<compile_context>
chip_gen: v7x
topology: tpu7x:2x2x1
jax: 0.10.0
libtpu: 0.0.40
codegen_flags: <defaults>
</compile_context>

<pallas_src>
import jax
import jax.numpy as jnp
import numpy as np
from jax import lax
from jax.experimental import pallas as pl
from jax.experimental.pallas import tpu as pltpu


# ----------------------------------------------------------------------------
# In-kernel helper: nearest 2x upsample (H, W) + 1-px zero halo, materialized
# with ONE dense store into a bf16 VMEM pad buffer, then im2col (9 taps
# concatenated on the lane/channel axis).
# ----------------------------------------------------------------------------
def _upsample2x_pad_im2col(x, pad_ref):
    """x: (Bb, H, W, Cin) value (f32 or bf16); pad_ref: (Bb, 2H+2, 2W+2, Cin)
    bf16 VMEM scratch.  Returns bf16 im2col patch (Bb, 2H*2W, 9*Cin)."""
    Bb, H, W, Cin = x.shape
    H2, W2 = 2 * H, 2 * W

    # Cast once, BEFORE upsampling (4x fewer elements than casting after).
    xb = x.astype(pad_ref.dtype)

    # H-duplication: broadcast + reshape touching only major dims (layout no-op).
    xh = jnp.broadcast_to(xb[:, :, None, :, :], (Bb, H, 2, W, Cin))
    xh = xh.reshape(Bb, H2, W, Cin)

    # W-duplication + left/right zero halo built as a VALUE (no per-column
    # masked stores), then top/bottom zero halo rows via a cheap major-dim
    # concat, then ONE dense full-slab store of the padded upsampled image.
    zcol = jnp.zeros((Bb, H2, 1, Cin), pad_ref.dtype)
    cols = [zcol]
    for j in range(W):                       # static, small W at these sizes
        c = xh[:, :, j:j + 1, :]             # (Bb, H2, 1, Cin)
        cols.append(c)
        cols.append(c)                       # each source column written twice
    cols.append(zcol)
    body = jnp.concatenate(cols, axis=2)     # (Bb, H2, W2+2, Cin)

    zrow = jnp.zeros((Bb, 1, W2 + 2, Cin), pad_ref.dtype)
    padded = jnp.concatenate([zrow, body, zrow], axis=1)  # (Bb, H2+2, W2+2, Cin)
    pad_ref[...] = padded                    # single lane/sublane-dense store

    # im2col: 9 shifted views concatenated along the channel (lane) axis.
    taps = [pad_ref[:, kh:kh + H2, kw:kw + W2, :]
            for kh in range(3) for kw in range(3)]
    patch = jnp.concatenate(taps, axis=3)    # (Bb, H2, W2, 9*Cin) bf16
    return patch.reshape(Bb, H2 * W2, 9 * Cin)


def _upconv_layer(x, w9_bf16, bias_f32, pad_ref):
    """upsample -> pad -> 3x3 conv as ONE MXU matmul (K = 9*Cin); f32 acc+bias.
    Returns (Bb, 2H, 2W, Cout) f32."""
    Bb, H, W, Cin = x.shape
    Cout = w9_bf16.shape[1]
    H2, W2 = 2 * H, 2 * W
    patch = _upsample2x_pad_im2col(x, pad_ref)               # (Bb, H2*W2, 9Cin)
    acc = jnp.dot(patch.reshape(Bb * H2 * W2, 9 * Cin), w9_bf16,
                  preferred_element_type=jnp.float32)        # (rows, Cout) f32
    acc = acc + bias_f32
    return acc.reshape(Bb, H2, W2, Cout)


def _upconv_last_lane_dense(x, w9t_bf16, bias_col_f32, pad_ref, o_ref):
    """Last layer, output kept lane-dense: (Cout=3, K) x (rows, K) -> (3, rows)
    so the store's last dim is rows (multiple of 128), not 3/128 lanes."""
    Bb, H, W, Cin = x.shape
    H2, W2 = 2 * H, 2 * W
    patch = _upsample2x_pad_im2col(x, pad_ref)               # (Bb, H2*W2, 9Cin)
    for bb in range(Bb):                                     # static tiny loop
        acc = lax.dot_general(
            w9t_bf16, patch[bb],
            dimension_numbers=(((1,), (1,)), ((), ())),      # contract on K
            preferred_element_type=jnp.float32)              # (3, H2*W2) f32
        o_ref[bb] = acc + bias_col_f32                       # lane-dense store


def _decoder_kernel(x_ref, w1_ref, b1_ref, w2_ref, b2_ref, w3t_ref, b3_ref,
                    o_ref, pad1_ref, pad2_ref, pad3_ref):
    x = x_ref[...]                                                   # (Bb, H,  W,  128) bf16
    a1 = _upconv_layer(x, w1_ref[...], b1_ref[...], pad1_ref)        # (Bb, 2H, 2W, 64) f32
    a2 = _upconv_layer(a1, w2_ref[...], b2_ref[...], pad2_ref)       # (Bb, 4H, 4W, 32) f32
    _upconv_last_lane_dense(a2, w3t_ref[...], b3_ref[...], pad3_ref, o_ref)


# ----------------------------------------------------------------------------
# Decoder parameters (deterministic init, mirrors nn.Conv3d shapes).
# Conv3d weight (Cout, Cin, 1, 3, 3) is stored as HWIO: (3, 3, Cin, Cout).
# ----------------------------------------------------------------------------
def init_decoder_params(key):
    def conv_init(key, cin, cout):
        kw_key, kb_key = jax.random.split(key)
        fan_in = cin * 3 * 3
        bound = 1.0 / np.sqrt(fan_in)
        w = jax.random.uniform(kw_key, (3, 3, cin, cout), jnp.float32, -bound, bound)
        b = jax.random.uniform(kb_key, (cout,), jnp.float32, -bound, bound)
        return w, b

    k1, k2, k3 = jax.random.split(key, 3)
    return {
        "conv1": conv_init(k1, 128, 64),
        "conv2": conv_init(k2, 64, 32),
        "conv3": conv_init(k3, 32, 3),
    }


# ----------------------------------------------------------------------------
# Decoder forward: NCDHW in, NCDHW out (like the PyTorch module).
# ----------------------------------------------------------------------------
@jax.jit
def decoder_forward(x_ncdhw, params):
    N, C, D, H, W = x_ncdhw.shape
    B = N * D
    x = jnp.transpose(x_ncdhw, (0, 2, 3, 4, 1)).reshape(B, H, W, C)
    x = x.astype(jnp.bfloat16)     # matmul operands are bf16 (f32 accumulate)

    def prep_w(w):                 # (3,3,Cin,Cout) HWIO -> (9*Cin, Cout) bf16
        kh, kw, cin, cout = w.shape
        return w.reshape(kh * kw * cin, cout).astype(jnp.bfloat16)

    w1 = prep_w(params["conv1"][0])
    b1 = params["conv1"][1].astype(jnp.float32).reshape(1, -1)
    w2 = prep_w(params["conv2"][0])
    b2 = params["conv2"][1].astype(jnp.float32).reshape(1, -1)
    w3t = prep_w(params["conv3"][0]).T          # (3, 9*32) for lane-dense output
    b3c = params["conv3"][1].astype(jnp.float32).reshape(-1, 1)   # (3, 1)

    # Grid sizing: ~4 steps so v7x (2 TensorCores, 'parallel' axis) gets >=2
    # pipelined steps per core; on single-core v5e/v6e the extra per-step
    # overhead (~0.35us) is negligible at these sizes.  bblk must divide B.
    target_steps = min(4, B)
    bblk = max(1, B // target_steps)
    while B % bblk:
        bblk -= 1
    assert bblk >= 1 and B % bblk == 0
    steps = B // bblk

    H3, W3 = 8 * H, 8 * W
    rows_out = H3 * W3
    c1o, c2o, c3o = w1.shape[1], w2.shape[1], w3t.shape[0]

    flops = 2 * B * ((2 * H) * (2 * W) * w1.shape[0] * c1o
                     + (4 * H) * (4 * W) * w2.shape[0] * c2o
                     + (8 * H) * (8 * W) * w3t.shape[1] * c3o)
    bytes_accessed = (x.size * 2 + B * c3o * rows_out * 4
                      + (w1.size + w2.size + w3t.size) * 2
                      + (b1.size + b2.size + b3c.size) * 4)

    y = pl.pallas_call(
        _decoder_kernel,
        out_shape=jax.ShapeDtypeStruct((B, c3o, rows_out), jnp.float32),
        grid_spec=pltpu.PrefetchScalarGridSpec(
            num_scalar_prefetch=0,
            grid=(steps,),
            in_specs=[
                pl.BlockSpec((bblk, H, W, C), lambda i: (i, 0, 0, 0)),
                pl.BlockSpec(w1.shape, lambda i: (0, 0)),   # VMEM-resident
                pl.BlockSpec(b1.shape, lambda i: (0, 0)),
                pl.BlockSpec(w2.shape, lambda i: (0, 0)),
                pl.BlockSpec(b2.shape, lambda i: (0, 0)),
                pl.BlockSpec(w3t.shape, lambda i: (0, 0)),
                pl.BlockSpec(b3c.shape, lambda i: (0, 0)),
            ],
            out_specs=pl.BlockSpec((bblk, c3o, rows_out), lambda i: (i, 0, 0)),
            scratch_shapes=[                                 # bf16 pad buffers
                pltpu.VMEM((bblk, 2 * H + 2, 2 * W + 2, C), jnp.bfloat16),
                pltpu.VMEM((bblk, 4 * H + 2, 4 * W + 2, c1o), jnp.bfloat16),
                pltpu.VMEM((bblk, 8 * H + 2, 8 * W + 2, c2o), jnp.bfloat16),
            ],
        ),
        compiler_params=pltpu.CompilerParams(
            dimension_semantics=("parallel",),
            vmem_limit_bytes=32 * 1024 * 1024),   # above v5e's 16 MiB default
        cost_estimate=pl.CostEstimate(flops=flops, transcendentals=0,
                                      bytes_accessed=bytes_accessed),
    )(x, w1, b1, w2, b2, w3t, b3c)

    y = y.reshape(N, D, c3o, H3, W3)
    return jnp.transpose(y, (0, 2, 1, 3, 4))      # back to NCDHW


# ----------------------------------------------------------------------------
# Pure-JAX reference (lax.conv) mirroring the kernel's bf16-operand / f32-acc
# precision, for a correctness check.
# ----------------------------------------------------------------------------
def _ref_upconv(x, w, b):
    x = jnp.repeat(jnp.repeat(x, 2, axis=1), 2, axis=2)       # nearest 2x
    y = lax.conv_general_dilated(
        x.astype(jnp.bfloat16), w.astype(jnp.bfloat16),
        window_strides=(1, 1), padding="SAME",
        dimension_numbers=("NHWC", "HWIO", "NHWC"),
        preferred_element_type=jnp.float32)
    return y + b.reshape(1, 1, 1, -1)


def decoder_forward_ref(x_ncdhw, params):
    N, C, D, H, W = x_ncdhw.shape
    x = jnp.transpose(x_ncdhw, (0, 2, 3, 4, 1)).reshape(N * D, H, W, C)
    x = x.astype(jnp.float32)
    x = _ref_upconv(x, *params["conv1"])
    x = _ref_upconv(x, *params["conv2"])
    x = _ref_upconv(x, *params["conv3"])
    Ho, Wo, Co = x.shape[1], x.shape[2], x.shape[3]
    x = x.reshape(N, D, Ho, Wo, Co)
    return jnp.transpose(x, (0, 4, 1, 2, 3))


if __name__ == "__main__":
    key = jax.random.PRNGKey(0)
    pkey, xkey = jax.random.split(key)

    params = init_decoder_params(pkey)

    # Small NCDHW input consistent with the module: 128 input channels.
    N, C, D, H, W = 2, 128, 2, 4, 4
    x = jax.random.normal(xkey, (N, C, D, H, W), jnp.float32)

    out = jax.block_until_ready(decoder_forward(x, params))
    assert out.shape == (N, 3, D, H * 8, W * 8), out.shape

    ref = jax.block_until_ready(decoder_forward_ref(x, params))
    np.testing.assert_allclose(np.asarray(out), np.asarray(ref),
                               rtol=2e-2, atol=2e-2)

    print("KERNEL_OK")
</pallas_src>

<mosaic_0001>
module attributes {stable_mosaic.version = 11 : i64} {
  func.func @_decoder_kernel(%arg0: i32, %arg1: memref<1x4x4x128xbf16, #tpu.memory_space<vmem>>, %arg2: memref<1152x64xbf16, #tpu.memory_space<vmem>>, %arg3: memref<1x64xf32, #tpu.memory_space<vmem>>, %arg4: memref<576x32xbf16, #tpu.memory_space<vmem>>, %arg5: memref<1x32xf32, #tpu.memory_space<vmem>>, %arg6: memref<3x288xbf16, #tpu.memory_space<vmem>>, %arg7: memref<3x1xf32, #tpu.memory_space<vmem>>, %arg8: memref<1x3x1024xf32, #tpu.memory_space<vmem>>, %arg9: memref<1x10x10x128xbf16, #tpu.memory_space<vmem>>, %arg10: memref<1x18x18x64xbf16, #tpu.memory_space<vmem>>, %arg11: memref<1x34x34x32xbf16, #tpu.memory_space<vmem>>) attributes {dimension_semantics = [#tpu.dimension_semantics<parallel>], iteration_bounds = array<i64: 4>, scalar_prefetch = 0 : i64, scratch_operands = 3 : i64, tpu.core_type = #tpu.core_type<tc>, window_params = [{transform_indices = @transform_0, window_bounds = array<i64: 1, 4, 4, 128>}, {pipeline_mode = #tpu.pipeline_mode<synchronous>, transform_indices = @transform_1, window_bounds = array<i64: 1152, 64>}, {pipeline_mode = #tpu.pipeline_mode<synchronous>, transform_indices = @transform_2, window_bounds = array<i64: 1, 64>}, {pipeline_mode = #tpu.pipeline_mode<synchronous>, transform_indices = @transform_3, window_bounds = array<i64: 576, 32>}, {pipeline_mode = #tpu.pipeline_mode<synchronous>, transform_indices = @transform_4, window_bounds = array<i64: 1, 32>}, {pipeline_mode = #tpu.pipeline_mode<synchronous>, transform_indices = @transform_5, window_bounds = array<i64: 3, 288>}, {pipeline_mode = #tpu.pipeline_mode<synchronous>, transform_indices = @transform_6, window_bounds = array<i64: 3, 1>}, {transform_indices = @transform_7, window_bounds = array<i64: 1, 3, 1024>}]} {
    %c0 = arith.constant 0 : index
    %c0_0 = arith.constant 0 : index
    %c0_1 = arith.constant 0 : index
    %c0_2 = arith.constant 0 : index
    %0 = vector.load %arg1[%c0, %c0_0, %c0_1, %c0_2] : memref<1x4x4x128xbf16, #tpu.memory_space<vmem>>, vector<1x4x4x128xbf16>
    %c0_3 = arith.constant 0 : index
    %c0_4 = arith.constant 0 : index
    %1 = vector.load %arg2[%c0_3, %c0_4] : memref<1152x64xbf16, #tpu.memory_space<vmem>>, vector<1152x64xbf16>
    %c0_5 = arith.constant 0 : index
    %c0_6 = arith.constant 0 : index
    %2 = vector.load %arg3[%c0_5, %c0_6] : memref<1x64xf32, #tpu.memory_space<vmem>>, vector<1x64xf32>
    %3 = vector.shape_cast %0 : vector<1x4x4x128xbf16> to vector<1x4x1x4x128xbf16>
    %4 = vector.shape_cast %3 : vector<1x4x1x4x128xbf16> to vector<1x4x1x4x128xbf16>
    %5 = vector.broadcast %4 : vector<1x4x1x4x128xbf16> to vector<1x4x2x4x128xbf16>
    %6 = vector.shape_cast %5 : vector<1x4x2x4x128xbf16> to vector<1x8x4x128xbf16>
    %cst = arith.constant 0.000000e+00 : bf16
    %7 = vector.broadcast %cst : bf16 to vector<1x8x1x128xbf16>
    %8 = vector.extract_strided_slice %6 {offsets = [0, 0, 0, 0], sizes = [1, 8, 1, 128], strides = [1, 1, 1, 1]} : vector<1x8x4x128xbf16> to vector<1x8x1x128xbf16>
    %9 = vector.extract_strided_slice %6 {offsets = [0, 0, 1, 0], sizes = [1, 8, 1, 128], strides = [1, 1, 1, 1]} : vector<1x8x4x128xbf16> to vector<1x8x1x128xbf16>
    %10 = vector.extract_strided_slice %6 {offsets = [0, 0, 2, 0], sizes = [1, 8, 1, 128], strides = [1, 1, 1, 1]} : vector<1x8x4x128xbf16> to vector<1x8x1x128xbf16>
    %11 = vector.extract_strided_slice %6 {offsets = [0, 0, 3, 0], sizes = [1, 8, 1, 128], strides = [1, 1, 1, 1]} : vector<1x8x4x128xbf16> to vector<1x8x1x128xbf16>
    %12 = tpu.concatenate %7, %8, %8, %9, %9, %10, %10, %11, %11, %7 in 2 : vector<1x8x1x128xbf16>, vector<1x8x1x128xbf16>, vector<1x8x1x128xbf16>, vector<1x8x1x128xbf16>, vector<1x8x1x128xbf16>, vector<1x8x1x128xbf16>, vector<1x8x1x128xbf16>, vector<1x8x1x128xbf16>, vector<1x8x1x128xbf16>, vector<1x8x1x128xbf16> -> vector<1x8x10x128xbf16>
    %cst_7 = arith.constant 0.000000e+00 : bf16
    %13 = vector.broadcast %cst_7 : bf16 to vector<1x1x10x128xbf16>
    %14 = tpu.concatenate %13, %12, %13 in 1 : vector<1x1x10x128xbf16>, vector<1x8x10x128xbf16>, vector<1x1x10x128xbf16> -> vector<1x10x10x128xbf16>
    %c0_8 = arith.constant 0 : index
    %c0_9 = arith.constant 0 : index
    %c0_10 = arith.constant 0 : index
    %c0_11 = arith.constant 0 : index
    %15 = vector.load %arg9[%c0_8, %c0_9, %c0_10, %c0_11] : memref<1x10x10x128xbf16, #tpu.memory_space<vmem>>, vector<1x10x10x128xbf16>
    tpu.vector_store %arg9[%c0_8, %c0_9, %c0_10, %c0_11], %14 {strides = array<i32>} : memref<1x10x10x128xbf16, #tpu.memory_space<vmem>>, vector<1x10x10x128xbf16>,
    %c0_12 = arith.constant 0 : index
    %c0_13 = arith.constant 0 : index
    %c0_14 = arith.constant 0 : index
    %c0_15 = arith.constant 0 : index
    %16 = vector.load %arg9[%c0_12, %c0_13, %c0_14, %c0_15] : memref<1x10x10x128xbf16, #tpu.memory_space<vmem>>, vector<1x8x8x128xbf16>
    %c0_16 = arith.constant 0 : index
    %c0_17 = arith.constant 0 : index
    %c1 = arith.constant 1 : index
    %c0_18 = arith.constant 0 : index
    %17 = vector.load %arg9[%c0_16, %c0_17, %c1, %c0_18] : memref<1x10x10x128xbf16, #tpu.memory_space<vmem>>, vector<1x8x8x128xbf16>
    %c0_19 = arith.constant 0 : index
    %c0_20 = arith.constant 0 : index
    %c2 = arith.constant 2 : index
    %c0_21 = arith.constant 0 : index
    %18 = vector.load %arg9[%c0_19, %c0_20, %c2, %c0_21] : memref<1x10x10x128xbf16, #tpu.memory_space<vmem>>, vector<1x8x8x128xbf16>
    %c0_22 = arith.constant 0 : index
    %c1_23 = arith.constant 1 : index
    %c0_24 = arith.constant 0 : index
    %c0_25 = arith.constant 0 : index
    %19 = vector.load %arg9[%c0_22, %c1_23, %c0_24, %c0_25] : memref<1x10x10x128xbf16, #tpu.memory_space<vmem>>, vector<1x8x8x128xbf16>
    %c0_26 = arith.constant 0 : index
    %c1_27 = arith.constant 1 : index
    %c1_28 = arith.constant 1 : index
    %c0_29 = arith.constant 0 : index
    %20 = vector.load %arg9[%c0_26, %c1_27, %c1_28, %c0_29] : memref<1x10x10x128xbf16, #tpu.memory_space<vmem>>, vector<1x8x8x128xbf16>
    %c0_30 = arith.constant 0 : index
    %c1_31 = arith.constant 1 : index
    %c2_32 = arith.constant 2 : index
    %c0_33 = arith.constant 0 : index
    %21 = vector.load %arg9[%c0_30, %c1_31, %c2_32, %c0_33] : memref<1x10x10x128xbf16, #tpu.memory_space<vmem>>, vector<1x8x8x128xbf16>
    %c0_34 = arith.constant 0 : index
    %c2_35 = arith.constant 2 : index
    %c0_36 = arith.constant 0 : index
    %c0_37 = arith.constant 0 : index
    %22 = vector.load %arg9[%c0_34, %c2_35, %c0_36, %c0_37] : memref<1x10x10x128xbf16, #tpu.memory_space<vmem>>, vector<1x8x8x128xbf16>
    %c0_38 = arith.constant 0 : index
    %c2_39 = arith.constant 2 : index
    %c1_40 = arith.constant 1 : index
    %c0_41 = arith.constant 0 : index
    %23 = vector.load %arg9[%c0_38, %c2_39, %c1_40, %c0_41] : memref<1x10x10x128xbf16, #tpu.memory_space<vmem>>, vector<1x8x8x128xbf16>
    %c0_42 = arith.constant 0 : index
    %c2_43 = arith.constant 2 : index
    %c2_44 = arith.constant 2 : index
    %c0_45 = arith.constant 0 : index
    %24 = vector.load %arg9[%c0_42, %c2_43, %c2_44, %c0_45] : memref<1x10x10x128xbf16, #tpu.memory_space<vmem>>, vector<1x8x8x128xbf16>
    %25 = tpu.concatenate %16, %17, %18, %19, %20, %21, %22, %23, %24 in 3 : vector<1x8x8x128xbf16>, vector<1x8x8x128xbf16>, vector<1x8x8x128xbf16>, vector<1x8x8x128xbf16>, vector<1x8x8x128xbf16>, vector<1x8x8x128xbf16>, vector<1x8x8x128xbf16>, vector<1x8x8x128xbf16>, vector<1x8x8x128xbf16> -> vector<1x8x8x1152xbf16>
    %26 = vector.shape_cast %25 : vector<1x8x8x1152xbf16> to vector<1x64x1152xbf16>
    %27 = vector.shape_cast %26 : vector<1x64x1152xbf16> to vector<64x1152xbf16>
    %cst_46 = arith.constant dense<0.000000e+00> : vector<64x64xf32>
    %28 = tpu.matmul %27, %1, %cst_46 {dimension_numbers = #tpu.dot_dimension_numbers<[1], [0], [0], [1], [0, 0, 1, 1], [], []>} : vector<64x1152xbf16>, vector<1152x64xbf16>, vector<64x64xf32> -> vector<64x64xf32>
    %29 = vector.broadcast %2 : vector<1x64xf32> to vector<64x64xf32>
    %30 = arith.addf %28, %29 : vector<64x64xf32>
    %31 = vector.shape_cast %30 : vector<64x64xf32> to vector<1x8x8x64xf32>
    %c0_47 = arith.constant 0 : index
    %c0_48 = arith.constant 0 : index
    %32 = vector.load %arg4[%c0_47, %c0_48] : memref<576x32xbf16, #tpu.memory_space<vmem>>, vector<576x32xbf16>
    %c0_49 = arith.constant 0 : index
    %c0_50 = arith.constant 0 : index
    %33 = vector.load %arg5[%c0_49, %c0_50] : memref<1x32xf32, #tpu.memory_space<vmem>>, vector<1x32xf32>
    %34 = arith.truncf %31 : vector<1x8x8x64xf32> to vector<1x8x8x64xbf16>
    %35 = vector.shape_cast %34 : vector<1x8x8x64xbf16> to vector<1x8x1x8x64xbf16>
    %36 = vector.shape_cast %35 : vector<1x8x1x8x64xbf16> to vector<1x8x1x8x64xbf16>
    %37 = vector.broadcast %36 : vector<1x8x1x8x64xbf16> to vector<1x8x2x8x64xbf16>
    %38 = vector.shape_cast %37 : vector<1x8x2x8x64xbf16> to vector<1x16x8x64xbf16>
    %cst_51 = arith.constant 0.000000e+00 : bf16
    %39 = vector.broadcast %cst_51 : bf16 to vector<1x16x1x64xbf16>
    %40 = vector.extract_strided_slice %38 {offsets = [0, 0, 0, 0], sizes = [1, 16, 1, 64], strides = [1, 1, 1, 1]} : vector<1x16x8x64xbf16> to vector<1x16x1x64xbf16>
    %41 = vector.extract_strided_slice %38 {offsets = [0, 0, 1, 0], sizes = [1, 16, 1, 64], strides = [1, 1, 1, 1]} : vector<1x16x8x64xbf16> to vector<1x16x1x64xbf16>
    %42 = vector.extract_strided_slice %38 {offsets = [0, 0, 2, 0], sizes = [1, 16, 1, 64], strides = [1, 1, 1, 1]} : vector<1x16x8x64xbf16> to vector<1x16x1x64xbf16>
    %43 = vector.extract_strided_slice %38 {offsets = [0, 0, 3, 0], sizes = [1, 16, 1, 64], strides = [1, 1, 1, 1]} : vector<1x16x8x64xbf16> to vector<1x16x1x64xbf16>
    %44 = vector.extract_strided_slice %38 {offsets = [0, 0, 4, 0], sizes = [1, 16, 1, 64], strides = [1, 1, 1, 1]} : vector<1x16x8x64xbf16> to vector<1x16x1x64xbf16>
    %45 = vector.extract_strided_slice %38 {offsets = [0, 0, 5, 0], sizes = [1, 16, 1, 64], strides = [1, 1, 1, 1]} : vector<1x16x8x64xbf16> to vector<1x16x1x64xbf16>
    %46 = vector.extract_strided_slice %38 {offsets = [0, 0, 6, 0], sizes = [1, 16, 1, 64], strides = [1, 1, 1, 1]} : vector<1x16x8x64xbf16> to vector<1x16x1x64xbf16>
    %47 = vector.extract_strided_slice %38 {offsets = [0, 0, 7, 0], sizes = [1, 16, 1, 64], strides = [1, 1, 1, 1]} : vector<1x16x8x64xbf16> to vector<1x16x1x64xbf16>
    %48 = tpu.concatenate %39, %40, %40, %41, %41, %42, %42, %43, %43, %44, %44, %45, %45, %46, %46, %47 in 2 : vector<1x16x1x64xbf16>, vector<1x16x1x64xbf16>, vector<1x16x1x64xbf16>, vector<1x16x1x64xbf16>, vector<1x16x1x64xbf16>, vector<1x16x1x64xbf16>, vector<1x16x1x64xbf16>, vector<1x16x1x64xbf16>, vector<1x16x1x64xbf16>, vector<1x16x1x64xbf16>, vector<1x16x1x64xbf16>, vector<1x16x1x64xbf16>, vector<1x16x1x64xbf16>, vector<1x16x1x64xbf16>, vector<1x16x1x64xbf16>, vector<1x16x1x64xbf16> -> vector<1x16x16x64xbf16>
    %49 = tpu.concatenate %47, %39 in 2 : vector<1x16x1x64xbf16>, vector<1x16x1x64xbf16> -> vector<1x16x2x64xbf16>
    %50 = tpu.concatenate %48, %49 in 2 : vector<1x16x16x64xbf16>, vector<1x16x2x64xbf16> -> vector<1x16x18x64xbf16>
    %cst_52 = arith.constant 0.000000e+00 : bf16
    %51 = vector.broadcast %cst_52 : bf16 to vector<1x1x18x64xbf16>
    %52 = tpu.concatenate %51, %50, %51 in 1 : vector<1x1x18x64xbf16>, vector<1x16x18x64xbf16>, vector<1x1x18x64xbf16> -> vector<1x18x18x64xbf16>
    %c0_53 = arith.constant 0 : index
    %c0_54 = arith.constant 0 : index
    %c0_55 = arith.constant 0 : index
    %c0_56 = arith.constant 0 : index
    %53 = vector.load %arg10[%c0_53, %c0_54, %c0_55, %c0_56] : memref<1x18x18x64xbf16, #tpu.memory_space<vmem>>, vector<1x18x18x64xbf16>
    tpu.vector_store %arg10[%c0_53, %c0_54, %c0_55, %c0_56], %52 {strides = array<i32>} : memref<1x18x18x64xbf16, #tpu.memory_space<vmem>>, vector<1x18x18x64xbf16>,
    %c0_57 = arith.constant 0 : index
    %c0_58 = arith.constant 0 : index
    %c0_59 = arith.constant 0 : index
    %c0_60 = arith.constant 0 : index
    %54 = vector.load %arg10[%c0_57, %c0_58, %c0_59, %c0_60] : memref<1x18x18x64xbf16, #tpu.memory_space<vmem>>, vector<1x16x16x64xbf16>
    %c0_61 = arith.constant 0 : index
    %c0_62 = arith.constant 0 : index
    %c1_63 = arith.constant 1 : index
    %c0_64 = arith.constant 0 : index
    %55 = vector.load %arg10[%c0_61, %c0_62, %c1_63, %c0_64] : memref<1x18x18x64xbf16, #tpu.memory_space<vmem>>, vector<1x16x16x64xbf16>
    %c0_65 = arith.constant 0 : index
    %c0_66 = arith.constant 0 : index
    %c2_67 = arith.constant 2 : index
    %c0_68 = arith.constant 0 : index
    %56 = vector.load %arg10[%c0_65, %c0_66, %c2_67, %c0_68] : memref<1x18x18x64xbf16, #tpu.memory_space<vmem>>, vector<1x16x16x64xbf16>
    %c0_69 = arith.constant 0 : index
    %c1_70 = arith.constant 1 : index
    %c0_71 = arith.constant 0 : index
    %c0_72 = arith.constant 0 : index
    %57 = vector.load %arg10[%c0_69, %c1_70, %c0_71, %c0_72] : memref<1x18x18x64xbf16, #tpu.memory_space<vmem>>, vector<1x16x16x64xbf16>
    %c0_73 = arith.constant 0 : index
    %c1_74 = arith.constant 1 : index
    %c1_75 = arith.constant 1 : index
    %c0_76 = arith.constant 0 : index
    %58 = vector.load %arg10[%c0_73, %c1_74, %c1_75, %c0_76] : memref<1x18x18x64xbf16, #tpu.memory_space<vmem>>, vector<1x16x16x64xbf16>
    %c0_77 = arith.constant 0 : index
    %c1_78 = arith.constant 1 : index
    %c2_79 = arith.constant 2 : index
    %c0_80 = arith.constant 0 : index
    %59 = vector.load %arg10[%c0_77, %c1_78, %c2_79, %c0_80] : memref<1x18x18x64xbf16, #tpu.memory_space<vmem>>, vector<1x16x16x64xbf16>
    %c0_81 = arith.constant 0 : index
    %c2_82 = arith.constant 2 : index
    %c0_83 = arith.constant 0 : index
    %c0_84 = arith.constant 0 : index
    %60 = vector.load %arg10[%c0_81, %c2_82, %c0_83, %c0_84] : memref<1x18x18x64xbf16, #tpu.memory_space<vmem>>, vector<1x16x16x64xbf16>
    %c0_85 = arith.constant 0 : index
    %c2_86 = arith.constant 2 : index
    %c1_87 = arith.constant 1 : index
    %c0_88 = arith.constant 0 : index
    %61 = vector.load %arg10[%c0_85, %c2_86, %c1_87, %c0_88] : memref<1x18x18x64xbf16, #tpu.memory_space<vmem>>, vector<1x16x16x64xbf16>
    %c0_89 = arith.constant 0 : index
    %c2_90 = arith.constant 2 : index
    %c2_91 = arith.constant 2 : index
    %c0_92 = arith.constant 0 : index
    %62 = vector.load %arg10[%c0_89, %c2_90, %c2_91, %c0_92] : memref<1x18x18x64xbf16, #tpu.memory_space<vmem>>, vector<1x16x16x64xbf16>
    %63 = tpu.concatenate %54, %55, %56, %57, %58, %59, %60, %61, %62 in 3 : vector<1x16x16x64xbf16>, vector<1x16x16x64xbf16>, vector<1x16x16x64xbf16>, vector<1x16x16x64xbf16>, vector<1x16x16x64xbf16>, vector<1x16x16x64xbf16>, vector<1x16x16x64xbf16>, vector<1x16x16x64xbf16>, vector<1x16x16x64xbf16> -> vector<1x16x16x576xbf16>
    %64 = vector.shape_cast %63 : vector<1x16x16x576xbf16> to vector<1x256x576xbf16>
    %65 = vector.shape_cast %64 : vector<1x256x576xbf16> to vector<256x576xbf16>
    %cst_93 = arith.constant dense<0.000000e+00> : vector<256x32xf32>
    %66 = tpu.matmul %65, %32, %cst_93 {dimension_numbers = #tpu.dot_dimension_numbers<[1], [0], [0], [1], [0, 0, 1, 1], [], []>} : vector<256x576xbf16>, vector<576x32xbf16>, vector<256x32xf32> -> vector<256x32xf32>
    %67 = vector.broadcast %33 : vector<1x32xf32> to vector<256x32xf32>
    %68 = arith.addf %66, %67 : vector<256x32xf32>
    %69 = vector.shape_cast %68 : vector<256x32xf32> to vector<1x16x16x32xf32>
    %c0_94 = arith.constant 0 : index
    %c0_95 = arith.constant 0 : index
    %70 = vector.load %arg6[%c0_94, %c0_95] : memref<3x288xbf16, #tpu.memory_space<vmem>>, vector<3x288xbf16>
    %c0_96 = arith.constant 0 : index
    %c0_97 = arith.constant 0 : index
    %71 = vector.load %arg7[%c0_96, %c0_97] : memref<3x1xf32, #tpu.memory_space<vmem>>, vector<3x1xf32>
    %72 = arith.truncf %69 : vector<1x16x16x32xf32> to vector<1x16x16x32xbf16>
    %73 = vector.shape_cast %72 : vector<1x16x16x32xbf16> to vector<1x16x1x16x32xbf16>
    %74 = vector.shape_cast %73 : vector<1x16x1x16x32xbf16> to vector<1x16x1x16x32xbf16>
    %75 = vector.broadcast %74 : vector<1x16x1x16x32xbf16> to vector<1x16x2x16x32xbf16>
    %76 = vector.shape_cast %75 : vector<1x16x2x16x32xbf16> to vector<1x32x16x32xbf16>
    %cst_98 = arith.constant 0.000000e+00 : bf16
    %77 = vector.broadcast %cst_98 : bf16 to vector<1x32x1x32xbf16>
    %78 = vector.extract_strided_slice %76 {offsets = [0, 0, 0, 0], sizes = [1, 32, 1, 32], strides = [1, 1, 1, 1]} : vector<1x32x16x32xbf16> to vector<1x32x1x32xbf16>
    %79 = vector.extract_strided_slice %76 {offsets = [0, 0, 1, 0], sizes = [1, 32, 1, 32], strides = [1, 1, 1, 1]} : vector<1x32x16x32xbf16> to vector<1x32x1x32xbf16>
    %80 = vector.extract_strided_slice %76 {offsets = [0, 0, 2, 0], sizes = [1, 32, 1, 32], strides = [1, 1, 1, 1]} : vector<1x32x16x32xbf16> to vector<1x32x1x32xbf16>
    %81 = vector.extract_strided_slice %76 {offsets = [0, 0, 3, 0], sizes = [1, 32, 1, 32], strides = [1, 1, 1, 1]} : vector<1x32x16x32xbf16> to vector<1x32x1x32xbf16>
    %82 = vector.extract_strided_slice %76 {offsets = [0, 0, 4, 0], sizes = [1, 32, 1, 32], strides = [1, 1, 1, 1]} : vector<1x32x16x32xbf16> to vector<1x32x1x32xbf16>
    %83 = vector.extract_strided_slice %76 {offsets = [0, 0, 5, 0], sizes = [1, 32, 1, 32], strides = [1, 1, 1, 1]} : vector<1x32x16x32xbf16> to vector<1x32x1x32xbf16>
    %84 = vector.extract_strided_slice %76 {offsets = [0, 0, 6, 0], sizes = [1, 32, 1, 32], strides = [1, 1, 1, 1]} : vector<1x32x16x32xbf16> to vector<1x32x1x32xbf16>
    %85 = vector.extract_strided_slice %76 {offsets = [0, 0, 7, 0], sizes = [1, 32, 1, 32], strides = [1, 1, 1, 1]} : vector<1x32x16x32xbf16> to vector<1x32x1x32xbf16>
    %86 = vector.extract_strided_slice %76 {offsets = [0, 0, 8, 0], sizes = [1, 32, 1, 32], strides = [1, 1, 1, 1]} : vector<1x32x16x32xbf16> to vector<1x32x1x32xbf16>
    %87 = vector.extract_strided_slice %76 {offsets = [0, 0, 9, 0], sizes = [1, 32, 1, 32], strides = [1, 1, 1, 1]} : vector<1x32x16x32xbf16> to vector<1x32x1x32xbf16>
    %88 = vector.extract_strided_slice %76 {offsets = [0, 0, 10, 0], sizes = [1, 32, 1, 32], strides = [1, 1, 1, 1]} : vector<1x32x16x32xbf16> to vector<1x32x1x32xbf16>
    %89 = vector.extract_strided_slice %76 {offsets = [0, 0, 11, 0], sizes = [1, 32, 1, 32], strides = [1, 1, 1, 1]} : vector<1x32x16x32xbf16> to vector<1x32x1x32xbf16>
    %90 = vector.extract_strided_slice %76 {offsets = [0, 0, 12, 0], sizes = [1, 32, 1, 32], strides = [1, 1, 1, 1]} : vector<1x32x16x32xbf16> to vector<1x32x1x32xbf16>
    %91 = vector.extract_strided_slice %76 {offsets = [0, 0, 13, 0], sizes = [1, 32, 1, 32], strides = [1, 1, 1, 1]} : vector<1x32x16x32xbf16> to vector<1x32x1x32xbf16>
    %92 = vector.extract_strided_slice %76 {offsets = [0, 0, 14, 0], sizes = [1, 32, 1, 32], strides = [1, 1, 1, 1]} : vector<1x32x16x32xbf16> to vector<1x32x1x32xbf16>
    %93 = vector.extract_strided_slice %76 {offsets = [0, 0, 15, 0], sizes = [1, 32, 1, 32], strides = [1, 1, 1, 1]} : vector<1x32x16x32xbf16> to vector<1x32x1x32xbf16>
    %94 = tpu.concatenate %77, %78, %78, %79, %79, %80, %80, %81, %81, %82, %82, %83, %83, %84, %84, %85 in 2 : vector<1x32x1x32xbf16>, vector<1x32x1x32xbf16>, vector<1x32x1x32xbf16>, vector<1x32x1x32xbf16>, vector<1x32x1x32xbf16>, vector<1x32x1x32xbf16>, vector<1x32x1x32xbf16>, vector<1x32x1x32xbf16>, vector<1x32x1x32xbf16>, vector<1x32x1x32xbf16>, vector<1x32x1x32xbf16>, vector<1x32x1x32xbf16>, vector<1x32x1x32xbf16>, vector<1x32x1x32xbf16>, vector<1x32x1x32xbf16>, vector<1x32x1x32xbf16> -> vector<1x32x16x32xbf16>
    %95 = tpu.concatenate %85, %86, %86, %87, %87, %88, %88, %89, %89, %90, %90, %91, %91, %92, %92, %93 in 2 : vector<1x32x1x32xbf16>, vector<1x32x1x32xbf16>, vector<1x32x1x32xbf16>, vector<1x32x1x32xbf16>, vector<1x32x1x32xbf16>, vector<1x32x1x32xbf16>, vector<1x32x1x32xbf16>, vector<1x32x1x32xbf16>, vector<1x32x1x32xbf16>, vector<1x32x1x32xbf16>, vector<1x32x1x32xbf16>, vector<1x32x1x32xbf16>, vector<1x32x1x32xbf16>, vector<1x32x1x32xbf16>, vector<1x32x1x32xbf16>, vector<1x32x1x32xbf16> -> vector<1x32x16x32xbf16>
    %96 = tpu.concatenate %93, %77 in 2 : vector<1x32x1x32xbf16>, vector<1x32x1x32xbf16> -> vector<1x32x2x32xbf16>
    %97 = tpu.concatenate %94, %95, %96 in 2 : vector<1x32x16x32xbf16>, vector<1x32x16x32xbf16>, vector<1x32x2x32xbf16> -> vector<1x32x34x32xbf16>
    %cst_99 = arith.constant 0.000000e+00 : bf16
    %98 = vector.broadcast %cst_99 : bf16 to vector<1x1x34x32xbf16>
    %99 = tpu.concatenate %98, %97, %98 in 1 : vector<1x1x34x32xbf16>, vector<1x32x34x32xbf16>, vector<1x1x34x32xbf16> -> vector<1x34x34x32xbf16>
    %c0_100 = arith.constant 0 : index
    %c0_101 = arith.constant 0 : index
    %c0_102 = arith.constant 0 : index
    %c0_103 = arith.constant 0 : index
    %100 = vector.load %arg11[%c0_100, %c0_101, %c0_102, %c0_103] : memref<1x34x34x32xbf16, #tpu.memory_space<vmem>>, vector<1x34x34x32xbf16>
    tpu.vector_store %arg11[%c0_100, %c0_101, %c0_102, %c0_103], %99 {strides = array<i32>} : memref<1x34x34x32xbf16, #tpu.memory_space<vmem>>, vector<1x34x34x32xbf16>,
    %c0_104 = arith.constant 0 : index
    %c0_105 = arith.constant 0 : index
    %c0_106 = arith.constant 0 : index
    %c0_107 = arith.constant 0 : index
    %101 = vector.load %arg11[%c0_104, %c0_105, %c0_106, %c0_107] : memref<1x34x34x32xbf16, #tpu.memory_space<vmem>>, vector<1x32x32x32xbf16>
    %c0_108 = arith.constant 0 : index
    %c0_109 = arith.constant 0 : index
    %c1_110 = arith.constant 1 : index
    %c0_111 = arith.constant 0 : index
    %102 = vector.load %arg11[%c0_108, %c0_109, %c1_110, %c0_111] : memref<1x34x34x32xbf16, #tpu.memory_space<vmem>>, vector<1x32x32x32xbf16>
    %c0_112 = arith.constant 0 : index
    %c0_113 = arith.constant 0 : index
    %c2_114 = arith.constant 2 : index
    %c0_115 = arith.constant 0 : index
    %103 = vector.load %arg11[%c0_112, %c0_113, %c2_114, %c0_115] : memref<1x34x34x32xbf16, #tpu.memory_space<vmem>>, vector<1x32x32x32xbf16>
    %c0_116 = arith.constant 0 : index
    %c1_117 = arith.constant 1 : index
    %c0_118 = arith.constant 0 : index
    %c0_119 = arith.constant 0 : index
    %104 = vector.load %arg11[%c0_116, %c1_117, %c0_118, %c0_119] : memref<1x34x34x32xbf16, #tpu.memory_space<vmem>>, vector<1x32x32x32xbf16>
    %c0_120 = arith.constant 0 : index
    %c1_121 = arith.constant 1 : index
    %c1_122 = arith.constant 1 : index
    %c0_123 = arith.constant 0 : index
    %105 = vector.load %arg11[%c0_120, %c1_121, %c1_122, %c0_123] : memref<1x34x34x32xbf16, #tpu.memory_space<vmem>>, vector<1x32x32x32xbf16>
    %c0_124 = arith.constant 0 : index
    %c1_125 = arith.constant 1 : index
    %c2_126 = arith.constant 2 : index
    %c0_127 = arith.constant 0 : index
    %106 = vector.load %arg11[%c0_124, %c1_125, %c2_126, %c0_127] : memref<1x34x34x32xbf16, #tpu.memory_space<vmem>>, vector<1x32x32x32xbf16>
    %c0_128 = arith.constant 0 : index
    %c2_129 = arith.constant 2 : index
    %c0_130 = arith.constant 0 : index
    %c0_131 = arith.constant 0 : index
    %107 = vector.load %arg11[%c0_128, %c2_129, %c0_130, %c0_131] : memref<1x34x34x32xbf16, #tpu.memory_space<vmem>>, vector<1x32x32x32xbf16>
    %c0_132 = arith.constant 0 : index
    %c2_133 = arith.constant 2 : index
    %c1_134 = arith.constant 1 : index
    %c0_135 = arith.constant 0 : index
    %108 = vector.load %arg11[%c0_132, %c2_133, %c1_134, %c0_135] : memref<1x34x34x32xbf16, #tpu.memory_space<vmem>>, vector<1x32x32x32xbf16>
    %c0_136 = arith.constant 0 : index
    %c2_137 = arith.constant 2 : index
    %c2_138 = arith.constant 2 : index
    %c0_139 = arith.constant 0 : index
    %109 = vector.load %arg11[%c0_136, %c2_137, %c2_138, %c0_139] : memref<1x34x34x32xbf16, #tpu.memory_space<vmem>>, vector<1x32x32x32xbf16>
    %110 = tpu.concatenate %101, %102, %103, %104, %105, %106, %107, %108, %109 in 3 : vector<1x32x32x32xbf16>, vector<1x32x32x32xbf16>, vector<1x32x32x32xbf16>, vector<1x32x32x32xbf16>, vector<1x32x32x32xbf16>, vector<1x32x32x32xbf16>, vector<1x32x32x32xbf16>, vector<1x32x32x32xbf16>, vector<1x32x32x32xbf16> -> vector<1x32x32x288xbf16>
    %111 = vector.shape_cast %110 : vector<1x32x32x288xbf16> to vector<1x1024x288xbf16>
    %112 = vector.shape_cast %111 : vector<1x1024x288xbf16> to vector<1024x288xbf16>
    %cst_140 = arith.constant dense<0.000000e+00> : vector<3x1024xf32>
    %113 = tpu.matmul %70, %112, %cst_140 {dimension_numbers = #tpu.dot_dimension_numbers<[1], [1], [0], [0], [0, 0, 1, 0], [], []>} : vector<3x288xbf16>, vector<1024x288xbf16>, vector<3x1024xf32> -> vector<3x1024xf32>
    %114 = vector.broadcast %71 : vector<3x1xf32> to vector<3x1024xf32>
    %115 = arith.addf %113, %114 : vector<3x1024xf32>
    %c0_141 = arith.constant 0 : index
    %c0_142 = arith.constant 0 : index
    %c0_143 = arith.constant 0 : index
    %116 = vector.load %arg8[%c0_141, %c0_142, %c0_143] : memref<1x3x1024xf32, #tpu.memory_space<vmem>>, vector<1x3x1024xf32>
    %117 = vector.shape_cast %116 : vector<1x3x1024xf32> to vector<3x1024xf32>
    %118 = vector.shape_cast %115 : vector<3x1024xf32> to vector<1x3x1024xf32>
    tpu.vector_store %arg8[%c0_141, %c0_142, %c0_143], %118 {strides = array<i32>} : memref<1x3x1024xf32, #tpu.memory_space<vmem>>, vector<1x3x1024xf32>,
    return
  }
  func.func @transform_0(%arg0: i32) -> (i32, i32, i32, i32) {
    %c0_i32 = arith.constant 0 : i32
    %c0_i32_0 = arith.constant 0 : i32
    %c0_i32_1 = arith.constant 0 : i32
    %c0_i32_2 = arith.constant 0 : i32
    return %arg0, %c0_i32, %c0_i32_0, %c0_i32_1 : i32, i32, i32, i32
  }
  func.func @transform_1(%arg0: i32) -> (i32, i32) {
    %c0_i32 = arith.constant 0 : i32
    %c0_i32_0 = arith.constant 0 : i32
    %c0_i32_1 = arith.constant 0 : i32
    return %c0_i32, %c0_i32_0 : i32, i32
  }
  func.func @transform_2(%arg0: i32) -> (i32, i32) {
    %c0_i32 = arith.constant 0 : i32
    %c0_i32_0 = arith.constant 0 : i32
    %c0_i32_1 = arith.constant 0 : i32
    return %c0_i32, %c0_i32_0 : i32, i32
  }
  func.func @transform_3(%arg0: i32) -> (i32, i32) {
    %c0_i32 = arith.constant 0 : i32
    %c0_i32_0 = arith.constant 0 : i32
    %c0_i32_1 = arith.constant 0 : i32
    return %c0_i32, %c0_i32_0 : i32, i32
  }
  func.func @transform_4(%arg0: i32) -> (i32, i32) {
    %c0_i32 = arith.constant 0 : i32
    %c0_i32_0 = arith.constant 0 : i32
    %c0_i32_1 = arith.constant 0 : i32
    return %c0_i32, %c0_i32_0 : i32, i32
  }
  func.func @transform_5(%arg0: i32) -> (i32, i32) {
    %c0_i32 = arith.constant 0 : i32
    %c0_i32_0 = arith.constant 0 : i32
    %c0_i32_1 = arith.constant 0 : i32
    return %c0_i32, %c0_i32_0 : i32, i32
  }
  func.func @transform_6(%arg0: i32) -> (i32, i32) {
    %c0_i32 = arith.constant 0 : i32
    %c0_i32_0 = arith.constant 0 : i32
    %c0_i32_1 = arith.constant 0 : i32
    return %c0_i32, %c0_i32_0 : i32, i32
  }
  func.func @transform_7(%arg0: i32) -> (i32, i32, i32) {
    %c0_i32 = arith.constant 0 : i32
    %c0_i32_0 = arith.constant 0 : i32
    %c0_i32_1 = arith.constant 0 : i32
    return %arg0, %c0_i32, %c0_i32_0 : i32, i32, i32
  }
}

</mosaic_0001>

<llo_original>
// kernel: decoder_forward.1
$region0: #{decoder_forward.1}
  #allocation0 [shape = 'u32[]', space=smem, size = 0x4, offset = 0x4, fixed_abs, tag = 'smem constant byte address 0x4 - core index']
  #allocation1 [shape = 'u32[144,128]{1,0:T(1,128)}', space=vmem, size = 0x12000, scoped, tag = 'internal scratch']
  #allocation2 [shape = 'bf16[1,10,10,128]{3,2,1,0:T(8,128)(2,1)}', space=vmem, size = 0xa000, scoped, tag = 'scratch operand']
  #allocation3 [shape = 'bf16[1,18,18,64]{3,2,1,0:T(8,128)(2,1)}', space=vmem, size = 0x1b000, scoped, tag = 'scratch operand']
  #allocation4 [shape = 'bf16[1,34,34,32]{3,2,1,0:T(8,128)(2,1)}', space=vmem, size = 0x55000, scoped, tag = 'scratch operand']
  %s0 = inlined_call_operand.vmem [shape: bf16[4,4,4,128], index: 0, kind: input, shape index: {}]
  %s1 = inlined_call_operand.vmem [shape: bf16[1152,64], index: 1, kind: input, shape index: {}]
  %s2 = inlined_call_operand.vmem [shape: f32[1,64], index: 2, kind: input, shape index: {}]
  %s3 = inlined_call_operand.vmem [shape: bf16[576,32], index: 3, kind: input, shape index: {}]
  %s4 = inlined_call_operand.vmem [shape: f32[1,32], index: 4, kind: input, shape index: {}]
  %s5 = inlined_call_operand.vmem [shape: bf16[3,288], index: 5, kind: input, shape index: {}]
  %s6 = inlined_call_operand.vmem [shape: f32[3,1], index: 6, kind: input, shape index: {}]
  %s7 = inlined_call_operand.vmem [shape: f32[4,3,1024], index: 7, kind: output, shape index: {}]
  %s8 = sld [smem:[#allocation0]]
  $region61: #{decoder_forward.1} parent=0
    _
  %s10 = ssub.s32 1, %s8
  %s11 = scalar_select 0, %s10, %s8
  loop: start=0, step=1, limit=6
  $region2: #{decoder_forward.1} parent=0 // loop_pre_header
    _
  $region3: #{decoder_forward.1} parent=0 // loop_header
    %s13 = sphi 0, %s17
    %p14 = scmp.ge.s32.totalorder %s13, 6
    %s23 = sphi 0, %s25
    %s26 = sphi 0, %s23
    %s27 = sphi 0, %s26
    %s43 = sphi 0, %s27
    %s47 = sphi 0, %s47
    %s49 = sphi 0, %s47
    %s50 = sphi 0, %s49
    %s64 = sphi 0, %s50
    %s68 = sphi 0, %s68
    %s70 = sphi 0, %s68
    %s71 = sphi 0, %s70
    %s85 = sphi 0, %s71
    %s89 = sphi 0, %s89
    %s91 = sphi 0, %s89
    %s92 = sphi 0, %s91
    %s106 = sphi 0, %s92
    %s110 = sphi 0, %s110
    %s112 = sphi 0, %s110
    %s113 = sphi 0, %s112
    %s127 = sphi 0, %s113
    %s131 = sphi 0, %s131
    %s133 = sphi 0, %s131
    %s134 = sphi 0, %s133
    %s148 = sphi 0, %s134
    %s152 = sphi 0, %s152
    %s154 = sphi 0, %s152
    %s155 = sphi 0, %s154
    %s169 = sphi 0, %s155
    %s175 = sphi 0, %s177
    %s178 = sphi 0, %s175
    %s179 = sphi 0, %s178
    %s195 = sphi 0, %s179
  $region4: #{decoder_forward.1} parent=0 // loop_header_branch
    %16 = sbr.rel (%p14) target = $region8
  $region5: #{decoder_forward.1} parent=0 // loop_body
    %s18 = ssub.s32 %s13, 1
    %s19 = ssub.s32 %s13, 2
    %s20 = sadd.s32 %s13, 1
    %s21 = ssub.s32 %s13, %s20
    %p22 = scmp.eq.s32.totalorder %s21, 0
    %s24 = sadd.s32 %s23, 1
    %s25 = scalar_select %p22, %s23, %s24
    %p28 = pneg %p22
    %p29 = scmp.eq.s32.totalorder %s13, 3
    %p30 = por %p28, %p29
    %p31 = scmp.ne.s32.totalorder %s23, %s26
    %p32 = scmp.eq.s32.totalorder %s13, 0
    %p33 = por %p31, %p32
    %p34 = scmp.ne.s32.totalorder %s23, %s26
    %p35 = scmp.eq.s32.totalorder %s18, 3
    %p36 = por %p34, %p35
    %p37 = scmp.ne.s32.totalorder %s26, %s27
    %p38 = scmp.eq.s32.totalorder %s18, 0
    %p39 = por %p37, %p38
    %p40 = scmp.ne.s32.totalorder %s26, %s27
    %p41 = scmp.eq.s32.totalorder %s19, 3
    %p42 = por %p40, %p41
    %p44 = scmp.ne.s32.totalorder %s27, %s43
    %p45 = scmp.eq.s32.totalorder %s19, 0
    %p46 = por %p44, %p45
    %s48 = sadd.s32 %s47, 1
    %p51 = scmp.eq.s32.totalorder %s13, 3
    %p52 = scmp.ne.s32.totalorder %s47, %s49
    %p53 = scmp.eq.s32.totalorder %s13, 0
    %p54 = por %p52, %p53
    %p55 = scmp.ne.s32.totalorder %s47, %s49
    %p56 = scmp.eq.s32.totalorder %s18, 3
    %p57 = por %p55, %p56
    %p58 = scmp.ne.s32.totalorder %s49, %s50
    %p59 = scmp.eq.s32.totalorder %s18, 0
    %p60 = por %p58, %p59
    %p61 = scmp.ne.s32.totalorder %s49, %s50
    %p62 = scmp.eq.s32.totalorder %s19, 3
    %p63 = por %p61, %p62
    %p65 = scmp.ne.s32.totalorder %s50, %s64
    %p66 = scmp.eq.s32.totalorder %s19, 0
    %p67 = por %p65, %p66
    %s69 = sadd.s32 %s68, 1
    %p72 = scmp.eq.s32.totalorder %s13, 3
    %p73 = scmp.ne.s32.totalorder %s68, %s70
    %p74 = scmp.eq.s32.totalorder %s13, 0
    %p75 = por %p73, %p74
    %p76 = scmp.ne.s32.totalorder %s68, %s70
    %p77 = scmp.eq.s32.totalorder %s18, 3
    %p78 = por %p76, %p77
    %p79 = scmp.ne.s32.totalorder %s70, %s71
    %p80 = scmp.eq.s32.totalorder %s18, 0
    %p81 = por %p79, %p80
    %p82 = scmp.ne.s32.totalorder %s70, %s71
    %p83 = scmp.eq.s32.totalorder %s19, 3
    %p84 = por %p82, %p83
    %p86 = scmp.ne.s32.totalorder %s71, %s85
    %p87 = scmp.eq.s32.totalorder %s19, 0
    %p88 = por %p86, %p87
    %s90 = sadd.s32 %s89, 1
    %p93 = scmp.eq.s32.totalorder %s13, 3
    %p94 = scmp.ne.s32.totalorder %s89, %s91
    %p95 = scmp.eq.s32.totalorder %s13, 0
    %p96 = por %p94, %p95
    %p97 = scmp.ne.s32.totalorder %s89, %s91
    %p98 = scmp.eq.s32.totalorder %s18, 3
    %p99 = por %p97, %p98
    %p100 = scmp.ne.s32.totalorder %s91, %s92
    %p101 = scmp.eq.s32.totalorder %s18, 0
    %p102 = por %p100, %p101
    %p103 = scmp.ne.s32.totalorder %s91, %s92
    %p104 = scmp.eq.s32.totalorder %s19, 3
    %p105 = por %p103, %p104
    %p107 = scmp.ne.s32.totalorder %s92, %s106
    %p108 = scmp.eq.s32.totalorder %s19, 0
    %p109 = por %p107, %p108
    %s111 = sadd.s32 %s110, 1
    %p114 = scmp.eq.s32.totalorder %s13, 3
    %p115 = scmp.ne.s32.totalorder %s110, %s112
    %p116 = scmp.eq.s32.totalorder %s13, 0
    %p117 = por %p115, %p116
    %p118 = scmp.ne.s32.totalorder %s110, %s112
    %p119 = scmp.eq.s32.totalorder %s18, 3
    %p120 = por %p118, %p119
    %p121 = scmp.ne.s32.totalorder %s112, %s113
    %p122 = scmp.eq.s32.totalorder %s18, 0
    %p123 = por %p121, %p122
    %p124 = scmp.ne.s32.totalorder %s112, %s113
    %p125 = scmp.eq.s32.totalorder %s19, 3
    %p126 = por %p124, %p125
    %p128 = scmp.ne.s32.totalorder %s113, %s127
    %p129 = scmp.eq.s32.totalorder %s19, 0
    %p130 = por %p128, %p129
    %s132 = sadd.s32 %s131, 1
    %p135 = scmp.eq.s32.totalorder %s13, 3
    %p136 = scmp.ne.s32.totalorder %s131, %s133
    %p137 = scmp.eq.s32.totalorder %s13, 0
    %p138 = por %p136, %p137
    %p139 = scmp.ne.s32.totalorder %s131, %s133
    %p140 = scmp.eq.s32.totalorder %s18, 3
    %p141 = por %p139, %p140
    %p142 = scmp.ne.s32.totalorder %s133, %s134
    %p143 = scmp.eq.s32.totalorder %s18, 0
    %p144 = por %p142, %p143
    %p145 = scmp.ne.s32.totalorder %s133, %s134
    %p146 = scmp.eq.s32.totalorder %s19, 3
    %p147 = por %p145, %p146
    %p149 = scmp.ne.s32.totalorder %s134, %s148
    %p150 = scmp.eq.s32.totalorder %s19, 0
    %p151 = por %p149, %p150
    %s153 = sadd.s32 %s152, 1
    %p156 = scmp.eq.s32.totalorder %s13, 3
    %p157 = scmp.ne.s32.totalorder %s152, %s154
    %p158 = scmp.eq.s32.totalorder %s13, 0
    %p159 = por %p157, %p158
    %p160 = scmp.ne.s32.totalorder %s152, %s154
    %p161 = scmp.eq.s32.totalorder %s18, 3
    %p162 = por %p160, %p161
    %p163 = scmp.ne.s32.totalorder %s154, %s155
    %p164 = scmp.eq.s32.totalorder %s18, 0
    %p165 = por %p163, %p164
    %p166 = scmp.ne.s32.totalorder %s154, %s155
    %p167 = scmp.eq.s32.totalorder %s19, 3
    %p168 = por %p166, %p167
    %p170 = scmp.ne.s32.totalorder %s155, %s169
    %p171 = scmp.eq.s32.totalorder %s19, 0
    %p172 = por %p170, %p171
    %s173 = ssub.s32 %s13, %s20
    %p174 = scmp.eq.s32.totalorder %s173, 0
    %s176 = sadd.s32 %s175, 1
    %s177 = scalar_select %p174, %s175, %s176
    %p180 = pneg %p174
    %p181 = scmp.eq.s32.totalorder %s13, 3
    %p182 = por %p180, %p181
    %p183 = scmp.ne.s32.totalorder %s175, %s178
    %p184 = scmp.eq.s32.totalorder %s13, 0
    %p185 = por %p183, %p184
    %p186 = scmp.ne.s32.totalorder %s175, %s178
    %p187 = scmp.eq.s32.totalorder %s18, 3
    %p188 = por %p186, %p187
    %p189 = scmp.ne.s32.totalorder %s178, %s179
    %p190 = scmp.eq.s32.totalorder %s18, 0
    %p191 = por %p189, %p190
    %p192 = scmp.ne.s32.totalorder %s178, %s179
    %p193 = scmp.eq.s32.totalorder %s19, 3
    %p194 = por %p192, %p193
    %p196 = scmp.ne.s32.totalorder %s179, %s195
    %p197 = scmp.eq.s32.totalorder %s19, 0
    %p198 = por %p196, %p197
    %p199 = scmp.le.s32.totalorder 1, %s13
    %p200 = scmp.lt.s32.totalorder %s13, 5
    %p201 = pnand %p199, %p200
    %p202 = pneg %p201
    // Predicated region
    $region9: #{decoder_forward.1} parent=5 // pred_check
      _
    $region10: #{decoder_forward.1} parent=5 // pred_check_branch
      %204 = sbr.rel (%p201) target = $region12
    $region11: #{decoder_forward.1} parent=5 // pred_region
      %s205 = ssub.s32 %s13, 1
      // Predicated region
      $region13: #{decoder_forward.1} parent=11 // pred_check
        %p206 = pneg %p60
      $region14: #{decoder_forward.1} parent=11 // pred_check_branch
        %208 = sbr.rel (%p206) target = $region16
      $region15: #{decoder_forward.1} parent=11 // pred_region
        _
      $region16: #{decoder_forward.1} parent=11 // pred_fallthru
        _
      // Predicated region
      $region17: #{decoder_forward.1} parent=11 // pred_check
        %p209 = pneg %p81
      $region18: #{decoder_forward.1} parent=11 // pred_check_branch
        %211 = sbr.rel (%p209) target = $region20
      $region19: #{decoder_forward.1} parent=11 // pred_region
        _
      $region20: #{decoder_forward.1} parent=11 // pred_fallthru
        _
      // Predicated region
      $region21: #{decoder_forward.1} parent=11 // pred_check
        %p212 = pneg %p102
      $region22: #{decoder_forward.1} parent=11 // pred_check_branch
        %214 = sbr.rel (%p212) target = $region24
      $region23: #{decoder_forward.1} parent=11 // pred_region
        _
      $region24: #{decoder_forward.1} parent=11 // pred_fallthru
        _
      // Predicated region
      $region25: #{decoder_forward.1} parent=11 // pred_check
        %p215 = pneg %p123
      $region26: #{decoder_forward.1} parent=11 // pred_check_branch
        %217 = sbr.rel (%p215) target = $region28
      $region27: #{decoder_forward.1} parent=11 // pred_region
        _
      $region28: #{decoder_forward.1} parent=11 // pred_fallthru
        _
      // Predicated region
      $region29: #{decoder_forward.1} parent=11 // pred_check
        %p218 = pneg %p144
      $region30: #{decoder_forward.1} parent=11 // pred_check_branch
        %220 = sbr.rel (%p218) target = $region32
      $region31: #{decoder_forward.1} parent=11 // pred_region
        _
      $region32: #{decoder_forward.1} parent=11 // pred_fallthru
        _
      // Predicated region
      $region33: #{decoder_forward.1} parent=11 // pred_check
        %p221 = pneg %p165
      $region34: #{decoder_forward.1} parent=11 // pred_check_branch
        %223 = sbr.rel (%p221) target = $region36
      $region35: #{decoder_forward.1} parent=11 // pred_region
        _
      $region36: #{decoder_forward.1} parent=11 // pred_fallthru
        _
    $region12: #{decoder_forward.1} parent=5 // pred_fallthru
      _
    %p224 = scmp.lt.s32.totalorder %s13, 4
    // Predicated region
    $region37: #{decoder_forward.1} parent=5 // pred_check
      %p225 = pneg %p224
    $region38: #{decoder_forward.1} parent=5 // pred_check_branch
      %227 = sbr.rel (%p225) target = $region40
    $region39: #{decoder_forward.1} parent=5 // pred_region
      // Predicated region
      $region41: #{decoder_forward.1} parent=39 // pred_check
        %p228 = pneg %p33
      $region42: #{decoder_forward.1} parent=39 // pred_check_branch
        %230 = sbr.rel (%p228) target = $region44
      $region43: #{decoder_forward.1} parent=39 // pred_region
        %p231 = scmp.lt.s32.totalorder %s13, 3
        %s232 = scalar_select %p231, %s13, 3
        %s233 = smul.addr %s232, 4
        %s234 = smul.addr %s233, 2
        %s235 = scalar_lea.vmem %s0, %s234
      $region44: #{decoder_forward.1} parent=39 // pred_fallthru
        _
    $region40: #{decoder_forward.1} parent=5 // pred_fallthru
      _
    %p236 = scmp.le.s32.totalorder 1, %s13
    %p237 = scmp.lt.s32.totalorder %s13, 5
    %p238 = pnand %p236, %p237
    %p239 = pneg %p238
    // Predicated region
    $region45: #{decoder_forward.1} parent=5 // pred_check
      _
    $region46: #{decoder_forward.1} parent=5 // pred_check_branch
      %241 = sbr.rel (%p238) target = $region48
    $region47: #{decoder_forward.1} parent=5 // pred_region
      %s242 = ssub.s32 %s13, 1
      %p243 = scmp.lt.s32.totalorder %s18, 3
      %s244 = scalar_select %p243, %s18, 3
      %s245 = smul.addr %s244, 4
      %s246 = smul.addr %s245, 2
      %s247 = scalar_lea.vmem %s0, %s246
      %p248 = pneg %p39
      %p249 = pneg %p36
      %p250 = pneg %p60
      %p251 = pneg %p57
      %p252 = pneg %p81
      %p253 = pneg %p78
      %p254 = pneg %p102
      %p255 = pneg %p99
      %p256 = pneg %p123
      %p257 = pneg %p120
      %p258 = pneg %p144
      %p259 = pneg %p141
      %p260 = pneg %p165
      %p261 = pneg %p162
      %p262 = pneg %p191
      %p263 = pneg %p188
      %p264 = scmp.lt.s32.totalorder %s18, 3
      %s265 = scalar_select %p264, %s18, 3
      %s266 = smul.addr %s265, 8
      %s267 = smul.addr %s266, 4
      %s268 = scalar_lea.vmem %s7, %s267
      %p269 = scmp.lt.s32.totalorder %s18, 3
      %s270 = scalar_select %p269, %s18, 3
      %s271 = smul.addr %s270, 4
      %s272 = smul.addr %s271, 2
      %s273 = scalar_lea.vmem %s0, %s272
      %p274 = scmp.lt.s32.totalorder %s18, 3
      %s275 = scalar_select %p274, %s18, 3
      %s276 = smul.addr %s275, 8
      %s277 = smul.addr %s276, 4
      %s278 = scalar_lea.vmem %s7, %s277
      %v280 = vld [vmem:[%s273] sm:$0x3]
      %v281 = vld [vmem:[%s273 + $0x2] sm:$0x3]
      %v282 = vld [vmem:[%s273 + $0x4] sm:$0x3]
      %v283 = vld [vmem:[%s273 + $0x6] sm:$0x3]
      %v284 = vld [vmem:[%s1] sm:$0xf]
      %v285 = vld [vmem:[%s1 + $0x4] sm:$0xf]
      %v286 = vld [vmem:[%s1 + $0x8] sm:$0xf]
      %v287 = vld [vmem:[%s1 + $0xc] sm:$0xf]
      %v288 = vld [vmem:[%s1 + $0x10] sm:$0xf]
      %v289 = vld [vmem:[%s1 + $0x14] sm:$0xf]
      %v290 = vld [vmem:[%s1 + $0x18] sm:$0xf]
      %v291 = vld [vmem:[%s1 + $0x1c] sm:$0xf]
      %v292 = vld [vmem:[%s1 + $0x20] sm:$0xf]
      %v293 = vld [vmem:[%s1 + $0x24] sm:$0xf]
      %v294 = vld [vmem:[%s1 + $0x28] sm:$0xf]
      %v295 = vld [vmem:[%s1 + $0x2c] sm:$0xf]
      %v296 = vld [vmem:[%s1 + $0x30] sm:$0xf]
      %v297 = vld [vmem:[%s1 + $0x34] sm:$0xf]
      %v298 = vld [vmem:[%s1 + $0x38] sm:$0xf]
      %v299 = vld [vmem:[%s1 + $0x3c] sm:$0xf]
      %v300 = vld [vmem:[%s1 + $0x40] sm:$0xf]
      %v301 = vld [vmem:[%s1 + $0x44] sm:$0xf]
      %v302 = vld [vmem:[%s1 + $0x48] sm:$0xf]
      %v303 = vld [vmem:[%s1 + $0x4c] sm:$0xf]
      %v304 = vld [vmem:[%s1 + $0x50] sm:$0xf]
      %v305 = vld [vmem:[%s1 + $0x54] sm:$0xf]
      %v306 = vld [vmem:[%s1 + $0x58] sm:$0xf]
      %v307 = vld [vmem:[%s1 + $0x5c] sm:$0xf]
      %v308 = vld [vmem:[%s1 + $0x60] sm:$0xf]
      %v309 = vld [vmem:[%s1 + $0x64] sm:$0xf]
      %v310 = vld [vmem:[%s1 + $0x68] sm:$0xf]
      %v311 = vld [vmem:[%s1 + $0x6c] sm:$0xf]
      %v312 = vld [vmem:[%s1 + $0x70] sm:$0xf]
      %v313 = vld [vmem:[%s1 + $0x74] sm:$0xf]
      %v314 = vld [vmem:[%s1 + $0x78] sm:$0xf]
      %v315 = vld [vmem:[%s1 + $0x7c] sm:$0xf]
      %v316 = vld [vmem:[%s1 + $0x80] sm:$0xf]
      %v317 = vld [vmem:[%s1 + $0x84] sm:$0xf]
      %v318 = vld [vmem:[%s1 + $0x88] sm:$0xf]
      %v319 = vld [vmem:[%s1 + $0x8c] sm:$0xf]
      %v320 = vld [vmem:[%s1 + $0x90] sm:$0xf]
      %v321 = vld [vmem:[%s1 + $0x94] sm:$0xf]
      %v322 = vld [vmem:[%s1 + $0x98] sm:$0xf]
      %v323 = vld [vmem:[%s1 + $0x9c] sm:$0xf]
      %v324 = vld [vmem:[%s1 + $0xa0] sm:$0xf]
      %v325 = vld [vmem:[%s1 + $0xa4] sm:$0xf]
      %v326 = vld [vmem:[%s1 + $0xa8] sm:$0xf]
      %v327 = vld [vmem:[%s1 + $0xac] sm:$0xf]
      %v328 = vld [vmem:[%s1 + $0xb0] sm:$0xf]
      %v329 = vld [vmem:[%s1 + $0xb4] sm:$0xf]
      %v330 = vld [vmem:[%s1 + $0xb8] sm:$0xf]
      %v331 = vld [vmem:[%s1 + $0xbc] sm:$0xf]
      %v332 = vld [vmem:[%s1 + $0xc0] sm:$0xf]
      %v333 = vld [vmem:[%s1 + $0xc4] sm:$0xf]
      %v334 = vld [vmem:[%s1 + $0xc8] sm:$0xf]
      %v335 = vld [vmem:[%s1 + $0xcc] sm:$0xf]
      %v336 = vld [vmem:[%s1 + $0xd0] sm:$0xf]
      %v337 = vld [vmem:[%s1 + $0xd4] sm:$0xf]
      %v338 = vld [vmem:[%s1 + $0xd8] sm:$0xf]
      %v339 = vld [vmem:[%s1 + $0xdc] sm:$0xf]
      %v340 = vld [vmem:[%s1 + $0xe0] sm:$0xf]
      %v341 = vld [vmem:[%s1 + $0xe4] sm:$0xf]
      %v342 = vld [vmem:[%s1 + $0xe8] sm:$0xf]
      %v343 = vld [vmem:[%s1 + $0xec] sm:$0xf]
      %v344 = vld [vmem:[%s1 + $0xf0] sm:$0xf]
      %v345 = vld [vmem:[%s1 + $0xf4] sm:$0xf]
      %v346 = vld [vmem:[%s1 + $0xf8] sm:$0xf]
      %v347 = vld [vmem:[%s1 + $0xfc] sm:$0xf]
      %v348 = vld [vmem:[%s1 + $0x100] sm:$0xf]
      %v349 = vld [vmem:[%s1 + $0x104] sm:$0xf]
      %v350 = vld [vmem:[%s1 + $0x108] sm:$0xf]
      %v351 = vld [vmem:[%s1 + $0x10c] sm:$0xf]
      %v352 = vld [vmem:[%s1 + $0x110] sm:$0xf]
      %v353 = vld [vmem:[%s1 + $0x114] sm:$0xf]
      %v354 = vld [vmem:[%s1 + $0x118] sm:$0xf]
      %v355 = vld [vmem:[%s1 + $0x11c] sm:$0xf]
      %v356 = vld [vmem:[%s1 + $0x120] sm:$0xf]
      %v357 = vld [vmem:[%s1 + $0x124] sm:$0xf]
      %v358 = vld [vmem:[%s1 + $0x128] sm:$0xf]
      %v359 = vld [vmem:[%s1 + $0x12c] sm:$0xf]
      %v360 = vld [vmem:[%s1 + $0x130] sm:$0xf]
      %v361 = vld [vmem:[%s1 + $0x134] sm:$0xf]
      %v362 = vld [vmem:[%s1 + $0x138] sm:$0xf]
      %v363 = vld [vmem:[%s1 + $0x13c] sm:$0xf]
      %v364 = vld [vmem:[%s1 + $0x140] sm:$0xf]
      %v365 = vld [vmem:[%s1 + $0x144] sm:$0xf]
      %v366 = vld [vmem:[%s1 + $0x148] sm:$0xf]
      %v367 = vld [vmem:[%s1 + $0x14c] sm:$0xf]
      %v368 = vld [vmem:[%s1 + $0x150] sm:$0xf]
      %v369 = vld [vmem:[%s1 + $0x154] sm:$0xf]
      %v370 = vld [vmem:[%s1 + $0x158] sm:$0xf]
      %v371 = vld [vmem:[%s1 + $0x15c] sm:$0xf]
      %v372 = vld [vmem:[%s1 + $0x160] sm:$0xf]
      %v373 = vld [vmem:[%s1 + $0x164] sm:$0xf]
      %v374 = vld [vmem:[%s1 + $0x168] sm:$0xf]
      %v375 = vld [vmem:[%s1 + $0x16c] sm:$0xf]
      %v376 = vld [vmem:[%s1 + $0x170] sm:$0xf]
      %v377 = vld [vmem:[%s1 + $0x174] sm:$0xf]
      %v378 = vld [vmem:[%s1 + $0x178] sm:$0xf]
      %v379 = vld [vmem:[%s1 + $0x17c] sm:$0xf]
      %v380 = vld [vmem:[%s1 + $0x180] sm:$0xf]
      %v381 = vld [vmem:[%s1 + $0x184] sm:$0xf]
      %v382 = vld [vmem:[%s1 + $0x188] sm:$0xf]
      %v383 = vld [vmem:[%s1 + $0x18c] sm:$0xf]
      %v384 = vld [vmem:[%s1 + $0x190] sm:$0xf]
      %v385 = vld [vmem:[%s1 + $0x194] sm:$0xf]
      %v386 = vld [vmem:[%s1 + $0x198] sm:$0xf]
      %v387 = vld [vmem:[%s1 + $0x19c] sm:$0xf]
      %v388 = vld [vmem:[%s1 + $0x1a0] sm:$0xf]
      %v389 = vld [vmem:[%s1 + $0x1a4] sm:$0xf]
      %v390 = vld [vmem:[%s1 + $0x1a8] sm:$0xf]
      %v391 = vld [vmem:[%s1 + $0x1ac] sm:$0xf]
      %v392 = vld [vmem:[%s1 + $0x1b0] sm:$0xf]
      %v393 = vld [vmem:[%s1 + $0x1b4] sm:$0xf]
      %v394 = vld [vmem:[%s1 + $0x1b8] sm:$0xf]
      %v395 = vld [vmem:[%s1 + $0x1bc] sm:$0xf]
      %v396 = vld [vmem:[%s1 + $0x1c0] sm:$0xf]
      %v397 = vld [vmem:[%s1 + $0x1c4] sm:$0xf]
      %v398 = vld [vmem:[%s1 + $0x1c8] sm:$0xf]
      %v399 = vld [vmem:[%s1 + $0x1cc] sm:$0xf]
      %v400 = vld [vmem:[%s1 + $0x1d0] sm:$0xf]
      %v401 = vld [vmem:[%s1 + $0x1d4] sm:$0xf]
      %v402 = vld [vmem:[%s1 + $0x1d8] sm:$0xf]
      %v403 = vld [vmem:[%s1 + $0x1dc] sm:$0xf]
      %v404 = vld [vmem:[%s1 + $0x1e0] sm:$0xf]
      %v405 = vld [vmem:[%s1 + $0x1e4] sm:$0xf]
      %v406 = vld [vmem:[%s1 + $0x1e8] sm:$0xf]
      %v407 = vld [vmem:[%s1 + $0x1ec] sm:$0xf]
      %v408 = vld [vmem:[%s1 + $0x1f0] sm:$0xf]
      %v409 = vld [vmem:[%s1 + $0x1f4] sm:$0xf]
      %v410 = vld [vmem:[%s1 + $0x1f8] sm:$0xf]
      %v411 = vld [vmem:[%s1 + $0x1fc] sm:$0xf]
      %v412 = vld [vmem:[%s1 + $0x200] sm:$0xf]
      %v413 = vld [vmem:[%s1 + $0x204] sm:$0xf]
      %v414 = vld [vmem:[%s1 + $0x208] sm:$0xf]
      %v415 = vld [vmem:[%s1 + $0x20c] sm:$0xf]
      %v416 = vld [vmem:[%s1 + $0x210] sm:$0xf]
      %v417 = vld [vmem:[%s1 + $0x214] sm:$0xf]
      %v418 = vld [vmem:[%s1 + $0x218] sm:$0xf]
      %v419 = vld [vmem:[%s1 + $0x21c] sm:$0xf]
      %v420 = vld [vmem:[%s1 + $0x220] sm:$0xf]
      %v421 = vld [vmem:[%s1 + $0x224] sm:$0xf]
      %v422 = vld [vmem:[%s1 + $0x228] sm:$0xf]
      %v423 = vld [vmem:[%s1 + $0x22c] sm:$0xf]
      %v424 = vld [vmem:[%s1 + $0x230] sm:$0xf]
      %v425 = vld [vmem:[%s1 + $0x234] sm:$0xf]
      %v426 = vld [vmem:[%s1 + $0x238] sm:$0xf]
      %v427 = vld [vmem:[%s1 + $0x23c] sm:$0xf]
      %v428 = vld [vmem:[%s2] sm:$0x1]
      %v434 = vunpack.c.l.s4 1983009808
      %v435 = vunpack.c.0.s8 %v434
      %v436 = vlaneseq
      %v437 = vshrl.u32 %v436, 7
      %v438 = vsub.s32 %v435, %v437
      %v439 = vrot.slane %v280, %v438
      %v441 = vunpack.c.l.s4 1983009808
      %v442 = vunpack.c.0.s8 %v441
      %v443 = vlaneseq
      %v444 = vshrl.u32 %v443, 7
      %v445 = vsub.s32 %v442, %v444
      %v446 = vrot.slane %v281, %v445
      %v448 = vunpack.c.l.s4 1983009808
      %v449 = vunpack.c.0.s8 %v448
      %v450 = vlaneseq
      %v451 = vshrl.u32 %v450, 7
      %v452 = vsub.s32 %v449, %v451
      %v453 = vrot.slane %v282, %v452
      %v455 = vunpack.c.l.s4 1983009808
      %v456 = vunpack.c.0.s8 %v455
      %v457 = vlaneseq
      %v458 = vshrl.u32 %v457, 7
      %v459 = vsub.s32 %v456, %v458
      %v460 = vrot.slane %v283, %v459
      %v462 = vshll.u32 %v439, 16
      %v465 = vshll.u32 %v446, 16
      %v468 = vshll.u32 %v453, 16
      %v471 = vshll.u32 %v460, 16
      %v477 = vrot.slane %v439, 7
      %v478 = vrot.slane %v446, 7
      %v479 = vrot.slane %v453, 7
      %v480 = vrot.slane %v460, 7
      %v485 = vshrl.u32 %v439, 16
      %v487 = vrot.slane %v485, 6
      %v488 = vshrl.u32 %v446, 16
      %v490 = vrot.slane %v488, 6
      %v491 = vshrl.u32 %v453, 16
      %v493 = vrot.slane %v491, 6
      %v494 = vshrl.u32 %v460, 16
      %v496 = vrot.slane %v494, 6
      %v497 = vrot.slane %v462, 7
      %v498 = vrot.slane %v465, 7
      %v499 = vrot.slane %v468, 7
      %v500 = vrot.slane %v471, 7
      %v505 = vcombine.low %v280, %v280
      %v507 = vunpack.c.l.s4 1983009808
      %v508 = vunpack.c.0.s8 %v507
      %v509 = vlaneseq
      %v510 = vshrl.u32 %v509, 7
      %v511 = vsub.s32 %v508, %v510
      %v512 = vrot.slane %v505, %v511
      %v513 = vcombine.low %v281, %v281
      %v515 = vunpack.c.l.s4 1983009808
      %v516 = vunpack.c.0.s8 %v515
      %v517 = vlaneseq
      %v518 = vshrl.u32 %v517, 7
      %v519 = vsub.s32 %v516, %v518
      %v520 = vrot.slane %v513, %v519
      %v521 = vcombine.low %v282, %v282
      %v523 = vunpack.c.l.s4 1983009808
      %v524 = vunpack.c.0.s8 %v523
      %v525 = vlaneseq
      %v526 = vshrl.u32 %v525, 7
      %v527 = vsub.s32 %v524, %v526
      %v528 = vrot.slane %v521, %v527
      %v529 = vcombine.low %v283, %v283
      %v531 = vunpack.c.l.s4 1983009808
      %v532 = vunpack.c.0.s8 %v531
      %v533 = vlaneseq
      %v534 = vshrl.u32 %v533, 7
      %v535 = vsub.s32 %v532, %v534
      %v536 = vrot.slane %v529, %v535
      %v541 = vrot.slane %v485, 5
      %v542 = vrot.slane %v488, 5
      %v543 = vrot.slane %v491, 5
      %v544 = vrot.slane %v494, 5
      %vm545 = vcmask 1040384
      %vm546 = vsmask.f32 256
      %vm547 = vmand %vm545, %vm546
      %v548 = vsel %vm547, 0, %v462
      %v549 = vsel %vm547, 0, %v465
      %v550 = vsel %vm547, 0, %v468
      %v551 = vsel %vm547, 0, %v471
      %vm552 = vcmask 1040384
      %v555 = vsel %vm552, %v548, %v477
      %v559 = vsel %vm552, %v549, %v478
      %v563 = vsel %vm552, %v550, %v479
      %v567 = vsel %vm552, %v551, %v480
      %vm569 = vcmask 1041408
      %vm570 = vsmask.f32 1280
      %vm571 = vmand %vm569, %vm570
      %v572 = vsel %vm571, %v555, %v477
      %v573 = vsel %vm571, %v559, %v478
      %v574 = vsel %vm571, %v563, %v479
      %v575 = vsel %vm571, %v567, %v480
      %vm576 = vcmask 1041408
      %v579 = vsel %vm576, %v572, %v487
      %v583 = vsel %vm576, %v573, %v490
      %v587 = vsel %vm576, %v574, %v493
      %v591 = vsel %vm576, %v575, %v496
      %vm593 = vcmask 1042432
      %vm594 = vsmask.f32 2304
      %vm595 = vmand %vm593, %vm594
      %v596 = vsel %vm595, %v579, %v497
      %v597 = vsel %vm595, %v583, %v498
      %v598 = vsel %vm595, %v587, %v499
      %v599 = vsel %vm595, %v591, %v500
      %vm600 = vcmask 1042432
      %v603 = vsel %vm600, %v596, %v512
      %v607 = vsel %vm600, %v597, %v520
      %v611 = vsel %vm600, %v598, %v528
      %v615 = vsel %vm600, %v599, %v536
      %vm617 = vcmask 1043456
      %vm618 = vsmask.f32 3328
      %vm619 = vmand %vm617, %vm618
      %v620 = vsel %vm619, %v603, %v512
      %v621 = vsel %vm619, %v607, %v520
      %v622 = vsel %vm619, %v611, %v528
      %v623 = vsel %vm619, %v615, %v536
      %vm624 = vcmask 1043456
      %v627 = vsel %vm624, %v620, %v541
      %v631 = vsel %vm624, %v621, %v542
      %v635 = vsel %vm624, %v622, %v543
      %v639 = vsel %vm624, %v623, %v544
      %vm641 = vcmask 1044480
      %vm642 = vsmask.f32 4352
      %vm643 = vmand %vm641, %vm642
      %v644 = vsel %vm643, %v627, 0
      %v645 = vsel %vm643, %v631, 0
      %v646 = vsel %vm643, %v635, 0
      %v647 = vsel %vm643, %v639, 0
      %v653 = vunpack.c.l.b16 0
      %v654 = vunpack.c.h.b16 0
      %v655 = vunpack.c.l.b16 %v644
      %v656 = vunpack.c.h.b16 %v644
      %v657 = vunpack.c.l.b16 %v645
      %v658 = vunpack.c.h.b16 %v645
      %v659 = vunpack.c.l.b16 %v646
      %v660 = vunpack.c.h.b16 %v646
      %v661 = vunpack.c.l.b16 %v647
      %v662 = vunpack.c.h.b16 %v647
      %v663 = vpack.c.b16 %v653, %v653
      %v664 = vpack.c.b16 %v654, %v654
      %v665 = vpack.c.b16 %v655, %v655
      %v666 = vpack.c.b16 %v656, %v656
      %v667 = vpack.c.b16 %v657, %v657
      %v668 = vpack.c.b16 %v658, %v658
      %v669 = vpack.c.b16 %v659, %v659
      %v670 = vpack.c.b16 %v660, %v660
      %v671 = vpack.c.b16 %v661, %v661
      %v672 = vpack.c.b16 %v662, %v662
      %683 = vst [vmem:[#allocation2] sm:$0xf] %v663
      %684 = vst [vmem:[#allocation2 + $0x4] sm:$0x1] %v664
      %685 = vst [vmem:[#allocation2 + $0x8] sm:$0xf] %v665
      %686 = vst [vmem:[#allocation2 + $0xc] sm:$0x1] %v666
      %687 = vst [vmem:[#allocation2 + $0x10] sm:$0xf] %v665
      %688 = vst [vmem:[#allocation2 + $0x14] sm:$0x1] %v666
      %689 = vst [vmem:[#allocation2 + $0x18] sm:$0xf] %v667
      %690 = vst [vmem:[#allocation2 + $0x1c] sm:$0x1] %v668
      %691 = vst [vmem:[#allocation2 + $0x20] sm:$0xf] %v667
      %692 = vst [vmem:[#allocation2 + $0x24] sm:$0x1] %v668
      %693 = vst [vmem:[#allocation2 + $0x28] sm:$0xf] %v669
      %694 = vst [vmem:[#allocation2 + $0x2c] sm:$0x1] %v670
      %695 = vst [vmem:[#allocation2 + $0x30] sm:$0xf] %v669
      %696 = vst [vmem:[#allocation2 + $0x34] sm:$0x1] %v670
      %697 = vst [vmem:[#allocation2 + $0x38] sm:$0xf] %v671
      %698 = vst [vmem:[#allocation2 + $0x3c] sm:$0x1] %v672
      %699 = vst [vmem:[#allocation2 + $0x40] sm:$0xf] %v671
      %700 = vst [vmem:[#allocation2 + $0x44] sm:$0x1] %v672
      %701 = vst [vmem:[#allocation2 + $0x48] sm:$0xf] %v663
      %702 = vst [vmem:[#allocation2 + $0x4c] sm:$0x1] %v664
      %v703 = vld [vmem:[#allocation2] sm:$0xf]
      %v704 = vld [vmem:[#allocation2 + $0x8] sm:$0xf]
      %v705 = vld [vmem:[#allocation2 + $0x10] sm:$0xf]
      %v706 = vld [vmem:[#allocation2 + $0x18] sm:$0xf]
      %v707 = vld [vmem:[#allocation2 + $0x20] sm:$0xf]
      %v708 = vld [vmem:[#allocation2 + $0x28] sm:$0xf]
      %v709 = vld [vmem:[#allocation2 + $0x30] sm:$0xf]
      %v710 = vld [vmem:[#allocation2 + $0x38] sm:$0xf]
      %v711 = vld [vmem:[#allocation2 + $0x4] sm:$0x1]
      %v712 = vld [vmem:[#allocation2 + $0xc] sm:$0x1]
      %v713 = vld [vmem:[#allocation2 + $0x14] sm:$0x1]
      %v714 = vld [vmem:[#allocation2 + $0x1c] sm:$0x1]
      %v715 = vld [vmem:[#allocation2 + $0x24] sm:$0x1]
      %v716 = vld [vmem:[#allocation2 + $0x2c] sm:$0x1]
      %v717 = vld [vmem:[#allocation2 + $0x34] sm:$0x1]
      %v718 = vld [vmem:[#allocation2 + $0x3c] sm:$0x1]
      %v719 = vld [vmem:[#allocation2] sm:$0xe]
      %v720 = vld [vmem:[#allocation2 + $0x8] sm:$0xe]
      %v721 = vld [vmem:[#allocation2 + $0x10] sm:$0xe]
      %v722 = vld [vmem:[#allocation2 + $0x18] sm:$0xe]
      %v723 = vld [vmem:[#allocation2 + $0x20] sm:$0xe]
      %v724 = vld [vmem:[#allocation2 + $0x28] sm:$0xe]
      %v725 = vld [vmem:[#allocation2 + $0x30] sm:$0xe]
      %v726 = vld [vmem:[#allocation2 + $0x38] sm:$0xe]
      %s727 = scalar_lea.vmem [#allocation2], 8
      %v728 = vld [vmem:[%s727] sm:$0xf]
      %v729 = vld [vmem:[%s727 + $0x8] sm:$0xf]
      %v730 = vld [vmem:[%s727 + $0x10] sm:$0xf]
      %v731 = vld [vmem:[%s727 + $0x18] sm:$0xf]
      %v732 = vld [vmem:[%s727 + $0x20] sm:$0xf]
      %v733 = vld [vmem:[%s727 + $0x28] sm:$0xf]
      %v734 = vld [vmem:[%s727 + $0x30] sm:$0xf]
      %v735 = vld [vmem:[%s727 + $0x38] sm:$0xf]
      %v736 = vld [vmem:[%s727 + $0x4] sm:$0x1]
      %v737 = vld [vmem:[%s727 + $0xc] sm:$0x1]
      %v738 = vld [vmem:[%s727 + $0x14] sm:$0x1]
      %v739 = vld [vmem:[%s727 + $0x1c] sm:$0x1]
      %v740 = vld [vmem:[%s727 + $0x24] sm:$0x1]
      %v741 = vld [vmem:[%s727 + $0x2c] sm:$0x1]
      %v742 = vld [vmem:[%s727 + $0x34] sm:$0x1]
      %v743 = vld [vmem:[%s727 + $0x3c] sm:$0x1]
      %v744 = vld [vmem:[%s727] sm:$0xe]
      %v745 = vld [vmem:[%s727 + $0x8] sm:$0xe]
      %v746 = vld [vmem:[%s727 + $0x10] sm:$0xe]
      %v747 = vld [vmem:[%s727 + $0x18] sm:$0xe]
      %v748 = vld [vmem:[%s727 + $0x20] sm:$0xe]
      %v749 = vld [vmem:[%s727 + $0x28] sm:$0xe]
      %v750 = vld [vmem:[%s727 + $0x30] sm:$0xe]
      %v751 = vld [vmem:[%s727 + $0x38] sm:$0xe]
      %s752 = scalar_lea.vmem [#allocation2], 16
      %v753 = vld [vmem:[%s752] sm:$0xf]
      %v754 = vld [vmem:[%s752 + $0x8] sm:$0xf]
      %v755 = vld [vmem:[%s752 + $0x10] sm:$0xf]
      %v756 = vld [vmem:[%s752 + $0x18] sm:$0xf]
      %v757 = vld [vmem:[%s752 + $0x20] sm:$0xf]
      %v758 = vld [vmem:[%s752 + $0x28] sm:$0xf]
      %v759 = vld [vmem:[%s752 + $0x30] sm:$0xf]
      %v760 = vld [vmem:[%s752 + $0x38] sm:$0xf]
      %v761 = vld [vmem:[%s752 + $0x4] sm:$0x1]
      %v762 = vld [vmem:[%s752 + $0xc] sm:$0x1]
      %v763 = vld [vmem:[%s752 + $0x14] sm:$0x1]
      %v764 = vld [vmem:[%s752 + $0x1c] sm:$0x1]
      %v765 = vld [vmem:[%s752 + $0x24] sm:$0x1]
      %v766 = vld [vmem:[%s752 + $0x2c] sm:$0x1]
      %v767 = vld [vmem:[%s752 + $0x34] sm:$0x1]
      %v768 = vld [vmem:[%s752 + $0x3c] sm:$0x1]
      %v769 = vld [vmem:[%s752] sm:$0xe]
      %v770 = vld [vmem:[%s752 + $0x8] sm:$0xe]
      %v771 = vld [vmem:[%s752 + $0x10] sm:$0xe]
      %v772 = vld [vmem:[%s752 + $0x18] sm:$0xe]
      %v773 = vld [vmem:[%s752 + $0x20] sm:$0xe]
      %v774 = vld [vmem:[%s752 + $0x28] sm:$0xe]
      %v775 = vld [vmem:[%s752 + $0x30] sm:$0xe]
      %v776 = vld [vmem:[%s752 + $0x38] sm:$0xe]
      %v793 = vunpack.c.l.b16 %v703
      %v794 = vunpack.c.l.b16 %v711
      %v795 = vunpack.c.l.b16 %v704
      %v796 = vunpack.c.l.b16 %v712
      %v797 = vunpack.c.l.b16 %v705
      %v798 = vunpack.c.l.b16 %v713
      %v799 = vunpack.c.l.b16 %v706
      %v800 = vunpack.c.l.b16 %v714
      %v801 = vunpack.c.l.b16 %v707
      %v802 = vunpack.c.l.b16 %v715
      %v803 = vunpack.c.l.b16 %v708
      %v804 = vunpack.c.l.b16 %v716
      %v805 = vunpack.c.l.b16 %v709
      %v806 = vunpack.c.l.b16 %v717
      %v807 = vunpack.c.l.b16 %v710
      %v808 = vunpack.c.l.b16 %v718
      %v809 = vpack.c.b16 %v794, %v793
      %v810 = vpack.c.b16 %v796, %v795
      %v811 = vpack.c.b16 %v798, %v797
      %v812 = vpack.c.b16 %v800, %v799
      %v813 = vpack.c.b16 %v802, %v801
      %v814 = vpack.c.b16 %v804, %v803
      %v815 = vpack.c.b16 %v806, %v805
      %v816 = vpack.c.b16 %v808, %v807
      %v818 = vshrl.u32 %v809, 16
      %v820 = vshll.u32 %v809, 16
      %v822 = vrot.slane %v820, 1
      %v823 = vor.u32 %v818, %v822
      %v825 = vshrl.u32 %v810, 16
      %v827 = vshll.u32 %v810, 16
      %v829 = vrot.slane %v827, 1
      %v830 = vor.u32 %v825, %v829
      %v832 = vshrl.u32 %v811, 16
      %v834 = vshll.u32 %v811, 16
      %v836 = vrot.slane %v834, 1
      %v837 = vor.u32 %v832, %v836
      %v839 = vshrl.u32 %v812, 16
      %v841 = vshll.u32 %v812, 16
      %v843 = vrot.slane %v841, 1
      %v844 = vor.u32 %v839, %v843
      %v846 = vshrl.u32 %v813, 16
      %v848 = vshll.u32 %v813, 16
      %v850 = vrot.slane %v848, 1
      %v851 = vor.u32 %v846, %v850
      %v853 = vshrl.u32 %v814, 16
      %v855 = vshll.u32 %v814, 16
      %v857 = vrot.slane %v855, 1
      %v858 = vor.u32 %v853, %v857
      %v860 = vshrl.u32 %v815, 16
      %v862 = vshll.u32 %v815, 16
      %v864 = vrot.slane %v862, 1
      %v865 = vor.u32 %v860, %v864
      %v867 = vshrl.u32 %v816, 16
      %v869 = vshll.u32 %v816, 16
      %v871 = vrot.slane %v869, 1
      %v872 = vor.u32 %v867, %v871
      %v881 = vunpack.c.l.b16 %v719
      %v882 = vunpack.c.l.b16 %v720
      %v883 = vunpack.c.l.b16 %v721
      %v884 = vunpack.c.l.b16 %v722
      %v885 = vunpack.c.l.b16 %v723
      %v886 = vunpack.c.l.b16 %v724
      %v887 = vunpack.c.l.b16 %v725
      %v888 = vunpack.c.l.b16 %v726
      %v889 = vpack.c.b16 %v794, %v881
      %v890 = vpack.c.b16 %v796, %v882
      %v891 = vpack.c.b16 %v798, %v883
      %v892 = vpack.c.b16 %v800, %v884
      %v893 = vpack.c.b16 %v802, %v885
      %v894 = vpack.c.b16 %v804, %v886
      %v895 = vpack.c.b16 %v806, %v887
      %v896 = vpack.c.b16 %v808, %v888
      %v897 = vrot.slane %v889, 1
      %v898 = vrot.slane %v890, 1
      %v899 = vrot.slane %v891, 1
      %v900 = vrot.slane %v892, 1
      %v901 = vrot.slane %v893, 1
      %v902 = vrot.slane %v894, 1
      %v903 = vrot.slane %v895, 1
      %v904 = vrot.slane %v896, 1
      %v921 = vunpack.c.l.b16 %v728
      %v922 = vunpack.c.l.b16 %v736
      %v923 = vunpack.c.l.b16 %v729
      %v924 = vunpack.c.l.b16 %v737
      %v925 = vunpack.c.l.b16 %v730
      %v926 = vunpack.c.l.b16 %v738
      %v927 = vunpack.c.l.b16 %v731
      %v928 = vunpack.c.l.b16 %v739
      %v929 = vunpack.c.l.b16 %v732
      %v930 = vunpack.c.l.b16 %v740
      %v931 = vunpack.c.l.b16 %v733
      %v932 = vunpack.c.l.b16 %v741
      %v933 = vunpack.c.l.b16 %v734
      %v934 = vunpack.c.l.b16 %v742
      %v935 = vunpack.c.l.b16 %v735
      %v936 = vunpack.c.l.b16 %v743
      %v937 = vpack.c.b16 %v922, %v921
      %v938 = vpack.c.b16 %v924, %v923
      %v939 = vpack.c.b16 %v926, %v925
      %v940 = vpack.c.b16 %v928, %v927
      %v941 = vpack.c.b16 %v930, %v929
      %v942 = vpack.c.b16 %v932, %v931
      %v943 = vpack.c.b16 %v934, %v933
      %v944 = vpack.c.b16 %v936, %v935
      %v946 = vshrl.u32 %v937, 16
      %v948 = vshll.u32 %v937, 16
      %v950 = vrot.slane %v948, 1
      %v951 = vor.u32 %v946, %v950
      %v953 = vshrl.u32 %v938, 16
      %v955 = vshll.u32 %v938, 16
      %v957 = vrot.slane %v955, 1
      %v958 = vor.u32 %v953, %v957
      %v960 = vshrl.u32 %v939, 16
      %v962 = vshll.u32 %v939, 16
      %v964 = vrot.slane %v962, 1
      %v965 = vor.u32 %v960, %v964
      %v967 = vshrl.u32 %v940, 16
      %v969 = vshll.u32 %v940, 16
      %v971 = vrot.slane %v969, 1
      %v972 = vor.u32 %v967, %v971
      %v974 = vshrl.u32 %v941, 16
      %v976 = vshll.u32 %v941, 16
      %v978 = vrot.slane %v976, 1
      %v979 = vor.u32 %v974, %v978
      %v981 = vshrl.u32 %v942, 16
      %v983 = vshll.u32 %v942, 16
      %v985 = vrot.slane %v983, 1
      %v986 = vor.u32 %v981, %v985
      %v988 = vshrl.u32 %v943, 16
      %v990 = vshll.u32 %v943, 16
      %v992 = vrot.slane %v990, 1
      %v993 = vor.u32 %v988, %v992
      %v995 = vshrl.u32 %v944, 16
      %v997 = vshll.u32 %v944, 16
      %v999 = vrot.slane %v997, 1
      %v1000 = vor.u32 %v995, %v999
      %v1009 = vunpack.c.l.b16 %v744
      %v1010 = vunpack.c.l.b16 %v745
      %v1011 = vunpack.c.l.b16 %v746
      %v1012 = vunpack.c.l.b16 %v747
      %v1013 = vunpack.c.l.b16 %v748
      %v1014 = vunpack.c.l.b16 %v749
      %v1015 = vunpack.c.l.b16 %v750
      %v1016 = vunpack.c.l.b16 %v751
      %v1017 = vpack.c.b16 %v922, %v1009
      %v1018 = vpack.c.b16 %v924, %v1010
      %v1019 = vpack.c.b16 %v926, %v1011
      %v1020 = vpack.c.b16 %v928, %v1012
      %v1021 = vpack.c.b16 %v930, %v1013
      %v1022 = vpack.c.b16 %v932, %v1014
      %v1023 = vpack.c.b16 %v934, %v1015
      %v1024 = vpack.c.b16 %v936, %v1016
      %v1025 = vrot.slane %v1017, 1
      %v1026 = vrot.slane %v1018, 1
      %v1027 = vrot.slane %v1019, 1
      %v1028 = vrot.slane %v1020, 1
      %v1029 = vrot.slane %v1021, 1
      %v1030 = vrot.slane %v1022, 1
      %v1031 = vrot.slane %v1023, 1
      %v1032 = vrot.slane %v1024, 1
      %v1049 = vunpack.c.l.b16 %v753
      %v1050 = vunpack.c.l.b16 %v761
      %v1051 = vunpack.c.l.b16 %v754
      %v1052 = vunpack.c.l.b16 %v762
      %v1053 = vunpack.c.l.b16 %v755
      %v1054 = vunpack.c.l.b16 %v763
      %v1055 = vunpack.c.l.b16 %v756
      %v1056 = vunpack.c.l.b16 %v764
      %v1057 = vunpack.c.l.b16 %v757
      %v1058 = vunpack.c.l.b16 %v765
      %v1059 = vunpack.c.l.b16 %v758
      %v1060 = vunpack.c.l.b16 %v766
      %v1061 = vunpack.c.l.b16 %v759
      %v1062 = vunpack.c.l.b16 %v767
      %v1063 = vunpack.c.l.b16 %v760
      %v1064 = vunpack.c.l.b16 %v768
      %v1065 = vpack.c.b16 %v1050, %v1049
      %v1066 = vpack.c.b16 %v1052, %v1051
      %v1067 = vpack.c.b16 %v1054, %v1053
      %v1068 = vpack.c.b16 %v1056, %v1055
      %v1069 = vpack.c.b16 %v1058, %v1057
      %v1070 = vpack.c.b16 %v1060, %v1059
      %v1071 = vpack.c.b16 %v1062, %v1061
      %v1072 = vpack.c.b16 %v1064, %v1063
      %v1074 = vshrl.u32 %v1065, 16
      %v1076 = vshll.u32 %v1065, 16
      %v1078 = vrot.slane %v1076, 1
      %v1079 = vor.u32 %v1074, %v1078
      %v1081 = vshrl.u32 %v1066, 16
      %v1083 = vshll.u32 %v1066, 16
      %v1085 = vrot.slane %v1083, 1
      %v1086 = vor.u32 %v1081, %v1085
      %v1088 = vshrl.u32 %v1067, 16
      %v1090 = vshll.u32 %v1067, 16
      %v1092 = vrot.slane %v1090, 1
      %v1093 = vor.u32 %v1088, %v1092
      %v1095 = vshrl.u32 %v1068, 16
      %v1097 = vshll.u32 %v1068, 16
      %v1099 = vrot.slane %v1097, 1
      %v1100 = vor.u32 %v1095, %v1099
      %v1102 = vshrl.u32 %v1069, 16
      %v1104 = vshll.u32 %v1069, 16
      %v1106 = vrot.slane %v1104, 1
      %v1107 = vor.u32 %v1102, %v1106
      %v1109 = vshrl.u32 %v1070, 16
      %v1111 = vshll.u32 %v1070, 16
      %v1113 = vrot.slane %v1111, 1
      %v1114 = vor.u32 %v1109, %v1113
      %v1116 = vshrl.u32 %v1071, 16
      %v1118 = vshll.u32 %v1071, 16
      %v1120 = vrot.slane %v1118, 1
      %v1121 = vor.u32 %v1116, %v1120
      %v1123 = vshrl.u32 %v1072, 16
      %v1125 = vshll.u32 %v1072, 16
      %v1127 = vrot.slane %v1125, 1
      %v1128 = vor.u32 %v1123, %v1127
      %v1137 = vunpack.c.l.b16 %v769
      %v1138 = vunpack.c.l.b16 %v770
      %v1139 = vunpack.c.l.b16 %v771
      %v1140 = vunpack.c.l.b16 %v772
      %v1141 = vunpack.c.l.b16 %v773
      %v1142 = vunpack.c.l.b16 %v774
      %v1143 = vunpack.c.l.b16 %v775
      %v1144 = vunpack.c.l.b16 %v776
      %v1145 = vpack.c.b16 %v1050, %v1137
      %v1146 = vpack.c.b16 %v1052, %v1138
      %v1147 = vpack.c.b16 %v1054, %v1139
      %v1148 = vpack.c.b16 %v1056, %v1140
      %v1149 = vpack.c.b16 %v1058, %v1141
      %v1150 = vpack.c.b16 %v1060, %v1142
      %v1151 = vpack.c.b16 %v1062, %v1143
      %v1152 = vpack.c.b16 %v1064, %v1144
      %v1153 = vrot.slane %v1145, 1
      %v1154 = vrot.slane %v1146, 1
      %v1155 = vrot.slane %v1147, 1
      %v1156 = vrot.slane %v1148, 1
      %v1157 = vrot.slane %v1149, 1
      %v1158 = vrot.slane %v1150, 1
      %v1159 = vrot.slane %v1151, 1
      %v1160 = vrot.slane %v1152, 1
      %v1161 = vunpack.c.l.b16 %v823
      %v1162 = vunpack.c.l.b16 %v897
      %v1163 = vunpack.c.l.b16 %v951
      %v1164 = vunpack.c.l.b16 %v1025
      %v1165 = vunpack.c.l.b16 %v1079
      %v1166 = vunpack.c.l.b16 %v1153
      %v1167 = vunpack.c.l.b16 %v830
      %v1168 = vunpack.c.l.b16 %v898
      %v1169 = vunpack.c.l.b16 %v958
      %v1170 = vunpack.c.l.b16 %v1026
      %v1171 = vunpack.c.l.b16 %v1086
      %v1172 = vunpack.c.l.b16 %v1154
      %v1173 = vunpack.c.l.b16 %v837
      %v1174 = vunpack.c.l.b16 %v899
      %v1175 = vunpack.c.l.b16 %v965
      %v1176 = vunpack.c.l.b16 %v1027
      %v1177 = vunpack.c.l.b16 %v1093
      %v1178 = vunpack.c.l.b16 %v1155
      %v1179 = vunpack.c.l.b16 %v844
      %v1180 = vunpack.c.l.b16 %v900
      %v1181 = vunpack.c.l.b16 %v972
      %v1182 = vunpack.c.l.b16 %v1028
      %v1183 = vunpack.c.l.b16 %v1100
      %v1184 = vunpack.c.l.b16 %v1156
      %v1185 = vunpack.c.l.b16 %v851
      %v1186 = vunpack.c.l.b16 %v901
      %v1187 = vunpack.c.l.b16 %v979
      %v1188 = vunpack.c.l.b16 %v1029
      %v1189 = vunpack.c.l.b16 %v1107
      %v1190 = vunpack.c.l.b16 %v1157
      %v1191 = vunpack.c.l.b16 %v858
      %v1192 = vunpack.c.l.b16 %v902
      %v1193 = vunpack.c.l.b16 %v986
      %v1194 = vunpack.c.l.b16 %v1030
      %v1195 = vunpack.c.l.b16 %v1114
      %v1196 = vunpack.c.l.b16 %v1158
      %v1197 = vunpack.c.l.b16 %v865
      %v1198 = vunpack.c.l.b16 %v903
      %v1199 = vunpack.c.l.b16 %v993
      %v1200 = vunpack.c.l.b16 %v1031
      %v1201 = vunpack.c.l.b16 %v1121
      %v1202 = vunpack.c.l.b16 %v1159
      %v1203 = vunpack.c.l.b16 %v872
      %v1204 = vunpack.c.l.b16 %v904
      %v1205 = vunpack.c.l.b16 %v1000
      %v1206 = vunpack.c.l.b16 %v1032
      %v1207 = vunpack.c.l.b16 %v1128
      %v1208 = vunpack.c.l.b16 %v1160
      %v1210 = vlaneseq
      %v1211 = vshrl.u32 %v1210, 7
      %v1212 = vsub.s32 0, %v1211
      %v1213 = vrot.slane %v428, %v1212
      %v1215 = vpack.c.b16 %v795, %v793
      %v1216 = vpack.c.b16 %v1167, %v1161
      %v1217 = vpack.c.b16 %v1168, %v1162
      %v1218 = vpack.c.b16 %v923, %v921
      %v1219 = vpack.c.b16 %v1169, %v1163
      %v1220 = vpack.c.b16 %v1170, %v1164
      %v1221 = vpack.c.b16 %v1051, %v1049
      %v1222 = vpack.c.b16 %v1171, %v1165
      %v1223 = vpack.c.b16 %v1172, %v1166
      %v1224 = vpack.c.b16 %v799, %v797
      %v1225 = vpack.c.b16 %v1179, %v1173
      %v1226 = vpack.c.b16 %v1180, %v1174
      %v1227 = vpack.c.b16 %v927, %v925
      %v1228 = vpack.c.b16 %v1181, %v1175
      %v1229 = vpack.c.b16 %v1182, %v1176
      %v1230 = vpack.c.b16 %v1055, %v1053
      %v1231 = vpack.c.b16 %v1183, %v1177
      %v1232 = vpack.c.b16 %v1184, %v1178
      %v1233 = vpack.c.b16 %v803, %v801
      %v1234 = vpack.c.b16 %v1191, %v1185
      %v1235 = vpack.c.b16 %v1192, %v1186
      %v1236 = vpack.c.b16 %v931, %v929
      %v1237 = vpack.c.b16 %v1193, %v1187
      %v1238 = vpack.c.b16 %v1194, %v1188
      %v1239 = vpack.c.b16 %v1059, %v1057
      %v1240 = vpack.c.b16 %v1195, %v1189
      %v1241 = vpack.c.b16 %v1196, %v1190
      %v1242 = vpack.c.b16 %v807, %v805
      %v1243 = vpack.c.b16 %v1203, %v1197
      %v1244 = vpack.c.b16 %v1204, %v1198
      %v1245 = vpack.c.b16 %v935, %v933
      %v1246 = vpack.c.b16 %v1205, %v1199
      %v1247 = vpack.c.b16 %v1206, %v1200
      %v1248 = vpack.c.b16 %v1063, %v1061
      %v1249 = vpack.c.b16 %v1207, %v1201
      %v1250 = vpack.c.b16 %v1208, %v1202
      %v1431 = vunpack.c.l.b16 %v284
      %v1432 = vunpack.c.l.b16 %v285
      %v1433 = vunpack.c.l.b16 %v286
      %v1434 = vunpack.c.l.b16 %v287
      %v1435 = vunpack.c.l.b16 %v288
      %v1436 = vunpack.c.l.b16 %v289
      %v1437 = vunpack.c.l.b16 %v290
      %v1438 = vunpack.c.l.b16 %v291
      %v1439 = vunpack.c.l.b16 %v292
      %v1440 = vunpack.c.l.b16 %v293
      %v1441 = vunpack.c.l.b16 %v294
      %v1442 = vunpack.c.l.b16 %v295
      %v1443 = vunpack.c.l.b16 %v296
      %v1444 = vunpack.c.l.b16 %v297
      %v1445 = vunpack.c.l.b16 %v298
      %v1446 = vunpack.c.l.b16 %v299
      %v1447 = vunpack.c.l.b16 %v300
      %v1448 = vunpack.c.l.b16 %v301
      %v1449 = vunpack.c.l.b16 %v302
      %v1450 = vunpack.c.l.b16 %v303
      %v1451 = vunpack.c.l.b16 %v304
      %v1452 = vunpack.c.l.b16 %v305
      %v1453 = vunpack.c.l.b16 %v306
      %v1454 = vunpack.c.l.b16 %v307
      %v1455 = vunpack.c.l.b16 %v308
      %v1456 = vunpack.c.l.b16 %v309
      %v1457 = vunpack.c.l.b16 %v310
      %v1458 = vunpack.c.l.b16 %v311
      %v1459 = vunpack.c.l.b16 %v312
      %v1460 = vunpack.c.l.b16 %v313
      %v1461 = vunpack.c.l.b16 %v314
      %v1462 = vunpack.c.l.b16 %v315
      %v1463 = vunpack.c.l.b16 %v316
      %v1464 = vunpack.c.l.b16 %v317
      %v1465 = vunpack.c.l.b16 %v318
      %v1466 = vunpack.c.l.b16 %v319
      %v1467 = vunpack.c.l.b16 %v320
      %v1468 = vunpack.c.l.b16 %v321
      %v1469 = vunpack.c.l.b16 %v322
      %v1470 = vunpack.c.l.b16 %v323
      %v1471 = vunpack.c.l.b16 %v324
      %v1472 = vunpack.c.l.b16 %v325
      %v1473 = vunpack.c.l.b16 %v326
      %v1474 = vunpack.c.l.b16 %v327
      %v1475 = vunpack.c.l.b16 %v328
      %v1476 = vunpack.c.l.b16 %v329
      %v1477 = vunpack.c.l.b16 %v330
      %v1478 = vunpack.c.l.b16 %v331
      %v1479 = vunpack.c.l.b16 %v332
      %v1480 = vunpack.c.l.b16 %v333
      %v1481 = vunpack.c.l.b16 %v334
      %v1482 = vunpack.c.l.b16 %v335
      %v1483 = vunpack.c.l.b16 %v336
      %v1484 = vunpack.c.l.b16 %v337
      %v1485 = vunpack.c.l.b16 %v338
      %v1486 = vunpack.c.l.b16 %v339
      %v1487 = vunpack.c.l.b16 %v340
      %v1488 = vunpack.c.l.b16 %v341
      %v1489 = vunpack.c.l.b16 %v342
      %v1490 = vunpack.c.l.b16 %v343
      %v1491 = vunpack.c.l.b16 %v344
      %v1492 = vunpack.c.l.b16 %v345
      %v1493 = vunpack.c.l.b16 %v346
      %v1494 = vunpack.c.l.b16 %v347
      %v1495 = vunpack.c.l.b16 %v348
      %v1496 = vunpack.c.l.b16 %v349
      %v1497 = vunpack.c.l.b16 %v350
      %v1498 = vunpack.c.l.b16 %v351
      %v1499 = vunpack.c.l.b16 %v352
      %v1500 = vunpack.c.l.b16 %v353
      %v1501 = vunpack.c.l.b16 %v354
      %v1502 = vunpack.c.l.b16 %v355
      %v1503 = vunpack.c.l.b16 %v356
      %v1504 = vunpack.c.l.b16 %v357
      %v1505 = vunpack.c.l.b16 %v358
      %v1506 = vunpack.c.l.b16 %v359
      %v1507 = vunpack.c.l.b16 %v360
      %v1508 = vunpack.c.l.b16 %v361
      %v1509 = vunpack.c.l.b16 %v362
      %v1510 = vunpack.c.l.b16 %v363
      %v1511 = vunpack.c.l.b16 %v364
      %v1512 = vunpack.c.l.b16 %v365
      %v1513 = vunpack.c.l.b16 %v366
      %v1514 = vunpack.c.l.b16 %v367
      %v1515 = vunpack.c.l.b16 %v368
      %v1516 = vunpack.c.l.b16 %v369
      %v1517 = vunpack.c.l.b16 %v370
      %v1518 = vunpack.c.l.b16 %v371
      %v1519 = vunpack.c.l.b16 %v372
      %v1520 = vunpack.c.l.b16 %v373
      %v1521 = vunpack.c.l.b16 %v374
      %v1522 = vunpack.c.l.b16 %v375
      %v1523 = vunpack.c.l.b16 %v376
      %v1524 = vunpack.c.l.b16 %v377
      %v1525 = vunpack.c.l.b16 %v378
      %v1526 = vunpack.c.l.b16 %v379
      %v1527 = vunpack.c.l.b16 %v380
      %v1528 = vunpack.c.l.b16 %v381
      %v1529 = vunpack.c.l.b16 %v382
      %v1530 = vunpack.c.l.b16 %v383
      %v1531 = vunpack.c.l.b16 %v384
      %v1532 = vunpack.c.l.b16 %v385
      %v1533 = vunpack.c.l.b16 %v386
      %v1534 = vunpack.c.l.b16 %v387
      %v1535 = vunpack.c.l.b16 %v388
      %v1536 = vunpack.c.l.b16 %v389
      %v1537 = vunpack.c.l.b16 %v390
      %v1538 = vunpack.c.l.b16 %v391
      %v1539 = vunpack.c.l.b16 %v392
      %v1540 = vunpack.c.l.b16 %v393
      %v1541 = vunpack.c.l.b16 %v394
      %v1542 = vunpack.c.l.b16 %v395
      %v1543 = vunpack.c.l.b16 %v396
      %v1544 = vunpack.c.l.b16 %v397
      %v1545 = vunpack.c.l.b16 %v398
      %v1546 = vunpack.c.l.b16 %v399
      %v1547 = vunpack.c.l.b16 %v400
      %v1548 = vunpack.c.l.b16 %v401
      %v1549 = vunpack.c.l.b16 %v402
      %v1550 = vunpack.c.l.b16 %v403
      %v1551 = vunpack.c.l.b16 %v404
      %v1552 = vunpack.c.l.b16 %v405
      %v1553 = vunpack.c.l.b16 %v406
      %v1554 = vunpack.c.l.b16 %v407
      %v1555 = vunpack.c.l.b16 %v408
      %v1556 = vunpack.c.l.b16 %v409
      %v1557 = vunpack.c.l.b16 %v410
      %v1558 = vunpack.c.l.b16 %v411
      %v1559 = vunpack.c.l.b16 %v412
      %v1560 = vunpack.c.l.b16 %v413
      %v1561 = vunpack.c.l.b16 %v414
      %v1562 = vunpack.c.l.b16 %v415
      %v1563 = vunpack.c.l.b16 %v416
      %v1564 = vunpack.c.l.b16 %v417
      %v1565 = vunpack.c.l.b16 %v418
      %v1566 = vunpack.c.l.b16 %v419
      %v1567 = vunpack.c.l.b16 %v420
      %v1568 = vunpack.c.l.b16 %v421
      %v1569 = vunpack.c.l.b16 %v422
      %v1570 = vunpack.c.l.b16 %v423
      %v1571 = vunpack.c.l.b16 %v424
      %v1572 = vunpack.c.l.b16 %v425
      %v1573 = vunpack.c.l.b16 %v426
      %v1574 = vunpack.c.l.b16 %v427
      %v1575 = vpack.c.b16 %v1432, %v1431
      %v1576 = vpack.c.b16 %v1434, %v1433
      %v1577 = vpack.c.b16 %v1436, %v1435
      %v1578 = vpack.c.b16 %v1438, %v1437
      %v1579 = vpack.c.b16 %v1440, %v1439
      %v1580 = vpack.c.b16 %v1442, %v1441
      %v1581 = vpack.c.b16 %v1444, %v1443
      %v1582 = vpack.c.b16 %v1446, %v1445
      %v1583 = vpack.c.b16 %v1448, %v1447
      %v1584 = vpack.c.b16 %v1450, %v1449
      %v1585 = vpack.c.b16 %v1452, %v1451
      %v1586 = vpack.c.b16 %v1454, %v1453
      %v1587 = vpack.c.b16 %v1456, %v1455
      %v1588 = vpack.c.b16 %v1458, %v1457
      %v1589 = vpack.c.b16 %v1460, %v1459
      %v1590 = vpack.c.b16 %v1462, %v1461
      %v1591 = vpack.c.b16 %v1464, %v1463
      %v1592 = vpack.c.b16 %v1466, %v1465
      %v1593 = vpack.c.b16 %v1468, %v1467
      %v1594 = vpack.c.b16 %v1470, %v1469
      %v1595 = vpack.c.b16 %v1472, %v1471
      %v1596 = vpack.c.b16 %v1474, %v1473
      %v1597 = vpack.c.b16 %v1476, %v1475
      %v1598 = vpack.c.b16 %v1478, %v1477
      %v1599 = vpack.c.b16 %v1480, %v1479
      %v1600 = vpack.c.b16 %v1482, %v1481
      %v1601 = vpack.c.b16 %v1484, %v1483
      %v1602 = vpack.c.b16 %v1486, %v1485
      %v1603 = vpack.c.b16 %v1488, %v1487
      %v1604 = vpack.c.b16 %v1490, %v1489
      %v1605 = vpack.c.b16 %v1492, %v1491
      %v1606 = vpack.c.b16 %v1494, %v1493
      %v1607 = vpack.c.b16 %v1496, %v1495
      %v1608 = vpack.c.b16 %v1498, %v1497
      %v1609 = vpack.c.b16 %v1500, %v1499
      %v1610 = vpack.c.b16 %v1502, %v1501
      %v1611 = vpack.c.b16 %v1504, %v1503
      %v1612 = vpack.c.b16 %v1506, %v1505
      %v1613 = vpack.c.b16 %v1508, %v1507
      %v1614 = vpack.c.b16 %v1510, %v1509
      %v1615 = vpack.c.b16 %v1512, %v1511
      %v1616 = vpack.c.b16 %v1514, %v1513
      %v1617 = vpack.c.b16 %v1516, %v1515
      %v1618 = vpack.c.b16 %v1518, %v1517
      %v1619 = vpack.c.b16 %v1520, %v1519
      %v1620 = vpack.c.b16 %v1522, %v1521
      %v1621 = vpack.c.b16 %v1524, %v1523
      %v1622 = vpack.c.b16 %v1526, %v1525
      %v1623 = vpack.c.b16 %v1528, %v1527
      %v1624 = vpack.c.b16 %v1530, %v1529
      %v1625 = vpack.c.b16 %v1532, %v1531
      %v1626 = vpack.c.b16 %v1534, %v1533
      %v1627 = vpack.c.b16 %v1536, %v1535
      %v1628 = vpack.c.b16 %v1538, %v1537
      %v1629 = vpack.c.b16 %v1540, %v1539
      %v1630 = vpack.c.b16 %v1542, %v1541
      %v1631 = vpack.c.b16 %v1544, %v1543
      %v1632 = vpack.c.b16 %v1546, %v1545
      %v1633 = vpack.c.b16 %v1548, %v1547
      %v1634 = vpack.c.b16 %v1550, %v1549
      %v1635 = vpack.c.b16 %v1552, %v1551
      %v1636 = vpack.c.b16 %v1554, %v1553
      %v1637 = vpack.c.b16 %v1556, %v1555
      %v1638 = vpack.c.b16 %v1558, %v1557
      %v1639 = vpack.c.b16 %v1560, %v1559
      %v1640 = vpack.c.b16 %v1562, %v1561
      %v1641 = vpack.c.b16 %v1564, %v1563
      %v1642 = vpack.c.b16 %v1566, %v1565
      %v1643 = vpack.c.b16 %v1568, %v1567
      %v1644 = vpack.c.b16 %v1570, %v1569
      %v1645 = vpack.c.b16 %v1572, %v1571
      %v1646 = vpack.c.b16 %v1574, %v1573
      %1719 = vmatprep.subr.bf16.mxu0 0
      %1720 = vmatpush1.bf16.msra.mxu0 %v1575
      %1721 = vmatprep.subr.bf16.mxu0 0
      %1722 = vmatpush1.bf16.msra.mxu0 %v1576
      %1723 = vmatprep.subr.bf16.mxu0 0
      %1724 = vmatpush1.bf16.msra.mxu0 %v1577
      %1725 = vmatprep.subr.bf16.mxu0 0
      %1726 = vmatpush1.bf16.msra.mxu0 %v1578
      %1727 = vmatprep.subr.bf16.mxu0 0
      %1728 = vmatpush1.bf16.msra.mxu0 %v1579
      %1729 = vmatprep.subr.bf16.mxu0 0
      %1730 = vmatpush1.bf16.msra.mxu0 %v1580
      %1731 = vmatprep.subr.bf16.mxu0 0
      %1732 = vmatpush1.bf16.msra.mxu0 %v1581
      %1733 = vmatprep.subr.bf16.mxu0 0
      %1734 = vmatpush1.bf16.msra.mxu0 %v1582
      %1735 = vmatprep.subr.bf16.mxu0 0
      %1736 = vmatpush1.bf16.msra.mxu0 %v1583
      %1737 = vmatprep.subr.bf16.mxu0 0
      %1738 = vmatpush1.bf16.msra.mxu0 %v1584
      %1739 = vmatprep.subr.bf16.mxu0 0
      %1740 = vmatpush1.bf16.msra.mxu0 %v1585
      %1741 = vmatprep.subr.bf16.mxu0 0
      %1742 = vmatpush1.bf16.msra.mxu0 %v1586
      %1743 = vmatprep.subr.bf16.mxu0 0
      %1744 = vmatpush1.bf16.msra.mxu0 %v1587
      %1745 = vmatprep.subr.bf16.mxu0 0
      %1746 = vmatpush1.bf16.msra.mxu0 %v1588
      %1747 = vmatprep.subr.bf16.mxu0 0
      %1748 = vmatpush1.bf16.msra.mxu0 %v1589
      %1749 = vmatprep.subr.bf16.mxu0 0
      %1750 = vmatpush1.bf16.msra.mxu0 %v1590
      %1751 = vmatprep.mubr.bf16.mxu0 %v1216
      %1752 = vmatmul.mubr.bf16.gmra.mrb[0].mxu0 %v1215
      %v1753 = vpop.f32.mrb[0].mxu0
      %v1754 = vadd.f32 %v1213, %v1753
      %v1755 = vpop.f32.mrb[0].mxu0
      %v1756 = vpop.f32.mrb[0].mxu0
      %v1757 = vadd.f32 %v1213, %v1756
      %v1758 = vpop.f32.mrb[0].mxu0
      %1759 = vmatprep.mubr.bf16.mxu0 %v1225
      %1760 = vmatmul.mubr.bf16.gmra.mrb[0].mxu0 %v1224
      %v1761 = vpop.f32.mrb[0].mxu0
      %v1762 = vadd.f32 %v1213, %v1761
      %v1763 = vpop.f32.mrb[0].mxu0
      %v1764 = vpop.f32.mrb[0].mxu0
      %v1765 = vadd.f32 %v1213, %v1764
      %v1766 = vpop.f32.mrb[0].mxu0
      %1767 = vmatprep.mubr.bf16.mxu0 %v1234
      %1768 = vmatmul.mubr.bf16.gmra.mrb[0].mxu0 %v1233
      %v1769 = vpop.f32.mrb[0].mxu0
      %v1770 = vadd.f32 %v1213, %v1769
      %v1771 = vpop.f32.mrb[0].mxu0
      %v1772 = vpop.f32.mrb[0].mxu0
      %v1773 = vadd.f32 %v1213, %v1772
      %v1774 = vpop.f32.mrb[0].mxu0
      %1775 = vmatprep.mubr.bf16.mxu0 %v1243
      %1776 = vmatmul.mubr.bf16.gmra.mrb[0].mxu0 %v1242
      %v1777 = vpop.f32.mrb[0].mxu0
      %v1778 = vadd.f32 %v1213, %v1777
      %v1779 = vpop.f32.mrb[0].mxu0
      %v1780 = vpop.f32.mrb[0].mxu0
      %v1781 = vadd.f32 %v1213, %v1780
      %v1782 = vpop.f32.mrb[0].mxu0
      %1783 = vdwg.mxu0
      %1784 = vmatprep.subr.bf16.mxu0 0
      %1785 = vmatpush1.bf16.msra.mxu0 %v1591
      %1786 = vmatprep.subr.bf16.mxu0 0
      %1787 = vmatpush1.bf16.msra.mxu0 %v1592
      %1788 = vmatprep.subr.bf16.mxu0 0
      %1789 = vmatpush1.bf16.msra.mxu0 %v1593
      %1790 = vmatprep.subr.bf16.mxu0 0
      %1791 = vmatpush1.bf16.msra.mxu0 %v1594
      %1792 = vmatprep.subr.bf16.mxu0 0
      %1793 = vmatpush1.bf16.msra.mxu0 %v1595
      %1794 = vmatprep.subr.bf16.mxu0 0
      %1795 = vmatpush1.bf16.msra.mxu0 %v1596
      %1796 = vmatprep.subr.bf16.mxu0 0
      %1797 = vmatpush1.bf16.msra.mxu0 %v1597
      %1798 = vmatprep.subr.bf16.mxu0 0
      %1799 = vmatpush1.bf16.msra.mxu0 %v1598
      %1800 = vmatprep.subr.bf16.mxu0 0
      %1801 = vmatpush1.bf16.msra.mxu0 %v1599
      %1802 = vmatprep.subr.bf16.mxu0 0
      %1803 = vmatpush1.bf16.msra.mxu0 %v1600
      %1804 = vmatprep.subr.bf16.mxu0 0
      %1805 = vmatpush1.bf16.msra.mxu0 %v1601
      %1806 = vmatprep.subr.bf16.mxu0 0
      %1807 = vmatpush1.bf16.msra.mxu0 %v1602
      %1808 = vmatprep.subr.bf16.mxu0 0
      %1809 = vmatpush1.bf16.msra.mxu0 %v1603
      %1810 = vmatprep.subr.bf16.mxu0 0
      %1811 = vmatpush1.bf16.msra.mxu0 %v1604
      %1812 = vmatprep.subr.bf16.mxu0 0
      %1813 = vmatpush1.bf16.msra.mxu0 %v1605
      %1814 = vmatprep.subr.bf16.mxu0 0
      %1815 = vmatpush1.bf16.msra.mxu0 %v1606
      %1816 = vmatprep.mubr.bf16.mxu0 %v1218
      %1817 = vmatmul.mubr.bf16.gmra.mrb[0].mxu0 %v1217
      %v1818 = vpop.f32.mrb[0].mxu0
      %v1819 = vadd.f32 %v1754, %v1818
      %v1820 = vpop.f32.mrb[0].mxu0
      %v1821 = vpop.f32.mrb[0].mxu0
      %v1822 = vadd.f32 %v1757, %v1821
      %v1823 = vpop.f32.mrb[0].mxu0
      %1824 = vmatprep.mubr.bf16.mxu0 %v1227
      %1825 = vmatmul.mubr.bf16.gmra.mrb[0].mxu0 %v1226
      %v1826 = vpop.f32.mrb[0].mxu0
      %v1827 = vadd.f32 %v1762, %v1826
      %v1828 = vpop.f32.mrb[0].mxu0
      %v1829 = vpop.f32.mrb[0].mxu0
      %v1830 = vadd.f32 %v1765, %v1829
      %v1831 = vpop.f32.mrb[0].mxu0
      %1832 = vmatprep.mubr.bf16.mxu0 %v1236
      %1833 = vmatmul.mubr.bf16.gmra.mrb[0].mxu0 %v1235
      %v1834 = vpop.f32.mrb[0].mxu0
      %v1835 = vadd.f32 %v1770, %v1834
      %v1836 = vpop.f32.mrb[0].mxu0
      %v1837 = vpop.f32.mrb[0].mxu0
      %v1838 = vadd.f32 %v1773, %v1837
      %v1839 = vpop.f32.mrb[0].mxu0
      %1840 = vmatprep.mubr.bf16.mxu0 %v1245
      %1841 = vmatmul.mubr.bf16.gmra.mrb[0].mxu0 %v1244
      %v1842 = vpop.f32.mrb[0].mxu0
      %v1843 = vadd.f32 %v1778, %v1842
      %v1844 = vpop.f32.mrb[0].mxu0
      %v1845 = vpop.f32.mrb[0].mxu0
      %v1846 = vadd.f32 %v1781, %v1845
      %v1847 = vpop.f32.mrb[0].mxu0
      %1848 = vdwg.mxu0
      %1849 = vmatprep.subr.bf16.mxu0 0
      %1850 = vmatpush1.bf16.msra.mxu0 %v1607
      %1851 = vmatprep.subr.bf16.mxu0 0
      %1852 = vmatpush1.bf16.msra.mxu0 %v1608
      %1853 = vmatprep.subr.bf16.mxu0 0
      %1854 = vmatpush1.bf16.msra.mxu0 %v1609
      %1855 = vmatprep.subr.bf16.mxu0 0
      %1856 = vmatpush1.bf16.msra.mxu0 %v1610
      %1857 = vmatprep.subr.bf16.mxu0 0
      %1858 = vmatpush1.bf16.msra.mxu0 %v1611
      %1859 = vmatprep.subr.bf16.mxu0 0
      %1860 = vmatpush1.bf16.msra.mxu0 %v1612
      %1861 = vmatprep.subr.bf16.mxu0 0
      %1862 = vmatpush1.bf16.msra.mxu0 %v1613
      %1863 = vmatprep.subr.bf16.mxu0 0
      %1864 = vmatpush1.bf16.msra.mxu0 %v1614
      %1865 = vmatprep.subr.bf16.mxu0 0
      %1866 = vmatpush1.bf16.msra.mxu0 %v1615
      %1867 = vmatprep.subr.bf16.mxu0 0
      %1868 = vmatpush1.bf16.msra.mxu0 %v1616
      %1869 = vmatprep.subr.bf16.mxu0 0
      %1870 = vmatpush1.bf16.msra.mxu0 %v1617
      %1871 = vmatprep.subr.bf16.mxu0 0
      %1872 = vmatpush1.bf16.msra.mxu0 %v1618
      %1873 = vmatprep.subr.bf16.mxu0 0
      %1874 = vmatpush1.bf16.msra.mxu0 %v1619
      %1875 = vmatprep.subr.bf16.mxu0 0
      %1876 = vmatpush1.bf16.msra.mxu0 %v1620
      %1877 = vmatprep.subr.bf16.mxu0 0
      %1878 = vmatpush1.bf16.msra.mxu0 %v1621
      %1879 = vmatprep.subr.bf16.mxu0 0
      %1880 = vmatpush1.bf16.msra.mxu0 %v1622
      %1881 = vmatprep.mubr.bf16.mxu0 %v1220
      %1882 = vmatmul.mubr.bf16.gmra.mrb[0].mxu0 %v1219
      %v1883 = vpop.f32.mrb[0].mxu0
      %v1884 = vadd.f32 %v1819, %v1883
      %v1885 = vpop.f32.mrb[0].mxu0
      %v1886 = vpop.f32.mrb[0].mxu0
      %v1887 = vadd.f32 %v1822, %v1886
      %v1888 = vpop.f32.mrb[0].mxu0
      %1889 = vmatprep.mubr.bf16.mxu0 %v1229
      %1890 = vmatmul.mubr.bf16.gmra.mrb[0].mxu0 %v1228
      %v1891 = vpop.f32.mrb[0].mxu0
      %v1892 = vadd.f32 %v1827, %v1891
      %v1893 = vpop.f32.mrb[0].mxu0
      %v1894 = vpop.f32.mrb[0].mxu0
      %v1895 = vadd.f32 %v1830, %v1894
      %v1896 = vpop.f32.mrb[0].mxu0
      %1897 = vmatprep.mubr.bf16.mxu0 %v1238
      %1898 = vmatmul.mubr.bf16.gmra.mrb[0].mxu0 %v1237
      %v1899 = vpop.f32.mrb[0].mxu0
      %v1900 = vadd.f32 %v1835, %v1899
      %v1901 = vpop.f32.mrb[0].mxu0
      %v1902 = vpop.f32.mrb[0].mxu0
      %v1903 = vadd.f32 %v1838, %v1902
      %v1904 = vpop.f32.mrb[0].mxu0
      %1905 = vmatprep.mubr.bf16.mxu0 %v1247
      %1906 = vmatmul.mubr.bf16.gmra.mrb[0].mxu0 %v1246
      %v1907 = vpop.f32.mrb[0].mxu0
      %v1908 = vadd.f32 %v1843, %v1907
      %v1909 = vpop.f32.mrb[0].mxu0
      %v1910 = vpop.f32.mrb[0].mxu0
      %v1911 = vadd.f32 %v1846, %v1910
      %v1912 = vpop.f32.mrb[0].mxu0
      %1913 = vdwg.mxu0
      %1914 = vmatprep.subr.bf16.mxu0 0
      %1915 = vmatpush1.bf16.msra.mxu0 %v1623
      %1916 = vmatprep.subr.bf16.mxu0 0
      %1917 = vmatpush1.bf16.msra.mxu0 %v1624
      %1918 = vmatprep.subr.bf16.mxu0 0
      %1919 = vmatpush1.bf16.msra.mxu0 %v1625
      %1920 = vmatprep.subr.bf16.mxu0 0
      %1921 = vmatpush1.bf16.msra.mxu0 %v1626
      %1922 = vmatprep.subr.bf16.mxu0 0
      %1923 = vmatpush1.bf16.msra.mxu0 %v1627
      %1924 = vmatprep.subr.bf16.mxu0 0
      %1925 = vmatpush1.bf16.msra.mxu0 %v1628
      %1926 = vmatprep.subr.bf16.mxu0 0
      %1927 = vmatpush1.bf16.msra.mxu0 %v1629
      %1928 = vmatprep.subr.bf16.mxu0 0
      %1929 = vmatpush1.bf16.msra.mxu0 %v1630
      %1930 = vmatprep.subr.bf16.mxu0 0
      %1931 = vmatpush1.bf16.msra.mxu0 %v1631
      %1932 = vmatprep.subr.bf16.mxu0 0
      %1933 = vmatpush1.bf16.msra.mxu0 %v1632
      %1934 = vmatprep.subr.bf16.mxu0 0
      %1935 = vmatpush1.bf16.msra.mxu0 %v1633
      %1936 = vmatprep.subr.bf16.mxu0 0
      %1937 = vmatpush1.bf16.msra.mxu0 %v1634
      %1938 = vmatprep.subr.bf16.mxu0 0
      %1939 = vmatpush1.bf16.msra.mxu0 %v1635
      %1940 = vmatprep.subr.bf16.mxu0 0
      %1941 = vmatpush1.bf16.msra.mxu0 %v1636
      %1942 = vmatprep.subr.bf16.mxu0 0
      %1943 = vmatpush1.bf16.msra.mxu0 %v1637
      %1944 = vmatprep.subr.bf16.mxu0 0
      %1945 = vmatpush1.bf16.msra.mxu0 %v1638
      %1946 = vmatprep.mubr.bf16.mxu0 %v1222
      %1947 = vmatmul.mubr.bf16.gmra.mrb[0].mxu0 %v1221
      %v1948 = vpop.f32.mrb[0].mxu0
      %v1949 = vadd.f32 %v1884, %v1948
      %v1950 = vpop.f32.mrb[0].mxu0
      %v1951 = vpop.f32.mrb[0].mxu0
      %v1952 = vadd.f32 %v1887, %v1951
      %v1953 = vpop.f32.mrb[0].mxu0
      %1954 = vmatprep.mubr.bf16.mxu0 %v1231
      %1955 = vmatmul.mubr.bf16.gmra.mrb[0].mxu0 %v1230
      %v1956 = vpop.f32.mrb[0].mxu0
      %v1957 = vadd.f32 %v1892, %v1956
      %v1958 = vpop.f32.mrb[0].mxu0
      %v1959 = vpop.f32.mrb[0].mxu0
      %v1960 = vadd.f32 %v1895, %v1959
      %v1961 = vpop.f32.mrb[0].mxu0
      %1962 = vmatprep.mubr.bf16.mxu0 %v1240
      %1963 = vmatmul.mubr.bf16.gmra.mrb[0].mxu0 %v1239
      %v1964 = vpop.f32.mrb[0].mxu0
      %v1965 = vadd.f32 %v1900, %v1964
      %v1966 = vpop.f32.mrb[0].mxu0
      %v1967 = vpop.f32.mrb[0].mxu0
      %v1968 = vadd.f32 %v1903, %v1967
      %v1969 = vpop.f32.mrb[0].mxu0
      %1970 = vmatprep.mubr.bf16.mxu0 %v1249
      %1971 = vmatmul.mubr.bf16.gmra.mrb[0].mxu0 %v1248
      %v1972 = vpop.f32.mrb[0].mxu0
      %v1973 = vadd.f32 %v1908, %v1972
      %v1974 = vpop.f32.mrb[0].mxu0
      %v1975 = vpop.f32.mrb[0].mxu0
      %v1976 = vadd.f32 %v1911, %v1975
      %v1977 = vpop.f32.mrb[0].mxu0
      %1978 = vdwg.mxu0
      %1979 = vmatprep.subr.bf16.mxu0 0
      %1980 = vmatpush1.bf16.msra.mxu0 %v1639
      %1981 = vmatprep.subr.bf16.mxu0 0
      %1982 = vmatpush1.bf16.msra.mxu0 %v1640
      %1983 = vmatprep.subr.bf16.mxu0 0
      %1984 = vmatpush1.bf16.msra.mxu0 %v1641
      %1985 = vmatprep.subr.bf16.mxu0 0
      %1986 = vmatpush1.bf16.msra.mxu0 %v1642
      %1987 = vmatprep.subr.bf16.mxu0 0
      %1988 = vmatpush1.bf16.msra.mxu0 %v1643
      %1989 = vmatprep.subr.bf16.mxu0 0
      %1990 = vmatpush1.bf16.msra.mxu0 %v1644
      %1991 = vmatprep.subr.bf16.mxu0 0
      %1992 = vmatpush1.bf16.msra.mxu0 %v1645
      %1993 = vmatprep.subr.bf16.mxu0 0
      %1994 = vmatpush1.bf16.msra.mxu0 %v1646
      %1995 = vmatprep.subr.bf16.mxu0 0
      %1996 = vmatpush1.bf16.msra.mxu0 0
      %1997 = vmatprep.subr.bf16.mxu0 0
      %1998 = vmatpush1.bf16.msra.mxu0 0
      %1999 = vmatprep.subr.bf16.mxu0 0
      %2000 = vmatpush1.bf16.msra.mxu0 0
      %2001 = vmatprep.subr.bf16.mxu0 0
      %2002 = vmatpush1.bf16.msra.mxu0 0
      %2003 = vmatprep.subr.bf16.mxu0 0
      %2004 = vmatpush1.bf16.msra.mxu0 0
      %2005 = vmatprep.subr.bf16.mxu0 0
      %2006 = vmatpush1.bf16.msra.mxu0 0
      %2007 = vmatprep.subr.bf16.mxu0 0
      %2008 = vmatpush1.bf16.msra.mxu0 0
      %2009 = vmatprep.subr.bf16.mxu0 0
      %2010 = vmatpush1.bf16.msra.mxu0 0
      %2011 = vmatprep.mubr.bf16.mxu0 0
      %2012 = vmatmul.mubr.bf16.gmra.mrb[0].mxu0 %v1223
      %v2013 = vpop.f32.mrb[0].mxu0
      %v2014 = vadd.f32 %v1949, %v2013
      %v2015 = vpop.f32.mrb[0].mxu0
      %v2016 = vpop.f32.mrb[0].mxu0
      %v2017 = vadd.f32 %v1952, %v2016
      %v2018 = vpop.f32.mrb[0].mxu0
      %2019 = vmatprep.mubr.bf16.mxu0 0
      %2020 = vmatmul.mubr.bf16.gmra.mrb[0].mxu0 %v1232
      %v2021 = vpop.f32.mrb[0].mxu0
      %v2022 = vadd.f32 %v1957, %v2021
      %v2023 = vpop.f32.mrb[0].mxu0
      %v2024 = vpop.f32.mrb[0].mxu0
      %v2025 = vadd.f32 %v1960, %v2024
      %v2026 = vpop.f32.mrb[0].mxu0
      %2027 = vmatprep.mubr.bf16.mxu0 0
      %2028 = vmatmul.mubr.bf16.gmra.mrb[0].mxu0 %v1241
      %v2029 = vpop.f32.mrb[0].mxu0
      %v2030 = vadd.f32 %v1965, %v2029
      %v2031 = vpop.f32.mrb[0].mxu0
      %v2032 = vpop.f32.mrb[0].mxu0
      %v2033 = vadd.f32 %v1968, %v2032
      %v2034 = vpop.f32.mrb[0].mxu0
      %2035 = vmatprep.mubr.bf16.mxu0 0
      %2036 = vmatmul.mubr.bf16.gmra.mrb[0].mxu0 %v1250
      %v2037 = vpop.f32.mrb[0].mxu0
      %v2038 = vadd.f32 %v1973, %v2037
      %v2039 = vpop.f32.mrb[0].mxu0
      %v2040 = vpop.f32.mrb[0].mxu0
      %v2041 = vadd.f32 %v1976, %v2040
      %v2042 = vpop.f32.mrb[0].mxu0
      %2043 = vdwg.mxu0
      %v2044 = vld [vmem:[%s3] sm:$0xf]
      %v2045 = vld [vmem:[%s3 + $0x4] sm:$0xf]
      %v2046 = vld [vmem:[%s3 + $0x8] sm:$0xf]
      %v2047 = vld [vmem:[%s3 + $0xc] sm:$0xf]
      %v2048 = vld [vmem:[%s3 + $0x10] sm:$0xf]
      %v2049 = vld [vmem:[%s3 + $0x14] sm:$0xf]
      %v2050 = vld [vmem:[%s3 + $0x18] sm:$0xf]
      %v2051 = vld [vmem:[%s3 + $0x1c] sm:$0xf]
      %v2052 = vld [vmem:[%s3 + $0x20] sm:$0xf]
      %v2053 = vld [vmem:[%s3 + $0x24] sm:$0xf]
      %v2054 = vld [vmem:[%s3 + $0x28] sm:$0xf]
      %v2055 = vld [vmem:[%s3 + $0x2c] sm:$0xf]
      %v2056 = vld [vmem:[%s3 + $0x30] sm:$0xf]
      %v2057 = vld [vmem:[%s3 + $0x34] sm:$0xf]
      %v2058 = vld [vmem:[%s3 + $0x38] sm:$0xf]
      %v2059 = vld [vmem:[%s3 + $0x3c] sm:$0xf]
      %v2060 = vld [vmem:[%s3 + $0x40] sm:$0xf]
      %v2061 = vld [vmem:[%s3 + $0x44] sm:$0xf]
      %v2062 = vld [vmem:[%s3 + $0x48] sm:$0xf]
      %v2063 = vld [vmem:[%s3 + $0x4c] sm:$0xf]
      %v2064 = vld [vmem:[%s3 + $0x50] sm:$0xf]
      %v2065 = vld [vmem:[%s3 + $0x54] sm:$0xf]
      %v2066 = vld [vmem:[%s3 + $0x58] sm:$0xf]
      %v2067 = vld [vmem:[%s3 + $0x5c] sm:$0xf]
      %v2068 = vld [vmem:[%s3 + $0x60] sm:$0xf]
      %v2069 = vld [vmem:[%s3 + $0x64] sm:$0xf]
      %v2070 = vld [vmem:[%s3 + $0x68] sm:$0xf]
      %v2071 = vld [vmem:[%s3 + $0x6c] sm:$0xf]
      %v2072 = vld [vmem:[%s3 + $0x70] sm:$0xf]
      %v2073 = vld [vmem:[%s3 + $0x74] sm:$0xf]
      %v2074 = vld [vmem:[%s3 + $0x78] sm:$0xf]
      %v2075 = vld [vmem:[%s3 + $0x7c] sm:$0xf]
      %v2076 = vld [vmem:[%s3 + $0x80] sm:$0xf]
      %v2077 = vld [vmem:[%s3 + $0x84] sm:$0xf]
      %v2078 = vld [vmem:[%s3 + $0x88] sm:$0xf]
      %v2079 = vld [vmem:[%s3 + $0x8c] sm:$0xf]
      %v2080 = vld [vmem:[%s3 + $0x90] sm:$0xf]
      %v2081 = vld [vmem:[%s3 + $0x94] sm:$0xf]
      %v2082 = vld [vmem:[%s3 + $0x98] sm:$0xf]
      %v2083 = vld [vmem:[%s3 + $0x9c] sm:$0xf]
      %v2084 = vld [vmem:[%s3 + $0xa0] sm:$0xf]
      %v2085 = vld [vmem:[%s3 + $0xa4] sm:$0xf]
      %v2086 = vld [vmem:[%s3 + $0xa8] sm:$0xf]
      %v2087 = vld [vmem:[%s3 + $0xac] sm:$0xf]
      %v2088 = vld [vmem:[%s3 + $0xb0] sm:$0xf]
      %v2089 = vld [vmem:[%s3 + $0xb4] sm:$0xf]
      %v2090 = vld [vmem:[%s3 + $0xb8] sm:$0xf]
      %v2091 = vld [vmem:[%s3 + $0xbc] sm:$0xf]
      %v2092 = vld [vmem:[%s3 + $0xc0] sm:$0xf]
      %v2093 = vld [vmem:[%s3 + $0xc4] sm:$0xf]
      %v2094 = vld [vmem:[%s3 + $0xc8] sm:$0xf]
      %v2095 = vld [vmem:[%s3 + $0xcc] sm:$0xf]
      %v2096 = vld [vmem:[%s3 + $0xd0] sm:$0xf]
      %v2097 = vld [vmem:[%s3 + $0xd4] sm:$0xf]
      %v2098 = vld [vmem:[%s3 + $0xd8] sm:$0xf]
      %v2099 = vld [vmem:[%s3 + $0xdc] sm:$0xf]
      %v2100 = vld [vmem:[%s3 + $0xe0] sm:$0xf]
      %v2101 = vld [vmem:[%s3 + $0xe4] sm:$0xf]
      %v2102 = vld [vmem:[%s3 + $0xe8] sm:$0xf]
      %v2103 = vld [vmem:[%s3 + $0xec] sm:$0xf]
      %v2104 = vld [vmem:[%s3 + $0xf0] sm:$0xf]
      %v2105 = vld [vmem:[%s3 + $0xf4] sm:$0xf]
      %v2106 = vld [vmem:[%s3 + $0xf8] sm:$0xf]
      %v2107 = vld [vmem:[%s3 + $0xfc] sm:$0xf]
      %v2108 = vld [vmem:[%s3 + $0x100] sm:$0xf]
      %v2109 = vld [vmem:[%s3 + $0x104] sm:$0xf]
      %v2110 = vld [vmem:[%s3 + $0x108] sm:$0xf]
      %v2111 = vld [vmem:[%s3 + $0x10c] sm:$0xf]
      %v2112 = vld [vmem:[%s3 + $0x110] sm:$0xf]
      %v2113 = vld [vmem:[%s3 + $0x114] sm:$0xf]
      %v2114 = vld [vmem:[%s3 + $0x118] sm:$0xf]
      %v2115 = vld [vmem:[%s3 + $0x11c] sm:$0xf]
      %v2116 = vld [vmem:[%s4] sm:$0x1]
      %v2117 = vpack.c.bf16 %v2014, %v2014
      %v2118 = vpack.c.bf16 %v2017, %v2017
      %v2119 = vpack.c.bf16 %v2022, %v2022
      %v2120 = vpack.c.bf16 %v2025, %v2025
      %v2121 = vpack.c.bf16 %v2030, %v2030
      %v2122 = vpack.c.bf16 %v2033, %v2033
      %v2123 = vpack.c.bf16 %v2038, %v2038
      %v2124 = vpack.c.bf16 %v2041, %v2041
      %v2126 = vshll.u32 %v2117, 16
      %v2129 = vshll.u32 %v2118, 16
      %v2132 = vshll.u32 %v2119, 16
      %v2135 = vshll.u32 %v2120, 16
      %v2138 = vshll.u32 %v2121, 16
      %v2141 = vshll.u32 %v2122, 16
      %v2144 = vshll.u32 %v2123, 16
      %v2147 = vshll.u32 %v2124, 16
      %v2165 = vrot.slane %v2117, 7
      %v2166 = vrot.slane %v2118, 7
      %v2167 = vrot.slane %v2119, 7
      %v2168 = vrot.slane %v2120, 7
      %v2169 = vrot.slane %v2121, 7
      %v2170 = vrot.slane %v2122, 7
      %v2171 = vrot.slane %v2123, 7
      %v2172 = vrot.slane %v2124, 7
      %v2181 = vshrl.u32 %v2117, 16
      %v2183 = vrot.slane %v2181, 6
      %v2184 = vshrl.u32 %v2118, 16
      %v2186 = vrot.slane %v2184, 6
      %v2187 = vshrl.u32 %v2119, 16
      %v2189 = vrot.slane %v2187, 6
      %v2190 = vshrl.u32 %v2120, 16
      %v2192 = vrot.slane %v2190, 6
      %v2193 = vshrl.u32 %v2121, 16
      %v2195 = vrot.slane %v2193, 6
      %v2196 = vshrl.u32 %v2122, 16
      %v2198 = vrot.slane %v2196, 6
      %v2199 = vshrl.u32 %v2123, 16
      %v2201 = vrot.slane %v2199, 6
      %v2202 = vshrl.u32 %v2124, 16
      %v2204 = vrot.slane %v2202, 6
      %v2205 = vrot.slane %v2126, 7
      %v2206 = vrot.slane %v2129, 7
      %v2207 = vrot.slane %v2132, 7
      %v2208 = vrot.slane %v2135, 7
      %v2209 = vrot.slane %v2138, 7
      %v2210 = vrot.slane %v2141, 7
      %v2211 = vrot.slane %v2144, 7
      %v2212 = vrot.slane %v2147, 7
      %v2221 = vrot.slane %v2117, 6
      %v2222 = vrot.slane %v2118, 6
      %v2223 = vrot.slane %v2119, 6
      %v2224 = vrot.slane %v2120, 6
      %v2225 = vrot.slane %v2121, 6
      %v2226 = vrot.slane %v2122, 6
      %v2227 = vrot.slane %v2123, 6
      %v2228 = vrot.slane %v2124, 6
      %v2237 = vrot.slane %v2181, 5
      %v2238 = vrot.slane %v2184, 5
      %v2239 = vrot.slane %v2187, 5
      %v2240 = vrot.slane %v2190, 5
      %v2241 = vrot.slane %v2193, 5
      %v2242 = vrot.slane %v2196, 5
      %v2243 = vrot.slane %v2199, 5
      %v2244 = vrot.slane %v2202, 5
      %v2245 = vrot.slane %v2126, 6
      %v2246 = vrot.slane %v2129, 6
      %v2247 = vrot.slane %v2132, 6
      %v2248 = vrot.slane %v2135, 6
      %v2249 = vrot.slane %v2138, 6
      %v2250 = vrot.slane %v2141, 6
      %v2251 = vrot.slane %v2144, 6
      %v2252 = vrot.slane %v2147, 6
      %v2261 = vrot.slane %v2117, 5
      %v2262 = vrot.slane %v2118, 5
      %v2263 = vrot.slane %v2119, 5
      %v2264 = vrot.slane %v2120, 5
      %v2265 = vrot.slane %v2121, 5
      %v2266 = vrot.slane %v2122, 5
      %v2267 = vrot.slane %v2123, 5
      %v2268 = vrot.slane %v2124, 5
      %v2277 = vrot.slane %v2181, 4
      %v2278 = vrot.slane %v2184, 4
      %v2279 = vrot.slane %v2187, 4
      %v2280 = vrot.slane %v2190, 4
      %v2281 = vrot.slane %v2193, 4
      %v2282 = vrot.slane %v2196, 4
      %v2283 = vrot.slane %v2199, 4
      %v2284 = vrot.slane %v2202, 4
      %v2285 = vrot.slane %v2126, 5
      %v2286 = vrot.slane %v2129, 5
      %v2287 = vrot.slane %v2132, 5
      %v2288 = vrot.slane %v2135, 5
      %v2289 = vrot.slane %v2138, 5
      %v2290 = vrot.slane %v2141, 5
      %v2291 = vrot.slane %v2144, 5
      %v2292 = vrot.slane %v2147, 5
      %v2301 = vrot.slane %v2117, 4
      %v2302 = vrot.slane %v2118, 4
      %v2303 = vrot.slane %v2119, 4
      %v2304 = vrot.slane %v2120, 4
      %v2305 = vrot.slane %v2121, 4
      %v2306 = vrot.slane %v2122, 4
      %v2307 = vrot.slane %v2123, 4
      %v2308 = vrot.slane %v2124, 4
      %v2317 = vsel %vm547, 0, %v2126
      %v2318 = vsel %vm547, 0, %v2129
      %v2319 = vsel %vm547, 0, %v2132
      %v2320 = vsel %vm547, 0, %v2135
      %v2321 = vsel %vm547, 0, %v2138
      %v2322 = vsel %vm547, 0, %v2141
      %v2323 = vsel %vm547, 0, %v2144
      %v2324 = vsel %vm547, 0, %v2147
      %v2327 = vsel %vm552, %v2317, %v2165
      %v2331 = vsel %vm552, %v2318, %v2166
      %v2335 = vsel %vm552, %v2319, %v2167
      %v2339 = vsel %vm552, %v2320, %v2168
      %v2343 = vsel %vm552, %v2321, %v2169
      %v2347 = vsel %vm552, %v2322, %v2170
      %v2351 = vsel %vm552, %v2323, %v2171
      %v2355 = vsel %vm552, %v2324, %v2172
      %v2357 = vsel %vm571, %v2327, %v2165
      %v2358 = vsel %vm571, %v2331, %v2166
      %v2359 = vsel %vm571, %v2335, %v2167
      %v2360 = vsel %vm571, %v2339, %v2168
      %v2361 = vsel %vm571, %v2343, %v2169
      %v2362 = vsel %vm571, %v2347, %v2170
      %v2363 = vsel %vm571, %v2351, %v2171
      %v2364 = vsel %vm571, %v2355, %v2172
      %v2367 = vsel %vm576, %v2357, %v2183
      %v2371 = vsel %vm576, %v2358, %v2186
      %v2375 = vsel %vm576, %v2359, %v2189
      %v2379 = vsel %vm576, %v2360, %v2192
      %v2383 = vsel %vm576, %v2361, %v2195
      %v2387 = vsel %vm576, %v2362, %v2198
      %v2391 = vsel %vm576, %v2363, %v2201
      %v2395 = vsel %vm576, %v2364, %v2204
      %v2397 = vsel %vm595, %v2367, %v2205
      %v2398 = vsel %vm595, %v2371, %v2206
      %v2399 = vsel %vm595, %v2375, %v2207
      %v2400 = vsel %vm595, %v2379, %v2208
      %v2401 = vsel %vm595, %v2383, %v2209
      %v2402 = vsel %vm595, %v2387, %v2210
      %v2403 = vsel %vm595, %v2391, %v2211
      %v2404 = vsel %vm595, %v2395, %v2212
      %v2407 = vsel %vm600, %v2397, %v2221
      %v2411 = vsel %vm600, %v2398, %v2222
      %v2415 = vsel %vm600, %v2399, %v2223
      %v2419 = vsel %vm600, %v2400, %v2224
      %v2423 = vsel %vm600, %v2401, %v2225
      %v2427 = vsel %vm600, %v2402, %v2226
      %v2431 = vsel %vm600, %v2403, %v2227
      %v2435 = vsel %vm600, %v2404, %v2228
      %v2437 = vsel %vm619, %v2407, %v2221
      %v2438 = vsel %vm619, %v2411, %v2222
      %v2439 = vsel %vm619, %v2415, %v2223
      %v2440 = vsel %vm619, %v2419, %v2224
      %v2441 = vsel %vm619, %v2423, %v2225
      %v2442 = vsel %vm619, %v2427, %v2226
      %v2443 = vsel %vm619, %v2431, %v2227
      %v2444 = vsel %vm619, %v2435, %v2228
      %v2447 = vsel %vm624, %v2437, %v2237
      %v2451 = vsel %vm624, %v2438, %v2238
      %v2455 = vsel %vm624, %v2439, %v2239
      %v2459 = vsel %vm624, %v2440, %v2240
      %v2463 = vsel %vm624, %v2441, %v2241
      %v2467 = vsel %vm624, %v2442, %v2242
      %v2471 = vsel %vm624, %v2443, %v2243
      %v2475 = vsel %vm624, %v2444, %v2244
      %v2477 = vsel %vm643, %v2447, %v2245
      %v2478 = vsel %vm643, %v2451, %v2246
      %v2479 = vsel %vm643, %v2455, %v2247
      %v2480 = vsel %vm643, %v2459, %v2248
      %v2481 = vsel %vm643, %v2463, %v2249
      %v2482 = vsel %vm643, %v2467, %v2250
      %v2483 = vsel %vm643, %v2471, %v2251
      %v2484 = vsel %vm643, %v2475, %v2252
      %vm2485 = vcmask 1044480
      %v2488 = vsel %vm2485, %v2477, %v2261
      %v2492 = vsel %vm2485, %v2478, %v2262
      %v2496 = vsel %vm2485, %v2479, %v2263
      %v2500 = vsel %vm2485, %v2480, %v2264
      %v2504 = vsel %vm2485, %v2481, %v2265
      %v2508 = vsel %vm2485, %v2482, %v2266
      %v2512 = vsel %vm2485, %v2483, %v2267
      %v2516 = vsel %vm2485, %v2484, %v2268
      %vm2518 = vcmask 1045504
      %vm2519 = vsmask.f32 5376
      %vm2520 = vmand %vm2518, %vm2519
      %v2521 = vsel %vm2520, %v2488, %v2261
      %v2522 = vsel %vm2520, %v2492, %v2262
      %v2523 = vsel %vm2520, %v2496, %v2263
      %v2524 = vsel %vm2520, %v2500, %v2264
      %v2525 = vsel %vm2520, %v2504, %v2265
      %v2526 = vsel %vm2520, %v2508, %v2266
      %v2527 = vsel %vm2520, %v2512, %v2267
      %v2528 = vsel %vm2520, %v2516, %v2268
      %vm2529 = vcmask 1045504
      %v2532 = vsel %vm2529, %v2521, %v2277
      %v2536 = vsel %vm2529, %v2522, %v2278
      %v2540 = vsel %vm2529, %v2523, %v2279
      %v2544 = vsel %vm2529, %v2524, %v2280
      %v2548 = vsel %vm2529, %v2525, %v2281
      %v2552 = vsel %vm2529, %v2526, %v2282
      %v2556 = vsel %vm2529, %v2527, %v2283
      %v2560 = vsel %vm2529, %v2528, %v2284
      %vm2562 = vcmask 1046528
      %vm2563 = vsmask.f32 6400
      %vm2564 = vmand %vm2562, %vm2563
      %v2565 = vsel %vm2564, %v2532, %v2285
      %v2566 = vsel %vm2564, %v2536, %v2286
      %v2567 = vsel %vm2564, %v2540, %v2287
      %v2568 = vsel %vm2564, %v2544, %v2288
      %v2569 = vsel %vm2564, %v2548, %v2289
      %v2570 = vsel %vm2564, %v2552, %v2290
      %v2571 = vsel %vm2564, %v2556, %v2291
      %v2572 = vsel %vm2564, %v2560, %v2292
      %vm2573 = vcmask 1046528
      %v2576 = vsel %vm2573, %v2565, %v2301
      %v2580 = vsel %vm2573, %v2566, %v2302
      %v2584 = vsel %vm2573, %v2567, %v2303
      %v2588 = vsel %vm2573, %v2568, %v2304
      %v2592 = vsel %vm2573, %v2569, %v2305
      %v2596 = vsel %vm2573, %v2570, %v2306
      %v2600 = vsel %vm2573, %v2571, %v2307
      %v2604 = vsel %vm2573, %v2572, %v2308
      %vm2606 = vcmask 1047552
      %vm2607 = vsmask.f32 7424
      %vm2608 = vmand %vm2606, %vm2607
      %v2609 = vsel %vm2608, %v2576, %v2301
      %v2610 = vsel %vm2608, %v2580, %v2302
      %v2611 = vsel %vm2608, %v2584, %v2303
      %v2612 = vsel %vm2608, %v2588, %v2304
      %v2613 = vsel %vm2608, %v2592, %v2305
      %v2614 = vsel %vm2608, %v2596, %v2306
      %v2615 = vsel %vm2608, %v2600, %v2307
      %v2616 = vsel %vm2608, %v2604, %v2308
      %v2617 = vrot.slane %v2181, 3
      %v2618 = vrot.slane %v2184, 3
      %v2619 = vrot.slane %v2187, 3
      %v2620 = vrot.slane %v2190, 3
      %v2621 = vrot.slane %v2193, 3
      %v2622 = vrot.slane %v2196, 3
      %v2623 = vrot.slane %v2199, 3
      %v2624 = vrot.slane %v2202, 3
      %v2633 = vsel %vm547, %v2617, 0
      %v2634 = vsel %vm547, %v2618, 0
      %v2635 = vsel %vm547, %v2619, 0
      %v2636 = vsel %vm547, %v2620, 0
      %v2637 = vsel %vm547, %v2621, 0
      %v2638 = vsel %vm547, %v2622, 0
      %v2639 = vsel %vm547, %v2623, 0
      %v2640 = vsel %vm547, %v2624, 0
      %v2657 = vunpack.c.l.b16 %v2609
      %v2658 = vunpack.c.h.b16 %v2609
      %v2659 = vunpack.c.l.b16 %v2633
      %v2660 = vunpack.c.l.b16 %v2610
      %v2661 = vunpack.c.h.b16 %v2610
      %v2662 = vunpack.c.l.b16 %v2634
      %v2663 = vunpack.c.l.b16 %v2611
      %v2664 = vunpack.c.h.b16 %v2611
      %v2665 = vunpack.c.l.b16 %v2635
      %v2666 = vunpack.c.l.b16 %v2612
      %v2667 = vunpack.c.h.b16 %v2612
      %v2668 = vunpack.c.l.b16 %v2636
      %v2669 = vunpack.c.l.b16 %v2613
      %v2670 = vunpack.c.h.b16 %v2613
      %v2671 = vunpack.c.l.b16 %v2637
      %v2672 = vunpack.c.l.b16 %v2614
      %v2673 = vunpack.c.h.b16 %v2614
      %v2674 = vunpack.c.l.b16 %v2638
      %v2675 = vunpack.c.l.b16 %v2615
      %v2676 = vunpack.c.h.b16 %v2615
      %v2677 = vunpack.c.l.b16 %v2639
      %v2678 = vunpack.c.l.b16 %v2616
      %v2679 = vunpack.c.h.b16 %v2616
      %v2680 = vunpack.c.l.b16 %v2640
      %v2681 = vpack.c.b16 %v2657, %v2657
      %v2682 = vpack.c.b16 %v2658, %v2658
      %v2683 = vpack.c.b16 %v2659, %v2659
      %v2684 = vpack.c.b16 %v2660, %v2660
      %v2685 = vpack.c.b16 %v2661, %v2661
      %v2686 = vpack.c.b16 %v2662, %v2662
      %v2687 = vpack.c.b16 %v2663, %v2663
      %v2688 = vpack.c.b16 %v2664, %v2664
      %v2689 = vpack.c.b16 %v2665, %v2665
      %v2690 = vpack.c.b16 %v2666, %v2666
      %v2691 = vpack.c.b16 %v2667, %v2667
      %v2692 = vpack.c.b16 %v2668, %v2668
      %v2693 = vpack.c.b16 %v2669, %v2669
      %v2694 = vpack.c.b16 %v2670, %v2670
      %v2695 = vpack.c.b16 %v2671, %v2671
      %v2696 = vpack.c.b16 %v2672, %v2672
      %v2697 = vpack.c.b16 %v2673, %v2673
      %v2698 = vpack.c.b16 %v2674, %v2674
      %v2699 = vpack.c.b16 %v2675, %v2675
      %v2700 = vpack.c.b16 %v2676, %v2676
      %v2701 = vpack.c.b16 %v2677, %v2677
      %v2702 = vpack.c.b16 %v2678, %v2678
      %v2703 = vpack.c.b16 %v2679, %v2679
      %v2704 = vpack.c.b16 %v2680, %v2680
      %vm2729 = vcmask 519168
      %2730 = vst.msk [vmem:[#allocation3] sm:$0xf] %vm2729, %v663
      %2731 = vst.msk [vmem:[#allocation3 + $0x4] sm:$0xf] %vm2729, %v664
      %vm2732 = vcmask 516096
      %2733 = vst.msk [vmem:[#allocation3 + $0x8] sm:$0x1] %vm2732, %v663
      %2734 = vst.msk [vmem:[#allocation3 + $0xc] sm:$0xf] %vm2729, %v2681
      %2735 = vst.msk [vmem:[#allocation3 + $0x10] sm:$0xf] %vm2729, %v2682
      %2736 = vst.msk [vmem:[#allocation3 + $0x14] sm:$0x1] %vm2732, %v2683
      %2737 = vst.msk [vmem:[#allocation3 + $0x18] sm:$0xf] %vm2729, %v2681
      %2738 = vst.msk [vmem:[#allocation3 + $0x1c] sm:$0xf] %vm2729, %v2682
      %2739 = vst.msk [vmem:[#allocation3 + $0x20] sm:$0x1] %vm2732, %v2683
      %2740 = vst.msk [vmem:[#allocation3 + $0x24] sm:$0xf] %vm2729, %v2684
      %2741 = vst.msk [vmem:[#allocation3 + $0x28] sm:$0xf] %vm2729, %v2685
      %2742 = vst.msk [vmem:[#allocation3 + $0x2c] sm:$0x1] %vm2732, %v2686
      %2743 = vst.msk [vmem:[#allocation3 + $0x30] sm:$0xf] %vm2729, %v2684
      %2744 = vst.msk [vmem:[#allocation3 + $0x34] sm:$0xf] %vm2729, %v2685
      %2745 = vst.msk [vmem:[#allocation3 + $0x38] sm:$0x1] %vm2732, %v2686
      %2746 = vst.msk [vmem:[#allocation3 + $0x3c] sm:$0xf] %vm2729, %v2687
      %2747 = vst.msk [vmem:[#allocation3 + $0x40] sm:$0xf] %vm2729, %v2688
      %2748 = vst.msk [vmem:[#allocation3 + $0x44] sm:$0x1] %vm2732, %v2689
      %2749 = vst.msk [vmem:[#allocation3 + $0x48] sm:$0xf] %vm2729, %v2687
      %2750 = vst.msk [vmem:[#allocation3 + $0x4c] sm:$0xf] %vm2729, %v2688
      %2751 = vst.msk [vmem:[#allocation3 + $0x50] sm:$0x1] %vm2732, %v2689
      %2752 = vst.msk [vmem:[#allocation3 + $0x54] sm:$0xf] %vm2729, %v2690
      %2753 = vst.msk [vmem:[#allocation3 + $0x58] sm:$0xf] %vm2729, %v2691
      %2754 = vst.msk [vmem:[#allocation3 + $0x5c] sm:$0x1] %vm2732, %v2692
      %2755 = vst.msk [vmem:[#allocation3 + $0x60] sm:$0xf] %vm2729, %v2690
      %2756 = vst.msk [vmem:[#allocation3 + $0x64] sm:$0xf] %vm2729, %v2691
      %2757 = vst.msk [vmem:[#allocation3 + $0x68] sm:$0x1] %vm2732, %v2692
      %2758 = vst.msk [vmem:[#allocation3 + $0x6c] sm:$0xf] %vm2729, %v2693
      %2759 = vst.msk [vmem:[#allocation3 + $0x70] sm:$0xf] %vm2729, %v2694
      %2760 = vst.msk [vmem:[#allocation3 + $0x74] sm:$0x1] %vm2732, %v2695
      %2761 = vst.msk [vmem:[#allocation3 + $0x78] sm:$0xf] %vm2729, %v2693
      %2762 = vst.msk [vmem:[#allocation3 + $0x7c] sm:$0xf] %vm2729, %v2694
      %2763 = vst.msk [vmem:[#allocation3 + $0x80] sm:$0x1] %vm2732, %v2695
      %2764 = vst.msk [vmem:[#allocation3 + $0x84] sm:$0xf] %vm2729, %v2696
      %2765 = vst.msk [vmem:[#allocation3 + $0x88] sm:$0xf] %vm2729, %v2697
      %2766 = vst.msk [vmem:[#allocation3 + $0x8c] sm:$0x1] %vm2732, %v2698
      %2767 = vst.msk [vmem:[#allocation3 + $0x90] sm:$0xf] %vm2729, %v2696
      %2768 = vst.msk [vmem:[#allocation3 + $0x94] sm:$0xf] %vm2729, %v2697
      %2769 = vst.msk [vmem:[#allocation3 + $0x98] sm:$0x1] %vm2732, %v2698
      %2770 = vst.msk [vmem:[#allocation3 + $0x9c] sm:$0xf] %vm2729, %v2699
      %2771 = vst.msk [vmem:[#allocation3 + $0xa0] sm:$0xf] %vm2729, %v2700
      %2772 = vst.msk [vmem:[#allocation3 + $0xa4] sm:$0x1] %vm2732, %v2701
      %2773 = vst.msk [vmem:[#allocation3 + $0xa8] sm:$0xf] %vm2729, %v2699
      %2774 = vst.msk [vmem:[#allocation3 + $0xac] sm:$0xf] %vm2729, %v2700
      %2775 = vst.msk [vmem:[#allocation3 + $0xb0] sm:$0x1] %vm2732, %v2701
      %2776 = vst.msk [vmem:[#allocation3 + $0xb4] sm:$0xf] %vm2729, %v2702
      %2777 = vst.msk [vmem:[#allocation3 + $0xb8] sm:$0xf] %vm2729, %v2703
      %2778 = vst.msk [vmem:[#allocation3 + $0xbc] sm:$0x1] %vm2732, %v2704
      %2779 = vst.msk [vmem:[#allocation3 + $0xc0] sm:$0xf] %vm2729, %v2702
      %2780 = vst.msk [vmem:[#allocation3 + $0xc4] sm:$0xf] %vm2729, %v2703
      %2781 = vst.msk [vmem:[#allocation3 + $0xc8] sm:$0x1] %vm2732, %v2704
      %2782 = vst.msk [vmem:[#allocation3 + $0xcc] sm:$0xf] %vm2729, %v663
      %2783 = vst.msk [vmem:[#allocation3 + $0xd0] sm:$0xf] %vm2729, %v664
      %2784 = vst.msk [vmem:[#allocation3 + $0xd4] sm:$0x1] %vm2732, %v663
      %v2785 = vld [vmem:[#allocation3] sm:$0xf]
      %v2786 = vld [vmem:[#allocation3 + $0x4] sm:$0xf]
      %v2787 = vld [vmem:[#allocation3 + $0xc] sm:$0xf]
      %v2788 = vld [vmem:[#allocation3 + $0x10] sm:$0xf]
      %v2789 = vld [vmem:[#allocation3 + $0x18] sm:$0xf]
      %v2790 = vld [vmem:[#allocation3 + $0x1c] sm:$0xf]
      %v2791 = vld [vmem:[#allocation3 + $0x24] sm:$0xf]
      %v2792 = vld [vmem:[#allocation3 + $0x28] sm:$0xf]
      %v2793 = vld [vmem:[#allocation3 + $0x30] sm:$0xf]
      %v2794 = vld [vmem:[#allocation3 + $0x34] sm:$0xf]
      %v2795 = vld [vmem:[#allocation3 + $0x3c] sm:$0xf]
      %v2796 = vld [vmem:[#allocation3 + $0x40] sm:$0xf]
      %v2797 = vld [vmem:[#allocation3 + $0x48] sm:$0xf]
      %v2798 = vld [vmem:[#allocation3 + $0x4c] sm:$0xf]
      %v2799 = vld [vmem:[#allocation3 + $0x54] sm:$0xf]
      %v2800 = vld [vmem:[#allocation3 + $0x58] sm:$0xf]
      %v2801 = vld [vmem:[#allocation3 + $0x60] sm:$0xf]
      %v2802 = vld [vmem:[#allocation3 + $0x64] sm:$0xf]
      %v2803 = vld [vmem:[#allocation3 + $0x6c] sm:$0xf]
      %v2804 = vld [vmem:[#allocation3 + $0x70] sm:$0xf]
      %v2805 = vld [vmem:[#allocation3 + $0x78] sm:$0xf]
      %v2806 = vld [vmem:[#allocation3 + $0x7c] sm:$0xf]
      %v2807 = vld [vmem:[#allocation3 + $0x84] sm:$0xf]
      %v2808 = vld [vmem:[#allocation3 + $0x88] sm:$0xf]
      %v2809 = vld [vmem:[#allocation3 + $0x90] sm:$0xf]
      %v2810 = vld [vmem:[#allocation3 + $0x94] sm:$0xf]
      %v2811 = vld [vmem:[#allocation3 + $0x9c] sm:$0xf]
      %v2812 = vld [vmem:[#allocation3 + $0xa0] sm:$0xf]
      %v2813 = vld [vmem:[#allocation3 + $0xa8] sm:$0xf]
      %v2814 = vld [vmem:[#allocation3 + $0xac] sm:$0xf]
      %v2815 = vld [vmem:[#allocation3 + $0xb4] sm:$0xf]
      %v2816 = vld [vmem:[#allocation3 + $0xb8] sm:$0xf]
      %v2817 = vld [vmem:[#allocation3 + $0x8] sm:$0x1]
      %v2818 = vld [vmem:[#allocation3 + $0x14] sm:$0x1]
      %v2819 = vld [vmem:[#allocation3 + $0x20] sm:$0x1]
      %v2820 = vld [vmem:[#allocation3 + $0x2c] sm:$0x1]
      %v2821 = vld [vmem:[#allocation3 + $0x38] sm:$0x1]
      %v2822 = vld [vmem:[#allocation3 + $0x44] sm:$0x1]
      %v2823 = vld [vmem:[#allocation3 + $0x50] sm:$0x1]
      %v2824 = vld [vmem:[#allocation3 + $0x5c] sm:$0x1]
      %v2825 = vld [vmem:[#allocation3 + $0x68] sm:$0x1]
      %v2826 = vld [vmem:[#allocation3 + $0x74] sm:$0x1]
      %v2827 = vld [vmem:[#allocation3 + $0x80] sm:$0x1]
      %v2828 = vld [vmem:[#allocation3 + $0x8c] sm:$0x1]
      %v2829 = vld [vmem:[#allocation3 + $0x98] sm:$0x1]
      %v2830 = vld [vmem:[#allocation3 + $0xa4] sm:$0x1]
      %v2831 = vld [vmem:[#allocation3 + $0xb0] sm:$0x1]
      %v2832 = vld [vmem:[#allocation3 + $0xbc] sm:$0x1]
      %v2833 = vld [vmem:[#allocation3] sm:$0xe]
      %v2834 = vld [vmem:[#allocation3 + $0xc] sm:$0xe]
      %v2835 = vld [vmem:[#allocation3 + $0x18] sm:$0xe]
      %v2836 = vld [vmem:[#allocation3 + $0x24] sm:$0xe]
      %v2837 = vld [vmem:[#allocation3 + $0x30] sm:$0xe]
      %v2838 = vld [vmem:[#allocation3 + $0x3c] sm:$0xe]
      %v2839 = vld [vmem:[#allocation3 + $0x48] sm:$0xe]
      %v2840 = vld [vmem:[#allocation3 + $0x54] sm:$0xe]
      %v2841 = vld [vmem:[#allocation3 + $0x60] sm:$0xe]
      %v2842 = vld [vmem:[#allocation3 + $0x6c] sm:$0xe]
      %v2843 = vld [vmem:[#allocation3 + $0x78] sm:$0xe]
      %v2844 = vld [vmem:[#allocation3 + $0x84] sm:$0xe]
      %v2845 = vld [vmem:[#allocation3 + $0x90] sm:$0xe]
      %v2846 = vld [vmem:[#allocation3 + $0x9c] sm:$0xe]
      %v2847 = vld [vmem:[#allocation3 + $0xa8] sm:$0xe]
      %v2848 = vld [vmem:[#allocation3 + $0xb4] sm:$0xe]
      %s2849 = scalar_lea.vmem [#allocation3], 12
      %v2850 = vld [vmem:[%s2849] sm:$0xf]
      %v2851 = vld [vmem:[%s2849 + $0x4] sm:$0xf]
      %v2852 = vld [vmem:[%s2849 + $0xc] sm:$0xf]
      %v2853 = vld [vmem:[%s2849 + $0x10] sm:$0xf]
      %v2854 = vld [vmem:[%s2849 + $0x18] sm:$0xf]
      %v2855 = vld [vmem:[%s2849 + $0x1c] sm:$0xf]
      %v2856 = vld [vmem:[%s2849 + $0x24] sm:$0xf]
      %v2857 = vld [vmem:[%s2849 + $0x28] sm:$0xf]
      %v2858 = vld [vmem:[%s2849 + $0x30] sm:$0xf]
      %v2859 = vld [vmem:[%s2849 + $0x34] sm:$0xf]
      %v2860 = vld [vmem:[%s2849 + $0x3c] sm:$0xf]
      %v2861 = vld [vmem:[%s2849 + $0x40] sm:$0xf]
      %v2862 = vld [vmem:[%s2849 + $0x48] sm:$0xf]
      %v2863 = vld [vmem:[%s2849 + $0x4c] sm:$0xf]
      %v2864 = vld [vmem:[%s2849 + $0x54] sm:$0xf]
      %v2865 = vld [vmem:[%s2849 + $0x58] sm:$0xf]
      %v2866 = vld [vmem:[%s2849 + $0x60] sm:$0xf]
      %v2867 = vld [vmem:[%s2849 + $0x64] sm:$0xf]
      %v2868 = vld [vmem:[%s2849 + $0x6c] sm:$0xf]
      %v2869 = vld [vmem:[%s2849 + $0x70] sm:$0xf]
      %v2870 = vld [vmem:[%s2849 + $0x78] sm:$0xf]
      %v2871 = vld [vmem:[%s2849 + $0x7c] sm:$0xf]
      %v2872 = vld [vmem:[%s2849 + $0x84] sm:$0xf]
      %v2873 = vld [vmem:[%s2849 + $0x88] sm:$0xf]
      %v2874 = vld [vmem:[%s2849 + $0x90] sm:$0xf]
      %v2875 = vld [vmem:[%s2849 + $0x94] sm:$0xf]
      %v2876 = vld [vmem:[%s2849 + $0x9c] sm:$0xf]
      %v2877 = vld [vmem:[%s2849 + $0xa0] sm:$0xf]
      %v2878 = vld [vmem:[%s2849 + $0xa8] sm:$0xf]
      %v2879 = vld [vmem:[%s2849 + $0xac] sm:$0xf]
      %v2880 = vld [vmem:[%s2849 + $0xb4] sm:$0xf]
      %v2881 = vld [vmem:[%s2849 + $0xb8] sm:$0xf]
      %v2882 = vld [vmem:[%s2849 + $0x8] sm:$0x1]
      %v2883 = vld [vmem:[%s2849 + $0x14] sm:$0x1]
      %v2884 = vld [vmem:[%s2849 + $0x20] sm:$0x1]
      %v2885 = vld [vmem:[%s2849 + $0x2c] sm:$0x1]
      %v2886 = vld [vmem:[%s2849 + $0x38] sm:$0x1]
      %v2887 = vld [vmem:[%s2849 + $0x44] sm:$0x1]
      %v2888 = vld [vmem:[%s2849 + $0x50] sm:$0x1]
      %v2889 = vld [vmem:[%s2849 + $0x5c] sm:$0x1]
      %v2890 = vld [vmem:[%s2849 + $0x68] sm:$0x1]
      %v2891 = vld [vmem:[%s2849 + $0x74] sm:$0x1]
      %v2892 = vld [vmem:[%s2849 + $0x80] sm:$0x1]
      %v2893 = vld [vmem:[%s2849 + $0x8c] sm:$0x1]
      %v2894 = vld [vmem:[%s2849 + $0x98] sm:$0x1]
      %v2895 = vld [vmem:[%s2849 + $0xa4] sm:$0x1]
      %v2896 = vld [vmem:[%s2849 + $0xb0] sm:$0x1]
      %v2897 = vld [vmem:[%s2849 + $0xbc] sm:$0x1]
      %v2898 = vld [vmem:[%s2849] sm:$0xe]
      %v2899 = vld [vmem:[%s2849 + $0xc] sm:$0xe]
      %v2900 = vld [vmem:[%s2849 + $0x18] sm:$0xe]
      %v2901 = vld [vmem:[%s2849 + $0x24] sm:$0xe]
      %v2902 = vld [vmem:[%s2849 + $0x30] sm:$0xe]
      %v2903 = vld [vmem:[%s2849 + $0x3c] sm:$0xe]
      %v2904 = vld [vmem:[%s2849 + $0x48] sm:$0xe]
      %v2905 = vld [vmem:[%s2849 + $0x54] sm:$0xe]
      %v2906 = vld [vmem:[%s2849 + $0x60] sm:$0xe]
      %v2907 = vld [vmem:[%s2849 + $0x6c] sm:$0xe]
      %v2908 = vld [vmem:[%s2849 + $0x78] sm:$0xe]
      %v2909 = vld [vmem:[%s2849 + $0x84] sm:$0xe]
      %v2910 = vld [vmem:[%s2849 + $0x90] sm:$0xe]
      %v2911 = vld [vmem:[%s2849 + $0x9c] sm:$0xe]
      %v2912 = vld [vmem:[%s2849 + $0xa8] sm:$0xe]
      %v2913 = vld [vmem:[%s2849 + $0xb4] sm:$0xe]
      %s2914 = scalar_lea.vmem [#allocation3], 24
      %v2915 = vld [vmem:[%s2914] sm:$0xf]
      %v2916 = vld [vmem:[%s2914 + $0x4] sm:$0xf]
      %v2917 = vld [vmem:[%s2914 + $0xc] sm:$0xf]
      %v2918 = vld [vmem:[%s2914 + $0x10] sm:$0xf]
      %v2919 = vld [vmem:[%s2914 + $0x18] sm:$0xf]
      %v2920 = vld [vmem:[%s2914 + $0x1c] sm:$0xf]
      %v2921 = vld [vmem:[%s2914 + $0x24] sm:$0xf]
      %v2922 = vld [vmem:[%s2914 + $0x28] sm:$0xf]
      %v2923 = vld [vmem:[%s2914 + $0x30] sm:$0xf]
      %v2924 = vld [vmem:[%s2914 + $0x34] sm:$0xf]
      %v2925 = vld [vmem:[%s2914 + $0x3c] sm:$0xf]
      %v2926 = vld [vmem:[%s2914 + $0x40] sm:$0xf]
      %v2927 = vld [vmem:[%s2914 + $0x48] sm:$0xf]
      %v2928 = vld [vmem:[%s2914 + $0x4c] sm:$0xf]
      %v2929 = vld [vmem:[%s2914 + $0x54] sm:$0xf]
      %v2930 = vld [vmem:[%s2914 + $0x58] sm:$0xf]
      %v2931 = vld [vmem:[%s2914 + $0x60] sm:$0xf]
      %v2932 = vld [vmem:[%s2914 + $0x64] sm:$0xf]
      %v2933 = vld [vmem:[%s2914 + $0x6c] sm:$0xf]
      %v2934 = vld [vmem:[%s2914 + $0x70] sm:$0xf]
      %v2935 = vld [vmem:[%s2914 + $0x78] sm:$0xf]
      %v2936 = vld [vmem:[%s2914 + $0x7c] sm:$0xf]
      %v2937 = vld [vmem:[%s2914 + $0x84] sm:$0xf]
      %v2938 = vld [vmem:[%s2914 + $0x88] sm:$0xf]
      %v2939 = vld [vmem:[%s2914 + $0x90] sm:$0xf]
      %v2940 = vld [vmem:[%s2914 + $0x94] sm:$0xf]
      %v2941 = vld [vmem:[%s2914 + $0x9c] sm:$0xf]
      %v2942 = vld [vmem:[%s2914 + $0xa0] sm:$0xf]
      %v2943 = vld [vmem:[%s2914 + $0xa8] sm:$0xf]
      %v2944 = vld [vmem:[%s2914 + $0xac] sm:$0xf]
      %v2945 = vld [vmem:[%s2914 + $0xb4] sm:$0xf]
      %v2946 = vld [vmem:[%s2914 + $0xb8] sm:$0xf]
      %v2947 = vld [vmem:[%s2914 + $0x8] sm:$0x1]
      %v2948 = vld [vmem:[%s2914 + $0x14] sm:$0x1]
      %v2949 = vld [vmem:[%s2914 + $0x20] sm:$0x1]
      %v2950 = vld [vmem:[%s2914 + $0x2c] sm:$0x1]
      %v2951 = vld [vmem:[%s2914 + $0x38] sm:$0x1]
      %v2952 = vld [vmem:[%s2914 + $0x44] sm:$0x1]
      %v2953 = vld [vmem:[%s2914 + $0x50] sm:$0x1]
      %v2954 = vld [vmem:[%s2914 + $0x5c] sm:$0x1]
      %v2955 = vld [vmem:[%s2914 + $0x68] sm:$0x1]
      %v2956 = vld [vmem:[%s2914 + $0x74] sm:$0x1]
      %v2957 = vld [vmem:[%s2914 + $0x80] sm:$0x1]
      %v2958 = vld [vmem:[%s2914 + $0x8c] sm:$0x1]
      %v2959 = vld [vmem:[%s2914 + $0x98] sm:$0x1]
      %v2960 = vld [vmem:[%s2914 + $0xa4] sm:$0x1]
      %v2961 = vld [vmem:[%s2914 + $0xb0] sm:$0x1]
      %v2962 = vld [vmem:[%s2914 + $0xbc] sm:$0x1]
      %v2963 = vld [vmem:[%s2914] sm:$0xe]
      %v2964 = vld [vmem:[%s2914 + $0xc] sm:$0xe]
      %v2965 = vld [vmem:[%s2914 + $0x18] sm:$0xe]
      %v2966 = vld [vmem:[%s2914 + $0x24] sm:$0xe]
      %v2967 = vld [vmem:[%s2914 + $0x30] sm:$0xe]
      %v2968 = vld [vmem:[%s2914 + $0x3c] sm:$0xe]
      %v2969 = vld [vmem:[%s2914 + $0x48] sm:$0xe]
      %v2970 = vld [vmem:[%s2914 + $0x54] sm:$0xe]
      %v2971 = vld [vmem:[%s2914 + $0x60] sm:$0xe]
      %v2972 = vld [vmem:[%s2914 + $0x6c] sm:$0xe]
      %v2973 = vld [vmem:[%s2914 + $0x78] sm:$0xe]
      %v2974 = vld [vmem:[%s2914 + $0x84] sm:$0xe]
      %v2975 = vld [vmem:[%s2914 + $0x90] sm:$0xe]
      %v2976 = vld [vmem:[%s2914 + $0x9c] sm:$0xe]
      %v2977 = vld [vmem:[%s2914 + $0xa8] sm:$0xe]
      %v2978 = vld [vmem:[%s2914 + $0xb4] sm:$0xe]
      %v3011 = vunpack.c.l.b16 %v2785
      %v3012 = vunpack.c.l.b16 %v2786
      %v3013 = vunpack.c.l.b16 %v2787
      %v3014 = vunpack.c.l.b16 %v2788
      %v3015 = vunpack.c.l.b16 %v2789
      %v3016 = vunpack.c.l.b16 %v2790
      %v3017 = vunpack.c.l.b16 %v2791
      %v3018 = vunpack.c.l.b16 %v2792
      %v3019 = vunpack.c.l.b16 %v2793
      %v3020 = vunpack.c.l.b16 %v2794
      %v3021 = vunpack.c.l.b16 %v2795
      %v3022 = vunpack.c.l.b16 %v2796
      %v3023 = vunpack.c.l.b16 %v2797
      %v3024 = vunpack.c.l.b16 %v2798
      %v3025 = vunpack.c.l.b16 %v2799
      %v3026 = vunpack.c.l.b16 %v2800
      %v3027 = vunpack.c.l.b16 %v2801
      %v3028 = vunpack.c.l.b16 %v2802
      %v3029 = vunpack.c.l.b16 %v2803
      %v3030 = vunpack.c.l.b16 %v2804
      %v3031 = vunpack.c.l.b16 %v2805
      %v3032 = vunpack.c.l.b16 %v2806
      %v3033 = vunpack.c.l.b16 %v2807
      %v3034 = vunpack.c.l.b16 %v2808
      %v3035 = vunpack.c.l.b16 %v2809
      %v3036 = vunpack.c.l.b16 %v2810
      %v3037 = vunpack.c.l.b16 %v2811
      %v3038 = vunpack.c.l.b16 %v2812
      %v3039 = vunpack.c.l.b16 %v2813
      %v3040 = vunpack.c.l.b16 %v2814
      %v3041 = vunpack.c.l.b16 %v2815
      %v3042 = vunpack.c.l.b16 %v2816
      %v3043 = vpack.c.b16 %v3012, %v3011
      %v3044 = vpack.c.b16 %v3014, %v3013
      %v3045 = vpack.c.b16 %v3016, %v3015
      %v3046 = vpack.c.b16 %v3018, %v3017
      %v3047 = vpack.c.b16 %v3020, %v3019
      %v3048 = vpack.c.b16 %v3022, %v3021
      %v3049 = vpack.c.b16 %v3024, %v3023
      %v3050 = vpack.c.b16 %v3026, %v3025
      %v3051 = vpack.c.b16 %v3028, %v3027
      %v3052 = vpack.c.b16 %v3030, %v3029
      %v3053 = vpack.c.b16 %v3032, %v3031
      %v3054 = vpack.c.b16 %v3034, %v3033
      %v3055 = vpack.c.b16 %v3036, %v3035
      %v3056 = vpack.c.b16 %v3038, %v3037
      %v3057 = vpack.c.b16 %v3040, %v3039
      %v3058 = vpack.c.b16 %v3042, %v3041
      %v3075 = vunpack.c.l.b16 %v2817
      %v3076 = vunpack.c.l.b16 %v2818
      %v3077 = vunpack.c.l.b16 %v2819
      %v3078 = vunpack.c.l.b16 %v2820
      %v3079 = vunpack.c.l.b16 %v2821
      %v3080 = vunpack.c.l.b16 %v2822
      %v3081 = vunpack.c.l.b16 %v2823
      %v3082 = vunpack.c.l.b16 %v2824
      %v3083 = vunpack.c.l.b16 %v2825
      %v3084 = vunpack.c.l.b16 %v2826
      %v3085 = vunpack.c.l.b16 %v2827
      %v3086 = vunpack.c.l.b16 %v2828
      %v3087 = vunpack.c.l.b16 %v2829
      %v3088 = vunpack.c.l.b16 %v2830
      %v3089 = vunpack.c.l.b16 %v2831
      %v3090 = vunpack.c.l.b16 %v2832
      %v3091 = vpack.c.b16 %v3075, %v3075
      %v3092 = vpack.c.b16 %v3076, %v3076
      %v3093 = vpack.c.b16 %v3077, %v3077
      %v3094 = vpack.c.b16 %v3078, %v3078
      %v3095 = vpack.c.b16 %v3079, %v3079
      %v3096 = vpack.c.b16 %v3080, %v3080
      %v3097 = vpack.c.b16 %v3081, %v3081
      %v3098 = vpack.c.b16 %v3082, %v3082
      %v3099 = vpack.c.b16 %v3083, %v3083
      %v3100 = vpack.c.b16 %v3084, %v3084
      %v3101 = vpack.c.b16 %v3085, %v3085
      %v3102 = vpack.c.b16 %v3086, %v3086
      %v3103 = vpack.c.b16 %v3087, %v3087
      %v3104 = vpack.c.b16 %v3088, %v3088
      %v3105 = vpack.c.b16 %v3089, %v3089
      %v3106 = vpack.c.b16 %v3090, %v3090
      %v3108 = vshrl.u32 %v3043, 16
      %v3110 = vshll.u32 %v3043, 16
      %v3112 = vrot.slane %v3110, 1
      %v3113 = vor.u32 %v3108, %v3112
      %v3115 = vshll.u32 %v3091, 16
      %v3117 = vrot.slane %v3115, 1
      %v3118 = vsel %vm2607, %v3113, %v3117
      %v3120 = vshrl.u32 %v3044, 16
      %v3122 = vshll.u32 %v3044, 16
      %v3124 = vrot.slane %v3122, 1
      %v3125 = vor.u32 %v3120, %v3124
      %v3127 = vshll.u32 %v3092, 16
      %v3129 = vrot.slane %v3127, 1
      %v3130 = vsel %vm2607, %v3125, %v3129
      %v3132 = vshrl.u32 %v3045, 16
      %v3134 = vshll.u32 %v3045, 16
      %v3136 = vrot.slane %v3134, 1
      %v3137 = vor.u32 %v3132, %v3136
      %v3139 = vshll.u32 %v3093, 16
      %v3141 = vrot.slane %v3139, 1
      %v3142 = vsel %vm2607, %v3137, %v3141
      %v3144 = vshrl.u32 %v3046, 16
      %v3146 = vshll.u32 %v3046, 16
      %v3148 = vrot.slane %v3146, 1
      %v3149 = vor.u32 %v3144, %v3148
      %v3151 = vshll.u32 %v3094, 16
      %v3153 = vrot.slane %v3151, 1
      %v3154 = vsel %vm2607, %v3149, %v3153
      %v3156 = vshrl.u32 %v3047, 16
      %v3158 = vshll.u32 %v3047, 16
      %v3160 = vrot.slane %v3158, 1
      %v3161 = vor.u32 %v3156, %v3160
      %v3163 = vshll.u32 %v3095, 16
      %v3165 = vrot.slane %v3163, 1
      %v3166 = vsel %vm2607, %v3161, %v3165
      %v3168 = vshrl.u32 %v3048, 16
      %v3170 = vshll.u32 %v3048, 16
      %v3172 = vrot.slane %v3170, 1
      %v3173 = vor.u32 %v3168, %v3172
      %v3175 = vshll.u32 %v3096, 16
      %v3177 = vrot.slane %v3175, 1
      %v3178 = vsel %vm2607, %v3173, %v3177
      %v3180 = vshrl.u32 %v3049, 16
      %v3182 = vshll.u32 %v3049, 16
      %v3184 = vrot.slane %v3182, 1
      %v3185 = vor.u32 %v3180, %v3184
      %v3187 = vshll.u32 %v3097, 16
      %v3189 = vrot.slane %v3187, 1
      %v3190 = vsel %vm2607, %v3185, %v3189
      %v3192 = vshrl.u32 %v3050, 16
      %v3194 = vshll.u32 %v3050, 16
      %v3196 = vrot.slane %v3194, 1
      %v3197 = vor.u32 %v3192, %v3196
      %v3199 = vshll.u32 %v3098, 16
      %v3201 = vrot.slane %v3199, 1
      %v3202 = vsel %vm2607, %v3197, %v3201
      %v3204 = vshrl.u32 %v3051, 16
      %v3206 = vshll.u32 %v3051, 16
      %v3208 = vrot.slane %v3206, 1
      %v3209 = vor.u32 %v3204, %v3208
      %v3211 = vshll.u32 %v3099, 16
      %v3213 = vrot.slane %v3211, 1
      %v3214 = vsel %vm2607, %v3209, %v3213
      %v3216 = vshrl.u32 %v3052, 16
      %v3218 = vshll.u32 %v3052, 16
      %v3220 = vrot.slane %v3218, 1
      %v3221 = vor.u32 %v3216, %v3220
      %v3223 = vshll.u32 %v3100, 16
      %v3225 = vrot.slane %v3223, 1
      %v3226 = vsel %vm2607, %v3221, %v3225
      %v3228 = vshrl.u32 %v3053, 16
      %v3230 = vshll.u32 %v3053, 16
      %v3232 = vrot.slane %v3230, 1
      %v3233 = vor.u32 %v3228, %v3232
      %v3235 = vshll.u32 %v3101, 16
      %v3237 = vrot.slane %v3235, 1
      %v3238 = vsel %vm2607, %v3233, %v3237
      %v3240 = vshrl.u32 %v3054, 16
      %v3242 = vshll.u32 %v3054, 16
      %v3244 = vrot.slane %v3242, 1
      %v3245 = vor.u32 %v3240, %v3244
      %v3247 = vshll.u32 %v3102, 16
      %v3249 = vrot.slane %v3247, 1
      %v3250 = vsel %vm2607, %v3245, %v3249
      %v3252 = vshrl.u32 %v3055, 16
      %v3254 = vshll.u32 %v3055, 16
      %v3256 = vrot.slane %v3254, 1
      %v3257 = vor.u32 %v3252, %v3256
      %v3259 = vshll.u32 %v3103, 16
      %v3261 = vrot.slane %v3259, 1
      %v3262 = vsel %vm2607, %v3257, %v3261
      %v3264 = vshrl.u32 %v3056, 16
      %v3266 = vshll.u32 %v3056, 16
      %v3268 = vrot.slane %v3266, 1
      %v3269 = vor.u32 %v3264, %v3268
      %v3271 = vshll.u32 %v3104, 16
      %v3273 = vrot.slane %v3271, 1
      %v3274 = vsel %vm2607, %v3269, %v3273
      %v3276 = vshrl.u32 %v3057, 16
      %v3278 = vshll.u32 %v3057, 16
      %v3280 = vrot.slane %v3278, 1
      %v3281 = vor.u32 %v3276, %v3280
      %v3283 = vshll.u32 %v3105, 16
      %v3285 = vrot.slane %v3283, 1
      %v3286 = vsel %vm2607, %v3281, %v3285
      %v3288 = vshrl.u32 %v3058, 16
      %v3290 = vshll.u32 %v3058, 16
      %v3292 = vrot.slane %v3290, 1
      %v3293 = vor.u32 %v3288, %v3292
      %v3295 = vshll.u32 %v3106, 16
      %v3297 = vrot.slane %v3295, 1
      %v3298 = vsel %vm2607, %v3293, %v3297
      %3299 = vrot.lane.b32.xlu0 %v3118, 64
      %v3300 = vpop.permute.xlu0 %3299
      %3301 = vrot.lane.b32.xlu0 %v3130, 64
      %v3302 = vpop.permute.xlu0 %3301
      %3303 = vrot.lane.b32.xlu0 %v3142, 64
      %v3304 = vpop.permute.xlu0 %3303
      %3305 = vrot.lane.b32.xlu0 %v3154, 64
      %v3306 = vpop.permute.xlu0 %3305
      %3307 = vrot.lane.b32.xlu0 %v3166, 64
      %v3308 = vpop.permute.xlu0 %3307
      %3309 = vrot.lane.b32.xlu0 %v3178, 64
      %v3310 = vpop.permute.xlu0 %3309
      %3311 = vrot.lane.b32.xlu0 %v3190, 64
      %v3312 = vpop.permute.xlu0 %3311
      %3313 = vrot.lane.b32.xlu0 %v3202, 64
      %v3314 = vpop.permute.xlu0 %3313
      %3315 = vrot.lane.b32.xlu0 %v3214, 64
      %v3316 = vpop.permute.xlu0 %3315
      %3317 = vrot.lane.b32.xlu0 %v3226, 64
      %v3318 = vpop.permute.xlu0 %3317
      %3319 = vrot.lane.b32.xlu0 %v3238, 64
      %v3320 = vpop.permute.xlu0 %3319
      %3321 = vrot.lane.b32.xlu0 %v3250, 64
      %v3322 = vpop.permute.xlu0 %3321
      %3323 = vrot.lane.b32.xlu0 %v3262, 64
      %v3324 = vpop.permute.xlu0 %3323
      %3325 = vrot.lane.b32.xlu0 %v3274, 64
      %v3326 = vpop.permute.xlu0 %3325
      %3327 = vrot.lane.b32.xlu0 %v3286, 64
      %v3328 = vpop.permute.xlu0 %3327
      %3329 = vrot.lane.b32.xlu0 %v3298, 64
      %v3330 = vpop.permute.xlu0 %3329
      %v3347 = vunpack.c.l.b16 %v2833
      %v3348 = vunpack.c.l.b16 %v2834
      %v3349 = vunpack.c.l.b16 %v2835
      %v3350 = vunpack.c.l.b16 %v2836
      %v3351 = vunpack.c.l.b16 %v2837
      %v3352 = vunpack.c.l.b16 %v2838
      %v3353 = vunpack.c.l.b16 %v2839
      %v3354 = vunpack.c.l.b16 %v2840
      %v3355 = vunpack.c.l.b16 %v2841
      %v3356 = vunpack.c.l.b16 %v2842
      %v3357 = vunpack.c.l.b16 %v2843
      %v3358 = vunpack.c.l.b16 %v2844
      %v3359 = vunpack.c.l.b16 %v2845
      %v3360 = vunpack.c.l.b16 %v2846
      %v3361 = vunpack.c.l.b16 %v2847
      %v3362 = vunpack.c.l.b16 %v2848
      %v3363 = vpack.c.b16 %v3012, %v3347
      %v3364 = vpack.c.b16 %v3014, %v3348
      %v3365 = vpack.c.b16 %v3016, %v3349
      %v3366 = vpack.c.b16 %v3018, %v3350
      %v3367 = vpack.c.b16 %v3020, %v3351
      %v3368 = vpack.c.b16 %v3022, %v3352
      %v3369 = vpack.c.b16 %v3024, %v3353
      %v3370 = vpack.c.b16 %v3026, %v3354
      %v3371 = vpack.c.b16 %v3028, %v3355
      %v3372 = vpack.c.b16 %v3030, %v3356
      %v3373 = vpack.c.b16 %v3032, %v3357
      %v3374 = vpack.c.b16 %v3034, %v3358
      %v3375 = vpack.c.b16 %v3036, %v3359
      %v3376 = vpack.c.b16 %v3038, %v3360
      %v3377 = vpack.c.b16 %v3040, %v3361
      %v3378 = vpack.c.b16 %v3042, %v3362
      %v3379 = vrot.slane %v3363, 1
      %v3380 = vrot.slane %v3091, 1
      %v3381 = vsel %vm2562, %v3379, %v3380
      %v3382 = vrot.slane %v3364, 1
      %v3383 = vrot.slane %v3092, 1
      %v3384 = vsel %vm2562, %v3382, %v3383
      %v3385 = vrot.slane %v3365, 1
      %v3386 = vrot.slane %v3093, 1
      %v3387 = vsel %vm2562, %v3385, %v3386
      %v3388 = vrot.slane %v3366, 1
      %v3389 = vrot.slane %v3094, 1
      %v3390 = vsel %vm2562, %v3388, %v3389
      %v3391 = vrot.slane %v3367, 1
      %v3392 = vrot.slane %v3095, 1
      %v3393 = vsel %vm2562, %v3391, %v3392
      %v3394 = vrot.slane %v3368, 1
      %v3395 = vrot.slane %v3096, 1
      %v3396 = vsel %vm2562, %v3394, %v3395
      %v3397 = vrot.slane %v3369, 1
      %v3398 = vrot.slane %v3097, 1
      %v3399 = vsel %vm2562, %v3397, %v3398
      %v3400 = vrot.slane %v3370, 1
      %v3401 = vrot.slane %v3098, 1
      %v3402 = vsel %vm2562, %v3400, %v3401
      %v3403 = vrot.slane %v3371, 1
      %v3404 = vrot.slane %v3099, 1
      %v3405 = vsel %vm2562, %v3403, %v3404
      %v3406 = vrot.slane %v3372, 1
      %v3407 = vrot.slane %v3100, 1
      %v3408 = vsel %vm2562, %v3406, %v3407
      %v3409 = vrot.slane %v3373, 1
      %v3410 = vrot.slane %v3101, 1
      %v3411 = vsel %vm2562, %v3409, %v3410
      %v3412 = vrot.slane %v3374, 1
      %v3413 = vrot.slane %v3102, 1
      %v3414 = vsel %vm2562, %v3412, %v3413
      %v3415 = vrot.slane %v3375, 1
      %v3416 = vrot.slane %v3103, 1
      %v3417 = vsel %vm2562, %v3415, %v3416
      %v3418 = vrot.slane %v3376, 1
      %v3419 = vrot.slane %v3104, 1
      %v3420 = vsel %vm2562, %v3418, %v3419
      %v3421 = vrot.slane %v3377, 1
      %v3422 = vrot.slane %v3105, 1
      %v3423 = vsel %vm2562, %v3421, %v3422
      %v3424 = vrot.slane %v3378, 1
      %v3425 = vrot.slane %v3106, 1
      %v3426 = vsel %vm2562, %v3424, %v3425
      %v3459 = vunpack.c.l.b16 %v2850
      %v3460 = vunpack.c.l.b16 %v2851
      %v3461 = vunpack.c.l.b16 %v2852
      %v3462 = vunpack.c.l.b16 %v2853
      %v3463 = vunpack.c.l.b16 %v2854
      %v3464 = vunpack.c.l.b16 %v2855
      %v3465 = vunpack.c.l.b16 %v2856
      %v3466 = vunpack.c.l.b16 %v2857
      %v3467 = vunpack.c.l.b16 %v2858
      %v3468 = vunpack.c.l.b16 %v2859
      %v3469 = vunpack.c.l.b16 %v2860
      %v3470 = vunpack.c.l.b16 %v2861
      %v3471 = vunpack.c.l.b16 %v2862
      %v3472 = vunpack.c.l.b16 %v2863
      %v3473 = vunpack.c.l.b16 %v2864
      %v3474 = vunpack.c.l.b16 %v2865
      %v3475 = vunpack.c.l.b16 %v2866
      %v3476 = vunpack.c.l.b16 %v2867
      %v3477 = vunpack.c.l.b16 %v2868
      %v3478 = vunpack.c.l.b16 %v2869
      %v3479 = vunpack.c.l.b16 %v2870
      %v3480 = vunpack.c.l.b16 %v2871
      %v3481 = vunpack.c.l.b16 %v2872
      %v3482 = vunpack.c.l.b16 %v2873
      %v3483 = vunpack.c.l.b16 %v2874
      %v3484 = vunpack.c.l.b16 %v2875
      %v3485 = vunpack.c.l.b16 %v2876
      %v3486 = vunpack.c.l.b16 %v2877
      %v3487 = vunpack.c.l.b16 %v2878
      %v3488 = vunpack.c.l.b16 %v2879
      %v3489 = vunpack.c.l.b16 %v2880
      %v3490 = vunpack.c.l.b16 %v2881
      %v3491 = vpack.c.b16 %v3460, %v3459
      %v3492 = vpack.c.b16 %v3462, %v3461
      %v3493 = vpack.c.b16 %v3464, %v3463
      %v3494 = vpack.c.b16 %v3466, %v3465
      %v3495 = vpack.c.b16 %v3468, %v3467
      %v3496 = vpack.c.b16 %v3470, %v3469
      %v3497 = vpack.c.b16 %v3472, %v3471
      %v3498 = vpack.c.b16 %v3474, %v3473
      %v3499 = vpack.c.b16 %v3476, %v3475
      %v3500 = vpack.c.b16 %v3478, %v3477
      %v3501 = vpack.c.b16 %v3480, %v3479
      %v3502 = vpack.c.b16 %v3482, %v3481
      %v3503 = vpack.c.b16 %v3484, %v3483
      %v3504 = vpack.c.b16 %v3486, %v3485
      %v3505 = vpack.c.b16 %v3488, %v3487
      %v3506 = vpack.c.b16 %v3490, %v3489
      %3507 = vrot.lane.b32.xlu0 %v3491, 64
      %v3508 = vpop.permute.xlu0 %3507
      %3509 = vrot.lane.b32.xlu0 %v3492, 64
      %v3510 = vpop.permute.xlu0 %3509
      %3511 = vrot.lane.b32.xlu0 %v3493, 64
      %v3512 = vpop.permute.xlu0 %3511
      %3513 = vrot.lane.b32.xlu0 %v3494, 64
      %v3514 = vpop.permute.xlu0 %3513
      %3515 = vrot.lane.b32.xlu0 %v3495, 64
      %v3516 = vpop.permute.xlu0 %3515
      %3517 = vrot.lane.b32.xlu0 %v3496, 64
      %v3518 = vpop.permute.xlu0 %3517
      %3519 = vrot.lane.b32.xlu0 %v3497, 64
      %v3520 = vpop.permute.xlu0 %3519
      %3521 = vrot.lane.b32.xlu0 %v3498, 64
      %v3522 = vpop.permute.xlu0 %3521
      %3523 = vrot.lane.b32.xlu0 %v3499, 64
      %v3524 = vpop.permute.xlu0 %3523
      %3525 = vrot.lane.b32.xlu0 %v3500, 64
      %v3526 = vpop.permute.xlu0 %3525
      %3527 = vrot.lane.b32.xlu0 %v3501, 64
      %v3528 = vpop.permute.xlu0 %3527
      %3529 = vrot.lane.b32.xlu0 %v3502, 64
      %v3530 = vpop.permute.xlu0 %3529
      %3531 = vrot.lane.b32.xlu0 %v3503, 64
      %v3532 = vpop.permute.xlu0 %3531
      %3533 = vrot.lane.b32.xlu0 %v3504, 64
      %v3534 = vpop.permute.xlu0 %3533
      %3535 = vrot.lane.b32.xlu0 %v3505, 64
      %v3536 = vpop.permute.xlu0 %3535
      %3537 = vrot.lane.b32.xlu0 %v3506, 64
      %v3538 = vpop.permute.xlu0 %3537
      %v3555 = vunpack.c.l.b16 %v2882
      %v3556 = vunpack.c.l.b16 %v2883
      %v3557 = vunpack.c.l.b16 %v2884
      %v3558 = vunpack.c.l.b16 %v2885
      %v3559 = vunpack.c.l.b16 %v2886
      %v3560 = vunpack.c.l.b16 %v2887
      %v3561 = vunpack.c.l.b16 %v2888
      %v3562 = vunpack.c.l.b16 %v2889
      %v3563 = vunpack.c.l.b16 %v2890
      %v3564 = vunpack.c.l.b16 %v2891
      %v3565 = vunpack.c.l.b16 %v2892
      %v3566 = vunpack.c.l.b16 %v2893
      %v3567 = vunpack.c.l.b16 %v2894
      %v3568 = vunpack.c.l.b16 %v2895
      %v3569 = vunpack.c.l.b16 %v2896
      %v3570 = vunpack.c.l.b16 %v2897
      %v3571 = vpack.c.b16 %v3555, %v3555
      %v3572 = vpack.c.b16 %v3556, %v3556
      %v3573 = vpack.c.b16 %v3557, %v3557
      %v3574 = vpack.c.b16 %v3558, %v3558
      %v3575 = vpack.c.b16 %v3559, %v3559
      %v3576 = vpack.c.b16 %v3560, %v3560
      %v3577 = vpack.c.b16 %v3561, %v3561
      %v3578 = vpack.c.b16 %v3562, %v3562
      %v3579 = vpack.c.b16 %v3563, %v3563
      %v3580 = vpack.c.b16 %v3564, %v3564
      %v3581 = vpack.c.b16 %v3565, %v3565
      %v3582 = vpack.c.b16 %v3566, %v3566
      %v3583 = vpack.c.b16 %v3567, %v3567
      %v3584 = vpack.c.b16 %v3568, %v3568
      %v3585 = vpack.c.b16 %v3569, %v3569
      %v3586 = vpack.c.b16 %v3570, %v3570
      %v3588 = vshrl.u32 %v3491, 16
      %v3590 = vshll.u32 %v3491, 16
      %v3592 = vrot.slane %v3590, 1
      %v3593 = vor.u32 %v3588, %v3592
      %v3595 = vshll.u32 %v3571, 16
      %v3597 = vrot.slane %v3595, 1
      %v3598 = vsel %vm2607, %v3593, %v3597
      %v3600 = vshrl.u32 %v3492, 16
      %v3602 = vshll.u32 %v3492, 16
      %v3604 = vrot.slane %v3602, 1
      %v3605 = vor.u32 %v3600, %v3604
      %v3607 = vshll.u32 %v3572, 16
      %v3609 = vrot.slane %v3607, 1
      %v3610 = vsel %vm2607, %v3605, %v3609
      %v3612 = vshrl.u32 %v3493, 16
      %v3614 = vshll.u32 %v3493, 16
      %v3616 = vrot.slane %v3614, 1
      %v3617 = vor.u32 %v3612, %v3616
      %v3619 = vshll.u32 %v3573, 16
      %v3621 = vrot.slane %v3619, 1
      %v3622 = vsel %vm2607, %v3617, %v3621
      %v3624 = vshrl.u32 %v3494, 16
      %v3626 = vshll.u32 %v3494, 16
      %v3628 = vrot.slane %v3626, 1
      %v3629 = vor.u32 %v3624, %v3628
      %v3631 = vshll.u32 %v3574, 16
      %v3633 = vrot.slane %v3631, 1
      %v3634 = vsel %vm2607, %v3629, %v3633
      %v3636 = vshrl.u32 %v3495, 16
      %v3638 = vshll.u32 %v3495, 16
      %v3640 = vrot.slane %v3638, 1
      %v3641 = vor.u32 %v3636, %v3640
      %v3643 = vshll.u32 %v3575, 16
      %v3645 = vrot.slane %v3643, 1
      %v3646 = vsel %vm2607, %v3641, %v3645
      %v3648 = vshrl.u32 %v3496, 16
      %v3650 = vshll.u32 %v3496, 16
      %v3652 = vrot.slane %v3650, 1
      %v3653 = vor.u32 %v3648, %v3652
      %v3655 = vshll.u32 %v3576, 16
      %v3657 = vrot.slane %v3655, 1
      %v3658 = vsel %vm2607, %v3653, %v3657
      %v3660 = vshrl.u32 %v3497, 16
      %v3662 = vshll.u32 %v3497, 16
      %v3664 = vrot.slane %v3662, 1
      %v3665 = vor.u32 %v3660, %v3664
      %v3667 = vshll.u32 %v3577, 16
      %v3669 = vrot.slane %v3667, 1
      %v3670 = vsel %vm2607, %v3665, %v3669
      %v3672 = vshrl.u32 %v3498, 16
      %v3674 = vshll.u32 %v3498, 16
      %v3676 = vrot.slane %v3674, 1
      %v3677 = vor.u32 %v3672, %v3676
      %v3679 = vshll.u32 %v3578, 16
      %v3681 = vrot.slane %v3679, 1
      %v3682 = vsel %vm2607, %v3677, %v3681
      %v3684 = vshrl.u32 %v3499, 16
      %v3686 = vshll.u32 %v3499, 16
      %v3688 = vrot.slane %v3686, 1
      %v3689 = vor.u32 %v3684, %v3688
      %v3691 = vshll.u32 %v3579, 16
      %v3693 = vrot.slane %v3691, 1
      %v3694 = vsel %vm2607, %v3689, %v3693
      %v3696 = vshrl.u32 %v3500, 16
      %v3698 = vshll.u32 %v3500, 16
      %v3700 = vrot.slane %v3698, 1
      %v3701 = vor.u32 %v3696, %v3700
      %v3703 = vshll.u32 %v3580, 16
      %v3705 = vrot.slane %v3703, 1
      %v3706 = vsel %vm2607, %v3701, %v3705
      %v3708 = vshrl.u32 %v3501, 16
      %v3710 = vshll.u32 %v3501, 16
      %v3712 = vrot.slane %v3710, 1
      %v3713 = vor.u32 %v3708, %v3712
      %v3715 = vshll.u32 %v3581, 16
      %v3717 = vrot.slane %v3715, 1
      %v3718 = vsel %vm2607, %v3713, %v3717
      %v3720 = vshrl.u32 %v3502, 16
      %v3722 = vshll.u32 %v3502, 16
      %v3724 = vrot.slane %v3722, 1
      %v3725 = vor.u32 %v3720, %v3724
      %v3727 = vshll.u32 %v3582, 16
      %v3729 = vrot.slane %v3727, 1
      %v3730 = vsel %vm2607, %v3725, %v3729
      %v3732 = vshrl.u32 %v3503, 16
      %v3734 = vshll.u32 %v3503, 16
      %v3736 = vrot.slane %v3734, 1
      %v3737 = vor.u32 %v3732, %v3736
      %v3739 = vshll.u32 %v3583, 16
      %v3741 = vrot.slane %v3739, 1
      %v3742 = vsel %vm2607, %v3737, %v3741
      %v3744 = vshrl.u32 %v3504, 16
      %v3746 = vshll.u32 %v3504, 16
      %v3748 = vrot.slane %v3746, 1
      %v3749 = vor.u32 %v3744, %v3748
      %v3751 = vshll.u32 %v3584, 16
      %v3753 = vrot.slane %v3751, 1
      %v3754 = vsel %vm2607, %v3749, %v3753
      %v3756 = vshrl.u32 %v3505, 16
      %v3758 = vshll.u32 %v3505, 16
      %v3760 = vrot.slane %v3758, 1
      %v3761 = vor.u32 %v3756, %v3760
      %v3763 = vshll.u32 %v3585, 16
      %v3765 = vrot.slane %v3763, 1
      %v3766 = vsel %vm2607, %v3761, %v3765
      %v3768 = vshrl.u32 %v3506, 16
      %v3770 = vshll.u32 %v3506, 16
      %v3772 = vrot.slane %v3770, 1
      %v3773 = vor.u32 %v3768, %v3772
      %v3775 = vshll.u32 %v3586, 16
      %v3777 = vrot.slane %v3775, 1
      %v3778 = vsel %vm2607, %v3773, %v3777
      %v3795 = vunpack.c.l.b16 %v2898
      %v3796 = vunpack.c.l.b16 %v2899
      %v3797 = vunpack.c.l.b16 %v2900
      %v3798 = vunpack.c.l.b16 %v2901
      %v3799 = vunpack.c.l.b16 %v2902
      %v3800 = vunpack.c.l.b16 %v2903
      %v3801 = vunpack.c.l.b16 %v2904
      %v3802 = vunpack.c.l.b16 %v2905
      %v3803 = vunpack.c.l.b16 %v2906
      %v3804 = vunpack.c.l.b16 %v2907
      %v3805 = vunpack.c.l.b16 %v2908
      %v3806 = vunpack.c.l.b16 %v2909
      %v3807 = vunpack.c.l.b16 %v2910
      %v3808 = vunpack.c.l.b16 %v2911
      %v3809 = vunpack.c.l.b16 %v2912
      %v3810 = vunpack.c.l.b16 %v2913
      %v3811 = vpack.c.b16 %v3460, %v3795
      %v3812 = vpack.c.b16 %v3462, %v3796
      %v3813 = vpack.c.b16 %v3464, %v3797
      %v3814 = vpack.c.b16 %v3466, %v3798
      %v3815 = vpack.c.b16 %v3468, %v3799
      %v3816 = vpack.c.b16 %v3470, %v3800
      %v3817 = vpack.c.b16 %v3472, %v3801
      %v3818 = vpack.c.b16 %v3474, %v3802
      %v3819 = vpack.c.b16 %v3476, %v3803
      %v3820 = vpack.c.b16 %v3478, %v3804
      %v3821 = vpack.c.b16 %v3480, %v3805
      %v3822 = vpack.c.b16 %v3482, %v3806
      %v3823 = vpack.c.b16 %v3484, %v3807
      %v3824 = vpack.c.b16 %v3486, %v3808
      %v3825 = vpack.c.b16 %v3488, %v3809
      %v3826 = vpack.c.b16 %v3490, %v3810
      %v3827 = vrot.slane %v3811, 1
      %v3828 = vrot.slane %v3571, 1
      %v3829 = vsel %vm2562, %v3827, %v3828
      %v3830 = vrot.slane %v3812, 1
      %v3831 = vrot.slane %v3572, 1
      %v3832 = vsel %vm2562, %v3830, %v3831
      %v3833 = vrot.slane %v3813, 1
      %v3834 = vrot.slane %v3573, 1
      %v3835 = vsel %vm2562, %v3833, %v3834
      %v3836 = vrot.slane %v3814, 1
      %v3837 = vrot.slane %v3574, 1
      %v3838 = vsel %vm2562, %v3836, %v3837
      %v3839 = vrot.slane %v3815, 1
      %v3840 = vrot.slane %v3575, 1
      %v3841 = vsel %vm2562, %v3839, %v3840
      %v3842 = vrot.slane %v3816, 1
      %v3843 = vrot.slane %v3576, 1
      %v3844 = vsel %vm2562, %v3842, %v3843
      %v3845 = vrot.slane %v3817, 1
      %v3846 = vrot.slane %v3577, 1
      %v3847 = vsel %vm2562, %v3845, %v3846
      %v3848 = vrot.slane %v3818, 1
      %v3849 = vrot.slane %v3578, 1
      %v3850 = vsel %vm2562, %v3848, %v3849
      %v3851 = vrot.slane %v3819, 1
      %v3852 = vrot.slane %v3579, 1
      %v3853 = vsel %vm2562, %v3851, %v3852
      %v3854 = vrot.slane %v3820, 1
      %v3855 = vrot.slane %v3580, 1
      %v3856 = vsel %vm2562, %v3854, %v3855
      %v3857 = vrot.slane %v3821, 1
      %v3858 = vrot.slane %v3581, 1
      %v3859 = vsel %vm2562, %v3857, %v3858
      %v3860 = vrot.slane %v3822, 1
      %v3861 = vrot.slane %v3582, 1
      %v3862 = vsel %vm2562, %v3860, %v3861
      %v3863 = vrot.slane %v3823, 1
      %v3864 = vrot.slane %v3583, 1
      %v3865 = vsel %vm2562, %v3863, %v3864
      %v3866 = vrot.slane %v3824, 1
      %v3867 = vrot.slane %v3584, 1
      %v3868 = vsel %vm2562, %v3866, %v3867
      %v3869 = vrot.slane %v3825, 1
      %v3870 = vrot.slane %v3585, 1
      %v3871 = vsel %vm2562, %v3869, %v3870
      %v3872 = vrot.slane %v3826, 1
      %v3873 = vrot.slane %v3586, 1
      %v3874 = vsel %vm2562, %v3872, %v3873
      %3875 = vrot.lane.b32.xlu0 %v3829, 64
      %v3876 = vpop.permute.xlu0 %3875
      %3877 = vrot.lane.b32.xlu0 %v3832, 64
      %v3878 = vpop.permute.xlu0 %3877
      %3879 = vrot.lane.b32.xlu0 %v3835, 64
      %v3880 = vpop.permute.xlu0 %3879
      %3881 = vrot.lane.b32.xlu0 %v3838, 64
      %v3882 = vpop.permute.xlu0 %3881
      %3883 = vrot.lane.b32.xlu0 %v3841, 64
      %v3884 = vpop.permute.xlu0 %3883
      %3885 = vrot.lane.b32.xlu0 %v3844, 64
      %v3886 = vpop.permute.xlu0 %3885
      %3887 = vrot.lane.b32.xlu0 %v3847, 64
      %v3888 = vpop.permute.xlu0 %3887
      %3889 = vrot.lane.b32.xlu0 %v3850, 64
      %v3890 = vpop.permute.xlu0 %3889
      %3891 = vrot.lane.b32.xlu0 %v3853, 64
      %v3892 = vpop.permute.xlu0 %3891
      %3893 = vrot.lane.b32.xlu0 %v3856, 64
      %v3894 = vpop.permute.xlu0 %3893
      %3895 = vrot.lane.b32.xlu0 %v3859, 64
      %v3896 = vpop.permute.xlu0 %3895
      %3897 = vrot.lane.b32.xlu0 %v3862, 64
      %v3898 = vpop.permute.xlu0 %3897
      %3899 = vrot.lane.b32.xlu0 %v3865, 64
      %v3900 = vpop.permute.xlu0 %3899
      %3901 = vrot.lane.b32.xlu0 %v3868, 64
      %v3902 = vpop.permute.xlu0 %3901
      %3903 = vrot.lane.b32.xlu0 %v3871, 64
      %v3904 = vpop.permute.xlu0 %3903
      %3905 = vrot.lane.b32.xlu0 %v3874, 64
      %v3906 = vpop.permute.xlu0 %3905
      %v3939 = vunpack.c.l.b16 %v2915
      %v3940 = vunpack.c.l.b16 %v2916
      %v3941 = vunpack.c.l.b16 %v2917
      %v3942 = vunpack.c.l.b16 %v2918
      %v3943 = vunpack.c.l.b16 %v2919
      %v3944 = vunpack.c.l.b16 %v2920
      %v3945 = vunpack.c.l.b16 %v2921
      %v3946 = vunpack.c.l.b16 %v2922
      %v3947 = vunpack.c.l.b16 %v2923
      %v3948 = vunpack.c.l.b16 %v2924
      %v3949 = vunpack.c.l.b16 %v2925
      %v3950 = vunpack.c.l.b16 %v2926
      %v3951 = vunpack.c.l.b16 %v2927
      %v3952 = vunpack.c.l.b16 %v2928
      %v3953 = vunpack.c.l.b16 %v2929
      %v3954 = vunpack.c.l.b16 %v2930
      %v3955 = vunpack.c.l.b16 %v2931
      %v3956 = vunpack.c.l.b16 %v2932
      %v3957 = vunpack.c.l.b16 %v2933
      %v3958 = vunpack.c.l.b16 %v2934
      %v3959 = vunpack.c.l.b16 %v2935
      %v3960 = vunpack.c.l.b16 %v2936
      %v3961 = vunpack.c.l.b16 %v2937
      %v3962 = vunpack.c.l.b16 %v2938
      %v3963 = vunpack.c.l.b16 %v2939
      %v3964 = vunpack.c.l.b16 %v2940
      %v3965 = vunpack.c.l.b16 %v2941
      %v3966 = vunpack.c.l.b16 %v2942
      %v3967 = vunpack.c.l.b16 %v2943
      %v3968 = vunpack.c.l.b16 %v2944
      %v3969 = vunpack.c.l.b16 %v2945
      %v3970 = vunpack.c.l.b16 %v2946
      %v3971 = vpack.c.b16 %v3940, %v3939
      %v3972 = vpack.c.b16 %v3942, %v3941
      %v3973 = vpack.c.b16 %v3944, %v3943
      %v3974 = vpack.c.b16 %v3946, %v3945
      %v3975 = vpack.c.b16 %v3948, %v3947
      %v3976 = vpack.c.b16 %v3950, %v3949
      %v3977 = vpack.c.b16 %v3952, %v3951
      %v3978 = vpack.c.b16 %v3954, %v3953
      %v3979 = vpack.c.b16 %v3956, %v3955
      %v3980 = vpack.c.b16 %v3958, %v3957
      %v3981 = vpack.c.b16 %v3960, %v3959
      %v3982 = vpack.c.b16 %v3962, %v3961
      %v3983 = vpack.c.b16 %v3964, %v3963
      %v3984 = vpack.c.b16 %v3966, %v3965
      %v3985 = vpack.c.b16 %v3968, %v3967
      %v3986 = vpack.c.b16 %v3970, %v3969
      %v4003 = vunpack.c.l.b16 %v2947
      %v4004 = vunpack.c.l.b16 %v2948
      %v4005 = vunpack.c.l.b16 %v2949
      %v4006 = vunpack.c.l.b16 %v2950
      %v4007 = vunpack.c.l.b16 %v2951
      %v4008 = vunpack.c.l.b16 %v2952
      %v4009 = vunpack.c.l.b16 %v2953
      %v4010 = vunpack.c.l.b16 %v2954
      %v4011 = vunpack.c.l.b16 %v2955
      %v4012 = vunpack.c.l.b16 %v2956
      %v4013 = vunpack.c.l.b16 %v2957
      %v4014 = vunpack.c.l.b16 %v2958
      %v4015 = vunpack.c.l.b16 %v2959
      %v4016 = vunpack.c.l.b16 %v2960
      %v4017 = vunpack.c.l.b16 %v2961
      %v4018 = vunpack.c.l.b16 %v2962
      %v4019 = vpack.c.b16 %v4003, %v4003
      %v4020 = vpack.c.b16 %v4004, %v4004
      %v4021 = vpack.c.b16 %v4005, %v4005
      %v4022 = vpack.c.b16 %v4006, %v4006
      %v4023 = vpack.c.b16 %v4007, %v4007
      %v4024 = vpack.c.b16 %v4008, %v4008
      %v4025 = vpack.c.b16 %v4009, %v4009
      %v4026 = vpack.c.b16 %v4010, %v4010
      %v4027 = vpack.c.b16 %v4011, %v4011
      %v4028 = vpack.c.b16 %v4012, %v4012
      %v4029 = vpack.c.b16 %v4013, %v4013
      %v4030 = vpack.c.b16 %v4014, %v4014
      %v4031 = vpack.c.b16 %v4015, %v4015
      %v4032 = vpack.c.b16 %v4016, %v4016
      %v4033 = vpack.c.b16 %v4017, %v4017
      %v4034 = vpack.c.b16 %v4018, %v4018
      %v4036 = vshrl.u32 %v3971, 16
      %v4038 = vshll.u32 %v3971, 16
      %v4040 = vrot.slane %v4038, 1
      %v4041 = vor.u32 %v4036, %v4040
      %v4043 = vshll.u32 %v4019, 16
      %v4045 = vrot.slane %v4043, 1
      %v4046 = vsel %vm2607, %v4041, %v4045
      %v4048 = vshrl.u32 %v3972, 16
      %v4050 = vshll.u32 %v3972, 16
      %v4052 = vrot.slane %v4050, 1
      %v4053 = vor.u32 %v4048, %v4052
      %v4055 = vshll.u32 %v4020, 16
      %v4057 = vrot.slane %v4055, 1
      %v4058 = vsel %vm2607, %v4053, %v4057
      %v4060 = vshrl.u32 %v3973, 16
      %v4062 = vshll.u32 %v3973, 16
      %v4064 = vrot.slane %v4062, 1
      %v4065 = vor.u32 %v4060, %v4064
      %v4067 = vshll.u32 %v4021, 16
      %v4069 = vrot.slane %v4067, 1
      %v4070 = vsel %vm2607, %v4065, %v4069
      %v4072 = vshrl.u32 %v3974, 16
      %v4074 = vshll.u32 %v3974, 16
      %v4076 = vrot.slane %v4074, 1
      %v4077 = vor.u32 %v4072, %v4076
      %v4079 = vshll.u32 %v4022, 16
      %v4081 = vrot.slane %v4079, 1
      %v4082 = vsel %vm2607, %v4077, %v4081
      %v4084 = vshrl.u32 %v3975, 16
      %v4086 = vshll.u32 %v3975, 16
      %v4088 = vrot.slane %v4086, 1
      %v4089 = vor.u32 %v4084, %v4088
      %v4091 = vshll.u32 %v4023, 16
      %v4093 = vrot.slane %v4091, 1
      %v4094 = vsel %vm2607, %v4089, %v4093
      %v4096 = vshrl.u32 %v3976, 16
      %v4098 = vshll.u32 %v3976, 16
      %v4100 = vrot.slane %v4098, 1
      %v4101 = vor.u32 %v4096, %v4100
      %v4103 = vshll.u32 %v4024, 16
      %v4105 = vrot.slane %v4103, 1
      %v4106 = vsel %vm2607, %v4101, %v4105
      %v4108 = vshrl.u32 %v3977, 16
      %v4110 = vshll.u32 %v3977, 16
      %v4112 = vrot.slane %v4110, 1
      %v4113 = vor.u32 %v4108, %v4112
      %v4115 = vshll.u32 %v4025, 16
      %v4117 = vrot.slane %v4115, 1
      %v4118 = vsel %vm2607, %v4113, %v4117
      %v4120 = vshrl.u32 %v3978, 16
      %v4122 = vshll.u32 %v3978, 16
      %v4124 = vrot.slane %v4122, 1
      %v4125 = vor.u32 %v4120, %v4124
      %v4127 = vshll.u32 %v4026, 16
      %v4129 = vrot.slane %v4127, 1
      %v4130 = vsel %vm2607, %v4125, %v4129
      %v4132 = vshrl.u32 %v3979, 16
      %v4134 = vshll.u32 %v3979, 16
      %v4136 = vrot.slane %v4134, 1
      %v4137 = vor.u32 %v4132, %v4136
      %v4139 = vshll.u32 %v4027, 16
      %v4141 = vrot.slane %v4139, 1
      %v4142 = vsel %vm2607, %v4137, %v4141
      %v4144 = vshrl.u32 %v3980, 16
      %v4146 = vshll.u32 %v3980, 16
      %v4148 = vrot.slane %v4146, 1
      %v4149 = vor.u32 %v4144, %v4148
      %v4151 = vshll.u32 %v4028, 16
      %v4153 = vrot.slane %v4151, 1
      %v4154 = vsel %vm2607, %v4149, %v4153
      %v4156 = vshrl.u32 %v3981, 16
      %v4158 = vshll.u32 %v3981, 16
      %v4160 = vrot.slane %v4158, 1
      %v4161 = vor.u32 %v4156, %v4160
      %v4163 = vshll.u32 %v4029, 16
      %v4165 = vrot.slane %v4163, 1
      %v4166 = vsel %vm2607, %v4161, %v4165
      %v4168 = vshrl.u32 %v3982, 16
      %v4170 = vshll.u32 %v3982, 16
      %v4172 = vrot.slane %v4170, 1
      %v4173 = vor.u32 %v4168, %v4172
      %v4175 = vshll.u32 %v4030, 16
      %v4177 = vrot.slane %v4175, 1
      %v4178 = vsel %vm2607, %v4173, %v4177
      %v4180 = vshrl.u32 %v3983, 16
      %v4182 = vshll.u32 %v3983, 16
      %v4184 = vrot.slane %v4182, 1
      %v4185 = vor.u32 %v4180, %v4184
      %v4187 = vshll.u32 %v4031, 16
      %v4189 = vrot.slane %v4187, 1
      %v4190 = vsel %vm2607, %v4185, %v4189
      %v4192 = vshrl.u32 %v3984, 16
      %v4194 = vshll.u32 %v3984, 16
      %v4196 = vrot.slane %v4194, 1
      %v4197 = vor.u32 %v4192, %v4196
      %v4199 = vshll.u32 %v4032, 16
      %v4201 = vrot.slane %v4199, 1
      %v4202 = vsel %vm2607, %v4197, %v4201
      %v4204 = vshrl.u32 %v3985, 16
      %v4206 = vshll.u32 %v3985, 16
      %v4208 = vrot.slane %v4206, 1
      %v4209 = vor.u32 %v4204, %v4208
      %v4211 = vshll.u32 %v4033, 16
      %v4213 = vrot.slane %v4211, 1
      %v4214 = vsel %vm2607, %v4209, %v4213
      %v4216 = vshrl.u32 %v3986, 16
      %v4218 = vshll.u32 %v3986, 16
      %v4220 = vrot.slane %v4218, 1
      %v4221 = vor.u32 %v4216, %v4220
      %v4223 = vshll.u32 %v4034, 16
      %v4225 = vrot.slane %v4223, 1
      %v4226 = vsel %vm2607, %v4221, %v4225
      %4227 = vrot.lane.b32.xlu0 %v4046, 64
      %v4228 = vpop.permute.xlu0 %4227
      %4229 = vrot.lane.b32.xlu0 %v4058, 64
      %v4230 = vpop.permute.xlu0 %4229
      %4231 = vrot.lane.b32.xlu0 %v4070, 64
      %v4232 = vpop.permute.xlu0 %4231
      %4233 = vrot.lane.b32.xlu0 %v4082, 64
      %v4234 = vpop.permute.xlu0 %4233
      %4235 = vrot.lane.b32.xlu0 %v4094, 64
      %v4236 = vpop.permute.xlu0 %4235
      %4237 = vrot.lane.b32.xlu0 %v4106, 64
      %v4238 = vpop.permute.xlu0 %4237
      %4239 = vrot.lane.b32.xlu0 %v4118, 64
      %v4240 = vpop.permute.xlu0 %4239
      %4241 = vrot.lane.b32.xlu0 %v4130, 64
      %v4242 = vpop.permute.xlu0 %4241
      %4243 = vrot.lane.b32.xlu0 %v4142, 64
      %v4244 = vpop.permute.xlu0 %4243
      %4245 = vrot.lane.b32.xlu0 %v4154, 64
      %v4246 = vpop.permute.xlu0 %4245
      %4247 = vrot.lane.b32.xlu0 %v4166, 64
      %v4248 = vpop.permute.xlu0 %4247
      %4249 = vrot.lane.b32.xlu0 %v4178, 64
      %v4250 = vpop.permute.xlu0 %4249
      %4251 = vrot.lane.b32.xlu0 %v4190, 64
      %v4252 = vpop.permute.xlu0 %4251
      %4253 = vrot.lane.b32.xlu0 %v4202, 64
      %v4254 = vpop.permute.xlu0 %4253
      %4255 = vrot.lane.b32.xlu0 %v4214, 64
      %v4256 = vpop.permute.xlu0 %4255
      %4257 = vrot.lane.b32.xlu0 %v4226, 64
      %v4258 = vpop.permute.xlu0 %4257
      %v4275 = vunpack.c.l.b16 %v2963
      %v4276 = vunpack.c.l.b16 %v2964
      %v4277 = vunpack.c.l.b16 %v2965
      %v4278 = vunpack.c.l.b16 %v2966
      %v4279 = vunpack.c.l.b16 %v2967
      %v4280 = vunpack.c.l.b16 %v2968
      %v4281 = vunpack.c.l.b16 %v2969
      %v4282 = vunpack.c.l.b16 %v2970
      %v4283 = vunpack.c.l.b16 %v2971
      %v4284 = vunpack.c.l.b16 %v2972
      %v4285 = vunpack.c.l.b16 %v2973
      %v4286 = vunpack.c.l.b16 %v2974
      %v4287 = vunpack.c.l.b16 %v2975
      %v4288 = vunpack.c.l.b16 %v2976
      %v4289 = vunpack.c.l.b16 %v2977
      %v4290 = vunpack.c.l.b16 %v2978
      %v4291 = vpack.c.b16 %v3940, %v4275
      %v4292 = vpack.c.b16 %v3942, %v4276
      %v4293 = vpack.c.b16 %v3944, %v4277
      %v4294 = vpack.c.b16 %v3946, %v4278
      %v4295 = vpack.c.b16 %v3948, %v4279
      %v4296 = vpack.c.b16 %v3950, %v4280
      %v4297 = vpack.c.b16 %v3952, %v4281
      %v4298 = vpack.c.b16 %v3954, %v4282
      %v4299 = vpack.c.b16 %v3956, %v4283
      %v4300 = vpack.c.b16 %v3958, %v4284
      %v4301 = vpack.c.b16 %v3960, %v4285
      %v4302 = vpack.c.b16 %v3962, %v4286
      %v4303 = vpack.c.b16 %v3964, %v4287
      %v4304 = vpack.c.b16 %v3966, %v4288
      %v4305 = vpack.c.b16 %v3968, %v4289
      %v4306 = vpack.c.b16 %v3970, %v4290
      %v4307 = vrot.slane %v4291, 1
      %v4308 = vrot.slane %v4019, 1
      %v4309 = vsel %vm2562, %v4307, %v4308
      %v4310 = vrot.slane %v4292, 1
      %v4311 = vrot.slane %v4020, 1
      %v4312 = vsel %vm2562, %v4310, %v4311
      %v4313 = vrot.slane %v4293, 1
      %v4314 = vrot.slane %v4021, 1
      %v4315 = vsel %vm2562, %v4313, %v4314
      %v4316 = vrot.slane %v4294, 1
      %v4317 = vrot.slane %v4022, 1
      %v4318 = vsel %vm2562, %v4316, %v4317
      %v4319 = vrot.slane %v4295, 1
      %v4320 = vrot.slane %v4023, 1
      %v4321 = vsel %vm2562, %v4319, %v4320
      %v4322 = vrot.slane %v4296, 1
      %v4323 = vrot.slane %v4024, 1
      %v4324 = vsel %vm2562, %v4322, %v4323
      %v4325 = vrot.slane %v4297, 1
      %v4326 = vrot.slane %v4025, 1
      %v4327 = vsel %vm2562, %v4325, %v4326
      %v4328 = vrot.slane %v4298, 1
      %v4329 = vrot.slane %v4026, 1
      %v4330 = vsel %vm2562, %v4328, %v4329
      %v4331 = vrot.slane %v4299, 1
      %v4332 = vrot.slane %v4027, 1
      %v4333 = vsel %vm2562, %v4331, %v4332
      %v4334 = vrot.slane %v4300, 1
      %v4335 = vrot.slane %v4028, 1
      %v4336 = vsel %vm2562, %v4334, %v4335
      %v4337 = vrot.slane %v4301, 1
      %v4338 = vrot.slane %v4029, 1
      %v4339 = vsel %vm2562, %v4337, %v4338
      %v4340 = vrot.slane %v4302, 1
      %v4341 = vrot.slane %v4030, 1
      %v4342 = vsel %vm2562, %v4340, %v4341
      %v4343 = vrot.slane %v4303, 1
      %v4344 = vrot.slane %v4031, 1
      %v4345 = vsel %vm2562, %v4343, %v4344
      %v4346 = vrot.slane %v4304, 1
      %v4347 = vrot.slane %v4032, 1
      %v4348 = vsel %vm2562, %v4346, %v4347
      %v4349 = vrot.slane %v4305, 1
      %v4350 = vrot.slane %v4033, 1
      %v4351 = vsel %vm2562, %v4349, %v4350
      %v4352 = vrot.slane %v4306, 1
      %v4353 = vrot.slane %v4034, 1
      %v4354 = vsel %vm2562, %v4352, %v4353
      %vm4355 = vcmask 523264
      %v4357 = vsel %vm4355, %v3043, %v3300
      %v4360 = vsel %vm4355, %v3044, %v3302
      %v4363 = vsel %vm4355, %v3045, %v3304
      %v4366 = vsel %vm4355, %v3046, %v3306
      %v4369 = vsel %vm4355, %v3047, %v3308
      %v4372 = vsel %vm4355, %v3048, %v3310
      %v4375 = vsel %vm4355, %v3049, %v3312
      %v4378 = vsel %vm4355, %v3050, %v3314
      %v4381 = vsel %vm4355, %v3051, %v3316
      %v4384 = vsel %vm4355, %v3052, %v3318
      %v4387 = vsel %vm4355, %v3053, %v3320
      %v4390 = vsel %vm4355, %v3054, %v3322
      %v4393 = vsel %vm4355, %v3055, %v3324
      %v4396 = vsel %vm4355, %v3056, %v3326
      %v4399 = vsel %vm4355, %v3057, %v3328
      %v4402 = vsel %vm4355, %v3058, %v3330
      %v4406 = vsel %vm4355, %v3381, %v3508
      %v4410 = vsel %vm4355, %v3384, %v3510
      %v4414 = vsel %vm4355, %v3387, %v3512
      %v4418 = vsel %vm4355, %v3390, %v3514
      %v4422 = vsel %vm4355, %v3393, %v3516
      %v4426 = vsel %vm4355, %v3396, %v3518
      %v4430 = vsel %vm4355, %v3399, %v3520
      %v4434 = vsel %vm4355, %v3402, %v3522
      %v4438 = vsel %vm4355, %v3405, %v3524
      %v4442 = vsel %vm4355, %v3408, %v3526
      %v4446 = vsel %vm4355, %v3411, %v3528
      %v4450 = vsel %vm4355, %v3414, %v3530
      %v4454 = vsel %vm4355, %v3417, %v3532
      %v4458 = vsel %vm4355, %v3420, %v3534
      %v4462 = vsel %vm4355, %v3423, %v3536
      %v4466 = vsel %vm4355, %v3426, %v3538
      %v4470 = vsel %vm4355, %v3598, %v3876
      %v4474 = vsel %vm4355, %v3610, %v3878
      %v4478 = vsel %vm4355, %v3622, %v3880
      %v4482 = vsel %vm4355, %v3634, %v3882
      %v4486 = vsel %vm4355, %v3646, %v3884
      %v4490 = vsel %vm4355, %v3658, %v3886
      %v4494 = vsel %vm4355, %v3670, %v3888
      %v4498 = vsel %vm4355, %v3682, %v3890
      %v4502 = vsel %vm4355, %v3694, %v3892
      %v4506 = vsel %vm4355, %v3706, %v3894
      %v4510 = vsel %vm4355, %v3718, %v3896
      %v4514 = vsel %vm4355, %v3730, %v3898
      %v4518 = vsel %vm4355, %v3742, %v3900
      %v4522 = vsel %vm4355, %v3754, %v3902
      %v4526 = vsel %vm4355, %v3766, %v3904
      %v4530 = vsel %vm4355, %v3778, %v3906
      %v4533 = vsel %vm4355, %v3971, %v4228
      %v4536 = vsel %vm4355, %v3972, %v4230
      %v4539 = vsel %vm4355, %v3973, %v4232
      %v4542 = vsel %vm4355, %v3974, %v4234
      %v4545 = vsel %vm4355, %v3975, %v4236
      %v4548 = vsel %vm4355, %v3976, %v4238
      %v4551 = vsel %vm4355, %v3977, %v4240
      %v4554 = vsel %vm4355, %v3978, %v4242
      %v4557 = vsel %vm4355, %v3979, %v4244
      %v4560 = vsel %vm4355, %v3980, %v4246
      %v4563 = vsel %vm4355, %v3981, %v4248
      %v4566 = vsel %vm4355, %v3982, %v4250
      %v4569 = vsel %vm4355, %v3983, %v4252
      %v4572 = vsel %vm4355, %v3984, %v4254
      %v4575 = vsel %vm4355, %v3985, %v4256
      %v4578 = vsel %vm4355, %v3986, %v4258
      %v4581 = vlaneseq
      %v4582 = vshrl.u32 %v4581, 7
      %v4583 = vsub.s32 0, %v4582
      %v4584 = vrot.slane %v2116, %v4583
      %v4658 = vunpack.c.l.b16 %v2044
      %v4659 = vunpack.c.l.b16 %v2045
      %v4660 = vunpack.c.l.b16 %v2046
      %v4661 = vunpack.c.l.b16 %v2047
      %v4662 = vunpack.c.l.b16 %v2048
      %v4663 = vunpack.c.l.b16 %v2049
      %v4664 = vunpack.c.l.b16 %v2050
      %v4665 = vunpack.c.l.b16 %v2051
      %v4666 = vunpack.c.l.b16 %v2052
      %v4667 = vunpack.c.l.b16 %v2053
      %v4668 = vunpack.c.l.b16 %v2054
      %v4669 = vunpack.c.l.b16 %v2055
      %v4670 = vunpack.c.l.b16 %v2056
      %v4671 = vunpack.c.l.b16 %v2057
      %v4672 = vunpack.c.l.b16 %v2058
      %v4673 = vunpack.c.l.b16 %v2059
      %v4674 = vunpack.c.l.b16 %v2060
      %v4675 = vunpack.c.l.b16 %v2061
      %v4676 = vunpack.c.l.b16 %v2062
      %v4677 = vunpack.c.l.b16 %v2063
      %v4678 = vunpack.c.l.b16 %v2064
      %v4679 = vunpack.c.l.b16 %v2065
      %v4680 = vunpack.c.l.b16 %v2066
      %v4681 = vunpack.c.l.b16 %v2067
      %v4682 = vunpack.c.l.b16 %v2068
      %v4683 = vunpack.c.l.b16 %v2069
      %v4684 = vunpack.c.l.b16 %v2070
      %v4685 = vunpack.c.l.b16 %v2071
      %v4686 = vunpack.c.l.b16 %v2072
      %v4687 = vunpack.c.l.b16 %v2073
      %v4688 = vunpack.c.l.b16 %v2074
      %v4689 = vunpack.c.l.b16 %v2075
      %v4690 = vunpack.c.l.b16 %v2076
      %v4691 = vunpack.c.l.b16 %v2077
      %v4692 = vunpack.c.l.b16 %v2078
      %v4693 = vunpack.c.l.b16 %v2079
      %v4694 = vunpack.c.l.b16 %v2080
      %v4695 = vunpack.c.l.b16 %v2081
      %v4696 = vunpack.c.l.b16 %v2082
      %v4697 = vunpack.c.l.b16 %v2083
      %v4698 = vunpack.c.l.b16 %v2084
      %v4699 = vunpack.c.l.b16 %v2085
      %v4700 = vunpack.c.l.b16 %v2086
      %v4701 = vunpack.c.l.b16 %v2087
      %v4702 = vunpack.c.l.b16 %v2088
      %v4703 = vunpack.c.l.b16 %v2089
      %v4704 = vunpack.c.l.b16 %v2090
      %v4705 = vunpack.c.l.b16 %v2091
      %v4706 = vunpack.c.l.b16 %v2092
      %v4707 = vunpack.c.l.b16 %v2093
      %v4708 = vunpack.c.l.b16 %v2094
      %v4709 = vunpack.c.l.b16 %v2095
      %v4710 = vunpack.c.l.b16 %v2096
      %v4711 = vunpack.c.l.b16 %v2097
      %v4712 = vunpack.c.l.b16 %v2098
      %v4713 = vunpack.c.l.b16 %v2099
      %v4714 = vunpack.c.l.b16 %v2100
      %v4715 = vunpack.c.l.b16 %v2101
      %v4716 = vunpack.c.l.b16 %v2102
      %v4717 = vunpack.c.l.b16 %v2103
      %v4718 = vunpack.c.l.b16 %v2104
      %v4719 = vunpack.c.l.b16 %v2105
      %v4720 = vunpack.c.l.b16 %v2106
      %v4721 = vunpack.c.l.b16 %v2107
      %v4722 = vunpack.c.l.b16 %v2108
      %v4723 = vunpack.c.l.b16 %v2109
      %v4724 = vunpack.c.l.b16 %v2110
      %v4725 = vunpack.c.l.b16 %v2111
      %v4726 = vunpack.c.l.b16 %v2112
      %v4727 = vunpack.c.l.b16 %v2113
      %v4728 = vunpack.c.l.b16 %v2114
      %v4729 = vunpack.c.l.b16 %v2115
      %v4730 = vpack.c.b16 %v4659, %v4658
      %v4731 = vpack.c.b16 %v4661, %v4660
      %v4732 = vpack.c.b16 %v4663, %v4662
      %v4733 = vpack.c.b16 %v4665, %v4664
      %v4734 = vpack.c.b16 %v4667, %v4666
      %v4735 = vpack.c.b16 %v4669, %v4668
      %v4736 = vpack.c.b16 %v4671, %v4670
      %v4737 = vpack.c.b16 %v4673, %v4672
      %v4738 = vpack.c.b16 %v4675, %v4674
      %v4739 = vpack.c.b16 %v4677, %v4676
      %v4740 = vpack.c.b16 %v4679, %v4678
      %v4741 = vpack.c.b16 %v4681, %v4680
      %v4742 = vpack.c.b16 %v4683, %v4682
      %v4743 = vpack.c.b16 %v4685, %v4684
      %v4744 = vpack.c.b16 %v4687, %v4686
      %v4745 = vpack.c.b16 %v4689, %v4688
      %v4746 = vpack.c.b16 %v4691, %v4690
      %v4747 = vpack.c.b16 %v4693, %v4692
      %v4748 = vpack.c.b16 %v4695, %v4694
      %v4749 = vpack.c.b16 %v4697, %v4696
      %v4750 = vpack.c.b16 %v4699, %v4698
      %v4751 = vpack.c.b16 %v4701, %v4700
      %v4752 = vpack.c.b16 %v4703, %v4702
      %v4753 = vpack.c.b16 %v4705, %v4704
      %v4754 = vpack.c.b16 %v4707, %v4706
      %v4755 = vpack.c.b16 %v4709, %v4708
      %v4756 = vpack.c.b16 %v4711, %v4710
      %v4757 = vpack.c.b16 %v4713, %v4712
      %v4758 = vpack.c.b16 %v4715, %v4714
      %v4759 = vpack.c.b16 %v4717, %v4716
      %v4760 = vpack.c.b16 %v4719, %v4718
      %v4761 = vpack.c.b16 %v4721, %v4720
      %v4762 = vpack.c.b16 %v4723, %v4722
      %v4763 = vpack.c.b16 %v4725, %v4724
      %v4764 = vpack.c.b16 %v4727, %v4726
      %v4765 = vpack.c.b16 %v4729, %v4728
      %v4803 = vsel %vm4355, %v4309, 0
      %v4806 = vsel %vm4355, %v4312, 0
      %v4809 = vsel %vm4355, %v4315, 0
      %v4812 = vsel %vm4355, %v4318, 0
      %v4815 = vsel %vm4355, %v4321, 0
      %v4818 = vsel %vm4355, %v4324, 0
      %v4821 = vsel %vm4355, %v4327, 0
      %v4824 = vsel %vm4355, %v4330, 0
      %v4827 = vsel %vm4355, %v4333, 0
      %v4830 = vsel %vm4355, %v4336, 0
      %v4833 = vsel %vm4355, %v4339, 0
      %v4836 = vsel %vm4355, %v4342, 0
      %v4839 = vsel %vm4355, %v4345, 0
      %v4842 = vsel %vm4355, %v4348, 0
      %v4845 = vsel %vm4355, %v4351, 0
      %v4848 = vsel %vm4355, %v4354, 0
      %4850 = vmatprep.subr.bf16.mxu0 0
      %4851 = vmatpush1.bf16.msra.mxu0 %v4730
      %4852 = vmatprep.subr.bf16.mxu0 0
      %4853 = vmatpush1.bf16.msra.mxu0 %v4731
      %4854 = vmatprep.subr.bf16.mxu0 0
      %4855 = vmatpush1.bf16.msra.mxu0 %v4732
      %4856 = vmatprep.subr.bf16.mxu0 0
      %4857 = vmatpush1.bf16.msra.mxu0 %v4733
      %4858 = vmatprep.subr.bf16.mxu0 0
      %4859 = vmatpush1.bf16.msra.mxu0 %v4734
      %4860 = vmatprep.subr.bf16.mxu0 0
      %4861 = vmatpush1.bf16.msra.mxu0 %v4735
      %4862 = vmatprep.subr.bf16.mxu0 0
      %4863 = vmatpush1.bf16.msra.mxu0 %v4736
      %4864 = vmatprep.subr.bf16.mxu0 0
      %4865 = vmatpush1.bf16.msra.mxu0 %v4737
      %4866 = vmatprep.subr.bf16.mxu0 0
      %4867 = vmatpush1.bf16.msra.mxu0 %v4738
      %4868 = vmatprep.subr.bf16.mxu0 0
      %4869 = vmatpush1.bf16.msra.mxu0 %v4739
      %4870 = vmatprep.subr.bf16.mxu0 0
      %4871 = vmatpush1.bf16.msra.mxu0 %v4740
      %4872 = vmatprep.subr.bf16.mxu0 0
      %4873 = vmatpush1.bf16.msra.mxu0 %v4741
      %4874 = vmatprep.subr.bf16.mxu0 0
      %4875 = vmatpush1.bf16.msra.mxu0 %v4742
      %4876 = vmatprep.subr.bf16.mxu0 0
      %4877 = vmatpush1.bf16.msra.mxu0 %v4743
      %4878 = vmatprep.subr.bf16.mxu0 0
      %4879 = vmatpush1.bf16.msra.mxu0 %v4744
      %4880 = vmatprep.subr.bf16.mxu0 0
      %4881 = vmatpush1.bf16.msra.mxu0 %v4745
      %4882 = vmatprep.mubr.bf16.mxu0 %v4406
      %4883 = vmatmul.mubr.bf16.gmra.mrb[0].mxu0 %v4357
      %v4884 = vpop.f32.mrb[0].mxu0
      %v4885 = vadd.f32 %v4584, %v4884
      %v4886 = vpop.f32.mrb[0].mxu0
      %v4887 = vpop.f32.mrb[0].mxu0
      %v4888 = vadd.f32 %v4584, %v4887
      %v4889 = vpop.f32.mrb[0].mxu0
      %4890 = vmatprep.mubr.bf16.mxu0 %v4410
      %4891 = vmatmul.mubr.bf16.gmra.mrb[0].mxu0 %v4360
      %v4892 = vpop.f32.mrb[0].mxu0
      %v4893 = vadd.f32 %v4584, %v4892
      %v4894 = vpop.f32.mrb[0].mxu0
      %v4895 = vpop.f32.mrb[0].mxu0
      %v4896 = vadd.f32 %v4584, %v4895
      %v4897 = vpop.f32.mrb[0].mxu0
      %4898 = vmatprep.mubr.bf16.mxu0 %v4414
      %4899 = vmatmul.mubr.bf16.gmra.mrb[0].mxu0 %v4363
      %v4900 = vpop.f32.mrb[0].mxu0
      %v4901 = vadd.f32 %v4584, %v4900
      %v4902 = vpop.f32.mrb[0].mxu0
      %v4903 = vpop.f32.mrb[0].mxu0
      %v4904 = vadd.f32 %v4584, %v4903
      %v4905 = vpop.f32.mrb[0].mxu0
      %4906 = vmatprep.mubr.bf16.mxu0 %v4418
      %4907 = vmatmul.mubr.bf16.gmra.mrb[0].mxu0 %v4366
      %v4908 = vpop.f32.mrb[0].mxu0
      %v4909 = vadd.f32 %v4584, %v4908
      %v4910 = vpop.f32.mrb[0].mxu0
      %v4911 = vpop.f32.mrb[0].mxu0
      %v4912 = vadd.f32 %v4584, %v4911
      %v4913 = vpop.f32.mrb[0].mxu0
      %4914 = vmatprep.mubr.bf16.mxu0 %v4422
      %4915 = vmatmul.mubr.bf16.gmra.mrb[0].mxu0 %v4369
      %v4916 = vpop.f32.mrb[0].mxu0
      %v4917 = vadd.f32 %v4584, %v4916
      %v4918 = vpop.f32.mrb[0].mxu0
      %v4919 = vpop.f32.mrb[0].mxu0
      %v4920 = vadd.f32 %v4584, %v4919
      %v4921 = vpop.f32.mrb[0].mxu0
      %4922 = vmatprep.mubr.bf16.mxu0 %v4426
      %4923 = vmatmul.mubr.bf16.gmra.mrb[0].mxu0 %v4372
      %v4924 = vpop.f32.mrb[0].mxu0
      %v4925 = vadd.f32 %v4584, %v4924
      %v4926 = vpop.f32.mrb[0].mxu0
      %v4927 = vpop.f32.mrb[0].mxu0
      %v4928 = vadd.f32 %v4584, %v4927
      %v4929 = vpop.f32.mrb[0].mxu0
      %4930 = vmatprep.mubr.bf16.mxu0 %v4430
      %4931 = vmatmul.mubr.bf16.gmra.mrb[0].mxu0 %v4375
      %v4932 = vpop.f32.mrb[0].mxu0
      %v4933 = vadd.f32 %v4584, %v4932
      %v4934 = vpop.f32.mrb[0].mxu0
      %v4935 = vpop.f32.mrb[0].mxu0
      %v4936 = vadd.f32 %v4584, %v4935
      %v4937 = vpop.f32.mrb[0].mxu0
      %4938 = vmatprep.mubr.bf16.mxu0 %v4434
      %4939 = vmatmul.mubr.bf16.gmra.mrb[0].mxu0 %v4378
      %v4940 = vpop.f32.mrb[0].mxu0
      %v4941 = vadd.f32 %v4584, %v4940
      %v4942 = vpop.f32.mrb[0].mxu0
      %v4943 = vpop.f32.mrb[0].mxu0
      %v4944 = vadd.f32 %v4584, %v4943
      %v4945 = vpop.f32.mrb[0].mxu0
      %4946 = vmatprep.mubr.bf16.mxu0 %v4438
      %4947 = vmatmul.mubr.bf16.gmra.mrb[0].mxu0 %v4381
      %v4948 = vpop.f32.mrb[0].mxu0
      %v4949 = vadd.f32 %v4584, %v4948
      %v4950 = vpop.f32.mrb[0].mxu0
      %v4951 = vpop.f32.mrb[0].mxu0
      %v4952 = vadd.f32 %v4584, %v4951
      %v4953 = vpop.f32.mrb[0].mxu0
      %4954 = vmatprep.mubr.bf16.mxu0 %v4442
      %4955 = vmatmul.mubr.bf16.gmra.mrb[0].mxu0 %v4384
      %v4956 = vpop.f32.mrb[0].mxu0
      %v4957 = vadd.f32 %v4584, %v4956
      %v4958 = vpop.f32.mrb[0].mxu0
      %v4959 = vpop.f32.mrb[0].mxu0
      %v4960 = vadd.f32 %v4584, %v4959
      %v4961 = vpop.f32.mrb[0].mxu0
      %4962 = vmatprep.mubr.bf16.mxu0 %v4446
      %4963 = vmatmul.mubr.bf16.gmra.mrb[0].mxu0 %v4387
      %v4964 = vpop.f32.mrb[0].mxu0
      %v4965 = vadd.f32 %v4584, %v4964
      %v4966 = vpop.f32.mrb[0].mxu0
      %v4967 = vpop.f32.mrb[0].mxu0
      %v4968 = vadd.f32 %v4584, %v4967
      %v4969 = vpop.f32.mrb[0].mxu0
      %4970 = vmatprep.mubr.bf16.mxu0 %v4450
      %4971 = vmatmul.mubr.bf16.gmra.mrb[0].mxu0 %v4390
      %v4972 = vpop.f32.mrb[0].mxu0
      %v4973 = vadd.f32 %v4584, %v4972
      %v4974 = vpop.f32.mrb[0].mxu0
      %v4975 = vpop.f32.mrb[0].mxu0
      %v4976 = vadd.f32 %v4584, %v4975
      %v4977 = vpop.f32.mrb[0].mxu0
      %4978 = vmatprep.mubr.bf16.mxu0 %v4454
      %4979 = vmatmul.mubr.bf16.gmra.mrb[0].mxu0 %v4393
      %v4980 = vpop.f32.mrb[0].mxu0
      %v4981 = vadd.f32 %v4584, %v4980
      %v4982 = vpop.f32.mrb[0].mxu0
      %v4983 = vpop.f32.mrb[0].mxu0
      %v4984 = vadd.f32 %v4584, %v4983
      %v4985 = vpop.f32.mrb[0].mxu0
      %4986 = vmatprep.mubr.bf16.mxu0 %v4458
      %4987 = vmatmul.mubr.bf16.gmra.mrb[0].mxu0 %v4396
      %v4988 = vpop.f32.mrb[0].mxu0
      %v4989 = vadd.f32 %v4584, %v4988
      %v4990 = vpop.f32.mrb[0].mxu0
      %v4991 = vpop.f32.mrb[0].mxu0
      %v4992 = vadd.f32 %v4584, %v4991
      %v4993 = vpop.f32.mrb[0].mxu0
      %4994 = vmatprep.mubr.bf16.mxu0 %v4462
      %4995 = vmatmul.mubr.bf16.gmra.mrb[0].mxu0 %v4399
      %v4996 = vpop.f32.mrb[0].mxu0
      %v4997 = vadd.f32 %v4584, %v4996
      %v4998 = vpop.f32.mrb[0].mxu0
      %v4999 = vpop.f32.mrb[0].mxu0
      %v5000 = vadd.f32 %v4584, %v4999
      %v5001 = vpop.f32.mrb[0].mxu0
      %5002 = vmatprep.mubr.bf16.mxu0 %v4466
      %5003 = vmatmul.mubr.bf16.gmra.mrb[0].mxu0 %v4402
      %v5004 = vpop.f32.mrb[0].mxu0
      %v5005 = vadd.f32 %v4584, %v5004
      %v5006 = vpop.f32.mrb[0].mxu0
      %v5007 = vpop.f32.mrb[0].mxu0
      %v5008 = vadd.f32 %v4584, %v5007
      %v5009 = vpop.f32.mrb[0].mxu0
      %5010 = vdwg.mxu0
      %5011 = vmatprep.subr.bf16.mxu0 0
      %5012 = vmatpush1.bf16.msra.mxu0 %v4746
      %5013 = vmatprep.subr.bf16.mxu0 0
      %5014 = vmatpush1.bf16.msra.mxu0 %v4747
      %5015 = vmatprep.subr.bf16.mxu0 0
      %5016 = vmatpush1.bf16.msra.mxu0 %v4748
      %5017 = vmatprep.subr.bf16.mxu0 0
      %5018 = vmatpush1.bf16.msra.mxu0 %v4749
      %5019 = vmatprep.subr.bf16.mxu0 0
      %5020 = vmatpush1.bf16.msra.mxu0 %v4750
      %5021 = vmatprep.subr.bf16.mxu0 0
      %5022 = vmatpush1.bf16.msra.mxu0 %v4751
      %5023 = vmatprep.subr.bf16.mxu0 0
      %5024 = vmatpush1.bf16.msra.mxu0 %v4752
      %5025 = vmatprep.subr.bf16.mxu0 0
      %5026 = vmatpush1.bf16.msra.mxu0 %v4753
      %5027 = vmatprep.subr.bf16.mxu0 0
      %5028 = vmatpush1.bf16.msra.mxu0 %v4754
      %5029 = vmatprep.subr.bf16.mxu0 0
      %5030 = vmatpush1.bf16.msra.mxu0 %v4755
      %5031 = vmatprep.subr.bf16.mxu0 0
      %5032 = vmatpush1.bf16.msra.mxu0 %v4756
      %5033 = vmatprep.subr.bf16.mxu0 0
      %5034 = vmatpush1.bf16.msra.mxu0 %v4757
      %5035 = vmatprep.subr.bf16.mxu0 0
      %5036 = vmatpush1.bf16.msra.mxu0 %v4758
      %5037 = vmatprep.subr.bf16.mxu0 0
      %5038 = vmatpush1.bf16.msra.mxu0 %v4759
      %5039 = vmatprep.subr.bf16.mxu0 0
      %5040 = vmatpush1.bf16.msra.mxu0 %v4760
      %5041 = vmatprep.subr.bf16.mxu0 0
      %5042 = vmatpush1.bf16.msra.mxu0 %v4761
      %5043 = vmatprep.mubr.bf16.mxu0 %v4533
      %5044 = vmatmul.mubr.bf16.gmra.mrb[0].mxu0 %v4470
      %v5045 = vpop.f32.mrb[0].mxu0
      %v5046 = vadd.f32 %v4885, %v5045
      %v5047 = vpop.f32.mrb[0].mxu0
      %v5048 = vpop.f32.mrb[0].mxu0
      %v5049 = vadd.f32 %v4888, %v5048
      %v5050 = vpop.f32.mrb[0].mxu0
      %5051 = vmatprep.mubr.bf16.mxu0 %v4536
      %5052 = vmatmul.mubr.bf16.gmra.mrb[0].mxu0 %v4474
      %v5053 = vpop.f32.mrb[0].mxu0
      %v5054 = vadd.f32 %v4893, %v5053
      %v5055 = vpop.f32.mrb[0].mxu0
      %v5056 = vpop.f32.mrb[0].mxu0
      %v5057 = vadd.f32 %v4896, %v5056
      %v5058 = vpop.f32.mrb[0].mxu0
      %5059 = vmatprep.mubr.bf16.mxu0 %v4539
      %5060 = vmatmul.mubr.bf16.gmra.mrb[0].mxu0 %v4478
      %v5061 = vpop.f32.mrb[0].mxu0
      %v5062 = vadd.f32 %v4901, %v5061
      %v5063 = vpop.f32.mrb[0].mxu0
      %v5064 = vpop.f32.mrb[0].mxu0
      %v5065 = vadd.f32 %v4904, %v5064
      %v5066 = vpop.f32.mrb[0].mxu0
      %5067 = vmatprep.mubr.bf16.mxu0 %v4542
      %5068 = vmatmul.mubr.bf16.gmra.mrb[0].mxu0 %v4482
      %v5069 = vpop.f32.mrb[0].mxu0
      %v5070 = vadd.f32 %v4909, %v5069
      %v5071 = vpop.f32.mrb[0].mxu0
      %v5072 = vpop.f32.mrb[0].mxu0
      %v5073 = vadd.f32 %v4912, %v5072
      %v5074 = vpop.f32.mrb[0].mxu0
      %5075 = vmatprep.mubr.bf16.mxu0 %v4545
      %5076 = vmatmul.mubr.bf16.gmra.mrb[0].mxu0 %v4486
      %v5077 = vpop.f32.mrb[0].mxu0
      %v5078 = vadd.f32 %v4917, %v5077
      %v5079 = vpop.f32.mrb[0].mxu0
      %v5080 = vpop.f32.mrb[0].mxu0
      %v5081 = vadd.f32 %v4920, %v5080
      %v5082 = vpop.f32.mrb[0].mxu0
      %5083 = vmatprep.mubr.bf16.mxu0 %v4548
      %5084 = vmatmul.mubr.bf16.gmra.mrb[0].mxu0 %v4490
      %v5085 = vpop.f32.mrb[0].mxu0
      %v5086 = vadd.f32 %v4925, %v5085
      %v5087 = vpop.f32.mrb[0].mxu0
      %v5088 = vpop.f32.mrb[0].mxu0
      %v5089 = vadd.f32 %v4928, %v5088
      %v5090 = vpop.f32.mrb[0].mxu0
      %5091 = vmatprep.mubr.bf16.mxu0 %v4551
      %5092 = vmatmul.mubr.bf16.gmra.mrb[0].mxu0 %v4494
      %v5093 = vpop.f32.mrb[0].mxu0
      %v5094 = vadd.f32 %v4933, %v5093
      %v5095 = vpop.f32.mrb[0].mxu0
      %v5096 = vpop.f32.mrb[0].mxu0
      %v5097 = vadd.f32 %v4936, %v5096
      %v5098 = vpop.f32.mrb[0].mxu0
      %5099 = vmatprep.mubr.bf16.mxu0 %v4554
      %5100 = vmatmul.mubr.bf16.gmra.mrb[0].mxu0 %v4498
      %v5101 = vpop.f32.mrb[0].mxu0
      %v5102 = vadd.f32 %v4941, %v5101
      %v5103 = vpop.f32.mrb[0].mxu0
      %v5104 = vpop.f32.mrb[0].mxu0
      %v5105 = vadd.f32 %v4944, %v5104
      %v5106 = vpop.f32.mrb[0].mxu0
      %5107 = vmatprep.mubr.bf16.mxu0 %v4557
      %5108 = vmatmul.mubr.bf16.gmra.mrb[0].mxu0 %v4502
      %v5109 = vpop.f32.mrb[0].mxu0
      %v5110 = vadd.f32 %v4949, %v5109
      %v5111 = vpop.f32.mrb[0].mxu0
      %v5112 = vpop.f32.mrb[0].mxu0
      %v5113 = vadd.f32 %v4952, %v5112
      %v5114 = vpop.f32.mrb[0].mxu0
      %5115 = vmatprep.mubr.bf16.mxu0 %v4560
      %5116 = vmatmul.mubr.bf16.gmra.mrb[0].mxu0 %v4506
      %v5117 = vpop.f32.mrb[0].mxu0
      %v5118 = vadd.f32 %v4957, %v5117
      %v5119 = vpop.f32.mrb[0].mxu0
      %v5120 = vpop.f32.mrb[0].mxu0
      %v5121 = vadd.f32 %v4960, %v5120
      %v5122 = vpop.f32.mrb[0].mxu0
      %5123 = vmatprep.mubr.bf16.mxu0 %v4563
      %5124 = vmatmul.mubr.bf16.gmra.mrb[0].mxu0 %v4510
      %v5125 = vpop.f32.mrb[0].mxu0
      %v5126 = vadd.f32 %v4965, %v5125
      %v5127 = vpop.f32.mrb[0].mxu0
      %v5128 = vpop.f32.mrb[0].mxu0
      %v5129 = vadd.f32 %v4968, %v5128
      %v5130 = vpop.f32.mrb[0].mxu0
      %5131 = vmatprep.mubr.bf16.mxu0 %v4566
      %5132 = vmatmul.mubr.bf16.gmra.mrb[0].mxu0 %v4514
      %v5133 = vpop.f32.mrb[0].mxu0
      %v5134 = vadd.f32 %v4973, %v5133
      %v5135 = vpop.f32.mrb[0].mxu0
      %v5136 = vpop.f32.mrb[0].mxu0
      %v5137 = vadd.f32 %v4976, %v5136
      %v5138 = vpop.f32.mrb[0].mxu0
      %5139 = vmatprep.mubr.bf16.mxu0 %v4569
      %5140 = vmatmul.mubr.bf16.gmra.mrb[0].mxu0 %v4518
      %v5141 = vpop.f32.mrb[0].mxu0
      %v5142 = vadd.f32 %v4981, %v5141
      %v5143 = vpop.f32.mrb[0].mxu0
      %v5144 = vpop.f32.mrb[0].mxu0
      %v5145 = vadd.f32 %v4984, %v5144
      %v5146 = vpop.f32.mrb[0].mxu0
      %5147 = vmatprep.mubr.bf16.mxu0 %v4572
      %5148 = vmatmul.mubr.bf16.gmra.mrb[0].mxu0 %v4522
      %v5149 = vpop.f32.mrb[0].mxu0
      %v5150 = vadd.f32 %v4989, %v5149
      %v5151 = vpop.f32.mrb[0].mxu0
      %v5152 = vpop.f32.mrb[0].mxu0
      %v5153 = vadd.f32 %v4992, %v5152
      %v5154 = vpop.f32.mrb[0].mxu0
      %5155 = vmatprep.mubr.bf16.mxu0 %v4575
      %5156 = vmatmul.mubr.bf16.gmra.mrb[0].mxu0 %v4526
      %v5157 = vpop.f32.mrb[0].mxu0
      %v5158 = vadd.f32 %v4997, %v5157
      %v5159 = vpop.f32.mrb[0].mxu0
      %v5160 = vpop.f32.mrb[0].mxu0
      %v5161 = vadd.f32 %v5000, %v5160
      %v5162 = vpop.f32.mrb[0].mxu0
      %5163 = vmatprep.mubr.bf16.mxu0 %v4578
      %5164 = vmatmul.mubr.bf16.gmra.mrb[0].mxu0 %v4530
      %v5165 = vpop.f32.mrb[0].mxu0
      %v5166 = vadd.f32 %v5005, %v5165
      %v5167 = vpop.f32.mrb[0].mxu0
      %v5168 = vpop.f32.mrb[0].mxu0
      %v5169 = vadd.f32 %v5008, %v5168
      %v5170 = vpop.f32.mrb[0].mxu0
      %5171 = vdwg.mxu0
      %5172 = vmatprep.subr.bf16.mxu0 0
      %5173 = vmatpush1.bf16.msra.mxu0 %v4762
      %5174 = vmatprep.subr.bf16.mxu0 0
      %5175 = vmatpush1.bf16.msra.mxu0 %v4763
      %5176 = vmatprep.subr.bf16.mxu0 0
      %5177 = vmatpush1.bf16.msra.mxu0 %v4764
      %5178 = vmatprep.subr.bf16.mxu0 0
      %5179 = vmatpush1.bf16.msra.mxu0 %v4765
      %5180 = vmatprep.subr.bf16.mxu0 0
      %5181 = vmatpush1.bf16.msra.mxu0 0
      %5182 = vmatprep.subr.bf16.mxu0 0
      %5183 = vmatpush1.bf16.msra.mxu0 0
      %5184 = vmatprep.subr.bf16.mxu0 0
      %5185 = vmatpush1.bf16.msra.mxu0 0
      %5186 = vmatprep.subr.bf16.mxu0 0
      %5187 = vmatpush1.bf16.msra.mxu0 0
      %5188 = vmatprep.subr.bf16.mxu0 0
      %5189 = vmatpush1.bf16.msra.mxu0 0
      %5190 = vmatprep.subr.bf16.mxu0 0
      %5191 = vmatpush1.bf16.msra.mxu0 0
      %5192 = vmatprep.subr.bf16.mxu0 0
      %5193 = vmatpush1.bf16.msra.mxu0 0
      %5194 = vmatprep.subr.bf16.mxu0 0
      %5195 = vmatpush1.bf16.msra.mxu0 0
      %5196 = vmatprep.subr.bf16.mxu0 0
      %5197 = vmatpush1.bf16.msra.mxu0 0
      %5198 = vmatprep.subr.bf16.mxu0 0
      %5199 = vmatpush1.bf16.msra.mxu0 0
      %5200 = vmatprep.subr.bf16.mxu0 0
      %5201 = vmatpush1.bf16.msra.mxu0 0
      %5202 = vmatprep.subr.bf16.mxu0 0
      %5203 = vmatpush1.bf16.msra.mxu0 0
      %5204 = vmatprep.mubr.bf16.mxu0 0
      %5205 = vmatmul.mubr.bf16.gmra.mrb[0].mxu0 %v4803
      %v5206 = vpop.f32.mrb[0].mxu0
      %v5207 = vadd.f32 %v5046, %v5206
      %v5208 = vpop.f32.mrb[0].mxu0
      %v5209 = vpop.f32.mrb[0].mxu0
      %v5210 = vadd.f32 %v5049, %v5209
      %v5211 = vpop.f32.mrb[0].mxu0
      %5212 = vmatprep.mubr.bf16.mxu0 0
      %5213 = vmatmul.mubr.bf16.gmra.mrb[0].mxu0 %v4806
      %v5214 = vpop.f32.mrb[0].mxu0
      %v5215 = vadd.f32 %v5054, %v5214
      %v5216 = vpop.f32.mrb[0].mxu0
      %v5217 = vpop.f32.mrb[0].mxu0
      %v5218 = vadd.f32 %v5057, %v5217
      %v5219 = vpop.f32.mrb[0].mxu0
      %5220 = vmatprep.mubr.bf16.mxu0 0
      %5221 = vmatmul.mubr.bf16.gmra.mrb[0].mxu0 %v4809
      %v5222 = vpop.f32.mrb[0].mxu0
      %v5223 = vadd.f32 %v5062, %v5222
      %v5224 = vpop.f32.mrb[0].mxu0
      %v5225 = vpop.f32.mrb[0].mxu0
      %v5226 = vadd.f32 %v5065, %v5225
      %v5227 = vpop.f32.mrb[0].mxu0
      %5228 = vmatprep.mubr.bf16.mxu0 0
      %5229 = vmatmul.mubr.bf16.gmra.mrb[0].mxu0 %v4812
      %v5230 = vpop.f32.mrb[0].mxu0
      %v5231 = vadd.f32 %v5070, %v5230
      %v5232 = vpop.f32.mrb[0].mxu0
      %v5233 = vpop.f32.mrb[0].mxu0
      %v5234 = vadd.f32 %v5073, %v5233
      %v5235 = vpop.f32.mrb[0].mxu0
      %5236 = vmatprep.mubr.bf16.mxu0 0
      %5237 = vmatmul.mubr.bf16.gmra.mrb[0].mxu0 %v4815
      %v5238 = vpop.f32.mrb[0].mxu0
      %v5239 = vadd.f32 %v5078, %v5238
      %v5240 = vpop.f32.mrb[0].mxu0
      %v5241 = vpop.f32.mrb[0].mxu0
      %v5242 = vadd.f32 %v5081, %v5241
      %v5243 = vpop.f32.mrb[0].mxu0
      %5244 = vmatprep.mubr.bf16.mxu0 0
      %5245 = vmatmul.mubr.bf16.gmra.mrb[0].mxu0 %v4818
      %v5246 = vpop.f32.mrb[0].mxu0
      %v5247 = vadd.f32 %v5086, %v5246
      %v5248 = vpop.f32.mrb[0].mxu0
      %v5249 = vpop.f32.mrb[0].mxu0
      %v5250 = vadd.f32 %v5089, %v5249
      %v5251 = vpop.f32.mrb[0].mxu0
      %5252 = vmatprep.mubr.bf16.mxu0 0
      %5253 = vmatmul.mubr.bf16.gmra.mrb[0].mxu0 %v4821
      %v5254 = vpop.f32.mrb[0].mxu0
      %v5255 = vadd.f32 %v5094, %v5254
      %v5256 = vpop.f32.mrb[0].mxu0
      %v5257 = vpop.f32.mrb[0].mxu0
      %v5258 = vadd.f32 %v5097, %v5257
      %v5259 = vpop.f32.mrb[0].mxu0
      %5260 = vmatprep.mubr.bf16.mxu0 0
      %5261 = vmatmul.mubr.bf16.gmra.mrb[0].mxu0 %v4824
      %v5262 = vpop.f32.mrb[0].mxu0
      %v5263 = vadd.f32 %v5102, %v5262
      %v5264 = vpop.f32.mrb[0].mxu0
      %v5265 = vpop.f32.mrb[0].mxu0
      %v5266 = vadd.f32 %v5105, %v5265
      %v5267 = vpop.f32.mrb[0].mxu0
      %5268 = vmatprep.mubr.bf16.mxu0 0
      %5269 = vmatmul.mubr.bf16.gmra.mrb[0].mxu0 %v4827
      %v5270 = vpop.f32.mrb[0].mxu0
      %v5271 = vadd.f32 %v5110, %v5270
      %v5272 = vpop.f32.mrb[0].mxu0
      %v5273 = vpop.f32.mrb[0].mxu0
      %v5274 = vadd.f32 %v5113, %v5273
      %v5275 = vpop.f32.mrb[0].mxu0
      %5276 = vmatprep.mubr.bf16.mxu0 0
      %5277 = vmatmul.mubr.bf16.gmra.mrb[0].mxu0 %v4830
      %v5278 = vpop.f32.mrb[0].mxu0
      %v5279 = vadd.f32 %v5118, %v5278
      %v5280 = vpop.f32.mrb[0].mxu0
      %v5281 = vpop.f32.mrb[0].mxu0
      %v5282 = vadd.f32 %v5121, %v5281
      %v5283 = vpop.f32.mrb[0].mxu0
      %5284 = vmatprep.mubr.bf16.mxu0 0
      %5285 = vmatmul.mubr.bf16.gmra.mrb[0].mxu0 %v4833
      %v5286 = vpop.f32.mrb[0].mxu0
      %v5287 = vadd.f32 %v5126, %v5286
      %v5288 = vpop.f32.mrb[0].mxu0
      %v5289 = vpop.f32.mrb[0].mxu0
      %v5290 = vadd.f32 %v5129, %v5289
      %v5291 = vpop.f32.mrb[0].mxu0
      %5292 = vmatprep.mubr.bf16.mxu0 0
      %5293 = vmatmul.mubr.bf16.gmra.mrb[0].mxu0 %v4836
      %v5294 = vpop.f32.mrb[0].mxu0
      %v5295 = vadd.f32 %v5134, %v5294
      %v5296 = vpop.f32.mrb[0].mxu0
      %v5297 = vpop.f32.mrb[0].mxu0
      %v5298 = vadd.f32 %v5137, %v5297
      %v5299 = vpop.f32.mrb[0].mxu0
      %5300 = vmatprep.mubr.bf16.mxu0 0
      %5301 = vmatmul.mubr.bf16.gmra.mrb[0].mxu0 %v4839
      %v5302 = vpop.f32.mrb[0].mxu0
      %v5303 = vadd.f32 %v5142, %v5302
      %v5304 = vpop.f32.mrb[0].mxu0
      %v5305 = vpop.f32.mrb[0].mxu0
      %v5306 = vadd.f32 %v5145, %v5305
      %v5307 = vpop.f32.mrb[0].mxu0
      %5308 = vmatprep.mubr.bf16.mxu0 0
      %5309 = vmatmul.mubr.bf16.gmra.mrb[0].mxu0 %v4842
      %v5310 = vpop.f32.mrb[0].mxu0
      %v5311 = vadd.f32 %v5150, %v5310
      %v5312 = vpop.f32.mrb[0].mxu0
      %v5313 = vpop.f32.mrb[0].mxu0
      %v5314 = vadd.f32 %v5153, %v5313
      %v5315 = vpop.f32.mrb[0].mxu0
      %5316 = vmatprep.mubr.bf16.mxu0 0
      %5317 = vmatmul.mubr.bf16.gmra.mrb[0].mxu0 %v4845
      %v5318 = vpop.f32.mrb[0].mxu0
      %v5319 = vadd.f32 %v5158, %v5318
      %v5320 = vpop.f32.mrb[0].mxu0
      %v5321 = vpop.f32.mrb[0].mxu0
      %v5322 = vadd.f32 %v5161, %v5321
      %v5323 = vpop.f32.mrb[0].mxu0
      %5324 = vmatprep.mubr.bf16.mxu0 0
      %5325 = vmatmul.mubr.bf16.gmra.mrb[0].mxu0 %v4848
      %v5326 = vpop.f32.mrb[0].mxu0
      %v5327 = vadd.f32 %v5166, %v5326
      %v5328 = vpop.f32.mrb[0].mxu0
      %v5329 = vpop.f32.mrb[0].mxu0
      %v5330 = vadd.f32 %v5169, %v5329
      %v5331 = vpop.f32.mrb[0].mxu0
      %5332 = vdwg.mxu0
      %v5333 = vld [vmem:[%s5] sm:$0x3f]
      %v5334 = vld [vmem:[%s6] sm:$0x7]
      %v5335 = vpack.c.bf16 %v5210, %v5207
      %v5336 = vpack.c.bf16 %v5218, %v5215
      %v5337 = vpack.c.bf16 %v5226, %v5223
      %v5338 = vpack.c.bf16 %v5234, %v5231
      %v5339 = vpack.c.bf16 %v5242, %v5239
      %v5340 = vpack.c.bf16 %v5250, %v5247
      %v5341 = vpack.c.bf16 %v5258, %v5255
      %v5342 = vpack.c.bf16 %v5266, %v5263
      %v5343 = vpack.c.bf16 %v5274, %v5271
      %v5344 = vpack.c.bf16 %v5282, %v5279
      %v5345 = vpack.c.bf16 %v5290, %v5287
      %v5346 = vpack.c.bf16 %v5298, %v5295
      %v5347 = vpack.c.bf16 %v5306, %v5303
      %v5348 = vpack.c.bf16 %v5314, %v5311
      %v5349 = vpack.c.bf16 %v5322, %v5319
      %v5350 = vpack.c.bf16 %v5330, %v5327
      %v5352 = vshll.u32 %v5335, 16
      %v5355 = vshll.u32 %v5336, 16
      %v5358 = vshll.u32 %v5337, 16
      %v5361 = vshll.u32 %v5338, 16
      %v5364 = vshll.u32 %v5339, 16
      %v5367 = vshll.u32 %v5340, 16
      %v5370 = vshll.u32 %v5341, 16
      %v5373 = vshll.u32 %v5342, 16
      %v5376 = vshll.u32 %v5343, 16
      %v5379 = vshll.u32 %v5344, 16
      %v5382 = vshll.u32 %v5345, 16
      %v5385 = vshll.u32 %v5346, 16
      %v5388 = vshll.u32 %v5347, 16
      %v5391 = vshll.u32 %v5348, 16
      %v5394 = vshll.u32 %v5349, 16
      %v5397 = vshll.u32 %v5350, 16
      %v5431 = vrot.slane %v5335, 7
      %v5432 = vrot.slane %v5336, 7
      %v5433 = vrot.slane %v5337, 7
      %v5434 = vrot.slane %v5338, 7
      %v5435 = vrot.slane %v5339, 7
      %v5436 = vrot.slane %v5340, 7
      %v5437 = vrot.slane %v5341, 7
      %v5438 = vrot.slane %v5342, 7
      %v5439 = vrot.slane %v5343, 7
      %v5440 = vrot.slane %v5344, 7
      %v5441 = vrot.slane %v5345, 7
      %v5442 = vrot.slane %v5346, 7
      %v5443 = vrot.slane %v5347, 7
      %v5444 = vrot.slane %v5348, 7
      %v5445 = vrot.slane %v5349, 7
      %v5446 = vrot.slane %v5350, 7
      %v5463 = vshrl.u32 %v5335, 16
      %v5465 = vrot.slane %v5463, 6
      %v5466 = vshrl.u32 %v5336, 16
      %v5468 = vrot.slane %v5466, 6
      %v5469 = vshrl.u32 %v5337, 16
      %v5471 = vrot.slane %v5469, 6
      %v5472 = vshrl.u32 %v5338, 16
      %v5474 = vrot.slane %v5472, 6
      %v5475 = vshrl.u32 %v5339, 16
      %v5477 = vrot.slane %v5475, 6
      %v5478 = vshrl.u32 %v5340, 16
      %v5480 = vrot.slane %v5478, 6
      %v5481 = vshrl.u32 %v5341, 16
      %v5483 = vrot.slane %v5481, 6
      %v5484 = vshrl.u32 %v5342, 16
      %v5486 = vrot.slane %v5484, 6
      %v5487 = vshrl.u32 %v5343, 16
      %v5489 = vrot.slane %v5487, 6
      %v5490 = vshrl.u32 %v5344, 16
      %v5492 = vrot.slane %v5490, 6
      %v5493 = vshrl.u32 %v5345, 16
      %v5495 = vrot.slane %v5493, 6
      %v5496 = vshrl.u32 %v5346, 16
      %v5498 = vrot.slane %v5496, 6
      %v5499 = vshrl.u32 %v5347, 16
      %v5501 = vrot.slane %v5499, 6
      %v5502 = vshrl.u32 %v5348, 16
      %v5504 = vrot.slane %v5502, 6
      %v5505 = vshrl.u32 %v5349, 16
      %v5507 = vrot.slane %v5505, 6
      %v5508 = vshrl.u32 %v5350, 16
      %v5510 = vrot.slane %v5508, 6
      %v5511 = vrot.slane %v5352, 7
      %v5512 = vrot.slane %v5355, 7
      %v5513 = vrot.slane %v5358, 7
      %v5514 = vrot.slane %v5361, 7
      %v5515 = vrot.slane %v5364, 7
      %v5516 = vrot.slane %v5367, 7
      %v5517 = vrot.slane %v5370, 7
      %v5518 = vrot.slane %v5373, 7
      %v5519 = vrot.slane %v5376, 7
      %v5520 = vrot.slane %v5379, 7
      %v5521 = vrot.slane %v5382, 7
      %v5522 = vrot.slane %v5385, 7
      %v5523 = vrot.slane %v5388, 7
      %v5524 = vrot.slane %v5391, 7
      %v5525 = vrot.slane %v5394, 7
      %v5526 = vrot.slane %v5397, 7
      %v5543 = vrot.slane %v5335, 6
      %v5544 = vrot.slane %v5336, 6
      %v5545 = vrot.slane %v5337, 6
      %v5546 = vrot.slane %v5338, 6
      %v5547 = vrot.slane %v5339, 6
      %v5548 = vrot.slane %v5340, 6
      %v5549 = vrot.slane %v5341, 6
      %v5550 = vrot.slane %v5342, 6
      %v5551 = vrot.slane %v5343, 6
      %v5552 = vrot.slane %v5344, 6
      %v5553 = vrot.slane %v5345, 6
      %v5554 = vrot.slane %v5346, 6
      %v5555 = vrot.slane %v5347, 6
      %v5556 = vrot.slane %v5348, 6
      %v5557 = vrot.slane %v5349, 6
      %v5558 = vrot.slane %v5350, 6
      %v5575 = vrot.slane %v5463, 5
      %v5576 = vrot.slane %v5466, 5
      %v5577 = vrot.slane %v5469, 5
      %v5578 = vrot.slane %v5472, 5
      %v5579 = vrot.slane %v5475, 5
      %v5580 = vrot.slane %v5478, 5
      %v5581 = vrot.slane %v5481, 5
      %v5582 = vrot.slane %v5484, 5
      %v5583 = vrot.slane %v5487, 5
      %v5584 = vrot.slane %v5490, 5
      %v5585 = vrot.slane %v5493, 5
      %v5586 = vrot.slane %v5496, 5
      %v5587 = vrot.slane %v5499, 5
      %v5588 = vrot.slane %v5502, 5
      %v5589 = vrot.slane %v5505, 5
      %v5590 = vrot.slane %v5508, 5
      %v5591 = vrot.slane %v5352, 6
      %v5592 = vrot.slane %v5355, 6
      %v5593 = vrot.slane %v5358, 6
      %v5594 = vrot.slane %v5361, 6
      %v5595 = vrot.slane %v5364, 6
      %v5596 = vrot.slane %v5367, 6
      %v5597 = vrot.slane %v5370, 6
      %v5598 = vrot.slane %v5373, 6
      %v5599 = vrot.slane %v5376, 6
      %v5600 = vrot.slane %v5379, 6
      %v5601 = vrot.slane %v5382, 6
      %v5602 = vrot.slane %v5385, 6
      %v5603 = vrot.slane %v5388, 6
      %v5604 = vrot.slane %v5391, 6
      %v5605 = vrot.slane %v5394, 6
      %v5606 = vrot.slane %v5397, 6
      %v5623 = vrot.slane %v5335, 5
      %v5624 = vrot.slane %v5336, 5
      %v5625 = vrot.slane %v5337, 5
      %v5626 = vrot.slane %v5338, 5
      %v5627 = vrot.slane %v5339, 5
      %v5628 = vrot.slane %v5340, 5
      %v5629 = vrot.slane %v5341, 5
      %v5630 = vrot.slane %v5342, 5
      %v5631 = vrot.slane %v5343, 5
      %v5632 = vrot.slane %v5344, 5
      %v5633 = vrot.slane %v5345, 5
      %v5634 = vrot.slane %v5346, 5
      %v5635 = vrot.slane %v5347, 5
      %v5636 = vrot.slane %v5348, 5
      %v5637 = vrot.slane %v5349, 5
      %v5638 = vrot.slane %v5350, 5
      %v5655 = vrot.slane %v5463, 4
      %v5656 = vrot.slane %v5466, 4
      %v5657 = vrot.slane %v5469, 4
      %v5658 = vrot.slane %v5472, 4
      %v5659 = vrot.slane %v5475, 4
      %v5660 = vrot.slane %v5478, 4
      %v5661 = vrot.slane %v5481, 4
      %v5662 = vrot.slane %v5484, 4
      %v5663 = vrot.slane %v5487, 4
      %v5664 = vrot.slane %v5490, 4
      %v5665 = vrot.slane %v5493, 4
      %v5666 = vrot.slane %v5496, 4
      %v5667 = vrot.slane %v5499, 4
      %v5668 = vrot.slane %v5502, 4
      %v5669 = vrot.slane %v5505, 4
      %v5670 = vrot.slane %v5508, 4
      %v5671 = vrot.slane %v5352, 5
      %v5672 = vrot.slane %v5355, 5
      %v5673 = vrot.slane %v5358, 5
      %v5674 = vrot.slane %v5361, 5
      %v5675 = vrot.slane %v5364, 5
      %v5676 = vrot.slane %v5367, 5
      %v5677 = vrot.slane %v5370, 5
      %v5678 = vrot.slane %v5373, 5
      %v5679 = vrot.slane %v5376, 5
      %v5680 = vrot.slane %v5379, 5
      %v5681 = vrot.slane %v5382, 5
      %v5682 = vrot.slane %v5385, 5
      %v5683 = vrot.slane %v5388, 5
      %v5684 = vrot.slane %v5391, 5
      %v5685 = vrot.slane %v5394, 5
      %v5686 = vrot.slane %v5397, 5
      %v5703 = vrot.slane %v5335, 4
      %v5704 = vrot.slane %v5336, 4
      %v5705 = vrot.slane %v5337, 4
      %v5706 = vrot.slane %v5338, 4
      %v5707 = vrot.slane %v5339, 4
      %v5708 = vrot.slane %v5340, 4
      %v5709 = vrot.slane %v5341, 4
      %v5710 = vrot.slane %v5342, 4
      %v5711 = vrot.slane %v5343, 4
      %v5712 = vrot.slane %v5344, 4
      %v5713 = vrot.slane %v5345, 4
      %v5714 = vrot.slane %v5346, 4
      %v5715 = vrot.slane %v5347, 4
      %v5716 = vrot.slane %v5348, 4
      %v5717 = vrot.slane %v5349, 4
      %v5718 = vrot.slane %v5350, 4
      %v5735 = vsel %vm547, 0, %v5352
      %v5736 = vsel %vm547, 0, %v5355
      %v5737 = vsel %vm547, 0, %v5358
      %v5738 = vsel %vm547, 0, %v5361
      %v5739 = vsel %vm547, 0, %v5364
      %v5740 = vsel %vm547, 0, %v5367
      %v5741 = vsel %vm547, 0, %v5370
      %v5742 = vsel %vm547, 0, %v5373
      %v5743 = vsel %vm547, 0, %v5376
      %v5744 = vsel %vm547, 0, %v5379
      %v5745 = vsel %vm547, 0, %v5382
      %v5746 = vsel %vm547, 0, %v5385
      %v5747 = vsel %vm547, 0, %v5388
      %v5748 = vsel %vm547, 0, %v5391
      %v5749 = vsel %vm547, 0, %v5394
      %v5750 = vsel %vm547, 0, %v5397
      %v5753 = vsel %vm552, %v5735, %v5431
      %v5757 = vsel %vm552, %v5736, %v5432
      %v5761 = vsel %vm552, %v5737, %v5433
      %v5765 = vsel %vm552, %v5738, %v5434
      %v5769 = vsel %vm552, %v5739, %v5435
      %v5773 = vsel %vm552, %v5740, %v5436
      %v5777 = vsel %vm552, %v5741, %v5437
      %v5781 = vsel %vm552, %v5742, %v5438
      %v5785 = vsel %vm552, %v5743, %v5439
      %v5789 = vsel %vm552, %v5744, %v5440
      %v5793 = vsel %vm552, %v5745, %v5441
      %v5797 = vsel %vm552, %v5746, %v5442
      %v5801 = vsel %vm552, %v5747, %v5443
      %v5805 = vsel %vm552, %v5748, %v5444
      %v5809 = vsel %vm552, %v5749, %v5445
      %v5813 = vsel %vm552, %v5750, %v5446
      %v5815 = vsel %vm571, %v5753, %v5431
      %v5816 = vsel %vm571, %v5757, %v5432
      %v5817 = vsel %vm571, %v5761, %v5433
      %v5818 = vsel %vm571, %v5765, %v5434
      %v5819 = vsel %vm571, %v5769, %v5435
      %v5820 = vsel %vm571, %v5773, %v5436
      %v5821 = vsel %vm571, %v5777, %v5437
      %v5822 = vsel %vm571, %v5781, %v5438
      %v5823 = vsel %vm571, %v5785, %v5439
      %v5824 = vsel %vm571, %v5789, %v5440
      %v5825 = vsel %vm571, %v5793, %v5441
      %v5826 = vsel %vm571, %v5797, %v5442
      %v5827 = vsel %vm571, %v5801, %v5443
      %v5828 = vsel %vm571, %v5805, %v5444
      %v5829 = vsel %vm571, %v5809, %v5445
      %v5830 = vsel %vm571, %v5813, %v5446
      %v5833 = vsel %vm576, %v5815, %v5465
      %v5837 = vsel %vm576, %v5816, %v5468
      %v5841 = vsel %vm576, %v5817, %v5471
      %v5845 = vsel %vm576, %v5818, %v5474
      %v5849 = vsel %vm576, %v5819, %v5477
      %v5853 = vsel %vm576, %v5820, %v5480
      %v5857 = vsel %vm576, %v5821, %v5483
      %v5861 = vsel %vm576, %v5822, %v5486
      %v5865 = vsel %vm576, %v5823, %v5489
      %v5869 = vsel %vm576, %v5824, %v5492
      %v5873 = vsel %vm576, %v5825, %v5495
      %v5877 = vsel %vm576, %v5826, %v5498
      %v5881 = vsel %vm576, %v5827, %v5501
      %v5885 = vsel %vm576, %v5828, %v5504
      %v5889 = vsel %vm576, %v5829, %v5507
      %v5893 = vsel %vm576, %v5830, %v5510
      %v5895 = vsel %vm595, %v5833, %v5511
      %v5896 = vsel %vm595, %v5837, %v5512
      %v5897 = vsel %vm595, %v5841, %v5513
      %v5898 = vsel %vm595, %v5845, %v5514
      %v5899 = vsel %vm595, %v5849, %v5515
      %v5900 = vsel %vm595, %v5853, %v5516
      %v5901 = vsel %vm595, %v5857, %v5517
      %v5902 = vsel %vm595, %v5861, %v5518
      %v5903 = vsel %vm595, %v5865, %v5519
      %v5904 = vsel %vm595, %v5869, %v5520
      %v5905 = vsel %vm595, %v5873, %v5521
      %v5906 = vsel %vm595, %v5877, %v5522
      %v5907 = vsel %vm595, %v5881, %v5523
      %v5908 = vsel %vm595, %v5885, %v5524
      %v5909 = vsel %vm595, %v5889, %v5525
      %v5910 = vsel %vm595, %v5893, %v5526
      %v5913 = vsel %vm600, %v5895, %v5543
      %v5917 = vsel %vm600, %v5896, %v5544
      %v5921 = vsel %vm600, %v5897, %v5545
      %v5925 = vsel %vm600, %v5898, %v5546
      %v5929 = vsel %vm600, %v5899, %v5547
      %v5933 = vsel %vm600, %v5900, %v5548
      %v5937 = vsel %vm600, %v5901, %v5549
      %v5941 = vsel %vm600, %v5902, %v5550
      %v5945 = vsel %vm600, %v5903, %v5551
      %v5949 = vsel %vm600, %v5904, %v5552
      %v5953 = vsel %vm600, %v5905, %v5553
      %v5957 = vsel %vm600, %v5906, %v5554
      %v5961 = vsel %vm600, %v5907, %v5555
      %v5965 = vsel %vm600, %v5908, %v5556
      %v5969 = vsel %vm600, %v5909, %v5557
      %v5973 = vsel %vm600, %v5910, %v5558
      %v5975 = vsel %vm619, %v5913, %v5543
      %v5976 = vsel %vm619, %v5917, %v5544
      %v5977 = vsel %vm619, %v5921, %v5545
      %v5978 = vsel %vm619, %v5925, %v5546
      %v5979 = vsel %vm619, %v5929, %v5547
      %v5980 = vsel %vm619, %v5933, %v5548
      %v5981 = vsel %vm619, %v5937, %v5549
      %v5982 = vsel %vm619, %v5941, %v5550
      %v5983 = vsel %vm619, %v5945, %v5551
      %v5984 = vsel %vm619, %v5949, %v5552
      %v5985 = vsel %vm619, %v5953, %v5553
      %v5986 = vsel %vm619, %v5957, %v5554
      %v5987 = vsel %vm619, %v5961, %v5555
      %v5988 = vsel %vm619, %v5965, %v5556
      %v5989 = vsel %vm619, %v5969, %v5557
      %v5990 = vsel %vm619, %v5973, %v5558
      %v5993 = vsel %vm624, %v5975, %v5575
      %v5997 = vsel %vm624, %v5976, %v5576
      %v6001 = vsel %vm624, %v5977, %v5577
      %v6005 = vsel %vm624, %v5978, %v5578
      %v6009 = vsel %vm624, %v5979, %v5579
      %v6013 = vsel %vm624, %v5980, %v5580
      %v6017 = vsel %vm624, %v5981, %v5581
      %v6021 = vsel %vm624, %v5982, %v5582
      %v6025 = vsel %vm624, %v5983, %v5583
      %v6029 = vsel %vm624, %v5984, %v5584
      %v6033 = vsel %vm624, %v5985, %v5585
      %v6037 = vsel %vm624, %v5986, %v5586
      %v6041 = vsel %vm624, %v5987, %v5587
      %v6045 = vsel %vm624, %v5988, %v5588
      %v6049 = vsel %vm624, %v5989, %v5589
      %v6053 = vsel %vm624, %v5990, %v5590
      %v6055 = vsel %vm643, %v5993, %v5591
      %v6056 = vsel %vm643, %v5997, %v5592
      %v6057 = vsel %vm643, %v6001, %v5593
      %v6058 = vsel %vm643, %v6005, %v5594
      %v6059 = vsel %vm643, %v6009, %v5595
      %v6060 = vsel %vm643, %v6013, %v5596
      %v6061 = vsel %vm643, %v6017, %v5597
      %v6062 = vsel %vm643, %v6021, %v5598
      %v6063 = vsel %vm643, %v6025, %v5599
      %v6064 = vsel %vm643, %v6029, %v5600
      %v6065 = vsel %vm643, %v6033, %v5601
      %v6066 = vsel %vm643, %v6037, %v5602
      %v6067 = vsel %vm643, %v6041, %v5603
      %v6068 = vsel %vm643, %v6045, %v5604
      %v6069 = vsel %vm643, %v6049, %v5605
      %v6070 = vsel %vm643, %v6053, %v5606
      %v6073 = vsel %vm2485, %v6055, %v5623
      %v6077 = vsel %vm2485, %v6056, %v5624
      %v6081 = vsel %vm2485, %v6057, %v5625
      %v6085 = vsel %vm2485, %v6058, %v5626
      %v6089 = vsel %vm2485, %v6059, %v5627
      %v6093 = vsel %vm2485, %v6060, %v5628
      %v6097 = vsel %vm2485, %v6061, %v5629
      %v6101 = vsel %vm2485, %v6062, %v5630
      %v6105 = vsel %vm2485, %v6063, %v5631
      %v6109 = vsel %vm2485, %v6064, %v5632
      %v6113 = vsel %vm2485, %v6065, %v5633
      %v6117 = vsel %vm2485, %v6066, %v5634
      %v6121 = vsel %vm2485, %v6067, %v5635
      %v6125 = vsel %vm2485, %v6068, %v5636
      %v6129 = vsel %vm2485, %v6069, %v5637
      %v6133 = vsel %vm2485, %v6070, %v5638
      %v6135 = vsel %vm2520, %v6073, %v5623
      %v6136 = vsel %vm2520, %v6077, %v5624
      %v6137 = vsel %vm2520, %v6081, %v5625
      %v6138 = vsel %vm2520, %v6085, %v5626
      %v6139 = vsel %vm2520, %v6089, %v5627
      %v6140 = vsel %vm2520, %v6093, %v5628
      %v6141 = vsel %vm2520, %v6097, %v5629
      %v6142 = vsel %vm2520, %v6101, %v5630
      %v6143 = vsel %vm2520, %v6105, %v5631
      %v6144 = vsel %vm2520, %v6109, %v5632
      %v6145 = vsel %vm2520, %v6113, %v5633
      %v6146 = vsel %vm2520, %v6117, %v5634
      %v6147 = vsel %vm2520, %v6121, %v5635
      %v6148 = vsel %vm2520, %v6125, %v5636
      %v6149 = vsel %vm2520, %v6129, %v5637
      %v6150 = vsel %vm2520, %v6133, %v5638
      %v6153 = vsel %vm2529, %v6135, %v5655
      %v6157 = vsel %vm2529, %v6136, %v5656
      %v6161 = vsel %vm2529, %v6137, %v5657
      %v6165 = vsel %vm2529, %v6138, %v5658
      %v6169 = vsel %vm2529, %v6139, %v5659
      %v6173 = vsel %vm2529, %v6140, %v5660
      %v6177 = vsel %vm2529, %v6141, %v5661
      %v6181 = vsel %vm2529, %v6142, %v5662
      %v6185 = vsel %vm2529, %v6143, %v5663
      %v6189 = vsel %vm2529, %v6144, %v5664
      %v6193 = vsel %vm2529, %v6145, %v5665
      %v6197 = vsel %vm2529, %v6146, %v5666
      %v6201 = vsel %vm2529, %v6147, %v5667
      %v6205 = vsel %vm2529, %v6148, %v5668
      %v6209 = vsel %vm2529, %v6149, %v5669
      %v6213 = vsel %vm2529, %v6150, %v5670
      %v6215 = vsel %vm2564, %v6153, %v5671
      %v6216 = vsel %vm2564, %v6157, %v5672
      %v6217 = vsel %vm2564, %v6161, %v5673
      %v6218 = vsel %vm2564, %v6165, %v5674
      %v6219 = vsel %vm2564, %v6169, %v5675
      %v6220 = vsel %vm2564, %v6173, %v5676
      %v6221 = vsel %vm2564, %v6177, %v5677
      %v6222 = vsel %vm2564, %v6181, %v5678
      %v6223 = vsel %vm2564, %v6185, %v5679
      %v6224 = vsel %vm2564, %v6189, %v5680
      %v6225 = vsel %vm2564, %v6193, %v5681
      %v6226 = vsel %vm2564, %v6197, %v5682
      %v6227 = vsel %vm2564, %v6201, %v5683
      %v6228 = vsel %vm2564, %v6205, %v5684
      %v6229 = vsel %vm2564, %v6209, %v5685
      %v6230 = vsel %vm2564, %v6213, %v5686
      %v6233 = vsel %vm2573, %v6215, %v5703
      %v6237 = vsel %vm2573, %v6216, %v5704
      %v6241 = vsel %vm2573, %v6217, %v5705
      %v6245 = vsel %vm2573, %v6218, %v5706
      %v6249 = vsel %vm2573, %v6219, %v5707
      %v6253 = vsel %vm2573, %v6220, %v5708
      %v6257 = vsel %vm2573, %v6221, %v5709
      %v6261 = vsel %vm2573, %v6222, %v5710
      %v6265 = vsel %vm2573, %v6223, %v5711
      %v6269 = vsel %vm2573, %v6224, %v5712
      %v6273 = vsel %vm2573, %v6225, %v5713
      %v6277 = vsel %vm2573, %v6226, %v5714
      %v6281 = vsel %vm2573, %v6227, %v5715
      %v6285 = vsel %vm2573, %v6228, %v5716
      %v6289 = vsel %vm2573, %v6229, %v5717
      %v6293 = vsel %vm2573, %v6230, %v5718
      %v6295 = vsel %vm2608, %v6233, %v5703
      %v6296 = vsel %vm2608, %v6237, %v5704
      %v6297 = vsel %vm2608, %v6241, %v5705
      %v6298 = vsel %vm2608, %v6245, %v5706
      %v6299 = vsel %vm2608, %v6249, %v5707
      %v6300 = vsel %vm2608, %v6253, %v5708
      %v6301 = vsel %vm2608, %v6257, %v5709
      %v6302 = vsel %vm2608, %v6261, %v5710
      %v6303 = vsel %vm2608, %v6265, %v5711
      %v6304 = vsel %vm2608, %v6269, %v5712
      %v6305 = vsel %vm2608, %v6273, %v5713
      %v6306 = vsel %vm2608, %v6277, %v5714
      %v6307 = vsel %vm2608, %v6281, %v5715
      %v6308 = vsel %vm2608, %v6285, %v5716
      %v6309 = vsel %vm2608, %v6289, %v5717
      %v6310 = vsel %vm2608, %v6293, %v5718
      %v6311 = vrot.slane %v5463, 3
      %v6312 = vrot.slane %v5466, 3
      %v6313 = vrot.slane %v5469, 3
      %v6314 = vrot.slane %v5472, 3
      %v6315 = vrot.slane %v5475, 3
      %v6316 = vrot.slane %v5478, 3
      %v6317 = vrot.slane %v5481, 3
      %v6318 = vrot.slane %v5484, 3
      %v6319 = vrot.slane %v5487, 3
      %v6320 = vrot.slane %v5490, 3
      %v6321 = vrot.slane %v5493, 3
      %v6322 = vrot.slane %v5496, 3
      %v6323 = vrot.slane %v5499, 3
      %v6324 = vrot.slane %v5502, 3
      %v6325 = vrot.slane %v5505, 3
      %v6326 = vrot.slane %v5508, 3
      %v6343 = vrot.slane %v5352, 4
      %v6344 = vrot.slane %v5355, 4
      %v6345 = vrot.slane %v5358, 4
      %v6346 = vrot.slane %v5361, 4
      %v6347 = vrot.slane %v5364, 4
      %v6348 = vrot.slane %v5367, 4
      %v6349 = vrot.slane %v5370, 4
      %v6350 = vrot.slane %v5373, 4
      %v6351 = vrot.slane %v5376, 4
      %v6352 = vrot.slane %v5379, 4
      %v6353 = vrot.slane %v5382, 4
      %v6354 = vrot.slane %v5385, 4
      %v6355 = vrot.slane %v5388, 4
      %v6356 = vrot.slane %v5391, 4
      %v6357 = vrot.slane %v5394, 4
      %v6358 = vrot.slane %v5397, 4
      %v6375 = vrot.slane %v5335, 3
      %v6376 = vrot.slane %v5336, 3
      %v6377 = vrot.slane %v5337, 3
      %v6378 = vrot.slane %v5338, 3
      %v6379 = vrot.slane %v5339, 3
      %v6380 = vrot.slane %v5340, 3
      %v6381 = vrot.slane %v5341, 3
      %v6382 = vrot.slane %v5342, 3
      %v6383 = vrot.slane %v5343, 3
      %v6384 = vrot.slane %v5344, 3
      %v6385 = vrot.slane %v5345, 3
      %v6386 = vrot.slane %v5346, 3
      %v6387 = vrot.slane %v5347, 3
      %v6388 = vrot.slane %v5348, 3
      %v6389 = vrot.slane %v5349, 3
      %v6390 = vrot.slane %v5350, 3
      %v6407 = vrot.slane %v5463, 2
      %v6408 = vrot.slane %v5466, 2
      %v6409 = vrot.slane %v5469, 2
      %v6410 = vrot.slane %v5472, 2
      %v6411 = vrot.slane %v5475, 2
      %v6412 = vrot.slane %v5478, 2
      %v6413 = vrot.slane %v5481, 2
      %v6414 = vrot.slane %v5484, 2
      %v6415 = vrot.slane %v5487, 2
      %v6416 = vrot.slane %v5490, 2
      %v6417 = vrot.slane %v5493, 2
      %v6418 = vrot.slane %v5496, 2
      %v6419 = vrot.slane %v5499, 2
      %v6420 = vrot.slane %v5502, 2
      %v6421 = vrot.slane %v5505, 2
      %v6422 = vrot.slane %v5508, 2
      %v6423 = vrot.slane %v5352, 3
      %v6424 = vrot.slane %v5355, 3
      %v6425 = vrot.slane %v5358, 3
      %v6426 = vrot.slane %v5361, 3
      %v6427 = vrot.slane %v5364, 3
      %v6428 = vrot.slane %v5367, 3
      %v6429 = vrot.slane %v5370, 3
      %v6430 = vrot.slane %v5373, 3
      %v6431 = vrot.slane %v5376, 3
      %v6432 = vrot.slane %v5379, 3
      %v6433 = vrot.slane %v5382, 3
      %v6434 = vrot.slane %v5385, 3
      %v6435 = vrot.slane %v5388, 3
      %v6436 = vrot.slane %v5391, 3
      %v6437 = vrot.slane %v5394, 3
      %v6438 = vrot.slane %v5397, 3
      %v6455 = vrot.slane %v5335, 2
      %v6456 = vrot.slane %v5336, 2
      %v6457 = vrot.slane %v5337, 2
      %v6458 = vrot.slane %v5338, 2
      %v6459 = vrot.slane %v5339, 2
      %v6460 = vrot.slane %v5340, 2
      %v6461 = vrot.slane %v5341, 2
      %v6462 = vrot.slane %v5342, 2
      %v6463 = vrot.slane %v5343, 2
      %v6464 = vrot.slane %v5344, 2
      %v6465 = vrot.slane %v5345, 2
      %v6466 = vrot.slane %v5346, 2
      %v6467 = vrot.slane %v5347, 2
      %v6468 = vrot.slane %v5348, 2
      %v6469 = vrot.slane %v5349, 2
      %v6470 = vrot.slane %v5350, 2
      %v6487 = vrot.slane %v5463, 1
      %v6488 = vrot.slane %v5466, 1
      %v6489 = vrot.slane %v5469, 1
      %v6490 = vrot.slane %v5472, 1
      %v6491 = vrot.slane %v5475, 1
      %v6492 = vrot.slane %v5478, 1
      %v6493 = vrot.slane %v5481, 1
      %v6494 = vrot.slane %v5484, 1
      %v6495 = vrot.slane %v5487, 1
      %v6496 = vrot.slane %v5490, 1
      %v6497 = vrot.slane %v5493, 1
      %v6498 = vrot.slane %v5496, 1
      %v6499 = vrot.slane %v5499, 1
      %v6500 = vrot.slane %v5502, 1
      %v6501 = vrot.slane %v5505, 1
      %v6502 = vrot.slane %v5508, 1
      %v6503 = vrot.slane %v5352, 2
      %v6504 = vrot.slane %v5355, 2
      %v6505 = vrot.slane %v5358, 2
      %v6506 = vrot.slane %v5361, 2
      %v6507 = vrot.slane %v5364, 2
      %v6508 = vrot.slane %v5367, 2
      %v6509 = vrot.slane %v5370, 2
      %v6510 = vrot.slane %v5373, 2
      %v6511 = vrot.slane %v5376, 2
      %v6512 = vrot.slane %v5379, 2
      %v6513 = vrot.slane %v5382, 2
      %v6514 = vrot.slane %v5385, 2
      %v6515 = vrot.slane %v5388, 2
      %v6516 = vrot.slane %v5391, 2
      %v6517 = vrot.slane %v5394, 2
      %v6518 = vrot.slane %v5397, 2
      %v6535 = vrot.slane %v5335, 1
      %v6536 = vrot.slane %v5336, 1
      %v6537 = vrot.slane %v5337, 1
      %v6538 = vrot.slane %v5338, 1
      %v6539 = vrot.slane %v5339, 1
      %v6540 = vrot.slane %v5340, 1
      %v6541 = vrot.slane %v5341, 1
      %v6542 = vrot.slane %v5342, 1
      %v6543 = vrot.slane %v5343, 1
      %v6544 = vrot.slane %v5344, 1
      %v6545 = vrot.slane %v5345, 1
      %v6546 = vrot.slane %v5346, 1
      %v6547 = vrot.slane %v5347, 1
      %v6548 = vrot.slane %v5348, 1
      %v6549 = vrot.slane %v5349, 1
      %v6550 = vrot.slane %v5350, 1
      %v6567 = vrot.slane %v5352, 1
      %v6568 = vrot.slane %v5355, 1
      %v6569 = vrot.slane %v5358, 1
      %v6570 = vrot.slane %v5361, 1
      %v6571 = vrot.slane %v5364, 1
      %v6572 = vrot.slane %v5367, 1
      %v6573 = vrot.slane %v5370, 1
      %v6574 = vrot.slane %v5373, 1
      %v6575 = vrot.slane %v5376, 1
      %v6576 = vrot.slane %v5379, 1
      %v6577 = vrot.slane %v5382, 1
      %v6578 = vrot.slane %v5385, 1
      %v6579 = vrot.slane %v5388, 1
      %v6580 = vrot.slane %v5391, 1
      %v6581 = vrot.slane %v5394, 1
      %v6582 = vrot.slane %v5397, 1
      %v6599 = vsel %vm547, %v6311, %v6343
      %v6600 = vsel %vm547, %v6312, %v6344
      %v6601 = vsel %vm547, %v6313, %v6345
      %v6602 = vsel %vm547, %v6314, %v6346
      %v6603 = vsel %vm547, %v6315, %v6347
      %v6604 = vsel %vm547, %v6316, %v6348
      %v6605 = vsel %vm547, %v6317, %v6349
      %v6606 = vsel %vm547, %v6318, %v6350
      %v6607 = vsel %vm547, %v6319, %v6351
      %v6608 = vsel %vm547, %v6320, %v6352
      %v6609 = vsel %vm547, %v6321, %v6353
      %v6610 = vsel %vm547, %v6322, %v6354
      %v6611 = vsel %vm547, %v6323, %v6355
      %v6612 = vsel %vm547, %v6324, %v6356
      %v6613 = vsel %vm547, %v6325, %v6357
      %v6614 = vsel %vm547, %v6326, %v6358
      %v6617 = vsel %vm552, %v6599, %v6375
      %v6621 = vsel %vm552, %v6600, %v6376
      %v6625 = vsel %vm552, %v6601, %v6377
      %v6629 = vsel %vm552, %v6602, %v6378
      %v6633 = vsel %vm552, %v6603, %v6379
      %v6637 = vsel %vm552, %v6604, %v6380
      %v6641 = vsel %vm552, %v6605, %v6381
      %v6645 = vsel %vm552, %v6606, %v6382
      %v6649 = vsel %vm552, %v6607, %v6383
      %v6653 = vsel %vm552, %v6608, %v6384
      %v6657 = vsel %vm552, %v6609, %v6385
      %v6661 = vsel %vm552, %v6610, %v6386
      %v6665 = vsel %vm552, %v6611, %v6387
      %v6669 = vsel %vm552, %v6612, %v6388
      %v6673 = vsel %vm552, %v6613, %v6389
      %v6677 = vsel %vm552, %v6614, %v6390
      %v6679 = vsel %vm571, %v6617, %v6375
      %v6680 = vsel %vm571, %v6621, %v6376
      %v6681 = vsel %vm571, %v6625, %v6377
      %v6682 = vsel %vm571, %v6629, %v6378
      %v6683 = vsel %vm571, %v6633, %v6379
      %v6684 = vsel %vm571, %v6637, %v6380
      %v6685 = vsel %vm571, %v6641, %v6381
      %v6686 = vsel %vm571, %v6645, %v6382
      %v6687 = vsel %vm571, %v6649, %v6383
      %v6688 = vsel %vm571, %v6653, %v6384
      %v6689 = vsel %vm571, %v6657, %v6385
      %v6690 = vsel %vm571, %v6661, %v6386
      %v6691 = vsel %vm571, %v6665, %v6387
      %v6692 = vsel %vm571, %v6669, %v6388
      %v6693 = vsel %vm571, %v6673, %v6389
      %v6694 = vsel %vm571, %v6677, %v6390
      %v6697 = vsel %vm576, %v6679, %v6407
      %v6701 = vsel %vm576, %v6680, %v6408
      %v6705 = vsel %vm576, %v6681, %v6409
      %v6709 = vsel %vm576, %v6682, %v6410
      %v6713 = vsel %vm576, %v6683, %v6411
      %v6717 = vsel %vm576, %v6684, %v6412
      %v6721 = vsel %vm576, %v6685, %v6413
      %v6725 = vsel %vm576, %v6686, %v6414
      %v6729 = vsel %vm576, %v6687, %v6415
      %v6733 = vsel %vm576, %v6688, %v6416
      %v6737 = vsel %vm576, %v6689, %v6417
      %v6741 = vsel %vm576, %v6690, %v6418
      %v6745 = vsel %vm576, %v6691, %v6419
      %v6749 = vsel %vm576, %v6692, %v6420
      %v6753 = vsel %vm576, %v6693, %v6421
      %v6757 = vsel %vm576, %v6694, %v6422
      %v6759 = vsel %vm595, %v6697, %v6423
      %v6760 = vsel %vm595, %v6701, %v6424
      %v6761 = vsel %vm595, %v6705, %v6425
      %v6762 = vsel %vm595, %v6709, %v6426
      %v6763 = vsel %vm595, %v6713, %v6427
      %v6764 = vsel %vm595, %v6717, %v6428
      %v6765 = vsel %vm595, %v6721, %v6429
      %v6766 = vsel %vm595, %v6725, %v6430
      %v6767 = vsel %vm595, %v6729, %v6431
      %v6768 = vsel %vm595, %v6733, %v6432
      %v6769 = vsel %vm595, %v6737, %v6433
      %v6770 = vsel %vm595, %v6741, %v6434
      %v6771 = vsel %vm595, %v6745, %v6435
      %v6772 = vsel %vm595, %v6749, %v6436
      %v6773 = vsel %vm595, %v6753, %v6437
      %v6774 = vsel %vm595, %v6757, %v6438
      %v6777 = vsel %vm600, %v6759, %v6455
      %v6781 = vsel %vm600, %v6760, %v6456
      %v6785 = vsel %vm600, %v6761, %v6457
      %v6789 = vsel %vm600, %v6762, %v6458
      %v6793 = vsel %vm600, %v6763, %v6459
      %v6797 = vsel %vm600, %v6764, %v6460
      %v6801 = vsel %vm600, %v6765, %v6461
      %v6805 = vsel %vm600, %v6766, %v6462
      %v6809 = vsel %vm600, %v6767, %v6463
      %v6813 = vsel %vm600, %v6768, %v6464
      %v6817 = vsel %vm600, %v6769, %v6465
      %v6821 = vsel %vm600, %v6770, %v6466
      %v6825 = vsel %vm600, %v6771, %v6467
      %v6829 = vsel %vm600, %v6772, %v6468
      %v6833 = vsel %vm600, %v6773, %v6469
      %v6837 = vsel %vm600, %v6774, %v6470
      %v6839 = vsel %vm619, %v6777, %v6455
      %v6840 = vsel %vm619, %v6781, %v6456
      %v6841 = vsel %vm619, %v6785, %v6457
      %v6842 = vsel %vm619, %v6789, %v6458
      %v6843 = vsel %vm619, %v6793, %v6459
      %v6844 = vsel %vm619, %v6797, %v6460
      %v6845 = vsel %vm619, %v6801, %v6461
      %v6846 = vsel %vm619, %v6805, %v6462
      %v6847 = vsel %vm619, %v6809, %v6463
      %v6848 = vsel %vm619, %v6813, %v6464
      %v6849 = vsel %vm619, %v6817, %v6465
      %v6850 = vsel %vm619, %v6821, %v6466
      %v6851 = vsel %vm619, %v6825, %v6467
      %v6852 = vsel %vm619, %v6829, %v6468
      %v6853 = vsel %vm619, %v6833, %v6469
      %v6854 = vsel %vm619, %v6837, %v6470
      %v6857 = vsel %vm624, %v6839, %v6487
      %v6861 = vsel %vm624, %v6840, %v6488
      %v6865 = vsel %vm624, %v6841, %v6489
      %v6869 = vsel %vm624, %v6842, %v6490
      %v6873 = vsel %vm624, %v6843, %v6491
      %v6877 = vsel %vm624, %v6844, %v6492
      %v6881 = vsel %vm624, %v6845, %v6493
      %v6885 = vsel %vm624, %v6846, %v6494
      %v6889 = vsel %vm624, %v6847, %v6495
      %v6893 = vsel %vm624, %v6848, %v6496
      %v6897 = vsel %vm624, %v6849, %v6497
      %v6901 = vsel %vm624, %v6850, %v6498
      %v6905 = vsel %vm624, %v6851, %v6499
      %v6909 = vsel %vm624, %v6852, %v6500
      %v6913 = vsel %vm624, %v6853, %v6501
      %v6917 = vsel %vm624, %v6854, %v6502
      %v6919 = vsel %vm643, %v6857, %v6503
      %v6920 = vsel %vm643, %v6861, %v6504
      %v6921 = vsel %vm643, %v6865, %v6505
      %v6922 = vsel %vm643, %v6869, %v6506
      %v6923 = vsel %vm643, %v6873, %v6507
      %v6924 = vsel %vm643, %v6877, %v6508
      %v6925 = vsel %vm643, %v6881, %v6509
      %v6926 = vsel %vm643, %v6885, %v6510
      %v6927 = vsel %vm643, %v6889, %v6511
      %v6928 = vsel %vm643, %v6893, %v6512
      %v6929 = vsel %vm643, %v6897, %v6513
      %v6930 = vsel %vm643, %v6901, %v6514
      %v6931 = vsel %vm643, %v6905, %v6515
      %v6932 = vsel %vm643, %v6909, %v6516
      %v6933 = vsel %vm643, %v6913, %v6517
      %v6934 = vsel %vm643, %v6917, %v6518
      %v6937 = vsel %vm2485, %v6919, %v6535
      %v6941 = vsel %vm2485, %v6920, %v6536
      %v6945 = vsel %vm2485, %v6921, %v6537
      %v6949 = vsel %vm2485, %v6922, %v6538
      %v6953 = vsel %vm2485, %v6923, %v6539
      %v6957 = vsel %vm2485, %v6924, %v6540
      %v6961 = vsel %vm2485, %v6925, %v6541
      %v6965 = vsel %vm2485, %v6926, %v6542
      %v6969 = vsel %vm2485, %v6927, %v6543
      %v6973 = vsel %vm2485, %v6928, %v6544
      %v6977 = vsel %vm2485, %v6929, %v6545
      %v6981 = vsel %vm2485, %v6930, %v6546
      %v6985 = vsel %vm2485, %v6931, %v6547
      %v6989 = vsel %vm2485, %v6932, %v6548
      %v6993 = vsel %vm2485, %v6933, %v6549
      %v6997 = vsel %vm2485, %v6934, %v6550
      %v6999 = vsel %vm2520, %v6937, %v6535
      %v7000 = vsel %vm2520, %v6941, %v6536
      %v7001 = vsel %vm2520, %v6945, %v6537
      %v7002 = vsel %vm2520, %v6949, %v6538
      %v7003 = vsel %vm2520, %v6953, %v6539
      %v7004 = vsel %vm2520, %v6957, %v6540
      %v7005 = vsel %vm2520, %v6961, %v6541
      %v7006 = vsel %vm2520, %v6965, %v6542
      %v7007 = vsel %vm2520, %v6969, %v6543
      %v7008 = vsel %vm2520, %v6973, %v6544
      %v7009 = vsel %vm2520, %v6977, %v6545
      %v7010 = vsel %vm2520, %v6981, %v6546
      %v7011 = vsel %vm2520, %v6985, %v6547
      %v7012 = vsel %vm2520, %v6989, %v6548
      %v7013 = vsel %vm2520, %v6993, %v6549
      %v7014 = vsel %vm2520, %v6997, %v6550
      %v7017 = vsel %vm2529, %v6999, %v5463
      %v7021 = vsel %vm2529, %v7000, %v5466
      %v7025 = vsel %vm2529, %v7001, %v5469
      %v7029 = vsel %vm2529, %v7002, %v5472
      %v7033 = vsel %vm2529, %v7003, %v5475
      %v7037 = vsel %vm2529, %v7004, %v5478
      %v7041 = vsel %vm2529, %v7005, %v5481
      %v7045 = vsel %vm2529, %v7006, %v5484
      %v7049 = vsel %vm2529, %v7007, %v5487
      %v7053 = vsel %vm2529, %v7008, %v5490
      %v7057 = vsel %vm2529, %v7009, %v5493
      %v7061 = vsel %vm2529, %v7010, %v5496
      %v7065 = vsel %vm2529, %v7011, %v5499
      %v7069 = vsel %vm2529, %v7012, %v5502
      %v7073 = vsel %vm2529, %v7013, %v5505
      %v7077 = vsel %vm2529, %v7014, %v5508
      %v7079 = vsel %vm2564, %v7017, %v6567
      %v7080 = vsel %vm2564, %v7021, %v6568
      %v7081 = vsel %vm2564, %v7025, %v6569
      %v7082 = vsel %vm2564, %v7029, %v6570
      %v7083 = vsel %vm2564, %v7033, %v6571
      %v7084 = vsel %vm2564, %v7037, %v6572
      %v7085 = vsel %vm2564, %v7041, %v6573
      %v7086 = vsel %vm2564, %v7045, %v6574
      %v7087 = vsel %vm2564, %v7049, %v6575
      %v7088 = vsel %vm2564, %v7053, %v6576
      %v7089 = vsel %vm2564, %v7057, %v6577
      %v7090 = vsel %vm2564, %v7061, %v6578
      %v7091 = vsel %vm2564, %v7065, %v6579
      %v7092 = vsel %vm2564, %v7069, %v6580
      %v7093 = vsel %vm2564, %v7073, %v6581
      %v7094 = vsel %vm2564, %v7077, %v6582
      %v7096 = vsel %vm2573, %v7079, %v5335
      %v7099 = vsel %vm2573, %v7080, %v5336
      %v7102 = vsel %vm2573, %v7081, %v5337
      %v7105 = vsel %vm2573, %v7082, %v5338
      %v7108 = vsel %vm2573, %v7083, %v5339
      %v7111 = vsel %vm2573, %v7084, %v5340
      %v7114 = vsel %vm2573, %v7085, %v5341
      %v7117 = vsel %vm2573, %v7086, %v5342
      %v7120 = vsel %vm2573, %v7087, %v5343
      %v7123 = vsel %vm2573, %v7088, %v5344
      %v7126 = vsel %vm2573, %v7089, %v5345
      %v7129 = vsel %vm2573, %v7090, %v5346
      %v7132 = vsel %vm2573, %v7091, %v5347
      %v7135 = vsel %vm2573, %v7092, %v5348
      %v7138 = vsel %vm2573, %v7093, %v5349
      %v7141 = vsel %vm2573, %v7094, %v5350
      %v7143 = vsel %vm2608, %v7096, %v5335
      %v7144 = vsel %vm2608, %v7099, %v5336
      %v7145 = vsel %vm2608, %v7102, %v5337
      %v7146 = vsel %vm2608, %v7105, %v5338
      %v7147 = vsel %vm2608, %v7108, %v5339
      %v7148 = vsel %vm2608, %v7111, %v5340
      %v7149 = vsel %vm2608, %v7114, %v5341
      %v7150 = vsel %vm2608, %v7117, %v5342
      %v7151 = vsel %vm2608, %v7120, %v5343
      %v7152 = vsel %vm2608, %v7123, %v5344
      %v7153 = vsel %vm2608, %v7126, %v5345
      %v7154 = vsel %vm2608, %v7129, %v5346
      %v7155 = vsel %vm2608, %v7132, %v5347
      %v7156 = vsel %vm2608, %v7135, %v5348
      %v7157 = vsel %vm2608, %v7138, %v5349
      %v7158 = vsel %vm2608, %v7141, %v5350
      %v7159 = vrot.slane %v5463, 7
      %v7160 = vrot.slane %v5466, 7
      %v7161 = vrot.slane %v5469, 7
      %v7162 = vrot.slane %v5472, 7
      %v7163 = vrot.slane %v5475, 7
      %v7164 = vrot.slane %v5478, 7
      %v7165 = vrot.slane %v5481, 7
      %v7166 = vrot.slane %v5484, 7
      %v7167 = vrot.slane %v5487, 7
      %v7168 = vrot.slane %v5490, 7
      %v7169 = vrot.slane %v5493, 7
      %v7170 = vrot.slane %v5496, 7
      %v7171 = vrot.slane %v5499, 7
      %v7172 = vrot.slane %v5502, 7
      %v7173 = vrot.slane %v5505, 7
      %v7174 = vrot.slane %v5508, 7
      %v7191 = vsel %vm547, %v7159, 0
      %v7192 = vsel %vm547, %v7160, 0
      %v7193 = vsel %vm547, %v7161, 0
      %v7194 = vsel %vm547, %v7162, 0
      %v7195 = vsel %vm547, %v7163, 0
      %v7196 = vsel %vm547, %v7164, 0
      %v7197 = vsel %vm547, %v7165, 0
      %v7198 = vsel %vm547, %v7166, 0
      %v7199 = vsel %vm547, %v7167, 0
      %v7200 = vsel %vm547, %v7168, 0
      %v7201 = vsel %vm547, %v7169, 0
      %v7202 = vsel %vm547, %v7170, 0
      %v7203 = vsel %vm547, %v7171, 0
      %v7204 = vsel %vm547, %v7172, 0
      %v7205 = vsel %vm547, %v7173, 0
      %v7206 = vsel %vm547, %v7174, 0
      %v7255 = vunpack.c.l.b16 %v6295
      %v7256 = vunpack.c.h.b16 %v6295
      %v7257 = vunpack.c.l.b16 %v7143
      %v7258 = vunpack.c.h.b16 %v7143
      %v7259 = vunpack.c.l.b16 %v7191
      %v7260 = vunpack.c.l.b16 %v6296
      %v7261 = vunpack.c.h.b16 %v6296
      %v7262 = vunpack.c.l.b16 %v7144
      %v7263 = vunpack.c.h.b16 %v7144
      %v7264 = vunpack.c.l.b16 %v7192
      %v7265 = vunpack.c.l.b16 %v6297
      %v7266 = vunpack.c.h.b16 %v6297
      %v7267 = vunpack.c.l.b16 %v7145
      %v7268 = vunpack.c.h.b16 %v7145
      %v7269 = vunpack.c.l.b16 %v7193
      %v7270 = vunpack.c.l.b16 %v6298
      %v7271 = vunpack.c.h.b16 %v6298
      %v7272 = vunpack.c.l.b16 %v7146
      %v7273 = vunpack.c.h.b16 %v7146
      %v7274 = vunpack.c.l.b16 %v7194
      %v7275 = vunpack.c.l.b16 %v6299
      %v7276 = vunpack.c.h.b16 %v6299
      %v7277 = vunpack.c.l.b16 %v7147
      %v7278 = vunpack.c.h.b16 %v7147
      %v7279 = vunpack.c.l.b16 %v7195
      %v7280 = vunpack.c.l.b16 %v6300
      %v7281 = vunpack.c.h.b16 %v6300
      %v7282 = vunpack.c.l.b16 %v7148
      %v7283 = vunpack.c.h.b16 %v7148
      %v7284 = vunpack.c.l.b16 %v7196
      %v7285 = vunpack.c.l.b16 %v6301
      %v7286 = vunpack.c.h.b16 %v6301
      %v7287 = vunpack.c.l.b16 %v7149
      %v7288 = vunpack.c.h.b16 %v7149
      %v7289 = vunpack.c.l.b16 %v7197
      %v7290 = vunpack.c.l.b16 %v6302
      %v7291 = vunpack.c.h.b16 %v6302
      %v7292 = vunpack.c.l.b16 %v7150
      %v7293 = vunpack.c.h.b16 %v7150
      %v7294 = vunpack.c.l.b16 %v7198
      %v7295 = vunpack.c.l.b16 %v6303
      %v7296 = vunpack.c.h.b16 %v6303
      %v7297 = vunpack.c.l.b16 %v7151
      %v7298 = vunpack.c.h.b16 %v7151
      %v7299 = vunpack.c.l.b16 %v7199
      %v7300 = vunpack.c.l.b16 %v6304
      %v7301 = vunpack.c.h.b16 %v6304
      %v7302 = vunpack.c.l.b16 %v7152
      %v7303 = vunpack.c.h.b16 %v7152
      %v7304 = vunpack.c.l.b16 %v7200
      %v7305 = vunpack.c.l.b16 %v6305
      %v7306 = vunpack.c.h.b16 %v6305
      %v7307 = vunpack.c.l.b16 %v7153
      %v7308 = vunpack.c.h.b16 %v7153
      %v7309 = vunpack.c.l.b16 %v7201
      %v7310 = vunpack.c.l.b16 %v6306
      %v7311 = vunpack.c.h.b16 %v6306
      %v7312 = vunpack.c.l.b16 %v7154
      %v7313 = vunpack.c.h.b16 %v7154
      %v7314 = vunpack.c.l.b16 %v7202
      %v7315 = vunpack.c.l.b16 %v6307
      %v7316 = vunpack.c.h.b16 %v6307
      %v7317 = vunpack.c.l.b16 %v7155
      %v7318 = vunpack.c.h.b16 %v7155
      %v7319 = vunpack.c.l.b16 %v7203
      %v7320 = vunpack.c.l.b16 %v6308
      %v7321 = vunpack.c.h.b16 %v6308
      %v7322 = vunpack.c.l.b16 %v7156
      %v7323 = vunpack.c.h.b16 %v7156
      %v7324 = vunpack.c.l.b16 %v7204
      %v7325 = vunpack.c.l.b16 %v6309
      %v7326 = vunpack.c.h.b16 %v6309
      %v7327 = vunpack.c.l.b16 %v7157
      %v7328 = vunpack.c.h.b16 %v7157
      %v7329 = vunpack.c.l.b16 %v7205
      %v7330 = vunpack.c.l.b16 %v6310
      %v7331 = vunpack.c.h.b16 %v6310
      %v7332 = vunpack.c.l.b16 %v7158
      %v7333 = vunpack.c.h.b16 %v7158
      %v7334 = vunpack.c.l.b16 %v7206
      %v7335 = vpack.c.b16 %v7255, %v7255
      %v7336 = vpack.c.b16 %v7256, %v7256
      %v7337 = vpack.c.b16 %v7257, %v7257
      %v7338 = vpack.c.b16 %v7258, %v7258
      %v7339 = vpack.c.b16 %v7259, %v7259
      %v7340 = vpack.c.b16 %v7260, %v7260
      %v7341 = vpack.c.b16 %v7261, %v7261
      %v7342 = vpack.c.b16 %v7262, %v7262
      %v7343 = vpack.c.b16 %v7263, %v7263
      %v7344 = vpack.c.b16 %v7264, %v7264
      %v7345 = vpack.c.b16 %v7265, %v7265
      %v7346 = vpack.c.b16 %v7266, %v7266
      %v7347 = vpack.c.b16 %v7267, %v7267
      %v7348 = vpack.c.b16 %v7268, %v7268
      %v7349 = vpack.c.b16 %v7269, %v7269
      %v7350 = vpack.c.b16 %v7270, %v7270
      %v7351 = vpack.c.b16 %v7271, %v7271
      %v7352 = vpack.c.b16 %v7272, %v7272
      %v7353 = vpack.c.b16 %v7273, %v7273
      %v7354 = vpack.c.b16 %v7274, %v7274
      %v7355 = vpack.c.b16 %v7275, %v7275
      %v7356 = vpack.c.b16 %v7276, %v7276
      %v7357 = vpack.c.b16 %v7277, %v7277
      %v7358 = vpack.c.b16 %v7278, %v7278
      %v7359 = vpack.c.b16 %v7279, %v7279
      %v7360 = vpack.c.b16 %v7280, %v7280
      %v7361 = vpack.c.b16 %v7281, %v7281
      %v7362 = vpack.c.b16 %v7282, %v7282
      %v7363 = vpack.c.b16 %v7283, %v7283
      %v7364 = vpack.c.b16 %v7284, %v7284
      %v7365 = vpack.c.b16 %v7285, %v7285
      %v7366 = vpack.c.b16 %v7286, %v7286
      %v7367 = vpack.c.b16 %v7287, %v7287
      %v7368 = vpack.c.b16 %v7288, %v7288
      %v7369 = vpack.c.b16 %v7289, %v7289
      %v7370 = vpack.c.b16 %v7290, %v7290
      %v7371 = vpack.c.b16 %v7291, %v7291
      %v7372 = vpack.c.b16 %v7292, %v7292
      %v7373 = vpack.c.b16 %v7293, %v7293
      %v7374 = vpack.c.b16 %v7294, %v7294
      %v7375 = vpack.c.b16 %v7295, %v7295
      %v7376 = vpack.c.b16 %v7296, %v7296
      %v7377 = vpack.c.b16 %v7297, %v7297
      %v7378 = vpack.c.b16 %v7298, %v7298
      %v7379 = vpack.c.b16 %v7299, %v7299
      %v7380 = vpack.c.b16 %v7300, %v7300
      %v7381 = vpack.c.b16 %v7301, %v7301
      %v7382 = vpack.c.b16 %v7302, %v7302
      %v7383 = vpack.c.b16 %v7303, %v7303
      %v7384 = vpack.c.b16 %v7304, %v7304
      %v7385 = vpack.c.b16 %v7305, %v7305
      %v7386 = vpack.c.b16 %v7306, %v7306
      %v7387 = vpack.c.b16 %v7307, %v7307
      %v7388 = vpack.c.b16 %v7308, %v7308
      %v7389 = vpack.c.b16 %v7309, %v7309
      %v7390 = vpack.c.b16 %v7310, %v7310
      %v7391 = vpack.c.b16 %v7311, %v7311
      %v7392 = vpack.c.b16 %v7312, %v7312
      %v7393 = vpack.c.b16 %v7313, %v7313
      %v7394 = vpack.c.b16 %v7314, %v7314
      %v7395 = vpack.c.b16 %v7315, %v7315
      %v7396 = vpack.c.b16 %v7316, %v7316
      %v7397 = vpack.c.b16 %v7317, %v7317
      %v7398 = vpack.c.b16 %v7318, %v7318
      %v7399 = vpack.c.b16 %v7319, %v7319
      %v7400 = vpack.c.b16 %v7320, %v7320
      %v7401 = vpack.c.b16 %v7321, %v7321
      %v7402 = vpack.c.b16 %v7322, %v7322
      %v7403 = vpack.c.b16 %v7323, %v7323
      %v7404 = vpack.c.b16 %v7324, %v7324
      %v7405 = vpack.c.b16 %v7325, %v7325
      %v7406 = vpack.c.b16 %v7326, %v7326
      %v7407 = vpack.c.b16 %v7327, %v7327
      %v7408 = vpack.c.b16 %v7328, %v7328
      %v7409 = vpack.c.b16 %v7329, %v7329
      %v7410 = vpack.c.b16 %v7330, %v7330
      %v7411 = vpack.c.b16 %v7331, %v7331
      %v7412 = vpack.c.b16 %v7332, %v7332
      %v7413 = vpack.c.b16 %v7333, %v7333
      %v7414 = vpack.c.b16 %v7334, %v7334
      %vm7495 = vcmask 257024
      %7496 = vst.msk [vmem:[#allocation4] sm:$0xf] %vm7495, %v663
      %7497 = vst.msk [vmem:[#allocation4 + $0x4] sm:$0xf] %vm7495, %v664
      %7498 = vst.msk [vmem:[#allocation4 + $0x8] sm:$0xf] %vm7495, %v663
      %7499 = vst.msk [vmem:[#allocation4 + $0xc] sm:$0xf] %vm7495, %v664
      %vm7500 = vcmask 253952
      %7501 = vst.msk [vmem:[#allocation4 + $0x10] sm:$0x1] %vm7500, %v663
      %7502 = vst.msk [vmem:[#allocation4 + $0x14] sm:$0xf] %vm7495, %v7335
      %7503 = vst.msk [vmem:[#allocation4 + $0x18] sm:$0xf] %vm7495, %v7336
      %7504 = vst.msk [vmem:[#allocation4 + $0x1c] sm:$0xf] %vm7495, %v7337
      %7505 = vst.msk [vmem:[#allocation4 + $0x20] sm:$0xf] %vm7495, %v7338
      %7506 = vst.msk [vmem:[#allocation4 + $0x24] sm:$0x1] %vm7500, %v7339
      %7507 = vst.msk [vmem:[#allocation4 + $0x28] sm:$0xf] %vm7495, %v7335
      %7508 = vst.msk [vmem:[#allocation4 + $0x2c] sm:$0xf] %vm7495, %v7336
      %7509 = vst.msk [vmem:[#allocation4 + $0x30] sm:$0xf] %vm7495, %v7337
      %7510 = vst.msk [vmem:[#allocation4 + $0x34] sm:$0xf] %vm7495, %v7338
      %7511 = vst.msk [vmem:[#allocation4 + $0x38] sm:$0x1] %vm7500, %v7339
      %7512 = vst.msk [vmem:[#allocation4 + $0x3c] sm:$0xf] %vm7495, %v7340
      %7513 = vst.msk [vmem:[#allocation4 + $0x40] sm:$0xf] %vm7495, %v7341
      %7514 = vst.msk [vmem:[#allocation4 + $0x44] sm:$0xf] %vm7495, %v7342
      %7515 = vst.msk [vmem:[#allocation4 + $0x48] sm:$0xf] %vm7495, %v7343
      %7516 = vst.msk [vmem:[#allocation4 + $0x4c] sm:$0x1] %vm7500, %v7344
      %7517 = vst.msk [vmem:[#allocation4 + $0x50] sm:$0xf] %vm7495, %v7340
      %7518 = vst.msk [vmem:[#allocation4 + $0x54] sm:$0xf] %vm7495, %v7341
      %7519 = vst.msk [vmem:[#allocation4 + $0x58] sm:$0xf] %vm7495, %v7342
      %7520 = vst.msk [vmem:[#allocation4 + $0x5c] sm:$0xf] %vm7495, %v7343
      %7521 = vst.msk [vmem:[#allocation4 + $0x60] sm:$0x1] %vm7500, %v7344
      %7522 = vst.msk [vmem:[#allocation4 + $0x64] sm:$0xf] %vm7495, %v7345
      %7523 = vst.msk [vmem:[#allocation4 + $0x68] sm:$0xf] %vm7495, %v7346
      %7524 = vst.msk [vmem:[#allocation4 + $0x6c] sm:$0xf] %vm7495, %v7347
      %7525 = vst.msk [vmem:[#allocation4 + $0x70] sm:$0xf] %vm7495, %v7348
      %7526 = vst.msk [vmem:[#allocation4 + $0x74] sm:$0x1] %vm7500, %v7349
      %7527 = vst.msk [vmem:[#allocation4 + $0x78] sm:$0xf] %vm7495, %v7345
      %7528 = vst.msk [vmem:[#allocation4 + $0x7c] sm:$0xf] %vm7495, %v7346
      %7529 = vst.msk [vmem:[#allocation4 + $0x80] sm:$0xf] %vm7495, %v7347
      %7530 = vst.msk [vmem:[#allocation4 + $0x84] sm:$0xf] %vm7495, %v7348
      %7531 = vst.msk [vmem:[#allocation4 + $0x88] sm:$0x1] %vm7500, %v7349
      %7532 = vst.msk [vmem:[#allocation4 + $0x8c] sm:$0xf] %vm7495, %v7350
      %7533 = vst.msk [vmem:[#allocation4 + $0x90] sm:$0xf] %vm7495, %v7351
      %7534 = vst.msk [vmem:[#allocation4 + $0x94] sm:$0xf] %vm7495, %v7352
      %7535 = vst.msk [vmem:[#allocation4 + $0x98] sm:$0xf] %vm7495, %v7353
      %7536 = vst.msk [vmem:[#allocation4 + $0x9c] sm:$0x1] %vm7500, %v7354
      %7537 = vst.msk [vmem:[#allocation4 + $0xa0] sm:$0xf] %vm7495, %v7350
      %7538 = vst.msk [vmem:[#allocation4 + $0xa4] sm:$0xf] %vm7495, %v7351
      %7539 = vst.msk [vmem:[#allocation4 + $0xa8] sm:$0xf] %vm7495, %v7352
      %7540 = vst.msk [vmem:[#allocation4 + $0xac] sm:$0xf] %vm7495, %v7353
      %7541 = vst.msk [vmem:[#allocation4 + $0xb0] sm:$0x1] %vm7500, %v7354
      %7542 = vst.msk [vmem:[#allocation4 + $0xb4] sm:$0xf] %vm7495, %v7355
      %7543 = vst.msk [vmem:[#allocation4 + $0xb8] sm:$0xf] %vm7495, %v7356
      %7544 = vst.msk [vmem:[#allocation4 + $0xbc] sm:$0xf] %vm7495, %v7357
      %7545 = vst.msk [vmem:[#allocation4 + $0xc0] sm:$0xf] %vm7495, %v7358
      %7546 = vst.msk [vmem:[#allocation4 + $0xc4] sm:$0x1] %vm7500, %v7359
      %7547 = vst.msk [vmem:[#allocation4 + $0xc8] sm:$0xf] %vm7495, %v7355
      %7548 = vst.msk [vmem:[#allocation4 + $0xcc] sm:$0xf] %vm7495, %v7356
      %7549 = vst.msk [vmem:[#allocation4 + $0xd0] sm:$0xf] %vm7495, %v7357
      %7550 = vst.msk [vmem:[#allocation4 + $0xd4] sm:$0xf] %vm7495, %v7358
      %7551 = vst.msk [vmem:[#allocation4 + $0xd8] sm:$0x1] %vm7500, %v7359
      %7552 = vst.msk [vmem:[#allocation4 + $0xdc] sm:$0xf] %vm7495, %v7360
      %7553 = vst.msk [vmem:[#allocation4 + $0xe0] sm:$0xf] %vm7495, %v7361
      %7554 = vst.msk [vmem:[#allocation4 + $0xe4] sm:$0xf] %vm7495, %v7362
      %7555 = vst.msk [vmem:[#allocation4 + $0xe8] sm:$0xf] %vm7495, %v7363
      %7556 = vst.msk [vmem:[#allocation4 + $0xec] sm:$0x1] %vm7500, %v7364
      %7557 = vst.msk [vmem:[#allocation4 + $0xf0] sm:$0xf] %vm7495, %v7360
      %7558 = vst.msk [vmem:[#allocation4 + $0xf4] sm:$0xf] %vm7495, %v7361
      %7559 = vst.msk [vmem:[#allocation4 + $0xf8] sm:$0xf] %vm7495, %v7362
      %7560 = vst.msk [vmem:[#allocation4 + $0xfc] sm:$0xf] %vm7495, %v7363
      %7561 = vst.msk [vmem:[#allocation4 + $0x100] sm:$0x1] %vm7500, %v7364
      %7562 = vst.msk [vmem:[#allocation4 + $0x104] sm:$0xf] %vm7495, %v7365
      %7563 = vst.msk [vmem:[#allocation4 + $0x108] sm:$0xf] %vm7495, %v7366
      %7564 = vst.msk [vmem:[#allocation4 + $0x10c] sm:$0xf] %vm7495, %v7367
      %7565 = vst.msk [vmem:[#allocation4 + $0x110] sm:$0xf] %vm7495, %v7368
      %7566 = vst.msk [vmem:[#allocation4 + $0x114] sm:$0x1] %vm7500, %v7369
      %7567 = vst.msk [vmem:[#allocation4 + $0x118] sm:$0xf] %vm7495, %v7365
      %7568 = vst.msk [vmem:[#allocation4 + $0x11c] sm:$0xf] %vm7495, %v7366
      %7569 = vst.msk [vmem:[#allocation4 + $0x120] sm:$0xf] %vm7495, %v7367
      %7570 = vst.msk [vmem:[#allocation4 + $0x124] sm:$0xf] %vm7495, %v7368
      %7571 = vst.msk [vmem:[#allocation4 + $0x128] sm:$0x1] %vm7500, %v7369
      %7572 = vst.msk [vmem:[#allocation4 + $0x12c] sm:$0xf] %vm7495, %v7370
      %7573 = vst.msk [vmem:[#allocation4 + $0x130] sm:$0xf] %vm7495, %v7371
      %7574 = vst.msk [vmem:[#allocation4 + $0x134] sm:$0xf] %vm7495, %v7372
      %7575 = vst.msk [vmem:[#allocation4 + $0x138] sm:$0xf] %vm7495, %v7373
      %7576 = vst.msk [vmem:[#allocation4 + $0x13c] sm:$0x1] %vm7500, %v7374
      %7577 = vst.msk [vmem:[#allocation4 + $0x140] sm:$0xf] %vm7495, %v7370
      %7578 = vst.msk [vmem:[#allocation4 + $0x144] sm:$0xf] %vm7495, %v7371
      %7579 = vst.msk [vmem:[#allocation4 + $0x148] sm:$0xf] %vm7495, %v7372
      %7580 = vst.msk [vmem:[#allocation4 + $0x14c] sm:$0xf] %vm7495, %v7373
      %7581 = vst.msk [vmem:[#allocation4 + $0x150] sm:$0x1] %vm7500, %v7374
      %7582 = vst.msk [vmem:[#allocation4 + $0x154] sm:$0xf] %vm7495, %v7375
      %7583 = vst.msk [vmem:[#allocation4 + $0x158] sm:$0xf] %vm7495, %v7376
      %7584 = vst.msk [vmem:[#allocation4 + $0x15c] sm:$0xf] %vm7495, %v7377
      %7585 = vst.msk [vmem:[#allocation4 + $0x160] sm:$0xf] %vm7495, %v7378
      %7586 = vst.msk [vmem:[#allocation4 + $0x164] sm:$0x1] %vm7500, %v7379
      %7587 = vst.msk [vmem:[#allocation4 + $0x168] sm:$0xf] %vm7495, %v7375
      %7588 = vst.msk [vmem:[#allocation4 + $0x16c] sm:$0xf] %vm7495, %v7376
      %7589 = vst.msk [vmem:[#allocation4 + $0x170] sm:$0xf] %vm7495, %v7377
      %7590 = vst.msk [vmem:[#allocation4 + $0x174] sm:$0xf] %vm7495, %v7378
      %7591 = vst.msk [vmem:[#allocation4 + $0x178] sm:$0x1] %vm7500, %v7379
      %7592 = vst.msk [vmem:[#allocation4 + $0x17c] sm:$0xf] %vm7495, %v7380
      %7593 = vst.msk [vmem:[#allocation4 + $0x180] sm:$0xf] %vm7495, %v7381
      %7594 = vst.msk [vmem:[#allocation4 + $0x184] sm:$0xf] %vm7495, %v7382
      %7595 = vst.msk [vmem:[#allocation4 + $0x188] sm:$0xf] %vm7495, %v7383
      %7596 = vst.msk [vmem:[#allocation4 + $0x18c] sm:$0x1] %vm7500, %v7384
      %7597 = vst.msk [vmem:[#allocation4 + $0x190] sm:$0xf] %vm7495, %v7380
      %7598 = vst.msk [vmem:[#allocation4 + $0x194] sm:$0xf] %vm7495, %v7381
      %7599 = vst.msk [vmem:[#allocation4 + $0x198] sm:$0xf] %vm7495, %v7382
      %7600 = vst.msk [vmem:[#allocation4 + $0x19c] sm:$0xf] %vm7495, %v7383
      %7601 = vst.msk [vmem:[#allocation4 + $0x1a0] sm:$0x1] %vm7500, %v7384
      %7602 = vst.msk [vmem:[#allocation4 + $0x1a4] sm:$0xf] %vm7495, %v7385
      %7603 = vst.msk [vmem:[#allocation4 + $0x1a8] sm:$0xf] %vm7495, %v7386
      %7604 = vst.msk [vmem:[#allocation4 + $0x1ac] sm:$0xf] %vm7495, %v7387
      %7605 = vst.msk [vmem:[#allocation4 + $0x1b0] sm:$0xf] %vm7495, %v7388
      %7606 = vst.msk [vmem:[#allocation4 + $0x1b4] sm:$0x1] %vm7500, %v7389
      %7607 = vst.msk [vmem:[#allocation4 + $0x1b8] sm:$0xf] %vm7495, %v7385
      %7608 = vst.msk [vmem:[#allocation4 + $0x1bc] sm:$0xf] %vm7495, %v7386
      %7609 = vst.msk [vmem:[#allocation4 + $0x1c0] sm:$0xf] %vm7495, %v7387
      %7610 = vst.msk [vmem:[#allocation4 + $0x1c4] sm:$0xf] %vm7495, %v7388
      %7611 = vst.msk [vmem:[#allocation4 + $0x1c8] sm:$0x1] %vm7500, %v7389
      %7612 = vst.msk [vmem:[#allocation4 + $0x1cc] sm:$0xf] %vm7495, %v7390
      %7613 = vst.msk [vmem:[#allocation4 + $0x1d0] sm:$0xf] %vm7495, %v7391
      %7614 = vst.msk [vmem:[#allocation4 + $0x1d4] sm:$0xf] %vm7495, %v7392
      %7615 = vst.msk [vmem:[#allocation4 + $0x1d8] sm:$0xf] %vm7495, %v7393
      %7616 = vst.msk [vmem:[#allocation4 + $0x1dc] sm:$0x1] %vm7500, %v7394
      %7617 = vst.msk [vmem:[#allocation4 + $0x1e0] sm:$0xf] %vm7495, %v7390
      %7618 = vst.msk [vmem:[#allocation4 + $0x1e4] sm:$0xf] %vm7495, %v7391
      %7619 = vst.msk [vmem:[#allocation4 + $0x1e8] sm:$0xf] %vm7495, %v7392
      %7620 = vst.msk [vmem:[#allocation4 + $0x1ec] sm:$0xf] %vm7495, %v7393
      %7621 = vst.msk [vmem:[#allocation4 + $0x1f0] sm:$0x1] %vm7500, %v7394
      %7622 = vst.msk [vmem:[#allocation4 + $0x1f4] sm:$0xf] %vm7495, %v7395
      %7623 = vst.msk [vmem:[#allocation4 + $0x1f8] sm:$0xf] %vm7495, %v7396
      %7624 = vst.msk [vmem:[#allocation4 + $0x1fc] sm:$0xf] %vm7495, %v7397
      %7625 = vst.msk [vmem:[#allocation4 + $0x200] sm:$0xf] %vm7495, %v7398
      %7626 = vst.msk [vmem:[#allocation4 + $0x204] sm:$0x1] %vm7500, %v7399
      %7627 = vst.msk [vmem:[#allocation4 + $0x208] sm:$0xf] %vm7495, %v7395
      %7628 = vst.msk [vmem:[#allocation4 + $0x20c] sm:$0xf] %vm7495, %v7396
      %7629 = vst.msk [vmem:[#allocation4 + $0x210] sm:$0xf] %vm7495, %v7397
      %7630 = vst.msk [vmem:[#allocation4 + $0x214] sm:$0xf] %vm7495, %v7398
      %7631 = vst.msk [vmem:[#allocation4 + $0x218] sm:$0x1] %vm7500, %v7399
      %7632 = vst.msk [vmem:[#allocation4 + $0x21c] sm:$0xf] %vm7495, %v7400
      %7633 = vst.msk [vmem:[#allocation4 + $0x220] sm:$0xf] %vm7495, %v7401
      %7634 = vst.msk [vmem:[#allocation4 + $0x224] sm:$0xf] %vm7495, %v7402
      %7635 = vst.msk [vmem:[#allocation4 + $0x228] sm:$0xf] %vm7495, %v7403
      %7636 = vst.msk [vmem:[#allocation4 + $0x22c] sm:$0x1] %vm7500, %v7404
      %7637 = vst.msk [vmem:[#allocation4 + $0x230] sm:$0xf] %vm7495, %v7400
      %7638 = vst.msk [vmem:[#allocation4 + $0x234] sm:$0xf] %vm7495, %v7401
      %7639 = vst.msk [vmem:[#allocation4 + $0x238] sm:$0xf] %vm7495, %v7402
      %7640 = vst.msk [vmem:[#allocation4 + $0x23c] sm:$0xf] %vm7495, %v7403
      %7641 = vst.msk [vmem:[#allocation4 + $0x240] sm:$0x1] %vm7500, %v7404
      %7642 = vst.msk [vmem:[#allocation4 + $0x244] sm:$0xf] %vm7495, %v7405
      %7643 = vst.msk [vmem:[#allocation4 + $0x248] sm:$0xf] %vm7495, %v7406
      %7644 = vst.msk [vmem:[#allocation4 + $0x24c] sm:$0xf] %vm7495, %v7407
      %7645 = vst.msk [vmem:[#allocation4 + $0x250] sm:$0xf] %vm7495, %v7408
      %7646 = vst.msk [vmem:[#allocation4 + $0x254] sm:$0x1] %vm7500, %v7409
      %7647 = vst.msk [vmem:[#allocation4 + $0x258] sm:$0xf] %vm7495, %v7405
      %7648 = vst.msk [vmem:[#allocation4 + $0x25c] sm:$0xf] %vm7495, %v7406
      %7649 = vst.msk [vmem:[#allocation4 + $0x260] sm:$0xf] %vm7495, %v7407
      %7650 = vst.msk [vmem:[#allocation4 + $0x264] sm:$0xf] %vm7495, %v7408
      %7651 = vst.msk [vmem:[#allocation4 + $0x268] sm:$0x1] %vm7500, %v7409
      %7652 = vst.msk [vmem:[#allocation4 + $0x26c] sm:$0xf] %vm7495, %v7410
      %7653 = vst.msk [vmem:[#allocation4 + $0x270] sm:$0xf] %vm7495, %v7411
      %7654 = vst.msk [vmem:[#allocation4 + $0x274] sm:$0xf] %vm7495, %v7412
      %7655 = vst.msk [vmem:[#allocation4 + $0x278] sm:$0xf] %vm7495, %v7413
      %7656 = vst.msk [vmem:[#allocation4 + $0x27c] sm:$0x1] %vm7500, %v7414
      %7657 = vst.msk [vmem:[#allocation4 + $0x280] sm:$0xf] %vm7495, %v7410
      %7658 = vst.msk [vmem:[#allocation4 + $0x284] sm:$0xf] %vm7495, %v7411
      %7659 = vst.msk [vmem:[#allocation4 + $0x288] sm:$0xf] %vm7495, %v7412
      %7660 = vst.msk [vmem:[#allocation4 + $0x28c] sm:$0xf] %vm7495, %v7413
      %7661 = vst.msk [vmem:[#allocation4 + $0x290] sm:$0x1] %vm7500, %v7414
      %7662 = vst.msk [vmem:[#allocation4 + $0x294] sm:$0xf] %vm7495, %v663
      %7663 = vst.msk [vmem:[#allocation4 + $0x298] sm:$0xf] %vm7495, %v664
      %7664 = vst.msk [vmem:[#allocation4 + $0x29c] sm:$0xf] %vm7495, %v663
      %7665 = vst.msk [vmem:[#allocation4 + $0x2a0] sm:$0xf] %vm7495, %v664
      %7666 = vst.msk [vmem:[#allocation4 + $0x2a4] sm:$0x1] %vm7500, %v663
      %v7667 = vld [vmem:[#allocation4] sm:$0xf]
      %v7668 = vld [vmem:[#allocation4 + $0x4] sm:$0xf]
      %v7669 = vld [vmem:[#allocation4 + $0x8] sm:$0xf]
      %v7670 = vld [vmem:[#allocation4 + $0xc] sm:$0xf]
      %v7671 = vld [vmem:[#allocation4 + $0x14] sm:$0xf]
      %v7672 = vld [vmem:[#allocation4 + $0x18] sm:$0xf]
      %v7673 = vld [vmem:[#allocation4 + $0x1c] sm:$0xf]
      %v7674 = vld [vmem:[#allocation4 + $0x20] sm:$0xf]
      %v7675 = vld [vmem:[#allocation4 + $0x28] sm:$0xf]
      %v7676 = vld [vmem:[#allocation4 + $0x2c] sm:$0xf]
      %v7677 = vld [vmem:[#allocation4 + $0x30] sm:$0xf]
      %v7678 = vld [vmem:[#allocation4 + $0x34] sm:$0xf]
      %v7679 = vld [vmem:[#allocation4 + $0x3c] sm:$0xf]
      %v7680 = vld [vmem:[#allocation4 + $0x40] sm:$0xf]
      %v7681 = vld [vmem:[#allocation4 + $0x44] sm:$0xf]
      %v7682 = vld [vmem:[#allocation4 + $0x48] sm:$0xf]
      %v7683 = vld [vmem:[#allocation4 + $0x50] sm:$0xf]
      %v7684 = vld [vmem:[#allocation4 + $0x54] sm:$0xf]
      %v7685 = vld [vmem:[#allocation4 + $0x58] sm:$0xf]
      %v7686 = vld [vmem:[#allocation4 + $0x5c] sm:$0xf]
      %v7687 = vld [vmem:[#allocation4 + $0x64] sm:$0xf]
      %v7688 = vld [vmem:[#allocation4 + $0x68] sm:$0xf]
      %v7689 = vld [vmem:[#allocation4 + $0x6c] sm:$0xf]
      %v7690 = vld [vmem:[#allocation4 + $0x70] sm:$0xf]
      %v7691 = vld [vmem:[#allocation4 + $0x78] sm:$0xf]
      %v7692 = vld [vmem:[#allocation4 + $0x7c] sm:$0xf]
      %v7693 = vld [vmem:[#allocation4 + $0x80] sm:$0xf]
      %v7694 = vld [vmem:[#allocation4 + $0x84] sm:$0xf]
      %v7695 = vld [vmem:[#allocation4 + $0x8c] sm:$0xf]
      %v7696 = vld [vmem:[#allocation4 + $0x90] sm:$0xf]
      %v7697 = vld [vmem:[#allocation4 + $0x94] sm:$0xf]
      %v7698 = vld [vmem:[#allocation4 + $0x98] sm:$0xf]
      %v7699 = vld [vmem:[#allocation4 + $0xa0] sm:$0xf]
      %v7700 = vld [vmem:[#allocation4 + $0xa4] sm:$0xf]
      %v7701 = vld [vmem:[#allocation4 + $0xa8] sm:$0xf]
      %v7702 = vld [vmem:[#allocation4 + $0xac] sm:$0xf]
      %v7703 = vld [vmem:[#allocation4 + $0xb4] sm:$0xf]
      %v7704 = vld [vmem:[#allocation4 + $0xb8] sm:$0xf]
      %v7705 = vld [vmem:[#allocation4 + $0xbc] sm:$0xf]
      %v7706 = vld [vmem:[#allocation4 + $0xc0] sm:$0xf]
      %v7707 = vld [vmem:[#allocation4 + $0xc8] sm:$0xf]
      %v7708 = vld [vmem:[#allocation4 + $0xcc] sm:$0xf]
      %v7709 = vld [vmem:[#allocation4 + $0xd0] sm:$0xf]
      %v7710 = vld [vmem:[#allocation4 + $0xd4] sm:$0xf]
      %v7711 = vld [vmem:[#allocation4 + $0xdc] sm:$0xf]
      %v7712 = vld [vmem:[#allocation4 + $0xe0] sm:$0xf]
      %v7713 = vld [vmem:[#allocation4 + $0xe4] sm:$0xf]
      %v7714 = vld [vmem:[#allocation4 + $0xe8] sm:$0xf]
      %v7715 = vld [vmem:[#allocation4 + $0xf0] sm:$0xf]
      %v7716 = vld [vmem:[#allocation4 + $0xf4] sm:$0xf]
      %v7717 = vld [vmem:[#allocation4 + $0xf8] sm:$0xf]
      %v7718 = vld [vmem:[#allocation4 + $0xfc] sm:$0xf]
      %v7719 = vld [vmem:[#allocation4 + $0x104] sm:$0xf]
      %v7720 = vld [vmem:[#allocation4 + $0x108] sm:$0xf]
      %v7721 = vld [vmem:[#allocation4 + $0x10c] sm:$0xf]
      %v7722 = vld [vmem:[#allocation4 + $0x110] sm:$0xf]
      %v7723 = vld [vmem:[#allocation4 + $0x118] sm:$0xf]
      %v7724 = vld [vmem:[#allocation4 + $0x11c] sm:$0xf]
      %v7725 = vld [vmem:[#allocation4 + $0x120] sm:$0xf]
      %v7726 = vld [vmem:[#allocation4 + $0x124] sm:$0xf]
      %v7727 = vld [vmem:[#allocation4 + $0x12c] sm:$0xf]
      %v7728 = vld [vmem:[#allocation4 + $0x130] sm:$0xf]
      %v7729 = vld [vmem:[#allocation4 + $0x134] sm:$0xf]
      %v7730 = vld [vmem:[#allocation4 + $0x138] sm:$0xf]
      %v7731 = vld [vmem:[#allocation4 + $0x140] sm:$0xf]
      %v7732 = vld [vmem:[#allocation4 + $0x144] sm:$0xf]
      %v7733 = vld [vmem:[#allocation4 + $0x148] sm:$0xf]
      %v7734 = vld [vmem:[#allocation4 + $0x14c] sm:$0xf]
      %v7735 = vld [vmem:[#allocation4 + $0x154] sm:$0xf]
      %v7736 = vld [vmem:[#allocation4 + $0x158] sm:$0xf]
      %v7737 = vld [vmem:[#allocation4 + $0x15c] sm:$0xf]
      %v7738 = vld [vmem:[#allocation4 + $0x160] sm:$0xf]
      %v7739 = vld [vmem:[#allocation4 + $0x168] sm:$0xf]
      %v7740 = vld [vmem:[#allocation4 + $0x16c] sm:$0xf]
      %v7741 = vld [vmem:[#allocation4 + $0x170] sm:$0xf]
      %v7742 = vld [vmem:[#allocation4 + $0x174] sm:$0xf]
      %v7743 = vld [vmem:[#allocation4 + $0x17c] sm:$0xf]
      %v7744 = vld [vmem:[#allocation4 + $0x180] sm:$0xf]
      %v7745 = vld [vmem:[#allocation4 + $0x184] sm:$0xf]
      %v7746 = vld [vmem:[#allocation4 + $0x188] sm:$0xf]
      %v7747 = vld [vmem:[#allocation4 + $0x190] sm:$0xf]
      %v7748 = vld [vmem:[#allocation4 + $0x194] sm:$0xf]
      %v7749 = vld [vmem:[#allocation4 + $0x198] sm:$0xf]
      %v7750 = vld [vmem:[#allocation4 + $0x19c] sm:$0xf]
      %v7751 = vld [vmem:[#allocation4 + $0x1a4] sm:$0xf]
      %v7752 = vld [vmem:[#allocation4 + $0x1a8] sm:$0xf]
      %v7753 = vld [vmem:[#allocation4 + $0x1ac] sm:$0xf]
      %v7754 = vld [vmem:[#allocation4 + $0x1b0] sm:$0xf]
      %v7755 = vld [vmem:[#allocation4 + $0x1b8] sm:$0xf]
      %v7756 = vld [vmem:[#allocation4 + $0x1bc] sm:$0xf]
      %v7757 = vld [vmem:[#allocation4 + $0x1c0] sm:$0xf]
      %v7758 = vld [vmem:[#allocation4 + $0x1c4] sm:$0xf]
      %v7759 = vld [vmem:[#allocation4 + $0x1cc] sm:$0xf]
      %v7760 = vld [vmem:[#allocation4 + $0x1d0] sm:$0xf]
      %v7761 = vld [vmem:[#allocation4 + $0x1d4] sm:$0xf]
      %v7762 = vld [vmem:[#allocation4 + $0x1d8] sm:$0xf]
      %v7763 = vld [vmem:[#allocation4 + $0x1e0] sm:$0xf]
      %v7764 = vld [vmem:[#allocation4 + $0x1e4] sm:$0xf]
      %v7765 = vld [vmem:[#allocation4 + $0x1e8] sm:$0xf]
      %v7766 = vld [vmem:[#allocation4 + $0x1ec] sm:$0xf]
      %v7767 = vld [vmem:[#allocation4 + $0x1f4] sm:$0xf]
      %v7768 = vld [vmem:[#allocation4 + $0x1f8] sm:$0xf]
      %v7769 = vld [vmem:[#allocation4 + $0x1fc] sm:$0xf]
      %v7770 = vld [vmem:[#allocation4 + $0x200] sm:$0xf]
      %v7771 = vld [vmem:[#allocation4 + $0x208] sm:$0xf]
      %v7772 = vld [vmem:[#allocation4 + $0x20c] sm:$0xf]
      %v7773 = vld [vmem:[#allocation4 + $0x210] sm:$0xf]
      %v7774 = vld [vmem:[#allocation4 + $0x214] sm:$0xf]
      %v7775 = vld [vmem:[#allocation4 + $0x21c] sm:$0xf]
      %v7776 = vld [vmem:[#allocation4 + $0x220] sm:$0xf]
      %v7777 = vld [vmem:[#allocation4 + $0x224] sm:$0xf]
      %v7778 = vld [vmem:[#allocation4 + $0x228] sm:$0xf]
      %v7779 = vld [vmem:[#allocation4 + $0x230] sm:$0xf]
      %v7780 = vld [vmem:[#allocation4 + $0x234] sm:$0xf]
      %v7781 = vld [vmem:[#allocation4 + $0x238] sm:$0xf]
      %v7782 = vld [vmem:[#allocation4 + $0x23c] sm:$0xf]
      %v7783 = vld [vmem:[#allocation4 + $0x244] sm:$0xf]
      %v7784 = vld [vmem:[#allocation4 + $0x248] sm:$0xf]
      %v7785 = vld [vmem:[#allocation4 + $0x24c] sm:$0xf]
      %v7786 = vld [vmem:[#allocation4 + $0x250] sm:$0xf]
      %v7787 = vld [vmem:[#allocation4 + $0x258] sm:$0xf]
      %v7788 = vld [vmem:[#allocation4 + $0x25c] sm:$0xf]
      %v7789 = vld [vmem:[#allocation4 + $0x260] sm:$0xf]
      %v7790 = vld [vmem:[#allocation4 + $0x264] sm:$0xf]
      %v7791 = vld [vmem:[#allocation4 + $0x26c] sm:$0xf]
      %v7792 = vld [vmem:[#allocation4 + $0x270] sm:$0xf]
      %v7793 = vld [vmem:[#allocation4 + $0x274] sm:$0xf]
      %v7794 = vld [vmem:[#allocation4 + $0x278] sm:$0xf]
      %v7795 = vld [vmem:[#allocation4 + $0x10] sm:$0x1]
      %v7796 = vld [vmem:[#allocation4 + $0x24] sm:$0x1]
      %v7797 = vld [vmem:[#allocation4 + $0x38] sm:$0x1]
      %v7798 = vld [vmem:[#allocation4 + $0x4c] sm:$0x1]
      %v7799 = vld [vmem:[#allocation4 + $0x60] sm:$0x1]
      %v7800 = vld [vmem:[#allocation4 + $0x74] sm:$0x1]
      %v7801 = vld [vmem:[#allocation4 + $0x88] sm:$0x1]
      %v7802 = vld [vmem:[#allocation4 + $0x9c] sm:$0x1]
      %v7803 = vld [vmem:[#allocation4 + $0xb0] sm:$0x1]
      %v7804 = vld [vmem:[#allocation4 + $0xc4] sm:$0x1]
      %v7805 = vld [vmem:[#allocation4 + $0xd8] sm:$0x1]
      %v7806 = vld [vmem:[#allocation4 + $0xec] sm:$0x1]
      %v7807 = vld [vmem:[#allocation4 + $0x100] sm:$0x1]
      %v7808 = vld [vmem:[#allocation4 + $0x114] sm:$0x1]
      %v7809 = vld [vmem:[#allocation4 + $0x128] sm:$0x1]
      %v7810 = vld [vmem:[#allocation4 + $0x13c] sm:$0x1]
      %v7811 = vld [vmem:[#allocation4 + $0x150] sm:$0x1]
      %v7812 = vld [vmem:[#allocation4 + $0x164] sm:$0x1]
      %v7813 = vld [vmem:[#allocation4 + $0x178] sm:$0x1]
      %v7814 = vld [vmem:[#allocation4 + $0x18c] sm:$0x1]
      %v7815 = vld [vmem:[#allocation4 + $0x1a0] sm:$0x1]
      %v7816 = vld [vmem:[#allocation4 + $0x1b4] sm:$0x1]
      %v7817 = vld [vmem:[#allocation4 + $0x1c8] sm:$0x1]
      %v7818 = vld [vmem:[#allocation4 + $0x1dc] sm:$0x1]
      %v7819 = vld [vmem:[#allocation4 + $0x1f0] sm:$0x1]
      %v7820 = vld [vmem:[#allocation4 + $0x204] sm:$0x1]
      %v7821 = vld [vmem:[#allocation4 + $0x218] sm:$0x1]
      %v7822 = vld [vmem:[#allocation4 + $0x22c] sm:$0x1]
      %v7823 = vld [vmem:[#allocation4 + $0x240] sm:$0x1]
      %v7824 = vld [vmem:[#allocation4 + $0x254] sm:$0x1]
      %v7825 = vld [vmem:[#allocation4 + $0x268] sm:$0x1]
      %v7826 = vld [vmem:[#allocation4 + $0x27c] sm:$0x1]
      %v7827 = vld [vmem:[#allocation4] sm:$0xe]
      %v7828 = vld [vmem:[#allocation4 + $0x14] sm:$0xe]
      %v7829 = vld [vmem:[#allocation4 + $0x28] sm:$0xe]
      %v7830 = vld [vmem:[#allocation4 + $0x3c] sm:$0xe]
      %v7831 = vld [vmem:[#allocation4 + $0x50] sm:$0xe]
      %v7832 = vld [vmem:[#allocation4 + $0x64] sm:$0xe]
      %v7833 = vld [vmem:[#allocation4 + $0x78] sm:$0xe]
      %v7834 = vld [vmem:[#allocation4 + $0x8c] sm:$0xe]
      %v7835 = vld [vmem:[#allocation4 + $0xa0] sm:$0xe]
      %v7836 = vld [vmem:[#allocation4 + $0xb4] sm:$0xe]
      %v7837 = vld [vmem:[#allocation4 + $0xc8] sm:$0xe]
      %v7838 = vld [vmem:[#allocation4 + $0xdc] sm:$0xe]
      %v7839 = vld [vmem:[#allocation4 + $0xf0] sm:$0xe]
      %v7840 = vld [vmem:[#allocation4 + $0x104] sm:$0xe]
      %v7841 = vld [vmem:[#allocation4 + $0x118] sm:$0xe]
      %v7842 = vld [vmem:[#allocation4 + $0x12c] sm:$0xe]
      %v7843 = vld [vmem:[#allocation4 + $0x140] sm:$0xe]
      %v7844 = vld [vmem:[#allocation4 + $0x154] sm:$0xe]
      %v7845 = vld [vmem:[#allocation4 + $0x168] sm:$0xe]
      %v7846 = vld [vmem:[#allocation4 + $0x17c] sm:$0xe]
      %v7847 = vld [vmem:[#allocation4 + $0x190] sm:$0xe]
      %v7848 = vld [vmem:[#allocation4 + $0x1a4] sm:$0xe]
      %v7849 = vld [vmem:[#allocation4 + $0x1b8] sm:$0xe]
      %v7850 = vld [vmem:[#allocation4 + $0x1cc] sm:$0xe]
      %v7851 = vld [vmem:[#allocation4 + $0x1e0] sm:$0xe]
      %v7852 = vld [vmem:[#allocation4 + $0x1f4] sm:$0xe]
      %v7853 = vld [vmem:[#allocation4 + $0x208] sm:$0xe]
      %v7854 = vld [vmem:[#allocation4 + $0x21c] sm:$0xe]
      %v7855 = vld [vmem:[#allocation4 + $0x230] sm:$0xe]
      %v7856 = vld [vmem:[#allocation4 + $0x244] sm:$0xe]
      %v7857 = vld [vmem:[#allocation4 + $0x258] sm:$0xe]
      %v7858 = vld [vmem:[#allocation4 + $0x26c] sm:$0xe]
      %s7859 = scalar_lea.vmem [#allocation4], 20
      %v7860 = vld [vmem:[%s7859] sm:$0xf]
      %v7861 = vld [vmem:[%s7859 + $0x4] sm:$0xf]
      %v7862 = vld [vmem:[%s7859 + $0x8] sm:$0xf]
      %v7863 = vld [vmem:[%s7859 + $0xc] sm:$0xf]
      %v7864 = vld [vmem:[%s7859 + $0x14] sm:$0xf]
      %v7865 = vld [vmem:[%s7859 + $0x18] sm:$0xf]
      %v7866 = vld [vmem:[%s7859 + $0x1c] sm:$0xf]
      %v7867 = vld [vmem:[%s7859 + $0x20] sm:$0xf]
      %v7868 = vld [vmem:[%s7859 + $0x28] sm:$0xf]
      %v7869 = vld [vmem:[%s7859 + $0x2c] sm:$0xf]
      %v7870 = vld [vmem:[%s7859 + $0x30] sm:$0xf]
      %v7871 = vld [vmem:[%s7859 + $0x34] sm:$0xf]
      %v7872 = vld [vmem:[%s7859 + $0x3c] sm:$0xf]
      %v7873 = vld [vmem:[%s7859 + $0x40] sm:$0xf]
      %v7874 = vld [vmem:[%s7859 + $0x44] sm:$0xf]
      %v7875 = vld [vmem:[%s7859 + $0x48] sm:$0xf]
      %v7876 = vld [vmem:[%s7859 + $0x50] sm:$0xf]
      %v7877 = vld [vmem:[%s7859 + $0x54] sm:$0xf]
      %v7878 = vld [vmem:[%s7859 + $0x58] sm:$0xf]
      %v7879 = vld [vmem:[%s7859 + $0x5c] sm:$0xf]
      %v7880 = vld [vmem:[%s7859 + $0x64] sm:$0xf]
      %v7881 = vld [vmem:[%s7859 + $0x68] sm:$0xf]
      %v7882 = vld [vmem:[%s7859 + $0x6c] sm:$0xf]
      %v7883 = vld [vmem:[%s7859 + $0x70] sm:$0xf]
      %v7884 = vld [vmem:[%s7859 + $0x78] sm:$0xf]
      %v7885 = vld [vmem:[%s7859 + $0x7c] sm:$0xf]
      %v7886 = vld [vmem:[%s7859 + $0x80] sm:$0xf]
      %v7887 = vld [vmem:[%s7859 + $0x84] sm:$0xf]
      %v7888 = vld [vmem:[%s7859 + $0x8c] sm:$0xf]
      %v7889 = vld [vmem:[%s7859 + $0x90] sm:$0xf]
      %v7890 = vld [vmem:[%s7859 + $0x94] sm:$0xf]
      %v7891 = vld [vmem:[%s7859 + $0x98] sm:$0xf]
      %v7892 = vld [vmem:[%s7859 + $0xa0] sm:$0xf]
      %v7893 = vld [vmem:[%s7859 + $0xa4] sm:$0xf]
      %v7894 = vld [vmem:[%s7859 + $0xa8] sm:$0xf]
      %v7895 = vld [vmem:[%s7859 + $0xac] sm:$0xf]
      %v7896 = vld [vmem:[%s7859 + $0xb4] sm:$0xf]
      %v7897 = vld [vmem:[%s7859 + $0xb8] sm:$0xf]
      %v7898 = vld [vmem:[%s7859 + $0xbc] sm:$0xf]
      %v7899 = vld [vmem:[%s7859 + $0xc0] sm:$0xf]
      %v7900 = vld [vmem:[%s7859 + $0xc8] sm:$0xf]
      %v7901 = vld [vmem:[%s7859 + $0xcc] sm:$0xf]
      %v7902 = vld [vmem:[%s7859 + $0xd0] sm:$0xf]
      %v7903 = vld [vmem:[%s7859 + $0xd4] sm:$0xf]
      %v7904 = vld [vmem:[%s7859 + $0xdc] sm:$0xf]
      %v7905 = vld [vmem:[%s7859 + $0xe0] sm:$0xf]
      %v7906 = vld [vmem:[%s7859 + $0xe4] sm:$0xf]
      %v7907 = vld [vmem:[%s7859 + $0xe8] sm:$0xf]
      %v7908 = vld [vmem:[%s7859 + $0xf0] sm:$0xf]
      %v7909 = vld [vmem:[%s7859 + $0xf4] sm:$0xf]
      %v7910 = vld [vmem:[%s7859 + $0xf8] sm:$0xf]
      %v7911 = vld [vmem:[%s7859 + $0xfc] sm:$0xf]
      %v7912 = vld [vmem:[%s7859 + $0x104] sm:$0xf]
      %v7913 = vld [vmem:[%s7859 + $0x108] sm:$0xf]
      %v7914 = vld [vmem:[%s7859 + $0x10c] sm:$0xf]
      %v7915 = vld [vmem:[%s7859 + $0x110] sm:$0xf]
      %v7916 = vld [vmem:[%s7859 + $0x118] sm:$0xf]
      %v7917 = vld [vmem:[%s7859 + $0x11c] sm:$0xf]
      %v7918 = vld [vmem:[%s7859 + $0x120] sm:$0xf]
      %v7919 = vld [vmem:[%s7859 + $0x124] sm:$0xf]
      %v7920 = vld [vmem:[%s7859 + $0x12c] sm:$0xf]
      %v7921 = vld [vmem:[%s7859 + $0x130] sm:$0xf]
      %v7922 = vld [vmem:[%s7859 + $0x134] sm:$0xf]
      %v7923 = vld [vmem:[%s7859 + $0x138] sm:$0xf]
      %v7924 = vld [vmem:[%s7859 + $0x140] sm:$0xf]
      %v7925 = vld [vmem:[%s7859 + $0x144] sm:$0xf]
      %v7926 = vld [vmem:[%s7859 + $0x148] sm:$0xf]
      %v7927 = vld [vmem:[%s7859 + $0x14c] sm:$0xf]
      %v7928 = vld [vmem:[%s7859 + $0x154] sm:$0xf]
      %v7929 = vld [vmem:[%s7859 + $0x158] sm:$0xf]
      %v7930 = vld [vmem:[%s7859 + $0x15c] sm:$0xf]
      %v7931 = vld [vmem:[%s7859 + $0x160] sm:$0xf]
      %v7932 = vld [vmem:[%s7859 + $0x168] sm:$0xf]
      %v7933 = vld [vmem:[%s7859 + $0x16c] sm:$0xf]
      %v7934 = vld [vmem:[%s7859 + $0x170] sm:$0xf]
      %v7935 = vld [vmem:[%s7859 + $0x174] sm:$0xf]
      %v7936 = vld [vmem:[%s7859 + $0x17c] sm:$0xf]
      %v7937 = vld [vmem:[%s7859 + $0x180] sm:$0xf]
      %v7938 = vld [vmem:[%s7859 + $0x184] sm:$0xf]
      %v7939 = vld [vmem:[%s7859 + $0x188] sm:$0xf]
      %v7940 = vld [vmem:[%s7859 + $0x190] sm:$0xf]
      %v7941 = vld [vmem:[%s7859 + $0x194] sm:$0xf]
      %v7942 = vld [vmem:[%s7859 + $0x198] sm:$0xf]
      %v7943 = vld [vmem:[%s7859 + $0x19c] sm:$0xf]
      %v7944 = vld [vmem:[%s7859 + $0x1a4] sm:$0xf]
      %v7945 = vld [vmem:[%s7859 + $0x1a8] sm:$0xf]
      %v7946 = vld [vmem:[%s7859 + $0x1ac] sm:$0xf]
      %v7947 = vld [vmem:[%s7859 + $0x1b0] sm:$0xf]
      %v7948 = vld [vmem:[%s7859 + $0x1b8] sm:$0xf]
      %v7949 = vld [vmem:[%s7859 + $0x1bc] sm:$0xf]
      %v7950 = vld [vmem:[%s7859 + $0x1c0] sm:$0xf]
      %v7951 = vld [vmem:[%s7859 + $0x1c4] sm:$0xf]
      %v7952 = vld [vmem:[%s7859 + $0x1cc] sm:$0xf]
      %v7953 = vld [vmem:[%s7859 + $0x1d0] sm:$0xf]
      %v7954 = vld [vmem:[%s7859 + $0x1d4] sm:$0xf]
      %v7955 = vld [vmem:[%s7859 + $0x1d8] sm:$0xf]
      %v7956 = vld [vmem:[%s7859 + $0x1e0] sm:$0xf]
      %v7957 = vld [vmem:[%s7859 + $0x1e4] sm:$0xf]
      %v7958 = vld [vmem:[%s7859 + $0x1e8] sm:$0xf]
      %v7959 = vld [vmem:[%s7859 + $0x1ec] sm:$0xf]
      %v7960 = vld [vmem:[%s7859 + $0x1f4] sm:$0xf]
      %v7961 = vld [vmem:[%s7859 + $0x1f8] sm:$0xf]
      %v7962 = vld [vmem:[%s7859 + $0x1fc] sm:$0xf]
      %v7963 = vld [vmem:[%s7859 + $0x200] sm:$0xf]
      %v7964 = vld [vmem:[%s7859 + $0x208] sm:$0xf]
      %v7965 = vld [vmem:[%s7859 + $0x20c] sm:$0xf]
      %v7966 = vld [vmem:[%s7859 + $0x210] sm:$0xf]
      %v7967 = vld [vmem:[%s7859 + $0x214] sm:$0xf]
      %v7968 = vld [vmem:[%s7859 + $0x21c] sm:$0xf]
      %v7969 = vld [vmem:[%s7859 + $0x220] sm:$0xf]
      %v7970 = vld [vmem:[%s7859 + $0x224] sm:$0xf]
      %v7971 = vld [vmem:[%s7859 + $0x228] sm:$0xf]
      %v7972 = vld [vmem:[%s7859 + $0x230] sm:$0xf]
      %v7973 = vld [vmem:[%s7859 + $0x234] sm:$0xf]
      %v7974 = vld [vmem:[%s7859 + $0x238] sm:$0xf]
      %v7975 = vld [vmem:[%s7859 + $0x23c] sm:$0xf]
      %v7976 = vld [vmem:[%s7859 + $0x244] sm:$0xf]
      %v7977 = vld [vmem:[%s7859 + $0x248] sm:$0xf]
      %v7978 = vld [vmem:[%s7859 + $0x24c] sm:$0xf]
      %v7979 = vld [vmem:[%s7859 + $0x250] sm:$0xf]
      %v7980 = vld [vmem:[%s7859 + $0x258] sm:$0xf]
      %v7981 = vld [vmem:[%s7859 + $0x25c] sm:$0xf]
      %v7982 = vld [vmem:[%s7859 + $0x260] sm:$0xf]
      %v7983 = vld [vmem:[%s7859 + $0x264] sm:$0xf]
      %v7984 = vld [vmem:[%s7859 + $0x26c] sm:$0xf]
      %v7985 = vld [vmem:[%s7859 + $0x270] sm:$0xf]
      %v7986 = vld [vmem:[%s7859 + $0x274] sm:$0xf]
      %v7987 = vld [vmem:[%s7859 + $0x278] sm:$0xf]
      %v7988 = vld [vmem:[%s7859 + $0x10] sm:$0x1]
      %v7989 = vld [vmem:[%s7859 + $0x24] sm:$0x1]
      %v7990 = vld [vmem:[%s7859 + $0x38] sm:$0x1]
      %v7991 = vld [vmem:[%s7859 + $0x4c] sm:$0x1]
      %v7992 = vld [vmem:[%s7859 + $0x60] sm:$0x1]
      %v7993 = vld [vmem:[%s7859 + $0x74] sm:$0x1]
      %v7994 = vld [vmem:[%s7859 + $0x88] sm:$0x1]
      %v7995 = vld [vmem:[%s7859 + $0x9c] sm:$0x1]
      %v7996 = vld [vmem:[%s7859 + $0xb0] sm:$0x1]
      %v7997 = vld [vmem:[%s7859 + $0xc4] sm:$0x1]
      %v7998 = vld [vmem:[%s7859 + $0xd8] sm:$0x1]
      %v7999 = vld [vmem:[%s7859 + $0xec] sm:$0x1]
      %v8000 = vld [vmem:[%s7859 + $0x100] sm:$0x1]
      %v8001 = vld [vmem:[%s7859 + $0x114] sm:$0x1]
      %v8002 = vld [vmem:[%s7859 + $0x128] sm:$0x1]
      %v8003 = vld [vmem:[%s7859 + $0x13c] sm:$0x1]
      %v8004 = vld [vmem:[%s7859 + $0x150] sm:$0x1]
      %v8005 = vld [vmem:[%s7859 + $0x164] sm:$0x1]
      %v8006 = vld [vmem:[%s7859 + $0x178] sm:$0x1]
      %v8007 = vld [vmem:[%s7859 + $0x18c] sm:$0x1]
      %v8008 = vld [vmem:[%s7859 + $0x1a0] sm:$0x1]
      %v8009 = vld [vmem:[%s7859 + $0x1b4] sm:$0x1]
      %v8010 = vld [vmem:[%s7859 + $0x1c8] sm:$0x1]
      %v8011 = vld [vmem:[%s7859 + $0x1dc] sm:$0x1]
      %v8012 = vld [vmem:[%s7859 + $0x1f0] sm:$0x1]
      %v8013 = vld [vmem:[%s7859 + $0x204] sm:$0x1]
      %v8014 = vld [vmem:[%s7859 + $0x218] sm:$0x1]
      %v8015 = vld [vmem:[%s7859 + $0x22c] sm:$0x1]
      %v8016 = vld [vmem:[%s7859 + $0x240] sm:$0x1]
      %v8017 = vld [vmem:[%s7859 + $0x254] sm:$0x1]
      %v8018 = vld [vmem:[%s7859 + $0x268] sm:$0x1]
      %v8019 = vld [vmem:[%s7859 + $0x27c] sm:$0x1]
      %v8020 = vld [vmem:[%s7859] sm:$0xe]
      %v8021 = vld [vmem:[%s7859 + $0x14] sm:$0xe]
      %v8022 = vld [vmem:[%s7859 + $0x28] sm:$0xe]
      %v8023 = vld [vmem:[%s7859 + $0x3c] sm:$0xe]
      %v8024 = vld [vmem:[%s7859 + $0x50] sm:$0xe]
      %v8025 = vld [vmem:[%s7859 + $0x64] sm:$0xe]
      %v8026 = vld [vmem:[%s7859 + $0x78] sm:$0xe]
      %v8027 = vld [vmem:[%s7859 + $0x8c] sm:$0xe]
      %v8028 = vld [vmem:[%s7859 + $0xa0] sm:$0xe]
      %v8029 = vld [vmem:[%s7859 + $0xb4] sm:$0xe]
      %v8030 = vld [vmem:[%s7859 + $0xc8] sm:$0xe]
      %v8031 = vld [vmem:[%s7859 + $0xdc] sm:$0xe]
      %v8032 = vld [vmem:[%s7859 + $0xf0] sm:$0xe]
      %v8033 = vld [vmem:[%s7859 + $0x104] sm:$0xe]
      %v8034 = vld [vmem:[%s7859 + $0x118] sm:$0xe]
      %v8035 = vld [vmem:[%s7859 + $0x12c] sm:$0xe]
      %v8036 = vld [vmem:[%s7859 + $0x140] sm:$0xe]
      %v8037 = vld [vmem:[%s7859 + $0x154] sm:$0xe]
      %v8038 = vld [vmem:[%s7859 + $0x168] sm:$0xe]
      %v8039 = vld [vmem:[%s7859 + $0x17c] sm:$0xe]
      %v8040 = vld [vmem:[%s7859 + $0x190] sm:$0xe]
      %v8041 = vld [vmem:[%s7859 + $0x1a4] sm:$0xe]
      %v8042 = vld [vmem:[%s7859 + $0x1b8] sm:$0xe]
      %v8043 = vld [vmem:[%s7859 + $0x1cc] sm:$0xe]
      %v8044 = vld [vmem:[%s7859 + $0x1e0] sm:$0xe]
      %v8045 = vld [vmem:[%s7859 + $0x1f4] sm:$0xe]
      %v8046 = vld [vmem:[%s7859 + $0x208] sm:$0xe]
      %v8047 = vld [vmem:[%s7859 + $0x21c] sm:$0xe]
      %v8048 = vld [vmem:[%s7859 + $0x230] sm:$0xe]
      %v8049 = vld [vmem:[%s7859 + $0x244] sm:$0xe]
      %v8050 = vld [vmem:[%s7859 + $0x258] sm:$0xe]
      %v8051 = vld [vmem:[%s7859 + $0x26c] sm:$0xe]
      %s8052 = scalar_lea.vmem [#allocation4], 40
      %v8053 = vld [vmem:[%s8052] sm:$0xf]
      %v8054 = vld [vmem:[%s8052 + $0x4] sm:$0xf]
      %v8055 = vld [vmem:[%s8052 + $0x8] sm:$0xf]
      %v8056 = vld [vmem:[%s8052 + $0xc] sm:$0xf]
      %v8057 = vld [vmem:[%s8052 + $0x14] sm:$0xf]
      %v8058 = vld [vmem:[%s8052 + $0x18] sm:$0xf]
      %v8059 = vld [vmem:[%s8052 + $0x1c] sm:$0xf]
      %v8060 = vld [vmem:[%s8052 + $0x20] sm:$0xf]
      %v8061 = vld [vmem:[%s8052 + $0x28] sm:$0xf]
      %v8062 = vld [vmem:[%s8052 + $0x2c] sm:$0xf]
      %v8063 = vld [vmem:[%s8052 + $0x30] sm:$0xf]
      %v8064 = vld [vmem:[%s8052 + $0x34] sm:$0xf]
      %v8065 = vld [vmem:[%s8052 + $0x3c] sm:$0xf]
      %v8066 = vld [vmem:[%s8052 + $0x40] sm:$0xf]
      %v8067 = vld [vmem:[%s8052 + $0x44] sm:$0xf]
      %v8068 = vld [vmem:[%s8052 + $0x48] sm:$0xf]
      %v8069 = vld [vmem:[%s8052 + $0x50] sm:$0xf]
      %v8070 = vld [vmem:[%s8052 + $0x54] sm:$0xf]
      %v8071 = vld [vmem:[%s8052 + $0x58] sm:$0xf]
      %v8072 = vld [vmem:[%s8052 + $0x5c] sm:$0xf]
      %v8073 = vld [vmem:[%s8052 + $0x64] sm:$0xf]
      %v8074 = vld [vmem:[%s8052 + $0x68] sm:$0xf]
      %v8075 = vld [vmem:[%s8052 + $0x6c] sm:$0xf]
      %v8076 = vld [vmem:[%s8052 + $0x70] sm:$0xf]
      %v8077 = vld [vmem:[%s8052 + $0x78] sm:$0xf]
      %v8078 = vld [vmem:[%s8052 + $0x7c] sm:$0xf]
      %v8079 = vld [vmem:[%s8052 + $0x80] sm:$0xf]
      %v8080 = vld [vmem:[%s8052 + $0x84] sm:$0xf]
      %v8081 = vld [vmem:[%s8052 + $0x8c] sm:$0xf]
      %v8082 = vld [vmem:[%s8052 + $0x90] sm:$0xf]
      %v8083 = vld [vmem:[%s8052 + $0x94] sm:$0xf]
      %v8084 = vld [vmem:[%s8052 + $0x98] sm:$0xf]
      %v8085 = vld [vmem:[%s8052 + $0xa0] sm:$0xf]
      %v8086 = vld [vmem:[%s8052 + $0xa4] sm:$0xf]
      %v8087 = vld [vmem:[%s8052 + $0xa8] sm:$0xf]
      %v8088 = vld [vmem:[%s8052 + $0xac] sm:$0xf]
      %v8089 = vld [vmem:[%s8052 + $0xb4] sm:$0xf]
      %v8090 = vld [vmem:[%s8052 + $0xb8] sm:$0xf]
      %v8091 = vld [vmem:[%s8052 + $0xbc] sm:$0xf]
      %v8092 = vld [vmem:[%s8052 + $0xc0] sm:$0xf]
      %v8093 = vld [vmem:[%s8052 + $0xc8] sm:$0xf]
      %v8094 = vld [vmem:[%s8052 + $0xcc] sm:$0xf]
      %v8095 = vld [vmem:[%s8052 + $0xd0] sm:$0xf]
      %v8096 = vld [vmem:[%s8052 + $0xd4] sm:$0xf]
      %v8097 = vld [vmem:[%s8052 + $0xdc] sm:$0xf]
      %v8098 = vld [vmem:[%s8052 + $0xe0] sm:$0xf]
      %v8099 = vld [vmem:[%s8052 + $0xe4] sm:$0xf]
      %v8100 = vld [vmem:[%s8052 + $0xe8] sm:$0xf]
      %v8101 = vld [vmem:[%s8052 + $0xf0] sm:$0xf]
      %v8102 = vld [vmem:[%s8052 + $0xf4] sm:$0xf]
      %v8103 = vld [vmem:[%s8052 + $0xf8] sm:$0xf]
      %v8104 = vld [vmem:[%s8052 + $0xfc] sm:$0xf]
      %v8105 = vld [vmem:[%s8052 + $0x104] sm:$0xf]
      %v8106 = vld [vmem:[%s8052 + $0x108] sm:$0xf]
      %v8107 = vld [vmem:[%s8052 + $0x10c] sm:$0xf]
      %v8108 = vld [vmem:[%s8052 + $0x110] sm:$0xf]
      %v8109 = vld [vmem:[%s8052 + $0x118] sm:$0xf]
      %v8110 = vld [vmem:[%s8052 + $0x11c] sm:$0xf]
      %v8111 = vld [vmem:[%s8052 + $0x120] sm:$0xf]
      %v8112 = vld [vmem:[%s8052 + $0x124] sm:$0xf]
      %v8113 = vld [vmem:[%s8052 + $0x12c] sm:$0xf]
      %v8114 = vld [vmem:[%s8052 + $0x130] sm:$0xf]
      %v8115 = vld [vmem:[%s8052 + $0x134] sm:$0xf]
      %v8116 = vld [vmem:[%s8052 + $0x138] sm:$0xf]
      %v8117 = vld [vmem:[%s8052 + $0x140] sm:$0xf]
      %v8118 = vld [vmem:[%s8052 + $0x144] sm:$0xf]
      %v8119 = vld [vmem:[%s8052 + $0x148] sm:$0xf]
      %v8120 = vld [vmem:[%s8052 + $0x14c] sm:$0xf]
      %v8121 = vld [vmem:[%s8052 + $0x154] sm:$0xf]
      %v8122 = vld [vmem:[%s8052 + $0x158] sm:$0xf]
      %v8123 = vld [vmem:[%s8052 + $0x15c] sm:$0xf]
      %v8124 = vld [vmem:[%s8052 + $0x160] sm:$0xf]
      %v8125 = vld [vmem:[%s8052 + $0x168] sm:$0xf]
      %v8126 = vld [vmem:[%s8052 + $0x16c] sm:$0xf]
      %v8127 = vld [vmem:[%s8052 + $0x170] sm:$0xf]
      %v8128 = vld [vmem:[%s8052 + $0x174] sm:$0xf]
      %v8129 = vld [vmem:[%s8052 + $0x17c] sm:$0xf]
      %v8130 = vld [vmem:[%s8052 + $0x180] sm:$0xf]
      %v8131 = vld [vmem:[%s8052 + $0x184] sm:$0xf]
      %v8132 = vld [vmem:[%s8052 + $0x188] sm:$0xf]
      %v8133 = vld [vmem:[%s8052 + $0x190] sm:$0xf]
      %v8134 = vld [vmem:[%s8052 + $0x194] sm:$0xf]
      %v8135 = vld [vmem:[%s8052 + $0x198] sm:$0xf]
      %v8136 = vld [vmem:[%s8052 + $0x19c] sm:$0xf]
      %v8137 = vld [vmem:[%s8052 + $0x1a4] sm:$0xf]
      %v8138 = vld [vmem:[%s8052 + $0x1a8] sm:$0xf]
      %v8139 = vld [vmem:[%s8052 + $0x1ac] sm:$0xf]
      %v8140 = vld [vmem:[%s8052 + $0x1b0] sm:$0xf]
      %v8141 = vld [vmem:[%s8052 + $0x1b8] sm:$0xf]
      %v8142 = vld [vmem:[%s8052 + $0x1bc] sm:$0xf]
      %v8143 = vld [vmem:[%s8052 + $0x1c0] sm:$0xf]
      %v8144 = vld [vmem:[%s8052 + $0x1c4] sm:$0xf]
      %v8145 = vld [vmem:[%s8052 + $0x1cc] sm:$0xf]
      %v8146 = vld [vmem:[%s8052 + $0x1d0] sm:$0xf]
      %v8147 = vld [vmem:[%s8052 + $0x1d4] sm:$0xf]
      %v8148 = vld [vmem:[%s8052 + $0x1d8] sm:$0xf]
      %v8149 = vld [vmem:[%s8052 + $0x1e0] sm:$0xf]
      %v8150 = vld [vmem:[%s8052 + $0x1e4] sm:$0xf]
      %v8151 = vld [vmem:[%s8052 + $0x1e8] sm:$0xf]
      %v8152 = vld [vmem:[%s8052 + $0x1ec] sm:$0xf]
      %v8153 = vld [vmem:[%s8052 + $0x1f4] sm:$0xf]
      %v8154 = vld [vmem:[%s8052 + $0x1f8] sm:$0xf]
      %v8155 = vld [vmem:[%s8052 + $0x1fc] sm:$0xf]
      %v8156 = vld [vmem:[%s8052 + $0x200] sm:$0xf]
      %v8157 = vld [vmem:[%s8052 + $0x208] sm:$0xf]
      %v8158 = vld [vmem:[%s8052 + $0x20c] sm:$0xf]
      %v8159 = vld [vmem:[%s8052 + $0x210] sm:$0xf]
      %v8160 = vld [vmem:[%s8052 + $0x214] sm:$0xf]
      %v8161 = vld [vmem:[%s8052 + $0x21c] sm:$0xf]
      %v8162 = vld [vmem:[%s8052 + $0x220] sm:$0xf]
      %v8163 = vld [vmem:[%s8052 + $0x224] sm:$0xf]
      %v8164 = vld [vmem:[%s8052 + $0x228] sm:$0xf]
      %v8165 = vld [vmem:[%s8052 + $0x230] sm:$0xf]
      %v8166 = vld [vmem:[%s8052 + $0x234] sm:$0xf]
      %v8167 = vld [vmem:[%s8052 + $0x238] sm:$0xf]
      %v8168 = vld [vmem:[%s8052 + $0x23c] sm:$0xf]
      %v8169 = vld [vmem:[%s8052 + $0x244] sm:$0xf]
      %v8170 = vld [vmem:[%s8052 + $0x248] sm:$0xf]
      %v8171 = vld [vmem:[%s8052 + $0x24c] sm:$0xf]
      %v8172 = vld [vmem:[%s8052 + $0x250] sm:$0xf]
      %v8173 = vld [vmem:[%s8052 + $0x258] sm:$0xf]
      %v8174 = vld [vmem:[%s8052 + $0x25c] sm:$0xf]
      %v8175 = vld [vmem:[%s8052 + $0x260] sm:$0xf]
      %v8176 = vld [vmem:[%s8052 + $0x264] sm:$0xf]
      %v8177 = vld [vmem:[%s8052 + $0x26c] sm:$0xf]
      %v8178 = vld [vmem:[%s8052 + $0x270] sm:$0xf]
      %v8179 = vld [vmem:[%s8052 + $0x274] sm:$0xf]
      %v8180 = vld [vmem:[%s8052 + $0x278] sm:$0xf]
      %v8181 = vld [vmem:[%s8052 + $0x10] sm:$0x1]
      %v8182 = vld [vmem:[%s8052 + $0x24] sm:$0x1]
      %v8183 = vld [vmem:[%s8052 + $0x38] sm:$0x1]
      %v8184 = vld [vmem:[%s8052 + $0x4c] sm:$0x1]
      %v8185 = vld [vmem:[%s8052 + $0x60] sm:$0x1]
      %v8186 = vld [vmem:[%s8052 + $0x74] sm:$0x1]
      %v8187 = vld [vmem:[%s8052 + $0x88] sm:$0x1]
      %v8188 = vld [vmem:[%s8052 + $0x9c] sm:$0x1]
      %v8189 = vld [vmem:[%s8052 + $0xb0] sm:$0x1]
      %v8190 = vld [vmem:[%s8052 + $0xc4] sm:$0x1]
      %v8191 = vld [vmem:[%s8052 + $0xd8] sm:$0x1]
      %v8192 = vld [vmem:[%s8052 + $0xec] sm:$0x1]
      %v8193 = vld [vmem:[%s8052 + $0x100] sm:$0x1]
      %v8194 = vld [vmem:[%s8052 + $0x114] sm:$0x1]
      %v8195 = vld [vmem:[%s8052 + $0x128] sm:$0x1]
      %v8196 = vld [vmem:[%s8052 + $0x13c] sm:$0x1]
      %v8197 = vld [vmem:[%s8052 + $0x150] sm:$0x1]
      %v8198 = vld [vmem:[%s8052 + $0x164] sm:$0x1]
      %v8199 = vld [vmem:[%s8052 + $0x178] sm:$0x1]
      %v8200 = vld [vmem:[%s8052 + $0x18c] sm:$0x1]
      %v8201 = vld [vmem:[%s8052 + $0x1a0] sm:$0x1]
      %v8202 = vld [vmem:[%s8052 + $0x1b4] sm:$0x1]
      %v8203 = vld [vmem:[%s8052 + $0x1c8] sm:$0x1]
      %v8204 = vld [vmem:[%s8052 + $0x1dc] sm:$0x1]
      %v8205 = vld [vmem:[%s8052 + $0x1f0] sm:$0x1]
      %v8206 = vld [vmem:[%s8052 + $0x204] sm:$0x1]
      %v8207 = vld [vmem:[%s8052 + $0x218] sm:$0x1]
      %v8208 = vld [vmem:[%s8052 + $0x22c] sm:$0x1]
      %v8209 = vld [vmem:[%s8052 + $0x240] sm:$0x1]
      %v8210 = vld [vmem:[%s8052 + $0x254] sm:$0x1]
      %v8211 = vld [vmem:[%s8052 + $0x268] sm:$0x1]
      %v8212 = vld [vmem:[%s8052 + $0x27c] sm:$0x1]
      %v8213 = vld [vmem:[%s8052] sm:$0xe]
      %v8214 = vld [vmem:[%s8052 + $0x14] sm:$0xe]
      %v8215 = vld [vmem:[%s8052 + $0x28] sm:$0xe]
      %v8216 = vld [vmem:[%s8052 + $0x3c] sm:$0xe]
      %v8217 = vld [vmem:[%s8052 + $0x50] sm:$0xe]
      %v8218 = vld [vmem:[%s8052 + $0x64] sm:$0xe]
      %v8219 = vld [vmem:[%s8052 + $0x78] sm:$0xe]
      %v8220 = vld [vmem:[%s8052 + $0x8c] sm:$0xe]
      %v8221 = vld [vmem:[%s8052 + $0xa0] sm:$0xe]
      %v8222 = vld [vmem:[%s8052 + $0xb4] sm:$0xe]
      %v8223 = vld [vmem:[%s8052 + $0xc8] sm:$0xe]
      %v8224 = vld [vmem:[%s8052 + $0xdc] sm:$0xe]
      %v8225 = vld [vmem:[%s8052 + $0xf0] sm:$0xe]
      %v8226 = vld [vmem:[%s8052 + $0x104] sm:$0xe]
      %v8227 = vld [vmem:[%s8052 + $0x118] sm:$0xe]
      %v8228 = vld [vmem:[%s8052 + $0x12c] sm:$0xe]
      %v8229 = vld [vmem:[%s8052 + $0x140] sm:$0xe]
      %v8230 = vld [vmem:[%s8052 + $0x154] sm:$0xe]
      %v8231 = vld [vmem:[%s8052 + $0x168] sm:$0xe]
      %v8232 = vld [vmem:[%s8052 + $0x17c] sm:$0xe]
      %v8233 = vld [vmem:[%s8052 + $0x190] sm:$0xe]
      %v8234 = vld [vmem:[%s8052 + $0x1a4] sm:$0xe]
      %v8235 = vld [vmem:[%s8052 + $0x1b8] sm:$0xe]
      %v8236 = vld [vmem:[%s8052 + $0x1cc] sm:$0xe]
      %v8237 = vld [vmem:[%s8052 + $0x1e0] sm:$0xe]
      %v8238 = vld [vmem:[%s8052 + $0x1f4] sm:$0xe]
      %v8239 = vld [vmem:[%s8052 + $0x208] sm:$0xe]
      %v8240 = vld [vmem:[%s8052 + $0x21c] sm:$0xe]
      %v8241 = vld [vmem:[%s8052 + $0x230] sm:$0xe]
      %v8242 = vld [vmem:[%s8052 + $0x244] sm:$0xe]
      %v8243 = vld [vmem:[%s8052 + $0x258] sm:$0xe]
      %v8244 = vld [vmem:[%s8052 + $0x26c] sm:$0xe]
      %v8373 = vunpack.c.l.b16 %v7667
      %v8374 = vunpack.c.l.b16 %v7668
      %v8375 = vunpack.c.l.b16 %v7669
      %v8376 = vunpack.c.l.b16 %v7670
      %v8377 = vunpack.c.l.b16 %v7671
      %v8378 = vunpack.c.l.b16 %v7672
      %v8379 = vunpack.c.l.b16 %v7673
      %v8380 = vunpack.c.l.b16 %v7674
      %v8381 = vunpack.c.l.b16 %v7675
      %v8382 = vunpack.c.l.b16 %v7676
      %v8383 = vunpack.c.l.b16 %v7677
      %v8384 = vunpack.c.l.b16 %v7678
      %v8385 = vunpack.c.l.b16 %v7679
      %v8386 = vunpack.c.l.b16 %v7680
      %v8387 = vunpack.c.l.b16 %v7681
      %v8388 = vunpack.c.l.b16 %v7682
      %v8389 = vunpack.c.l.b16 %v7683
      %v8390 = vunpack.c.l.b16 %v7684
      %v8391 = vunpack.c.l.b16 %v7685
      %v8392 = vunpack.c.l.b16 %v7686
      %v8393 = vunpack.c.l.b16 %v7687
      %v8394 = vunpack.c.l.b16 %v7688
      %v8395 = vunpack.c.l.b16 %v7689
      %v8396 = vunpack.c.l.b16 %v7690
      %v8397 = vunpack.c.l.b16 %v7691
      %v8398 = vunpack.c.l.b16 %v7692
      %v8399 = vunpack.c.l.b16 %v7693
      %v8400 = vunpack.c.l.b16 %v7694
      %v8401 = vunpack.c.l.b16 %v7695
      %v8402 = vunpack.c.l.b16 %v7696
      %v8403 = vunpack.c.l.b16 %v7697
      %v8404 = vunpack.c.l.b16 %v7698
      %v8405 = vunpack.c.l.b16 %v7699
      %v8406 = vunpack.c.l.b16 %v7700
      %v8407 = vunpack.c.l.b16 %v7701
      %v8408 = vunpack.c.l.b16 %v7702
      %v8409 = vunpack.c.l.b16 %v7703
      %v8410 = vunpack.c.l.b16 %v7704
      %v8411 = vunpack.c.l.b16 %v7705
      %v8412 = vunpack.c.l.b16 %v7706
      %v8413 = vunpack.c.l.b16 %v7707
      %v8414 = vunpack.c.l.b16 %v7708
      %v8415 = vunpack.c.l.b16 %v7709
      %v8416 = vunpack.c.l.b16 %v7710
      %v8417 = vunpack.c.l.b16 %v7711
      %v8418 = vunpack.c.l.b16 %v7712
      %v8419 = vunpack.c.l.b16 %v7713
      %v8420 = vunpack.c.l.b16 %v7714
      %v8421 = vunpack.c.l.b16 %v7715
      %v8422 = vunpack.c.l.b16 %v7716
      %v8423 = vunpack.c.l.b16 %v7717
      %v8424 = vunpack.c.l.b16 %v7718
      %v8425 = vunpack.c.l.b16 %v7719
      %v8426 = vunpack.c.l.b16 %v7720
      %v8427 = vunpack.c.l.b16 %v7721
      %v8428 = vunpack.c.l.b16 %v7722
      %v8429 = vunpack.c.l.b16 %v7723
      %v8430 = vunpack.c.l.b16 %v7724
      %v8431 = vunpack.c.l.b16 %v7725
      %v8432 = vunpack.c.l.b16 %v7726
      %v8433 = vunpack.c.l.b16 %v7727
      %v8434 = vunpack.c.l.b16 %v7728
      %v8435 = vunpack.c.l.b16 %v7729
      %v8436 = vunpack.c.l.b16 %v7730
      %v8437 = vunpack.c.l.b16 %v7731
      %v8438 = vunpack.c.l.b16 %v7732
      %v8439 = vunpack.c.l.b16 %v7733
      %v8440 = vunpack.c.l.b16 %v7734
      %v8441 = vunpack.c.l.b16 %v7735
      %v8442 = vunpack.c.l.b16 %v7736
      %v8443 = vunpack.c.l.b16 %v7737
      %v8444 = vunpack.c.l.b16 %v7738
      %v8445 = vunpack.c.l.b16 %v7739
      %v8446 = vunpack.c.l.b16 %v7740
      %v8447 = vunpack.c.l.b16 %v7741
      %v8448 = vunpack.c.l.b16 %v7742
      %v8449 = vunpack.c.l.b16 %v7743
      %v8450 = vunpack.c.l.b16 %v7744
      %v8451 = vunpack.c.l.b16 %v7745
      %v8452 = vunpack.c.l.b16 %v7746
      %v8453 = vunpack.c.l.b16 %v7747
      %v8454 = vunpack.c.l.b16 %v7748
      %v8455 = vunpack.c.l.b16 %v7749
      %v8456 = vunpack.c.l.b16 %v7750
      %v8457 = vunpack.c.l.b16 %v7751
      %v8458 = vunpack.c.l.b16 %v7752
      %v8459 = vunpack.c.l.b16 %v7753
      %v8460 = vunpack.c.l.b16 %v7754
      %v8461 = vunpack.c.l.b16 %v7755
      %v8462 = vunpack.c.l.b16 %v7756
      %v8463 = vunpack.c.l.b16 %v7757
      %v8464 = vunpack.c.l.b16 %v7758
      %v8465 = vunpack.c.l.b16 %v7759
      %v8466 = vunpack.c.l.b16 %v7760
      %v8467 = vunpack.c.l.b16 %v7761
      %v8468 = vunpack.c.l.b16 %v7762
      %v8469 = vunpack.c.l.b16 %v7763
      %v8470 = vunpack.c.l.b16 %v7764
      %v8471 = vunpack.c.l.b16 %v7765
      %v8472 = vunpack.c.l.b16 %v7766
      %v8473 = vunpack.c.l.b16 %v7767
      %v8474 = vunpack.c.l.b16 %v7768
      %v8475 = vunpack.c.l.b16 %v7769
      %v8476 = vunpack.c.l.b16 %v7770
      %v8477 = vunpack.c.l.b16 %v7771
      %v8478 = vunpack.c.l.b16 %v7772
      %v8479 = vunpack.c.l.b16 %v7773
      %v8480 = vunpack.c.l.b16 %v7774
      %v8481 = vunpack.c.l.b16 %v7775
      %v8482 = vunpack.c.l.b16 %v7776
      %v8483 = vunpack.c.l.b16 %v7777
      %v8484 = vunpack.c.l.b16 %v7778
      %v8485 = vunpack.c.l.b16 %v7779
      %v8486 = vunpack.c.l.b16 %v7780
      %v8487 = vunpack.c.l.b16 %v7781
      %v8488 = vunpack.c.l.b16 %v7782
      %v8489 = vunpack.c.l.b16 %v7783
      %v8490 = vunpack.c.l.b16 %v7784
      %v8491 = vunpack.c.l.b16 %v7785
      %v8492 = vunpack.c.l.b16 %v7786
      %v8493 = vunpack.c.l.b16 %v7787
      %v8494 = vunpack.c.l.b16 %v7788
      %v8495 = vunpack.c.l.b16 %v7789
      %v8496 = vunpack.c.l.b16 %v7790
      %v8497 = vunpack.c.l.b16 %v7791
      %v8498 = vunpack.c.l.b16 %v7792
      %v8499 = vunpack.c.l.b16 %v7793
      %v8500 = vunpack.c.l.b16 %v7794
      %v8501 = vpack.c.b16 %v8374, %v8373
      %v8502 = vpack.c.b16 %v8376, %v8375
      %v8503 = vpack.c.b16 %v8378, %v8377
      %v8504 = vpack.c.b16 %v8380, %v8379
      %v8505 = vpack.c.b16 %v8382, %v8381
      %v8506 = vpack.c.b16 %v8384, %v8383
      %v8507 = vpack.c.b16 %v8386, %v8385
      %v8508 = vpack.c.b16 %v8388, %v8387
      %v8509 = vpack.c.b16 %v8390, %v8389
      %v8510 = vpack.c.b16 %v8392, %v8391
      %v8511 = vpack.c.b16 %v8394, %v8393
      %v8512 = vpack.c.b16 %v8396, %v8395
      %v8513 = vpack.c.b16 %v8398, %v8397
      %v8514 = vpack.c.b16 %v8400, %v8399
      %v8515 = vpack.c.b16 %v8402, %v8401
      %v8516 = vpack.c.b16 %v8404, %v8403
      %v8517 = vpack.c.b16 %v8406, %v8405
      %v8518 = vpack.c.b16 %v8408, %v8407
      %v8519 = vpack.c.b16 %v8410, %v8409
      %v8520 = vpack.c.b16 %v8412, %v8411
      %v8521 = vpack.c.b16 %v8414, %v8413
      %v8522 = vpack.c.b16 %v8416, %v8415
      %v8523 = vpack.c.b16 %v8418, %v8417
      %v8524 = vpack.c.b16 %v8420, %v8419
      %v8525 = vpack.c.b16 %v8422, %v8421
      %v8526 = vpack.c.b16 %v8424, %v8423
      %v8527 = vpack.c.b16 %v8426, %v8425
      %v8528 = vpack.c.b16 %v8428, %v8427
      %v8529 = vpack.c.b16 %v8430, %v8429
      %v8530 = vpack.c.b16 %v8432, %v8431
      %v8531 = vpack.c.b16 %v8434, %v8433
      %v8532 = vpack.c.b16 %v8436, %v8435
      %v8533 = vpack.c.b16 %v8438, %v8437
      %v8534 = vpack.c.b16 %v8440, %v8439
      %v8535 = vpack.c.b16 %v8442, %v8441
      %v8536 = vpack.c.b16 %v8444, %v8443
      %v8537 = vpack.c.b16 %v8446, %v8445
      %v8538 = vpack.c.b16 %v8448, %v8447
      %v8539 = vpack.c.b16 %v8450, %v8449
      %v8540 = vpack.c.b16 %v8452, %v8451
      %v8541 = vpack.c.b16 %v8454, %v8453
      %v8542 = vpack.c.b16 %v8456, %v8455
      %v8543 = vpack.c.b16 %v8458, %v8457
      %v8544 = vpack.c.b16 %v8460, %v8459
      %v8545 = vpack.c.b16 %v8462, %v8461
      %v8546 = vpack.c.b16 %v8464, %v8463
      %v8547 = vpack.c.b16 %v8466, %v8465
      %v8548 = vpack.c.b16 %v8468, %v8467
      %v8549 = vpack.c.b16 %v8470, %v8469
      %v8550 = vpack.c.b16 %v8472, %v8471
      %v8551 = vpack.c.b16 %v8474, %v8473
      %v8552 = vpack.c.b16 %v8476, %v8475
      %v8553 = vpack.c.b16 %v8478, %v8477
      %v8554 = vpack.c.b16 %v8480, %v8479
      %v8555 = vpack.c.b16 %v8482, %v8481
      %v8556 = vpack.c.b16 %v8484, %v8483
      %v8557 = vpack.c.b16 %v8486, %v8485
      %v8558 = vpack.c.b16 %v8488, %v8487
      %v8559 = vpack.c.b16 %v8490, %v8489
      %v8560 = vpack.c.b16 %v8492, %v8491
      %v8561 = vpack.c.b16 %v8494, %v8493
      %v8562 = vpack.c.b16 %v8496, %v8495
      %v8563 = vpack.c.b16 %v8498, %v8497
      %v8564 = vpack.c.b16 %v8500, %v8499
      %v8597 = vunpack.c.l.b16 %v7795
      %v8598 = vunpack.c.l.b16 %v7796
      %v8599 = vunpack.c.l.b16 %v7797
      %v8600 = vunpack.c.l.b16 %v7798
      %v8601 = vunpack.c.l.b16 %v7799
      %v8602 = vunpack.c.l.b16 %v7800
      %v8603 = vunpack.c.l.b16 %v7801
      %v8604 = vunpack.c.l.b16 %v7802
      %v8605 = vunpack.c.l.b16 %v7803
      %v8606 = vunpack.c.l.b16 %v7804
      %v8607 = vunpack.c.l.b16 %v7805
      %v8608 = vunpack.c.l.b16 %v7806
      %v8609 = vunpack.c.l.b16 %v7807
      %v8610 = vunpack.c.l.b16 %v7808
      %v8611 = vunpack.c.l.b16 %v7809
      %v8612 = vunpack.c.l.b16 %v7810
      %v8613 = vunpack.c.l.b16 %v7811
      %v8614 = vunpack.c.l.b16 %v7812
      %v8615 = vunpack.c.l.b16 %v7813
      %v8616 = vunpack.c.l.b16 %v7814
      %v8617 = vunpack.c.l.b16 %v7815
      %v8618 = vunpack.c.l.b16 %v7816
      %v8619 = vunpack.c.l.b16 %v7817
      %v8620 = vunpack.c.l.b16 %v7818
      %v8621 = vunpack.c.l.b16 %v7819
      %v8622 = vunpack.c.l.b16 %v7820
      %v8623 = vunpack.c.l.b16 %v7821
      %v8624 = vunpack.c.l.b16 %v7822
      %v8625 = vunpack.c.l.b16 %v7823
      %v8626 = vunpack.c.l.b16 %v7824
      %v8627 = vunpack.c.l.b16 %v7825
      %v8628 = vunpack.c.l.b16 %v7826
      %v8629 = vpack.c.b16 %v8597, %v8597
      %v8630 = vpack.c.b16 %v8598, %v8598
      %v8631 = vpack.c.b16 %v8599, %v8599
      %v8632 = vpack.c.b16 %v8600, %v8600
      %v8633 = vpack.c.b16 %v8601, %v8601
      %v8634 = vpack.c.b16 %v8602, %v8602
      %v8635 = vpack.c.b16 %v8603, %v8603
      %v8636 = vpack.c.b16 %v8604, %v8604
      %v8637 = vpack.c.b16 %v8605, %v8605
      %v8638 = vpack.c.b16 %v8606, %v8606
      %v8639 = vpack.c.b16 %v8607, %v8607
      %v8640 = vpack.c.b16 %v8608, %v8608
      %v8641 = vpack.c.b16 %v8609, %v8609
      %v8642 = vpack.c.b16 %v8610, %v8610
      %v8643 = vpack.c.b16 %v8611, %v8611
      %v8644 = vpack.c.b16 %v8612, %v8612
      %v8645 = vpack.c.b16 %v8613, %v8613
      %v8646 = vpack.c.b16 %v8614, %v8614
      %v8647 = vpack.c.b16 %v8615, %v8615
      %v8648 = vpack.c.b16 %v8616, %v8616
      %v8649 = vpack.c.b16 %v8617, %v8617
      %v8650 = vpack.c.b16 %v8618, %v8618
      %v8651 = vpack.c.b16 %v8619, %v8619
      %v8652 = vpack.c.b16 %v8620, %v8620
      %v8653 = vpack.c.b16 %v8621, %v8621
      %v8654 = vpack.c.b16 %v8622, %v8622
      %v8655 = vpack.c.b16 %v8623, %v8623
      %v8656 = vpack.c.b16 %v8624, %v8624
      %v8657 = vpack.c.b16 %v8625, %v8625
      %v8658 = vpack.c.b16 %v8626, %v8626
      %v8659 = vpack.c.b16 %v8627, %v8627
      %v8660 = vpack.c.b16 %v8628, %v8628
      %v8662 = vshrl.u32 %v8501, 16
      %v8664 = vshll.u32 %v8501, 16
      %v8666 = vrot.slane %v8664, 1
      %v8667 = vor.u32 %v8662, %v8666
      %v8669 = vshll.u32 %v8502, 16
      %v8671 = vrot.slane %v8669, 1
      %v8672 = vsel %vm2607, %v8667, %v8671
      %v8673 = vshrl.u32 %v8502, 16
      %v8675 = vor.u32 %v8673, %v8671
      %v8677 = vshll.u32 %v8629, 16
      %v8679 = vrot.slane %v8677, 1
      %v8680 = vsel %vm2607, %v8675, %v8679
      %v8682 = vshrl.u32 %v8503, 16
      %v8684 = vshll.u32 %v8503, 16
      %v8686 = vrot.slane %v8684, 1
      %v8687 = vor.u32 %v8682, %v8686
      %v8689 = vshll.u32 %v8504, 16
      %v8691 = vrot.slane %v8689, 1
      %v8692 = vsel %vm2607, %v8687, %v8691
      %v8693 = vshrl.u32 %v8504, 16
      %v8695 = vor.u32 %v8693, %v8691
      %v8697 = vshll.u32 %v8630, 16
      %v8699 = vrot.slane %v8697, 1
      %v8700 = vsel %vm2607, %v8695, %v8699
      %v8702 = vshrl.u32 %v8505, 16
      %v8704 = vshll.u32 %v8505, 16
      %v8706 = vrot.slane %v8704, 1
      %v8707 = vor.u32 %v8702, %v8706
      %v8709 = vshll.u32 %v8506, 16
      %v8711 = vrot.slane %v8709, 1
      %v8712 = vsel %vm2607, %v8707, %v8711
      %v8713 = vshrl.u32 %v8506, 16
      %v8715 = vor.u32 %v8713, %v8711
      %v8717 = vshll.u32 %v8631, 16
      %v8719 = vrot.slane %v8717, 1
      %v8720 = vsel %vm2607, %v8715, %v8719
      %v8722 = vshrl.u32 %v8507, 16
      %v8724 = vshll.u32 %v8507, 16
      %v8726 = vrot.slane %v8724, 1
      %v8727 = vor.u32 %v8722, %v8726
      %v8729 = vshll.u32 %v8508, 16
      %v8731 = vrot.slane %v8729, 1
      %v8732 = vsel %vm2607, %v8727, %v8731
      %v8733 = vshrl.u32 %v8508, 16
      %v8735 = vor.u32 %v8733, %v8731
      %v8737 = vshll.u32 %v8632, 16
      %v8739 = vrot.slane %v8737, 1
      %v8740 = vsel %vm2607, %v8735, %v8739
      %v8742 = vshrl.u32 %v8509, 16
      %v8744 = vshll.u32 %v8509, 16
      %v8746 = vrot.slane %v8744, 1
      %v8747 = vor.u32 %v8742, %v8746
      %v8749 = vshll.u32 %v8510, 16
      %v8751 = vrot.slane %v8749, 1
      %v8752 = vsel %vm2607, %v8747, %v8751
      %v8753 = vshrl.u32 %v8510, 16
      %v8755 = vor.u32 %v8753, %v8751
      %v8757 = vshll.u32 %v8633, 16
      %v8759 = vrot.slane %v8757, 1
      %v8760 = vsel %vm2607, %v8755, %v8759
      %v8762 = vshrl.u32 %v8511, 16
      %v8764 = vshll.u32 %v8511, 16
      %v8766 = vrot.slane %v8764, 1
      %v8767 = vor.u32 %v8762, %v8766
      %v8769 = vshll.u32 %v8512, 16
      %v8771 = vrot.slane %v8769, 1
      %v8772 = vsel %vm2607, %v8767, %v8771
      %v8773 = vshrl.u32 %v8512, 16
      %v8775 = vor.u32 %v8773, %v8771
      %v8777 = vshll.u32 %v8634, 16
      %v8779 = vrot.slane %v8777, 1
      %v8780 = vsel %vm2607, %v8775, %v8779
      %v8782 = vshrl.u32 %v8513, 16
      %v8784 = vshll.u32 %v8513, 16
      %v8786 = vrot.slane %v8784, 1
      %v8787 = vor.u32 %v8782, %v8786
      %v8789 = vshll.u32 %v8514, 16
      %v8791 = vrot.slane %v8789, 1
      %v8792 = vsel %vm2607, %v8787, %v8791
      %v8793 = vshrl.u32 %v8514, 16
      %v8795 = vor.u32 %v8793, %v8791
      %v8797 = vshll.u32 %v8635, 16
      %v8799 = vrot.slane %v8797, 1
      %v8800 = vsel %vm2607, %v8795, %v8799
      %v8802 = vshrl.u32 %v8515, 16
      %v8804 = vshll.u32 %v8515, 16
      %v8806 = vrot.slane %v8804, 1
      %v8807 = vor.u32 %v8802, %v8806
      %v8809 = vshll.u32 %v8516, 16
      %v8811 = vrot.slane %v8809, 1
      %v8812 = vsel %vm2607, %v8807, %v8811
      %v8813 = vshrl.u32 %v8516, 16
      %v8815 = vor.u32 %v8813, %v8811
      %v8817 = vshll.u32 %v8636, 16
      %v8819 = vrot.slane %v8817, 1
      %v8820 = vsel %vm2607, %v8815, %v8819
      %v8822 = vshrl.u32 %v8517, 16
      %v8824 = vshll.u32 %v8517, 16
      %v8826 = vrot.slane %v8824, 1
      %v8827 = vor.u32 %v8822, %v8826
      %v8829 = vshll.u32 %v8518, 16
      %v8831 = vrot.slane %v8829, 1
      %v8832 = vsel %vm2607, %v8827, %v8831
      %v8833 = vshrl.u32 %v8518, 16
      %v8835 = vor.u32 %v8833, %v8831
      %v8837 = vshll.u32 %v8637, 16
      %v8839 = vrot.slane %v8837, 1
      %v8840 = vsel %vm2607, %v8835, %v8839
      %v8842 = vshrl.u32 %v8519, 16
      %v8844 = vshll.u32 %v8519, 16
      %v8846 = vrot.slane %v8844, 1
      %v8847 = vor.u32 %v8842, %v8846
      %v8849 = vshll.u32 %v8520, 16
      %v8851 = vrot.slane %v8849, 1
      %v8852 = vsel %vm2607, %v8847, %v8851
      %v8853 = vshrl.u32 %v8520, 16
      %v8855 = vor.u32 %v8853, %v8851
      %v8857 = vshll.u32 %v8638, 16
      %v8859 = vrot.slane %v8857, 1
      %v8860 = vsel %vm2607, %v8855, %v8859
      %v8862 = vshrl.u32 %v8521, 16
      %v8864 = vshll.u32 %v8521, 16
      %v8866 = vrot.slane %v8864, 1
      %v8867 = vor.u32 %v8862, %v8866
      %v8869 = vshll.u32 %v8522, 16
      %v8871 = vrot.slane %v8869, 1
      %v8872 = vsel %vm2607, %v8867, %v8871
      %v8873 = vshrl.u32 %v8522, 16
      %v8875 = vor.u32 %v8873, %v8871
      %v8877 = vshll.u32 %v8639, 16
      %v8879 = vrot.slane %v8877, 1
      %v8880 = vsel %vm2607, %v8875, %v8879
      %v8882 = vshrl.u32 %v8523, 16
      %v8884 = vshll.u32 %v8523, 16
      %v8886 = vrot.slane %v8884, 1
      %v8887 = vor.u32 %v8882, %v8886
      %v8889 = vshll.u32 %v8524, 16
      %v8891 = vrot.slane %v8889, 1
      %v8892 = vsel %vm2607, %v8887, %v8891
      %v8893 = vshrl.u32 %v8524, 16
      %v8895 = vor.u32 %v8893, %v8891
      %v8897 = vshll.u32 %v8640, 16
      %v8899 = vrot.slane %v8897, 1
      %v8900 = vsel %vm2607, %v8895, %v8899
      %v8902 = vshrl.u32 %v8525, 16
      %v8904 = vshll.u32 %v8525, 16
      %v8906 = vrot.slane %v8904, 1
      %v8907 = vor.u32 %v8902, %v8906
      %v8909 = vshll.u32 %v8526, 16
      %v8911 = vrot.slane %v8909, 1
      %v8912 = vsel %vm2607, %v8907, %v8911
      %v8913 = vshrl.u32 %v8526, 16
      %v8915 = vor.u32 %v8913, %v8911
      %v8917 = vshll.u32 %v8641, 16
      %v8919 = vrot.slane %v8917, 1
      %v8920 = vsel %vm2607, %v8915, %v8919
      %v8922 = vshrl.u32 %v8527, 16
      %v8924 = vshll.u32 %v8527, 16
      %v8926 = vrot.slane %v8924, 1
      %v8927 = vor.u32 %v8922, %v8926
      %v8929 = vshll.u32 %v8528, 16
      %v8931 = vrot.slane %v8929, 1
      %v8932 = vsel %vm2607, %v8927, %v8931
      %v8933 = vshrl.u32 %v8528, 16
      %v8935 = vor.u32 %v8933, %v8931
      %v8937 = vshll.u32 %v8642, 16
      %v8939 = vrot.slane %v8937, 1
      %v8940 = vsel %vm2607, %v8935, %v8939
      %v8942 = vshrl.u32 %v8529, 16
      %v8944 = vshll.u32 %v8529, 16
      %v8946 = vrot.slane %v8944, 1
      %v8947 = vor.u32 %v8942, %v8946
      %v8949 = vshll.u32 %v8530, 16
      %v8951 = vrot.slane %v8949, 1
      %v8952 = vsel %vm2607, %v8947, %v8951
      %v8953 = vshrl.u32 %v8530, 16
      %v8955 = vor.u32 %v8953, %v8951
      %v8957 = vshll.u32 %v8643, 16
      %v8959 = vrot.slane %v8957, 1
      %v8960 = vsel %vm2607, %v8955, %v8959
      %v8962 = vshrl.u32 %v8531, 16
      %v8964 = vshll.u32 %v8531, 16
      %v8966 = vrot.slane %v8964, 1
      %v8967 = vor.u32 %v8962, %v8966
      %v8969 = vshll.u32 %v8532, 16
      %v8971 = vrot.slane %v8969, 1
      %v8972 = vsel %vm2607, %v8967, %v8971
      %v8973 = vshrl.u32 %v8532, 16
      %v8975 = vor.u32 %v8973, %v8971
      %v8977 = vshll.u32 %v8644, 16
      %v8979 = vrot.slane %v8977, 1
      %v8980 = vsel %vm2607, %v8975, %v8979
      %v8982 = vshrl.u32 %v8533, 16
      %v8984 = vshll.u32 %v8533, 16
      %v8986 = vrot.slane %v8984, 1
      %v8987 = vor.u32 %v8982, %v8986
      %v8989 = vshll.u32 %v8534, 16
      %v8991 = vrot.slane %v8989, 1
      %v8992 = vsel %vm2607, %v8987, %v8991
      %v8993 = vshrl.u32 %v8534, 16
      %v8995 = vor.u32 %v8993, %v8991
      %v8997 = vshll.u32 %v8645, 16
      %v8999 = vrot.slane %v8997, 1
      %v9000 = vsel %vm2607, %v8995, %v8999
      %v9002 = vshrl.u32 %v8535, 16
      %v9004 = vshll.u32 %v8535, 16
      %v9006 = vrot.slane %v9004, 1
      %v9007 = vor.u32 %v9002, %v9006
      %v9009 = vshll.u32 %v8536, 16
      %v9011 = vrot.slane %v9009, 1
      %v9012 = vsel %vm2607, %v9007, %v9011
      %v9013 = vshrl.u32 %v8536, 16
      %v9015 = vor.u32 %v9013, %v9011
      %v9017 = vshll.u32 %v8646, 16
      %v9019 = vrot.slane %v9017, 1
      %v9020 = vsel %vm2607, %v9015, %v9019
      %v9022 = vshrl.u32 %v8537, 16
      %v9024 = vshll.u32 %v8537, 16
      %v9026 = vrot.slane %v9024, 1
      %v9027 = vor.u32 %v9022, %v9026
      %v9029 = vshll.u32 %v8538, 16
      %v9031 = vrot.slane %v9029, 1
      %v9032 = vsel %vm2607, %v9027, %v9031
      %v9033 = vshrl.u32 %v8538, 16
      %v9035 = vor.u32 %v9033, %v9031
      %v9037 = vshll.u32 %v8647, 16
      %v9039 = vrot.slane %v9037, 1
      %v9040 = vsel %vm2607, %v9035, %v9039
      %v9042 = vshrl.u32 %v8539, 16
      %v9044 = vshll.u32 %v8539, 16
      %v9046 = vrot.slane %v9044, 1
      %v9047 = vor.u32 %v9042, %v9046
      %v9049 = vshll.u32 %v8540, 16
      %v9051 = vrot.slane %v9049, 1
      %v9052 = vsel %vm2607, %v9047, %v9051
      %v9053 = vshrl.u32 %v8540, 16
      %v9055 = vor.u32 %v9053, %v9051
      %v9057 = vshll.u32 %v8648, 16
      %v9059 = vrot.slane %v9057, 1
      %v9060 = vsel %vm2607, %v9055, %v9059
      %v9062 = vshrl.u32 %v8541, 16
      %v9064 = vshll.u32 %v8541, 16
      %v9066 = vrot.slane %v9064, 1
      %v9067 = vor.u32 %v9062, %v9066
      %v9069 = vshll.u32 %v8542, 16
      %v9071 = vrot.slane %v9069, 1
      %v9072 = vsel %vm2607, %v9067, %v9071
      %v9073 = vshrl.u32 %v8542, 16
      %v9075 = vor.u32 %v9073, %v9071
      %v9077 = vshll.u32 %v8649, 16
      %v9079 = vrot.slane %v9077, 1
      %v9080 = vsel %vm2607, %v9075, %v9079
      %v9082 = vshrl.u32 %v8543, 16
      %v9084 = vshll.u32 %v8543, 16
      %v9086 = vrot.slane %v9084, 1
      %v9087 = vor.u32 %v9082, %v9086
      %v9089 = vshll.u32 %v8544, 16
      %v9091 = vrot.slane %v9089, 1
      %v9092 = vsel %vm2607, %v9087, %v9091
      %v9093 = vshrl.u32 %v8544, 16
      %v9095 = vor.u32 %v9093, %v9091
      %v9097 = vshll.u32 %v8650, 16
      %v9099 = vrot.slane %v9097, 1
      %v9100 = vsel %vm2607, %v9095, %v9099
      %v9102 = vshrl.u32 %v8545, 16
      %v9104 = vshll.u32 %v8545, 16
      %v9106 = vrot.slane %v9104, 1
      %v9107 = vor.u32 %v9102, %v9106
      %v9109 = vshll.u32 %v8546, 16
      %v9111 = vrot.slane %v9109, 1
      %v9112 = vsel %vm2607, %v9107, %v9111
      %v9113 = vshrl.u32 %v8546, 16
      %v9115 = vor.u32 %v9113, %v9111
      %v9117 = vshll.u32 %v8651, 16
      %v9119 = vrot.slane %v9117, 1
      %v9120 = vsel %vm2607, %v9115, %v9119
      %v9122 = vshrl.u32 %v8547, 16
      %v9124 = vshll.u32 %v8547, 16
      %v9126 = vrot.slane %v9124, 1
      %v9127 = vor.u32 %v9122, %v9126
      %v9129 = vshll.u32 %v8548, 16
      %v9131 = vrot.slane %v9129, 1
      %v9132 = vsel %vm2607, %v9127, %v9131
      %v9133 = vshrl.u32 %v8548, 16
      %v9135 = vor.u32 %v9133, %v9131
      %v9137 = vshll.u32 %v8652, 16
      %v9139 = vrot.slane %v9137, 1
      %v9140 = vsel %vm2607, %v9135, %v9139
      %v9142 = vshrl.u32 %v8549, 16
      %v9144 = vshll.u32 %v8549, 16
      %v9146 = vrot.slane %v9144, 1
      %v9147 = vor.u32 %v9142, %v9146
      %v9149 = vshll.u32 %v8550, 16
      %v9151 = vrot.slane %v9149, 1
      %v9152 = vsel %vm2607, %v9147, %v9151
      %v9153 = vshrl.u32 %v8550, 16
      %v9155 = vor.u32 %v9153, %v9151
      %v9157 = vshll.u32 %v8653, 16
      %v9159 = vrot.slane %v9157, 1
      %v9160 = vsel %vm2607, %v9155, %v9159
      %v9162 = vshrl.u32 %v8551, 16
      %v9164 = vshll.u32 %v8551, 16
      %v9166 = vrot.slane %v9164, 1
      %v9167 = vor.u32 %v9162, %v9166
      %v9169 = vshll.u32 %v8552, 16
      %v9171 = vrot.slane %v9169, 1
      %v9172 = vsel %vm2607, %v9167, %v9171
      %v9173 = vshrl.u32 %v8552, 16
      %v9175 = vor.u32 %v9173, %v9171
      %v9177 = vshll.u32 %v8654, 16
      %v9179 = vrot.slane %v9177, 1
      %v9180 = vsel %vm2607, %v9175, %v9179
      %v9182 = vshrl.u32 %v8553, 16
      %v9184 = vshll.u32 %v8553, 16
      %v9186 = vrot.slane %v9184, 1
      %v9187 = vor.u32 %v9182, %v9186
      %v9189 = vshll.u32 %v8554, 16
      %v9191 = vrot.slane %v9189, 1
      %v9192 = vsel %vm2607, %v9187, %v9191
      %v9193 = vshrl.u32 %v8554, 16
      %v9195 = vor.u32 %v9193, %v9191
      %v9197 = vshll.u32 %v8655, 16
      %v9199 = vrot.slane %v9197, 1
      %v9200 = vsel %vm2607, %v9195, %v9199
      %v9202 = vshrl.u32 %v8555, 16
      %v9204 = vshll.u32 %v8555, 16
      %v9206 = vrot.slane %v9204, 1
      %v9207 = vor.u32 %v9202, %v9206
      %v9209 = vshll.u32 %v8556, 16
      %v9211 = vrot.slane %v9209, 1
      %v9212 = vsel %vm2607, %v9207, %v9211
      %v9213 = vshrl.u32 %v8556, 16
      %v9215 = vor.u32 %v9213, %v9211
      %v9217 = vshll.u32 %v8656, 16
      %v9219 = vrot.slane %v9217, 1
      %v9220 = vsel %vm2607, %v9215, %v9219
      %v9222 = vshrl.u32 %v8557, 16
      %v9224 = vshll.u32 %v8557, 16
      %v9226 = vrot.slane %v9224, 1
      %v9227 = vor.u32 %v9222, %v9226
      %v9229 = vshll.u32 %v8558, 16
      %v9231 = vrot.slane %v9229, 1
      %v9232 = vsel %vm2607, %v9227, %v9231
      %v9233 = vshrl.u32 %v8558, 16
      %v9235 = vor.u32 %v9233, %v9231
      %v9237 = vshll.u32 %v8657, 16
      %v9239 = vrot.slane %v9237, 1
      %v9240 = vsel %vm2607, %v9235, %v9239
      %v9242 = vshrl.u32 %v8559, 16
      %v9244 = vshll.u32 %v8559, 16
      %v9246 = vrot.slane %v9244, 1
      %v9247 = vor.u32 %v9242, %v9246
      %v9249 = vshll.u32 %v8560, 16
      %v9251 = vrot.slane %v9249, 1
      %v9252 = vsel %vm2607, %v9247, %v9251
      %v9253 = vshrl.u32 %v8560, 16
      %v9255 = vor.u32 %v9253, %v9251
      %v9257 = vshll.u32 %v8658, 16
      %v9259 = vrot.slane %v9257, 1
      %v9260 = vsel %vm2607, %v9255, %v9259
      %v9262 = vshrl.u32 %v8561, 16
      %v9264 = vshll.u32 %v8561, 16
      %v9266 = vrot.slane %v9264, 1
      %v9267 = vor.u32 %v9262, %v9266
      %v9269 = vshll.u32 %v8562, 16
      %v9271 = vrot.slane %v9269, 1
      %v9272 = vsel %vm2607, %v9267, %v9271
      %v9273 = vshrl.u32 %v8562, 16
      %v9275 = vor.u32 %v9273, %v9271
      %v9277 = vshll.u32 %v8659, 16
      %v9279 = vrot.slane %v9277, 1
      %v9280 = vsel %vm2607, %v9275, %v9279
      %v9282 = vshrl.u32 %v8563, 16
      %v9284 = vshll.u32 %v8563, 16
      %v9286 = vrot.slane %v9284, 1
      %v9287 = vor.u32 %v9282, %v9286
      %v9289 = vshll.u32 %v8564, 16
      %v9291 = vrot.slane %v9289, 1
      %v9292 = vsel %vm2607, %v9287, %v9291
      %v9293 = vshrl.u32 %v8564, 16
      %v9295 = vor.u32 %v9293, %v9291
      %v9297 = vshll.u32 %v8660, 16
      %v9299 = vrot.slane %v9297, 1
      %v9300 = vsel %vm2607, %v9295, %v9299
      %9301 = vrot.lane.b32.xlu0 %v8672, 32
      %v9302 = vpop.permute.xlu0 %9301
      %9303 = vrot.lane.b32.xlu0 %v8680, 32
      %v9304 = vpop.permute.xlu0 %9303
      %9305 = vrot.lane.b32.xlu0 %v8692, 32
      %v9306 = vpop.permute.xlu0 %9305
      %9307 = vrot.lane.b32.xlu0 %v8700, 32
      %v9308 = vpop.permute.xlu0 %9307
      %9309 = vrot.lane.b32.xlu0 %v8712, 32
      %v9310 = vpop.permute.xlu0 %9309
      %9311 = vrot.lane.b32.xlu0 %v8720, 32
      %v9312 = vpop.permute.xlu0 %9311
      %9313 = vrot.lane.b32.xlu0 %v8732, 32
      %v9314 = vpop.permute.xlu0 %9313
      %9315 = vrot.lane.b32.xlu0 %v8740, 32
      %v9316 = vpop.permute.xlu0 %9315
      %9317 = vrot.lane.b32.xlu0 %v8752, 32
      %v9318 = vpop.permute.xlu0 %9317
      %9319 = vrot.lane.b32.xlu0 %v8760, 32
      %v9320 = vpop.permute.xlu0 %9319
      %9321 = vrot.lane.b32.xlu0 %v8772, 32
      %v9322 = vpop.permute.xlu0 %9321
      %9323 = vrot.lane.b32.xlu0 %v8780, 32
      %v9324 = vpop.permute.xlu0 %9323
      %9325 = vrot.lane.b32.xlu0 %v8792, 32
      %v9326 = vpop.permute.xlu0 %9325
      %9327 = vrot.lane.b32.xlu0 %v8800, 32
      %v9328 = vpop.permute.xlu0 %9327
      %9329 = vrot.lane.b32.xlu0 %v8812, 32
      %v9330 = vpop.permute.xlu0 %9329
      %9331 = vrot.lane.b32.xlu0 %v8820, 32
      %v9332 = vpop.permute.xlu0 %9331
      %9333 = vrot.lane.b32.xlu0 %v8832, 32
      %v9334 = vpop.permute.xlu0 %9333
      %9335 = vrot.lane.b32.xlu0 %v8840, 32
      %v9336 = vpop.permute.xlu0 %9335
      %9337 = vrot.lane.b32.xlu0 %v8852, 32
      %v9338 = vpop.permute.xlu0 %9337
      %9339 = vrot.lane.b32.xlu0 %v8860, 32
      %v9340 = vpop.permute.xlu0 %9339
      %9341 = vrot.lane.b32.xlu0 %v8872, 32
      %v9342 = vpop.permute.xlu0 %9341
      %9343 = vrot.lane.b32.xlu0 %v8880, 32
      %v9344 = vpop.permute.xlu0 %9343
      %9345 = vrot.lane.b32.xlu0 %v8892, 32
      %v9346 = vpop.permute.xlu0 %9345
      %9347 = vrot.lane.b32.xlu0 %v8900, 32
      %v9348 = vpop.permute.xlu0 %9347
      %9349 = vrot.lane.b32.xlu0 %v8912, 32
      %v9350 = vpop.permute.xlu0 %9349
      %9351 = vrot.lane.b32.xlu0 %v8920, 32
      %v9352 = vpop.permute.xlu0 %9351
      %9353 = vrot.lane.b32.xlu0 %v8932, 32
      %v9354 = vpop.permute.xlu0 %9353
      %9355 = vrot.lane.b32.xlu0 %v8940, 32
      %v9356 = vpop.permute.xlu0 %9355
      %9357 = vrot.lane.b32.xlu0 %v8952, 32
      %v9358 = vpop.permute.xlu0 %9357
      %9359 = vrot.lane.b32.xlu0 %v8960, 32
      %v9360 = vpop.permute.xlu0 %9359
      %9361 = vrot.lane.b32.xlu0 %v8972, 32
      %v9362 = vpop.permute.xlu0 %9361
      %9363 = vrot.lane.b32.xlu0 %v8980, 32
      %v9364 = vpop.permute.xlu0 %9363
      %9365 = vrot.lane.b32.xlu0 %v8992, 32
      %v9366 = vpop.permute.xlu0 %9365
      %9367 = vrot.lane.b32.xlu0 %v9000, 32
      %v9368 = vpop.permute.xlu0 %9367
      %9369 = vrot.lane.b32.xlu0 %v9012, 32
      %v9370 = vpop.permute.xlu0 %9369
      %9371 = vrot.lane.b32.xlu0 %v9020, 32
      %v9372 = vpop.permute.xlu0 %9371
      %9373 = vrot.lane.b32.xlu0 %v9032, 32
      %v9374 = vpop.permute.xlu0 %9373
      %9375 = vrot.lane.b32.xlu0 %v9040, 32
      %v9376 = vpop.permute.xlu0 %9375
      %9377 = vrot.lane.b32.xlu0 %v9052, 32
      %v9378 = vpop.permute.xlu0 %9377
      %9379 = vrot.lane.b32.xlu0 %v9060, 32
      %v9380 = vpop.permute.xlu0 %9379
      %9381 = vrot.lane.b32.xlu0 %v9072, 32
      %v9382 = vpop.permute.xlu0 %9381
      %9383 = vrot.lane.b32.xlu0 %v9080, 32
      %v9384 = vpop.permute.xlu0 %9383
      %9385 = vrot.lane.b32.xlu0 %v9092, 32
      %v9386 = vpop.permute.xlu0 %9385
      %9387 = vrot.lane.b32.xlu0 %v9100, 32
      %v9388 = vpop.permute.xlu0 %9387
      %9389 = vrot.lane.b32.xlu0 %v9112, 32
      %v9390 = vpop.permute.xlu0 %9389
      %9391 = vrot.lane.b32.xlu0 %v9120, 32
      %v9392 = vpop.permute.xlu0 %9391
      %9393 = vrot.lane.b32.xlu0 %v9132, 32
      %v9394 = vpop.permute.xlu0 %9393
      %9395 = vrot.lane.b32.xlu0 %v9140, 32
      %v9396 = vpop.permute.xlu0 %9395
      %9397 = vrot.lane.b32.xlu0 %v9152, 32
      %v9398 = vpop.permute.xlu0 %9397
      %9399 = vrot.lane.b32.xlu0 %v9160, 32
      %v9400 = vpop.permute.xlu0 %9399
      %9401 = vrot.lane.b32.xlu0 %v9172, 32
      %v9402 = vpop.permute.xlu0 %9401
      %9403 = vrot.lane.b32.xlu0 %v9180, 32
      %v9404 = vpop.permute.xlu0 %9403
      %9405 = vrot.lane.b32.xlu0 %v9192, 32
      %v9406 = vpop.permute.xlu0 %9405
      %9407 = vrot.lane.b32.xlu0 %v9200, 32
      %v9408 = vpop.permute.xlu0 %9407
      %9409 = vrot.lane.b32.xlu0 %v9212, 32
      %v9410 = vpop.permute.xlu0 %9409
      %9411 = vrot.lane.b32.xlu0 %v9220, 32
      %v9412 = vpop.permute.xlu0 %9411
      %9413 = vrot.lane.b32.xlu0 %v9232, 32
      %v9414 = vpop.permute.xlu0 %9413
      %9415 = vrot.lane.b32.xlu0 %v9240, 32
      %v9416 = vpop.permute.xlu0 %9415
      %9417 = vrot.lane.b32.xlu0 %v9252, 32
      %v9418 = vpop.permute.xlu0 %9417
      %9419 = vrot.lane.b32.xlu0 %v9260, 32
      %v9420 = vpop.permute.xlu0 %9419
      %9421 = vrot.lane.b32.xlu0 %v9272, 32
      %v9422 = vpop.permute.xlu0 %9421
      %9423 = vrot.lane.b32.xlu0 %v9280, 32
      %v9424 = vpop.permute.xlu0 %9423
      %9425 = vrot.lane.b32.xlu0 %v9292, 32
      %v9426 = vpop.permute.xlu0 %9425
      %9427 = vrot.lane.b32.xlu0 %v9300, 32
      %v9428 = vpop.permute.xlu0 %9427
      %v9461 = vunpack.c.l.b16 %v7827
      %v9462 = vunpack.c.l.b16 %v7828
      %v9463 = vunpack.c.l.b16 %v7829
      %v9464 = vunpack.c.l.b16 %v7830
      %v9465 = vunpack.c.l.b16 %v7831
      %v9466 = vunpack.c.l.b16 %v7832
      %v9467 = vunpack.c.l.b16 %v7833
      %v9468 = vunpack.c.l.b16 %v7834
      %v9469 = vunpack.c.l.b16 %v7835
      %v9470 = vunpack.c.l.b16 %v7836
      %v9471 = vunpack.c.l.b16 %v7837
      %v9472 = vunpack.c.l.b16 %v7838
      %v9473 = vunpack.c.l.b16 %v7839
      %v9474 = vunpack.c.l.b16 %v7840
      %v9475 = vunpack.c.l.b16 %v7841
      %v9476 = vunpack.c.l.b16 %v7842
      %v9477 = vunpack.c.l.b16 %v7843
      %v9478 = vunpack.c.l.b16 %v7844
      %v9479 = vunpack.c.l.b16 %v7845
      %v9480 = vunpack.c.l.b16 %v7846
      %v9481 = vunpack.c.l.b16 %v7847
      %v9482 = vunpack.c.l.b16 %v7848
      %v9483 = vunpack.c.l.b16 %v7849
      %v9484 = vunpack.c.l.b16 %v7850
      %v9485 = vunpack.c.l.b16 %v7851
      %v9486 = vunpack.c.l.b16 %v7852
      %v9487 = vunpack.c.l.b16 %v7853
      %v9488 = vunpack.c.l.b16 %v7854
      %v9489 = vunpack.c.l.b16 %v7855
      %v9490 = vunpack.c.l.b16 %v7856
      %v9491 = vunpack.c.l.b16 %v7857
      %v9492 = vunpack.c.l.b16 %v7858
      %v9493 = vpack.c.b16 %v8374, %v9461
      %v9494 = vpack.c.b16 %v8378, %v9462
      %v9495 = vpack.c.b16 %v8382, %v9463
      %v9496 = vpack.c.b16 %v8386, %v9464
      %v9497 = vpack.c.b16 %v8390, %v9465
      %v9498 = vpack.c.b16 %v8394, %v9466
      %v9499 = vpack.c.b16 %v8398, %v9467
      %v9500 = vpack.c.b16 %v8402, %v9468
      %v9501 = vpack.c.b16 %v8406, %v9469
      %v9502 = vpack.c.b16 %v8410, %v9470
      %v9503 = vpack.c.b16 %v8414, %v9471
      %v9504 = vpack.c.b16 %v8418, %v9472
      %v9505 = vpack.c.b16 %v8422, %v9473
      %v9506 = vpack.c.b16 %v8426, %v9474
      %v9507 = vpack.c.b16 %v8430, %v9475
      %v9508 = vpack.c.b16 %v8434, %v9476
      %v9509 = vpack.c.b16 %v8438, %v9477
      %v9510 = vpack.c.b16 %v8442, %v9478
      %v9511 = vpack.c.b16 %v8446, %v9479
      %v9512 = vpack.c.b16 %v8450, %v9480
      %v9513 = vpack.c.b16 %v8454, %v9481
      %v9514 = vpack.c.b16 %v8458, %v9482
      %v9515 = vpack.c.b16 %v8462, %v9483
      %v9516 = vpack.c.b16 %v8466, %v9484
      %v9517 = vpack.c.b16 %v8470, %v9485
      %v9518 = vpack.c.b16 %v8474, %v9486
      %v9519 = vpack.c.b16 %v8478, %v9487
      %v9520 = vpack.c.b16 %v8482, %v9488
      %v9521 = vpack.c.b16 %v8486, %v9489
      %v9522 = vpack.c.b16 %v8490, %v9490
      %v9523 = vpack.c.b16 %v8494, %v9491
      %v9524 = vpack.c.b16 %v8498, %v9492
      %v9525 = vrot.slane %v9493, 1
      %v9526 = vrot.slane %v8502, 1
      %v9527 = vsel %vm2562, %v9525, %v9526
      %v9528 = vrot.slane %v8629, 1
      %v9529 = vsel %vm2562, %v9526, %v9528
      %v9530 = vrot.slane %v9494, 1
      %v9531 = vrot.slane %v8504, 1
      %v9532 = vsel %vm2562, %v9530, %v9531
      %v9533 = vrot.slane %v8630, 1
      %v9534 = vsel %vm2562, %v9531, %v9533
      %v9535 = vrot.slane %v9495, 1
      %v9536 = vrot.slane %v8506, 1
      %v9537 = vsel %vm2562, %v9535, %v9536
      %v9538 = vrot.slane %v8631, 1
      %v9539 = vsel %vm2562, %v9536, %v9538
      %v9540 = vrot.slane %v9496, 1
      %v9541 = vrot.slane %v8508, 1
      %v9542 = vsel %vm2562, %v9540, %v9541
      %v9543 = vrot.slane %v8632, 1
      %v9544 = vsel %vm2562, %v9541, %v9543
      %v9545 = vrot.slane %v9497, 1
      %v9546 = vrot.slane %v8510, 1
      %v9547 = vsel %vm2562, %v9545, %v9546
      %v9548 = vrot.slane %v8633, 1
      %v9549 = vsel %vm2562, %v9546, %v9548
      %v9550 = vrot.slane %v9498, 1
      %v9551 = vrot.slane %v8512, 1
      %v9552 = vsel %vm2562, %v9550, %v9551
      %v9553 = vrot.slane %v8634, 1
      %v9554 = vsel %vm2562, %v9551, %v9553
      %v9555 = vrot.slane %v9499, 1
      %v9556 = vrot.slane %v8514, 1
      %v9557 = vsel %vm2562, %v9555, %v9556
      %v9558 = vrot.slane %v8635, 1
      %v9559 = vsel %vm2562, %v9556, %v9558
      %v9560 = vrot.slane %v9500, 1
      %v9561 = vrot.slane %v8516, 1
      %v9562 = vsel %vm2562, %v9560, %v9561
      %v9563 = vrot.slane %v8636, 1
      %v9564 = vsel %vm2562, %v9561, %v9563
      %v9565 = vrot.slane %v9501, 1
      %v9566 = vrot.slane %v8518, 1
      %v9567 = vsel %vm2562, %v9565, %v9566
      %v9568 = vrot.slane %v8637, 1
      %v9569 = vsel %vm2562, %v9566, %v9568
      %v9570 = vrot.slane %v9502, 1
      %v9571 = vrot.slane %v8520, 1
      %v9572 = vsel %vm2562, %v9570, %v9571
      %v9573 = vrot.slane %v8638, 1
      %v9574 = vsel %vm2562, %v9571, %v9573
      %v9575 = vrot.slane %v9503, 1
      %v9576 = vrot.slane %v8522, 1
      %v9577 = vsel %vm2562, %v9575, %v9576
      %v9578 = vrot.slane %v8639, 1
      %v9579 = vsel %vm2562, %v9576, %v9578
      %v9580 = vrot.slane %v9504, 1
      %v9581 = vrot.slane %v8524, 1
      %v9582 = vsel %vm2562, %v9580, %v9581
      %v9583 = vrot.slane %v8640, 1
      %v9584 = vsel %vm2562, %v9581, %v9583
      %v9585 = vrot.slane %v9505, 1
      %v9586 = vrot.slane %v8526, 1
      %v9587 = vsel %vm2562, %v9585, %v9586
      %v9588 = vrot.slane %v8641, 1
      %v9589 = vsel %vm2562, %v9586, %v9588
      %v9590 = vrot.slane %v9506, 1
      %v9591 = vrot.slane %v8528, 1
      %v9592 = vsel %vm2562, %v9590, %v9591
      %v9593 = vrot.slane %v8642, 1
      %v9594 = vsel %vm2562, %v9591, %v9593
      %v9595 = vrot.slane %v9507, 1
      %v9596 = vrot.slane %v8530, 1
      %v9597 = vsel %vm2562, %v9595, %v9596
      %v9598 = vrot.slane %v8643, 1
      %v9599 = vsel %vm2562, %v9596, %v9598
      %v9600 = vrot.slane %v9508, 1
      %v9601 = vrot.slane %v8532, 1
      %v9602 = vsel %vm2562, %v9600, %v9601
      %v9603 = vrot.slane %v8644, 1
      %v9604 = vsel %vm2562, %v9601, %v9603
      %v9605 = vrot.slane %v9509, 1
      %v9606 = vrot.slane %v8534, 1
      %v9607 = vsel %vm2562, %v9605, %v9606
      %v9608 = vrot.slane %v8645, 1
      %v9609 = vsel %vm2562, %v9606, %v9608
      %v9610 = vrot.slane %v9510, 1
      %v9611 = vrot.slane %v8536, 1
      %v9612 = vsel %vm2562, %v9610, %v9611
      %v9613 = vrot.slane %v8646, 1
      %v9614 = vsel %vm2562, %v9611, %v9613
      %v9615 = vrot.slane %v9511, 1
      %v9616 = vrot.slane %v8538, 1
      %v9617 = vsel %vm2562, %v9615, %v9616
      %v9618 = vrot.slane %v8647, 1
      %v9619 = vsel %vm2562, %v9616, %v9618
      %v9620 = vrot.slane %v9512, 1
      %v9621 = vrot.slane %v8540, 1
      %v9622 = vsel %vm2562, %v9620, %v9621
      %v9623 = vrot.slane %v8648, 1
      %v9624 = vsel %vm2562, %v9621, %v9623
      %v9625 = vrot.slane %v9513, 1
      %v9626 = vrot.slane %v8542, 1
      %v9627 = vsel %vm2562, %v9625, %v9626
      %v9628 = vrot.slane %v8649, 1
      %v9629 = vsel %vm2562, %v9626, %v9628
      %v9630 = vrot.slane %v9514, 1
      %v9631 = vrot.slane %v8544, 1
      %v9632 = vsel %vm2562, %v9630, %v9631
      %v9633 = vrot.slane %v8650, 1
      %v9634 = vsel %vm2562, %v9631, %v9633
      %v9635 = vrot.slane %v9515, 1
      %v9636 = vrot.slane %v8546, 1
      %v9637 = vsel %vm2562, %v9635, %v9636
      %v9638 = vrot.slane %v8651, 1
      %v9639 = vsel %vm2562, %v9636, %v9638
      %v9640 = vrot.slane %v9516, 1
      %v9641 = vrot.slane %v8548, 1
      %v9642 = vsel %vm2562, %v9640, %v9641
      %v9643 = vrot.slane %v8652, 1
      %v9644 = vsel %vm2562, %v9641, %v9643
      %v9645 = vrot.slane %v9517, 1
      %v9646 = vrot.slane %v8550, 1
      %v9647 = vsel %vm2562, %v9645, %v9646
      %v9648 = vrot.slane %v8653, 1
      %v9649 = vsel %vm2562, %v9646, %v9648
      %v9650 = vrot.slane %v9518, 1
      %v9651 = vrot.slane %v8552, 1
      %v9652 = vsel %vm2562, %v9650, %v9651
      %v9653 = vrot.slane %v8654, 1
      %v9654 = vsel %vm2562, %v9651, %v9653
      %v9655 = vrot.slane %v9519, 1
      %v9656 = vrot.slane %v8554, 1
      %v9657 = vsel %vm2562, %v9655, %v9656
      %v9658 = vrot.slane %v8655, 1
      %v9659 = vsel %vm2562, %v9656, %v9658
      %v9660 = vrot.slane %v9520, 1
      %v9661 = vrot.slane %v8556, 1
      %v9662 = vsel %vm2562, %v9660, %v9661
      %v9663 = vrot.slane %v8656, 1
      %v9664 = vsel %vm2562, %v9661, %v9663
      %v9665 = vrot.slane %v9521, 1
      %v9666 = vrot.slane %v8558, 1
      %v9667 = vsel %vm2562, %v9665, %v9666
      %v9668 = vrot.slane %v8657, 1
      %v9669 = vsel %vm2562, %v9666, %v9668
      %v9670 = vrot.slane %v9522, 1
      %v9671 = vrot.slane %v8560, 1
      %v9672 = vsel %vm2562, %v9670, %v9671
      %v9673 = vrot.slane %v8658, 1
      %v9674 = vsel %vm2562, %v9671, %v9673
      %v9675 = vrot.slane %v9523, 1
      %v9676 = vrot.slane %v8562, 1
      %v9677 = vsel %vm2562, %v9675, %v9676
      %v9678 = vrot.slane %v8659, 1
      %v9679 = vsel %vm2562, %v9676, %v9678
      %v9680 = vrot.slane %v9524, 1
      %v9681 = vrot.slane %v8564, 1
      %v9682 = vsel %vm2562, %v9680, %v9681
      %v9683 = vrot.slane %v8660, 1
      %v9684 = vsel %vm2562, %v9681, %v9683
      %9685 = vrot.lane.b32.xlu0 %v9527, 64
      %v9686 = vpop.permute.xlu0 %9685
      %9687 = vrot.lane.b32.xlu0 %v9529, 64
      %v9688 = vpop.permute.xlu0 %9687
      %9689 = vrot.lane.b32.xlu0 %v9532, 64
      %v9690 = vpop.permute.xlu0 %9689
      %9691 = vrot.lane.b32.xlu0 %v9534, 64
      %v9692 = vpop.permute.xlu0 %9691
      %9693 = vrot.lane.b32.xlu0 %v9537, 64
      %v9694 = vpop.permute.xlu0 %9693
      %9695 = vrot.lane.b32.xlu0 %v9539, 64
      %v9696 = vpop.permute.xlu0 %9695
      %9697 = vrot.lane.b32.xlu0 %v9542, 64
      %v9698 = vpop.permute.xlu0 %9697
      %9699 = vrot.lane.b32.xlu0 %v9544, 64
      %v9700 = vpop.permute.xlu0 %9699
      %9701 = vrot.lane.b32.xlu0 %v9547, 64
      %v9702 = vpop.permute.xlu0 %9701
      %9703 = vrot.lane.b32.xlu0 %v9549, 64
      %v9704 = vpop.permute.xlu0 %9703
      %9705 = vrot.lane.b32.xlu0 %v9552, 64
      %v9706 = vpop.permute.xlu0 %9705
      %9707 = vrot.lane.b32.xlu0 %v9554, 64
      %v9708 = vpop.permute.xlu0 %9707
      %9709 = vrot.lane.b32.xlu0 %v9557, 64
      %v9710 = vpop.permute.xlu0 %9709
      %9711 = vrot.lane.b32.xlu0 %v9559, 64
      %v9712 = vpop.permute.xlu0 %9711
      %9713 = vrot.lane.b32.xlu0 %v9562, 64
      %v9714 = vpop.permute.xlu0 %9713
      %9715 = vrot.lane.b32.xlu0 %v9564, 64
      %v9716 = vpop.permute.xlu0 %9715
      %9717 = vrot.lane.b32.xlu0 %v9567, 64
      %v9718 = vpop.permute.xlu0 %9717
      %9719 = vrot.lane.b32.xlu0 %v9569, 64
      %v9720 = vpop.permute.xlu0 %9719
      %9721 = vrot.lane.b32.xlu0 %v9572, 64
      %v9722 = vpop.permute.xlu0 %9721
      %9723 = vrot.lane.b32.xlu0 %v9574, 64
      %v9724 = vpop.permute.xlu0 %9723
      %9725 = vrot.lane.b32.xlu0 %v9577, 64
      %v9726 = vpop.permute.xlu0 %9725
      %9727 = vrot.lane.b32.xlu0 %v9579, 64
      %v9728 = vpop.permute.xlu0 %9727
      %9729 = vrot.lane.b32.xlu0 %v9582, 64
      %v9730 = vpop.permute.xlu0 %9729
      %9731 = vrot.lane.b32.xlu0 %v9584, 64
      %v9732 = vpop.permute.xlu0 %9731
      %9733 = vrot.lane.b32.xlu0 %v9587, 64
      %v9734 = vpop.permute.xlu0 %9733
      %9735 = vrot.lane.b32.xlu0 %v9589, 64
      %v9736 = vpop.permute.xlu0 %9735
      %9737 = vrot.lane.b32.xlu0 %v9592, 64
      %v9738 = vpop.permute.xlu0 %9737
      %9739 = vrot.lane.b32.xlu0 %v9594, 64
      %v9740 = vpop.permute.xlu0 %9739
      %9741 = vrot.lane.b32.xlu0 %v9597, 64
      %v9742 = vpop.permute.xlu0 %9741
      %9743 = vrot.lane.b32.xlu0 %v9599, 64
      %v9744 = vpop.permute.xlu0 %9743
      %9745 = vrot.lane.b32.xlu0 %v9602, 64
      %v9746 = vpop.permute.xlu0 %9745
      %9747 = vrot.lane.b32.xlu0 %v9604, 64
      %v9748 = vpop.permute.xlu0 %9747
      %9749 = vrot.lane.b32.xlu0 %v9607, 64
      %v9750 = vpop.permute.xlu0 %9749
      %9751 = vrot.lane.b32.xlu0 %v9609, 64
      %v9752 = vpop.permute.xlu0 %9751
      %9753 = vrot.lane.b32.xlu0 %v9612, 64
      %v9754 = vpop.permute.xlu0 %9753
      %9755 = vrot.lane.b32.xlu0 %v9614, 64
      %v9756 = vpop.permute.xlu0 %9755
      %9757 = vrot.lane.b32.xlu0 %v9617, 64
      %v9758 = vpop.permute.xlu0 %9757
      %9759 = vrot.lane.b32.xlu0 %v9619, 64
      %v9760 = vpop.permute.xlu0 %9759
      %9761 = vrot.lane.b32.xlu0 %v9622, 64
      %v9762 = vpop.permute.xlu0 %9761
      %9763 = vrot.lane.b32.xlu0 %v9624, 64
      %v9764 = vpop.permute.xlu0 %9763
      %9765 = vrot.lane.b32.xlu0 %v9627, 64
      %v9766 = vpop.permute.xlu0 %9765
      %9767 = vrot.lane.b32.xlu0 %v9629, 64
      %v9768 = vpop.permute.xlu0 %9767
      %9769 = vrot.lane.b32.xlu0 %v9632, 64
      %v9770 = vpop.permute.xlu0 %9769
      %9771 = vrot.lane.b32.xlu0 %v9634, 64
      %v9772 = vpop.permute.xlu0 %9771
      %9773 = vrot.lane.b32.xlu0 %v9637, 64
      %v9774 = vpop.permute.xlu0 %9773
      %9775 = vrot.lane.b32.xlu0 %v9639, 64
      %v9776 = vpop.permute.xlu0 %9775
      %9777 = vrot.lane.b32.xlu0 %v9642, 64
      %v9778 = vpop.permute.xlu0 %9777
      %9779 = vrot.lane.b32.xlu0 %v9644, 64
      %v9780 = vpop.permute.xlu0 %9779
      %9781 = vrot.lane.b32.xlu0 %v9647, 64
      %v9782 = vpop.permute.xlu0 %9781
      %9783 = vrot.lane.b32.xlu0 %v9649, 64
      %v9784 = vpop.permute.xlu0 %9783
      %9785 = vrot.lane.b32.xlu0 %v9652, 64
      %v9786 = vpop.permute.xlu0 %9785
      %9787 = vrot.lane.b32.xlu0 %v9654, 64
      %v9788 = vpop.permute.xlu0 %9787
      %9789 = vrot.lane.b32.xlu0 %v9657, 64
      %v9790 = vpop.permute.xlu0 %9789
      %9791 = vrot.lane.b32.xlu0 %v9659, 64
      %v9792 = vpop.permute.xlu0 %9791
      %9793 = vrot.lane.b32.xlu0 %v9662, 64
      %v9794 = vpop.permute.xlu0 %9793
      %9795 = vrot.lane.b32.xlu0 %v9664, 64
      %v9796 = vpop.permute.xlu0 %9795
      %9797 = vrot.lane.b32.xlu0 %v9667, 64
      %v9798 = vpop.permute.xlu0 %9797
      %9799 = vrot.lane.b32.xlu0 %v9669, 64
      %v9800 = vpop.permute.xlu0 %9799
      %9801 = vrot.lane.b32.xlu0 %v9672, 64
      %v9802 = vpop.permute.xlu0 %9801
      %9803 = vrot.lane.b32.xlu0 %v9674, 64
      %v9804 = vpop.permute.xlu0 %9803
      %9805 = vrot.lane.b32.xlu0 %v9677, 64
      %v9806 = vpop.permute.xlu0 %9805
      %9807 = vrot.lane.b32.xlu0 %v9679, 64
      %v9808 = vpop.permute.xlu0 %9807
      %9809 = vrot.lane.b32.xlu0 %v9682, 64
      %v9810 = vpop.permute.xlu0 %9809
      %9811 = vrot.lane.b32.xlu0 %v9684, 64
      %v9812 = vpop.permute.xlu0 %9811
      %v9941 = vunpack.c.l.b16 %v7860
      %v9942 = vunpack.c.l.b16 %v7861
      %v9943 = vunpack.c.l.b16 %v7862
      %v9944 = vunpack.c.l.b16 %v7863
      %v9945 = vunpack.c.l.b16 %v7864
      %v9946 = vunpack.c.l.b16 %v7865
      %v9947 = vunpack.c.l.b16 %v7866
      %v9948 = vunpack.c.l.b16 %v7867
      %v9949 = vunpack.c.l.b16 %v7868
      %v9950 = vunpack.c.l.b16 %v7869
      %v9951 = vunpack.c.l.b16 %v7870
      %v9952 = vunpack.c.l.b16 %v7871
      %v9953 = vunpack.c.l.b16 %v7872
      %v9954 = vunpack.c.l.b16 %v7873
      %v9955 = vunpack.c.l.b16 %v7874
      %v9956 = vunpack.c.l.b16 %v7875
      %v9957 = vunpack.c.l.b16 %v7876
      %v9958 = vunpack.c.l.b16 %v7877
      %v9959 = vunpack.c.l.b16 %v7878
      %v9960 = vunpack.c.l.b16 %v7879
      %v9961 = vunpack.c.l.b16 %v7880
      %v9962 = vunpack.c.l.b16 %v7881
      %v9963 = vunpack.c.l.b16 %v7882
      %v9964 = vunpack.c.l.b16 %v7883
      %v9965 = vunpack.c.l.b16 %v7884
      %v9966 = vunpack.c.l.b16 %v7885
      %v9967 = vunpack.c.l.b16 %v7886
      %v9968 = vunpack.c.l.b16 %v7887
      %v9969 = vunpack.c.l.b16 %v7888
      %v9970 = vunpack.c.l.b16 %v7889
      %v9971 = vunpack.c.l.b16 %v7890
      %v9972 = vunpack.c.l.b16 %v7891
      %v9973 = vunpack.c.l.b16 %v7892
      %v9974 = vunpack.c.l.b16 %v7893
      %v9975 = vunpack.c.l.b16 %v7894
      %v9976 = vunpack.c.l.b16 %v7895
      %v9977 = vunpack.c.l.b16 %v7896
      %v9978 = vunpack.c.l.b16 %v7897
      %v9979 = vunpack.c.l.b16 %v7898
      %v9980 = vunpack.c.l.b16 %v7899
      %v9981 = vunpack.c.l.b16 %v7900
      %v9982 = vunpack.c.l.b16 %v7901
      %v9983 = vunpack.c.l.b16 %v7902
      %v9984 = vunpack.c.l.b16 %v7903
      %v9985 = vunpack.c.l.b16 %v7904
      %v9986 = vunpack.c.l.b16 %v7905
      %v9987 = vunpack.c.l.b16 %v7906
      %v9988 = vunpack.c.l.b16 %v7907
      %v9989 = vunpack.c.l.b16 %v7908
      %v9990 = vunpack.c.l.b16 %v7909
      %v9991 = vunpack.c.l.b16 %v7910
      %v9992 = vunpack.c.l.b16 %v7911
      %v9993 = vunpack.c.l.b16 %v7912
      %v9994 = vunpack.c.l.b16 %v7913
      %v9995 = vunpack.c.l.b16 %v7914
      %v9996 = vunpack.c.l.b16 %v7915
      %v9997 = vunpack.c.l.b16 %v7916
      %v9998 = vunpack.c.l.b16 %v7917
      %v9999 = vunpack.c.l.b16 %v7918
      %v10000 = vunpack.c.l.b16 %v7919
      %v10001 = vunpack.c.l.b16 %v7920
      %v10002 = vunpack.c.l.b16 %v7921
      %v10003 = vunpack.c.l.b16 %v7922
      %v10004 = vunpack.c.l.b16 %v7923
      %v10005 = vunpack.c.l.b16 %v7924
      %v10006 = vunpack.c.l.b16 %v7925
      %v10007 = vunpack.c.l.b16 %v7926
      %v10008 = vunpack.c.l.b16 %v7927
      %v10009 = vunpack.c.l.b16 %v7928
      %v10010 = vunpack.c.l.b16 %v7929
      %v10011 = vunpack.c.l.b16 %v7930
      %v10012 = vunpack.c.l.b16 %v7931
      %v10013 = vunpack.c.l.b16 %v7932
      %v10014 = vunpack.c.l.b16 %v7933
      %v10015 = vunpack.c.l.b16 %v7934
      %v10016 = vunpack.c.l.b16 %v7935
      %v10017 = vunpack.c.l.b16 %v7936
      %v10018 = vunpack.c.l.b16 %v7937
      %v10019 = vunpack.c.l.b16 %v7938
      %v10020 = vunpack.c.l.b16 %v7939
      %v10021 = vunpack.c.l.b16 %v7940
      %v10022 = vunpack.c.l.b16 %v7941
      %v10023 = vunpack.c.l.b16 %v7942
      %v10024 = vunpack.c.l.b16 %v7943
      %v10025 = vunpack.c.l.b16 %v7944
      %v10026 = vunpack.c.l.b16 %v7945
      %v10027 = vunpack.c.l.b16 %v7946
      %v10028 = vunpack.c.l.b16 %v7947
      %v10029 = vunpack.c.l.b16 %v7948
      %v10030 = vunpack.c.l.b16 %v7949
      %v10031 = vunpack.c.l.b16 %v7950
      %v10032 = vunpack.c.l.b16 %v7951
      %v10033 = vunpack.c.l.b16 %v7952
      %v10034 = vunpack.c.l.b16 %v7953
      %v10035 = vunpack.c.l.b16 %v7954
      %v10036 = vunpack.c.l.b16 %v7955
      %v10037 = vunpack.c.l.b16 %v7956
      %v10038 = vunpack.c.l.b16 %v7957
      %v10039 = vunpack.c.l.b16 %v7958
      %v10040 = vunpack.c.l.b16 %v7959
      %v10041 = vunpack.c.l.b16 %v7960
      %v10042 = vunpack.c.l.b16 %v7961
      %v10043 = vunpack.c.l.b16 %v7962
      %v10044 = vunpack.c.l.b16 %v7963
      %v10045 = vunpack.c.l.b16 %v7964
      %v10046 = vunpack.c.l.b16 %v7965
      %v10047 = vunpack.c.l.b16 %v7966
      %v10048 = vunpack.c.l.b16 %v7967
      %v10049 = vunpack.c.l.b16 %v7968
      %v10050 = vunpack.c.l.b16 %v7969
      %v10051 = vunpack.c.l.b16 %v7970
      %v10052 = vunpack.c.l.b16 %v7971
      %v10053 = vunpack.c.l.b16 %v7972
      %v10054 = vunpack.c.l.b16 %v7973
      %v10055 = vunpack.c.l.b16 %v7974
      %v10056 = vunpack.c.l.b16 %v7975
      %v10057 = vunpack.c.l.b16 %v7976
      %v10058 = vunpack.c.l.b16 %v7977
      %v10059 = vunpack.c.l.b16 %v7978
      %v10060 = vunpack.c.l.b16 %v7979
      %v10061 = vunpack.c.l.b16 %v7980
      %v10062 = vunpack.c.l.b16 %v7981
      %v10063 = vunpack.c.l.b16 %v7982
      %v10064 = vunpack.c.l.b16 %v7983
      %v10065 = vunpack.c.l.b16 %v7984
      %v10066 = vunpack.c.l.b16 %v7985
      %v10067 = vunpack.c.l.b16 %v7986
      %v10068 = vunpack.c.l.b16 %v7987
      %v10069 = vpack.c.b16 %v9942, %v9941
      %v10070 = vpack.c.b16 %v9944, %v9943
      %v10071 = vpack.c.b16 %v9946, %v9945
      %v10072 = vpack.c.b16 %v9948, %v9947
      %v10073 = vpack.c.b16 %v9950, %v9949
      %v10074 = vpack.c.b16 %v9952, %v9951
      %v10075 = vpack.c.b16 %v9954, %v9953
      %v10076 = vpack.c.b16 %v9956, %v9955
      %v10077 = vpack.c.b16 %v9958, %v9957
      %v10078 = vpack.c.b16 %v9960, %v9959
      %v10079 = vpack.c.b16 %v9962, %v9961
      %v10080 = vpack.c.b16 %v9964, %v9963
      %v10081 = vpack.c.b16 %v9966, %v9965
      %v10082 = vpack.c.b16 %v9968, %v9967
      %v10083 = vpack.c.b16 %v9970, %v9969
      %v10084 = vpack.c.b16 %v9972, %v9971
      %v10085 = vpack.c.b16 %v9974, %v9973
      %v10086 = vpack.c.b16 %v9976, %v9975
      %v10087 = vpack.c.b16 %v9978, %v9977
      %v10088 = vpack.c.b16 %v9980, %v9979
      %v10089 = vpack.c.b16 %v9982, %v9981
      %v10090 = vpack.c.b16 %v9984, %v9983
      %v10091 = vpack.c.b16 %v9986, %v9985
      %v10092 = vpack.c.b16 %v9988, %v9987
      %v10093 = vpack.c.b16 %v9990, %v9989
      %v10094 = vpack.c.b16 %v9992, %v9991
      %v10095 = vpack.c.b16 %v9994, %v9993
      %v10096 = vpack.c.b16 %v9996, %v9995
      %v10097 = vpack.c.b16 %v9998, %v9997
      %v10098 = vpack.c.b16 %v10000, %v9999
      %v10099 = vpack.c.b16 %v10002, %v10001
      %v10100 = vpack.c.b16 %v10004, %v10003
      %v10101 = vpack.c.b16 %v10006, %v10005
      %v10102 = vpack.c.b16 %v10008, %v10007
      %v10103 = vpack.c.b16 %v10010, %v10009
      %v10104 = vpack.c.b16 %v10012, %v10011
      %v10105 = vpack.c.b16 %v10014, %v10013
      %v10106 = vpack.c.b16 %v10016, %v10015
      %v10107 = vpack.c.b16 %v10018, %v10017
      %v10108 = vpack.c.b16 %v10020, %v10019
      %v10109 = vpack.c.b16 %v10022, %v10021
      %v10110 = vpack.c.b16 %v10024, %v10023
      %v10111 = vpack.c.b16 %v10026, %v10025
      %v10112 = vpack.c.b16 %v10028, %v10027
      %v10113 = vpack.c.b16 %v10030, %v10029
      %v10114 = vpack.c.b16 %v10032, %v10031
      %v10115 = vpack.c.b16 %v10034, %v10033
      %v10116 = vpack.c.b16 %v10036, %v10035
      %v10117 = vpack.c.b16 %v10038, %v10037
      %v10118 = vpack.c.b16 %v10040, %v10039
      %v10119 = vpack.c.b16 %v10042, %v10041
      %v10120 = vpack.c.b16 %v10044, %v10043
      %v10121 = vpack.c.b16 %v10046, %v10045
      %v10122 = vpack.c.b16 %v10048, %v10047
      %v10123 = vpack.c.b16 %v10050, %v10049
      %v10124 = vpack.c.b16 %v10052, %v10051
      %v10125 = vpack.c.b16 %v10054, %v10053
      %v10126 = vpack.c.b16 %v10056, %v10055
      %v10127 = vpack.c.b16 %v10058, %v10057
      %v10128 = vpack.c.b16 %v10060, %v10059
      %v10129 = vpack.c.b16 %v10062, %v10061
      %v10130 = vpack.c.b16 %v10064, %v10063
      %v10131 = vpack.c.b16 %v10066, %v10065
      %v10132 = vpack.c.b16 %v10068, %v10067
      %10133 = vrot.lane.b32.xlu0 %v10069, 96
      %v10134 = vpop.permute.xlu0 %10133
      %10135 = vrot.lane.b32.xlu0 %v10070, 96
      %v10136 = vpop.permute.xlu0 %10135
      %10137 = vrot.lane.b32.xlu0 %v10071, 96
      %v10138 = vpop.permute.xlu0 %10137
      %10139 = vrot.lane.b32.xlu0 %v10072, 96
      %v10140 = vpop.permute.xlu0 %10139
      %10141 = vrot.lane.b32.xlu0 %v10073, 96
      %v10142 = vpop.permute.xlu0 %10141
      %10143 = vrot.lane.b32.xlu0 %v10074, 96
      %v10144 = vpop.permute.xlu0 %10143
      %10145 = vrot.lane.b32.xlu0 %v10075, 96
      %v10146 = vpop.permute.xlu0 %10145
      %10147 = vrot.lane.b32.xlu0 %v10076, 96
      %v10148 = vpop.permute.xlu0 %10147
      %10149 = vrot.lane.b32.xlu0 %v10077, 96
      %v10150 = vpop.permute.xlu0 %10149
      %10151 = vrot.lane.b32.xlu0 %v10078, 96
      %v10152 = vpop.permute.xlu0 %10151
      %10153 = vrot.lane.b32.xlu0 %v10079, 96
      %v10154 = vpop.permute.xlu0 %10153
      %10155 = vrot.lane.b32.xlu0 %v10080, 96
      %v10156 = vpop.permute.xlu0 %10155
      %10157 = vrot.lane.b32.xlu0 %v10081, 96
      %v10158 = vpop.permute.xlu0 %10157
      %10159 = vrot.lane.b32.xlu0 %v10082, 96
      %v10160 = vpop.permute.xlu0 %10159
      %10161 = vrot.lane.b32.xlu0 %v10083, 96
      %v10162 = vpop.permute.xlu0 %10161
      %10163 = vrot.lane.b32.xlu0 %v10084, 96
      %v10164 = vpop.permute.xlu0 %10163
      %10165 = vrot.lane.b32.xlu0 %v10085, 96
      %v10166 = vpop.permute.xlu0 %10165
      %10167 = vrot.lane.b32.xlu0 %v10086, 96
      %v10168 = vpop.permute.xlu0 %10167
      %10169 = vrot.lane.b32.xlu0 %v10087, 96
      %v10170 = vpop.permute.xlu0 %10169
      %10171 = vrot.lane.b32.xlu0 %v10088, 96
      %v10172 = vpop.permute.xlu0 %10171
      %10173 = vrot.lane.b32.xlu0 %v10089, 96
      %v10174 = vpop.permute.xlu0 %10173
      %10175 = vrot.lane.b32.xlu0 %v10090, 96
      %v10176 = vpop.permute.xlu0 %10175
      %10177 = vrot.lane.b32.xlu0 %v10091, 96
      %v10178 = vpop.permute.xlu0 %10177
      %10179 = vrot.lane.b32.xlu0 %v10092, 96
      %v10180 = vpop.permute.xlu0 %10179
      %10181 = vrot.lane.b32.xlu0 %v10093, 96
      %v10182 = vpop.permute.xlu0 %10181
      %10183 = vrot.lane.b32.xlu0 %v10094, 96
      %v10184 = vpop.permute.xlu0 %10183
      %10185 = vrot.lane.b32.xlu0 %v10095, 96
      %v10186 = vpop.permute.xlu0 %10185
      %10187 = vrot.lane.b32.xlu0 %v10096, 96
      %v10188 = vpop.permute.xlu0 %10187
      %10189 = vrot.lane.b32.xlu0 %v10097, 96
      %v10190 = vpop.permute.xlu0 %10189
      %10191 = vrot.lane.b32.xlu0 %v10098, 96
      %v10192 = vpop.permute.xlu0 %10191
      %10193 = vrot.lane.b32.xlu0 %v10099, 96
      %v10194 = vpop.permute.xlu0 %10193
      %10195 = vrot.lane.b32.xlu0 %v10100, 96
      %v10196 = vpop.permute.xlu0 %10195
      %10197 = vrot.lane.b32.xlu0 %v10101, 96
      %v10198 = vpop.permute.xlu0 %10197
      %10199 = vrot.lane.b32.xlu0 %v10102, 96
      %v10200 = vpop.permute.xlu0 %10199
      %10201 = vrot.lane.b32.xlu0 %v10103, 96
      %v10202 = vpop.permute.xlu0 %10201
      %10203 = vrot.lane.b32.xlu0 %v10104, 96
      %v10204 = vpop.permute.xlu0 %10203
      %10205 = vrot.lane.b32.xlu0 %v10105, 96
      %v10206 = vpop.permute.xlu0 %10205
      %10207 = vrot.lane.b32.xlu0 %v10106, 96
      %v10208 = vpop.permute.xlu0 %10207
      %10209 = vrot.lane.b32.xlu0 %v10107, 96
      %v10210 = vpop.permute.xlu0 %10209
      %10211 = vrot.lane.b32.xlu0 %v10108, 96
      %v10212 = vpop.permute.xlu0 %10211
      %10213 = vrot.lane.b32.xlu0 %v10109, 96
      %v10214 = vpop.permute.xlu0 %10213
      %10215 = vrot.lane.b32.xlu0 %v10110, 96
      %v10216 = vpop.permute.xlu0 %10215
      %10217 = vrot.lane.b32.xlu0 %v10111, 96
      %v10218 = vpop.permute.xlu0 %10217
      %10219 = vrot.lane.b32.xlu0 %v10112, 96
      %v10220 = vpop.permute.xlu0 %10219
      %10221 = vrot.lane.b32.xlu0 %v10113, 96
      %v10222 = vpop.permute.xlu0 %10221
      %10223 = vrot.lane.b32.xlu0 %v10114, 96
      %v10224 = vpop.permute.xlu0 %10223
      %10225 = vrot.lane.b32.xlu0 %v10115, 96
      %v10226 = vpop.permute.xlu0 %10225
      %10227 = vrot.lane.b32.xlu0 %v10116, 96
      %v10228 = vpop.permute.xlu0 %10227
      %10229 = vrot.lane.b32.xlu0 %v10117, 96
      %v10230 = vpop.permute.xlu0 %10229
      %10231 = vrot.lane.b32.xlu0 %v10118, 96
      %v10232 = vpop.permute.xlu0 %10231
      %10233 = vrot.lane.b32.xlu0 %v10119, 96
      %v10234 = vpop.permute.xlu0 %10233
      %10235 = vrot.lane.b32.xlu0 %v10120, 96
      %v10236 = vpop.permute.xlu0 %10235
      %10237 = vrot.lane.b32.xlu0 %v10121, 96
      %v10238 = vpop.permute.xlu0 %10237
      %10239 = vrot.lane.b32.xlu0 %v10122, 96
      %v10240 = vpop.permute.xlu0 %10239
      %10241 = vrot.lane.b32.xlu0 %v10123, 96
      %v10242 = vpop.permute.xlu0 %10241
      %10243 = vrot.lane.b32.xlu0 %v10124, 96
      %v10244 = vpop.permute.xlu0 %10243
      %10245 = vrot.lane.b32.xlu0 %v10125, 96
      %v10246 = vpop.permute.xlu0 %10245
      %10247 = vrot.lane.b32.xlu0 %v10126, 96
      %v10248 = vpop.permute.xlu0 %10247
      %10249 = vrot.lane.b32.xlu0 %v10127, 96
      %v10250 = vpop.permute.xlu0 %10249
      %10251 = vrot.lane.b32.xlu0 %v10128, 96
      %v10252 = vpop.permute.xlu0 %10251
      %10253 = vrot.lane.b32.xlu0 %v10129, 96
      %v10254 = vpop.permute.xlu0 %10253
      %10255 = vrot.lane.b32.xlu0 %v10130, 96
      %v10256 = vpop.permute.xlu0 %10255
      %10257 = vrot.lane.b32.xlu0 %v10131, 96
      %v10258 = vpop.permute.xlu0 %10257
      %10259 = vrot.lane.b32.xlu0 %v10132, 96
      %v10260 = vpop.permute.xlu0 %10259
      %v10293 = vunpack.c.l.b16 %v7988
      %v10294 = vunpack.c.l.b16 %v7989
      %v10295 = vunpack.c.l.b16 %v7990
      %v10296 = vunpack.c.l.b16 %v7991
      %v10297 = vunpack.c.l.b16 %v7992
      %v10298 = vunpack.c.l.b16 %v7993
      %v10299 = vunpack.c.l.b16 %v7994
      %v10300 = vunpack.c.l.b16 %v7995
      %v10301 = vunpack.c.l.b16 %v7996
      %v10302 = vunpack.c.l.b16 %v7997
      %v10303 = vunpack.c.l.b16 %v7998
      %v10304 = vunpack.c.l.b16 %v7999
      %v10305 = vunpack.c.l.b16 %v8000
      %v10306 = vunpack.c.l.b16 %v8001
      %v10307 = vunpack.c.l.b16 %v8002
      %v10308 = vunpack.c.l.b16 %v8003
      %v10309 = vunpack.c.l.b16 %v8004
      %v10310 = vunpack.c.l.b16 %v8005
      %v10311 = vunpack.c.l.b16 %v8006
      %v10312 = vunpack.c.l.b16 %v8007
      %v10313 = vunpack.c.l.b16 %v8008
      %v10314 = vunpack.c.l.b16 %v8009
      %v10315 = vunpack.c.l.b16 %v8010
      %v10316 = vunpack.c.l.b16 %v8011
      %v10317 = vunpack.c.l.b16 %v8012
      %v10318 = vunpack.c.l.b16 %v8013
      %v10319 = vunpack.c.l.b16 %v8014
      %v10320 = vunpack.c.l.b16 %v8015
      %v10321 = vunpack.c.l.b16 %v8016
      %v10322 = vunpack.c.l.b16 %v8017
      %v10323 = vunpack.c.l.b16 %v8018
      %v10324 = vunpack.c.l.b16 %v8019
      %v10325 = vpack.c.b16 %v10293, %v10293
      %v10326 = vpack.c.b16 %v10294, %v10294
      %v10327 = vpack.c.b16 %v10295, %v10295
      %v10328 = vpack.c.b16 %v10296, %v10296
      %v10329 = vpack.c.b16 %v10297, %v10297
      %v10330 = vpack.c.b16 %v10298, %v10298
      %v10331 = vpack.c.b16 %v10299, %v10299
      %v10332 = vpack.c.b16 %v10300, %v10300
      %v10333 = vpack.c.b16 %v10301, %v10301
      %v10334 = vpack.c.b16 %v10302, %v10302
      %v10335 = vpack.c.b16 %v10303, %v10303
      %v10336 = vpack.c.b16 %v10304, %v10304
      %v10337 = vpack.c.b16 %v10305, %v10305
      %v10338 = vpack.c.b16 %v10306, %v10306
      %v10339 = vpack.c.b16 %v10307, %v10307
      %v10340 = vpack.c.b16 %v10308, %v10308
      %v10341 = vpack.c.b16 %v10309, %v10309
      %v10342 = vpack.c.b16 %v10310, %v10310
      %v10343 = vpack.c.b16 %v10311, %v10311
      %v10344 = vpack.c.b16 %v10312, %v10312
      %v10345 = vpack.c.b16 %v10313, %v10313
      %v10346 = vpack.c.b16 %v10314, %v10314
      %v10347 = vpack.c.b16 %v10315, %v10315
      %v10348 = vpack.c.b16 %v10316, %v10316
      %v10349 = vpack.c.b16 %v10317, %v10317
      %v10350 = vpack.c.b16 %v10318, %v10318
      %v10351 = vpack.c.b16 %v10319, %v10319
      %v10352 = vpack.c.b16 %v10320, %v10320
      %v10353 = vpack.c.b16 %v10321, %v10321
      %v10354 = vpack.c.b16 %v10322, %v10322
      %v10355 = vpack.c.b16 %v10323, %v10323
      %v10356 = vpack.c.b16 %v10324, %v10324
      %v10358 = vshrl.u32 %v10069, 16
      %v10360 = vshll.u32 %v10069, 16
      %v10362 = vrot.slane %v10360, 1
      %v10363 = vor.u32 %v10358, %v10362
      %v10365 = vshll.u32 %v10070, 16
      %v10367 = vrot.slane %v10365, 1
      %v10368 = vsel %vm2607, %v10363, %v10367
      %v10369 = vshrl.u32 %v10070, 16
      %v10371 = vor.u32 %v10369, %v10367
      %v10373 = vshll.u32 %v10325, 16
      %v10375 = vrot.slane %v10373, 1
      %v10376 = vsel %vm2607, %v10371, %v10375
      %v10378 = vshrl.u32 %v10071, 16
      %v10380 = vshll.u32 %v10071, 16
      %v10382 = vrot.slane %v10380, 1
      %v10383 = vor.u32 %v10378, %v10382
      %v10385 = vshll.u32 %v10072, 16
      %v10387 = vrot.slane %v10385, 1
      %v10388 = vsel %vm2607, %v10383, %v10387
      %v10389 = vshrl.u32 %v10072, 16
      %v10391 = vor.u32 %v10389, %v10387
      %v10393 = vshll.u32 %v10326, 16
      %v10395 = vrot.slane %v10393, 1
      %v10396 = vsel %vm2607, %v10391, %v10395
      %v10398 = vshrl.u32 %v10073, 16
      %v10400 = vshll.u32 %v10073, 16
      %v10402 = vrot.slane %v10400, 1
      %v10403 = vor.u32 %v10398, %v10402
      %v10405 = vshll.u32 %v10074, 16
      %v10407 = vrot.slane %v10405, 1
      %v10408 = vsel %vm2607, %v10403, %v10407
      %v10409 = vshrl.u32 %v10074, 16
      %v10411 = vor.u32 %v10409, %v10407
      %v10413 = vshll.u32 %v10327, 16
      %v10415 = vrot.slane %v10413, 1
      %v10416 = vsel %vm2607, %v10411, %v10415
      %v10418 = vshrl.u32 %v10075, 16
      %v10420 = vshll.u32 %v10075, 16
      %v10422 = vrot.slane %v10420, 1
      %v10423 = vor.u32 %v10418, %v10422
      %v10425 = vshll.u32 %v10076, 16
      %v10427 = vrot.slane %v10425, 1
      %v10428 = vsel %vm2607, %v10423, %v10427
      %v10429 = vshrl.u32 %v10076, 16
      %v10431 = vor.u32 %v10429, %v10427
      %v10433 = vshll.u32 %v10328, 16
      %v10435 = vrot.slane %v10433, 1
      %v10436 = vsel %vm2607, %v10431, %v10435
      %v10438 = vshrl.u32 %v10077, 16
      %v10440 = vshll.u32 %v10077, 16
      %v10442 = vrot.slane %v10440, 1
      %v10443 = vor.u32 %v10438, %v10442
      %v10445 = vshll.u32 %v10078, 16
      %v10447 = vrot.slane %v10445, 1
      %v10448 = vsel %vm2607, %v10443, %v10447
      %v10449 = vshrl.u32 %v10078, 16
      %v10451 = vor.u32 %v10449, %v10447
      %v10453 = vshll.u32 %v10329, 16
      %v10455 = vrot.slane %v10453, 1
      %v10456 = vsel %vm2607, %v10451, %v10455
      %v10458 = vshrl.u32 %v10079, 16
      %v10460 = vshll.u32 %v10079, 16
      %v10462 = vrot.slane %v10460, 1
      %v10463 = vor.u32 %v10458, %v10462
      %v10465 = vshll.u32 %v10080, 16
      %v10467 = vrot.slane %v10465, 1
      %v10468 = vsel %vm2607, %v10463, %v10467
      %v10469 = vshrl.u32 %v10080, 16
      %v10471 = vor.u32 %v10469, %v10467
      %v10473 = vshll.u32 %v10330, 16
      %v10475 = vrot.slane %v10473, 1
      %v10476 = vsel %vm2607, %v10471, %v10475
      %v10478 = vshrl.u32 %v10081, 16
      %v10480 = vshll.u32 %v10081, 16
      %v10482 = vrot.slane %v10480, 1
      %v10483 = vor.u32 %v10478, %v10482
      %v10485 = vshll.u32 %v10082, 16
      %v10487 = vrot.slane %v10485, 1
      %v10488 = vsel %vm2607, %v10483, %v10487
      %v10489 = vshrl.u32 %v10082, 16
      %v10491 = vor.u32 %v10489, %v10487
      %v10493 = vshll.u32 %v10331, 16
      %v10495 = vrot.slane %v10493, 1
      %v10496 = vsel %vm2607, %v10491, %v10495
      %v10498 = vshrl.u32 %v10083, 16
      %v10500 = vshll.u32 %v10083, 16
      %v10502 = vrot.slane %v10500, 1
      %v10503 = vor.u32 %v10498, %v10502
      %v10505 = vshll.u32 %v10084, 16
      %v10507 = vrot.slane %v10505, 1
      %v10508 = vsel %vm2607, %v10503, %v10507
      %v10509 = vshrl.u32 %v10084, 16
      %v10511 = vor.u32 %v10509, %v10507
      %v10513 = vshll.u32 %v10332, 16
      %v10515 = vrot.slane %v10513, 1
      %v10516 = vsel %vm2607, %v10511, %v10515
      %v10518 = vshrl.u32 %v10085, 16
      %v10520 = vshll.u32 %v10085, 16
      %v10522 = vrot.slane %v10520, 1
      %v10523 = vor.u32 %v10518, %v10522
      %v10525 = vshll.u32 %v10086, 16
      %v10527 = vrot.slane %v10525, 1
      %v10528 = vsel %vm2607, %v10523, %v10527
      %v10529 = vshrl.u32 %v10086, 16
      %v10531 = vor.u32 %v10529, %v10527
      %v10533 = vshll.u32 %v10333, 16
      %v10535 = vrot.slane %v10533, 1
      %v10536 = vsel %vm2607, %v10531, %v10535
      %v10538 = vshrl.u32 %v10087, 16
      %v10540 = vshll.u32 %v10087, 16
      %v10542 = vrot.slane %v10540, 1
      %v10543 = vor.u32 %v10538, %v10542
      %v10545 = vshll.u32 %v10088, 16
      %v10547 = vrot.slane %v10545, 1
      %v10548 = vsel %vm2607, %v10543, %v10547
      %v10549 = vshrl.u32 %v10088, 16
      %v10551 = vor.u32 %v10549, %v10547
      %v10553 = vshll.u32 %v10334, 16
      %v10555 = vrot.slane %v10553, 1
      %v10556 = vsel %vm2607, %v10551, %v10555
      %v10558 = vshrl.u32 %v10089, 16
      %v10560 = vshll.u32 %v10089, 16
      %v10562 = vrot.slane %v10560, 1
      %v10563 = vor.u32 %v10558, %v10562
      %v10565 = vshll.u32 %v10090, 16
      %v10567 = vrot.slane %v10565, 1
      %v10568 = vsel %vm2607, %v10563, %v10567
      %v10569 = vshrl.u32 %v10090, 16
      %v10571 = vor.u32 %v10569, %v10567
      %v10573 = vshll.u32 %v10335, 16
      %v10575 = vrot.slane %v10573, 1
      %v10576 = vsel %vm2607, %v10571, %v10575
      %v10578 = vshrl.u32 %v10091, 16
      %v10580 = vshll.u32 %v10091, 16
      %v10582 = vrot.slane %v10580, 1
      %v10583 = vor.u32 %v10578, %v10582
      %v10585 = vshll.u32 %v10092, 16
      %v10587 = vrot.slane %v10585, 1
      %v10588 = vsel %vm2607, %v10583, %v10587
      %v10589 = vshrl.u32 %v10092, 16
      %v10591 = vor.u32 %v10589, %v10587
      %v10593 = vshll.u32 %v10336, 16
      %v10595 = vrot.slane %v10593, 1
      %v10596 = vsel %vm2607, %v10591, %v10595
      %v10598 = vshrl.u32 %v10093, 16
      %v10600 = vshll.u32 %v10093, 16
      %v10602 = vrot.slane %v10600, 1
      %v10603 = vor.u32 %v10598, %v10602
      %v10605 = vshll.u32 %v10094, 16
      %v10607 = vrot.slane %v10605, 1
      %v10608 = vsel %vm2607, %v10603, %v10607
      %v10609 = vshrl.u32 %v10094, 16
      %v10611 = vor.u32 %v10609, %v10607
      %v10613 = vshll.u32 %v10337, 16
      %v10615 = vrot.slane %v10613, 1
      %v10616 = vsel %vm2607, %v10611, %v10615
      %v10618 = vshrl.u32 %v10095, 16
      %v10620 = vshll.u32 %v10095, 16
      %v10622 = vrot.slane %v10620, 1
      %v10623 = vor.u32 %v10618, %v10622
      %v10625 = vshll.u32 %v10096, 16
      %v10627 = vrot.slane %v10625, 1
      %v10628 = vsel %vm2607, %v10623, %v10627
      %v10629 = vshrl.u32 %v10096, 16
      %v10631 = vor.u32 %v10629, %v10627
      %v10633 = vshll.u32 %v10338, 16
      %v10635 = vrot.slane %v10633, 1
      %v10636 = vsel %vm2607, %v10631, %v10635
      %v10638 = vshrl.u32 %v10097, 16
      %v10640 = vshll.u32 %v10097, 16
      %v10642 = vrot.slane %v10640, 1
      %v10643 = vor.u32 %v10638, %v10642
      %v10645 = vshll.u32 %v10098, 16
      %v10647 = vrot.slane %v10645, 1
      %v10648 = vsel %vm2607, %v10643, %v10647
      %v10649 = vshrl.u32 %v10098, 16
      %v10651 = vor.u32 %v10649, %v10647
      %v10653 = vshll.u32 %v10339, 16
      %v10655 = vrot.slane %v10653, 1
      %v10656 = vsel %vm2607, %v10651, %v10655
      %v10658 = vshrl.u32 %v10099, 16
      %v10660 = vshll.u32 %v10099, 16
      %v10662 = vrot.slane %v10660, 1
      %v10663 = vor.u32 %v10658, %v10662
      %v10665 = vshll.u32 %v10100, 16
      %v10667 = vrot.slane %v10665, 1
      %v10668 = vsel %vm2607, %v10663, %v10667
      %v10669 = vshrl.u32 %v10100, 16
      %v10671 = vor.u32 %v10669, %v10667
      %v10673 = vshll.u32 %v10340, 16
      %v10675 = vrot.slane %v10673, 1
      %v10676 = vsel %vm2607, %v10671, %v10675
      %v10678 = vshrl.u32 %v10101, 16
      %v10680 = vshll.u32 %v10101, 16
      %v10682 = vrot.slane %v10680, 1
      %v10683 = vor.u32 %v10678, %v10682
      %v10685 = vshll.u32 %v10102, 16
      %v10687 = vrot.slane %v10685, 1
      %v10688 = vsel %vm2607, %v10683, %v10687
      %v10689 = vshrl.u32 %v10102, 16
      %v10691 = vor.u32 %v10689, %v10687
      %v10693 = vshll.u32 %v10341, 16
      %v10695 = vrot.slane %v10693, 1
      %v10696 = vsel %vm2607, %v10691, %v10695
      %v10698 = vshrl.u32 %v10103, 16
      %v10700 = vshll.u32 %v10103, 16
      %v10702 = vrot.slane %v10700, 1
      %v10703 = vor.u32 %v10698, %v10702
      %v10705 = vshll.u32 %v10104, 16
      %v10707 = vrot.slane %v10705, 1
      %v10708 = vsel %vm2607, %v10703, %v10707
      %v10709 = vshrl.u32 %v10104, 16
      %v10711 = vor.u32 %v10709, %v10707
      %v10713 = vshll.u32 %v10342, 16
      %v10715 = vrot.slane %v10713, 1
      %v10716 = vsel %vm2607, %v10711, %v10715
      %v10718 = vshrl.u32 %v10105, 16
      %v10720 = vshll.u32 %v10105, 16
      %v10722 = vrot.slane %v10720, 1
      %v10723 = vor.u32 %v10718, %v10722
      %v10725 = vshll.u32 %v10106, 16
      %v10727 = vrot.slane %v10725, 1
      %v10728 = vsel %vm2607, %v10723, %v10727
      %v10729 = vshrl.u32 %v10106, 16
      %v10731 = vor.u32 %v10729, %v10727
      %v10733 = vshll.u32 %v10343, 16
      %v10735 = vrot.slane %v10733, 1
      %v10736 = vsel %vm2607, %v10731, %v10735
      %v10738 = vshrl.u32 %v10107, 16
      %v10740 = vshll.u32 %v10107, 16
      %v10742 = vrot.slane %v10740, 1
      %v10743 = vor.u32 %v10738, %v10742
      %v10745 = vshll.u32 %v10108, 16
      %v10747 = vrot.slane %v10745, 1
      %v10748 = vsel %vm2607, %v10743, %v10747
      %v10749 = vshrl.u32 %v10108, 16
      %v10751 = vor.u32 %v10749, %v10747
      %v10753 = vshll.u32 %v10344, 16
      %v10755 = vrot.slane %v10753, 1
      %v10756 = vsel %vm2607, %v10751, %v10755
      %v10758 = vshrl.u32 %v10109, 16
      %v10760 = vshll.u32 %v10109, 16
      %v10762 = vrot.slane %v10760, 1
      %v10763 = vor.u32 %v10758, %v10762
      %v10765 = vshll.u32 %v10110, 16
      %v10767 = vrot.slane %v10765, 1
      %v10768 = vsel %vm2607, %v10763, %v10767
      %v10769 = vshrl.u32 %v10110, 16
      %v10771 = vor.u32 %v10769, %v10767
      %v10773 = vshll.u32 %v10345, 16
      %v10775 = vrot.slane %v10773, 1
      %v10776 = vsel %vm2607, %v10771, %v10775
      %v10778 = vshrl.u32 %v10111, 16
      %v10780 = vshll.u32 %v10111, 16
      %v10782 = vrot.slane %v10780, 1
      %v10783 = vor.u32 %v10778, %v10782
      %v10785 = vshll.u32 %v10112, 16
      %v10787 = vrot.slane %v10785, 1
      %v10788 = vsel %vm2607, %v10783, %v10787
      %v10789 = vshrl.u32 %v10112, 16
      %v10791 = vor.u32 %v10789, %v10787
      %v10793 = vshll.u32 %v10346, 16
      %v10795 = vrot.slane %v10793, 1
      %v10796 = vsel %vm2607, %v10791, %v10795
      %v10798 = vshrl.u32 %v10113, 16
      %v10800 = vshll.u32 %v10113, 16
      %v10802 = vrot.slane %v10800, 1
      %v10803 = vor.u32 %v10798, %v10802
      %v10805 = vshll.u32 %v10114, 16
      %v10807 = vrot.slane %v10805, 1
      %v10808 = vsel %vm2607, %v10803, %v10807
      %v10809 = vshrl.u32 %v10114, 16
      %v10811 = vor.u32 %v10809, %v10807
      %v10813 = vshll.u32 %v10347, 16
      %v10815 = vrot.slane %v10813, 1
      %v10816 = vsel %vm2607, %v10811, %v10815
      %v10818 = vshrl.u32 %v10115, 16
      %v10820 = vshll.u32 %v10115, 16
      %v10822 = vrot.slane %v10820, 1
      %v10823 = vor.u32 %v10818, %v10822
      %v10825 = vshll.u32 %v10116, 16
      %v10827 = vrot.slane %v10825, 1
      %v10828 = vsel %vm2607, %v10823, %v10827
      %v10829 = vshrl.u32 %v10116, 16
      %v10831 = vor.u32 %v10829, %v10827
      %v10833 = vshll.u32 %v10348, 16
      %v10835 = vrot.slane %v10833, 1
      %v10836 = vsel %vm2607, %v10831, %v10835
      %v10838 = vshrl.u32 %v10117, 16
      %v10840 = vshll.u32 %v10117, 16
      %v10842 = vrot.slane %v10840, 1
      %v10843 = vor.u32 %v10838, %v10842
      %v10845 = vshll.u32 %v10118, 16
      %v10847 = vrot.slane %v10845, 1
      %v10848 = vsel %vm2607, %v10843, %v10847
      %v10849 = vshrl.u32 %v10118, 16
      %v10851 = vor.u32 %v10849, %v10847
      %v10853 = vshll.u32 %v10349, 16
      %v10855 = vrot.slane %v10853, 1
      %v10856 = vsel %vm2607, %v10851, %v10855
      %v10858 = vshrl.u32 %v10119, 16
      %v10860 = vshll.u32 %v10119, 16
      %v10862 = vrot.slane %v10860, 1
      %v10863 = vor.u32 %v10858, %v10862
      %v10865 = vshll.u32 %v10120, 16
      %v10867 = vrot.slane %v10865, 1
      %v10868 = vsel %vm2607, %v10863, %v10867
      %v10869 = vshrl.u32 %v10120, 16
      %v10871 = vor.u32 %v10869, %v10867
      %v10873 = vshll.u32 %v10350, 16
      %v10875 = vrot.slane %v10873, 1
      %v10876 = vsel %vm2607, %v10871, %v10875
      %v10878 = vshrl.u32 %v10121, 16
      %v10880 = vshll.u32 %v10121, 16
      %v10882 = vrot.slane %v10880, 1
      %v10883 = vor.u32 %v10878, %v10882
      %v10885 = vshll.u32 %v10122, 16
      %v10887 = vrot.slane %v10885, 1
      %v10888 = vsel %vm2607, %v10883, %v10887
      %v10889 = vshrl.u32 %v10122, 16
      %v10891 = vor.u32 %v10889, %v10887
      %v10893 = vshll.u32 %v10351, 16
      %v10895 = vrot.slane %v10893, 1
      %v10896 = vsel %vm2607, %v10891, %v10895
      %v10898 = vshrl.u32 %v10123, 16
      %v10900 = vshll.u32 %v10123, 16
      %v10902 = vrot.slane %v10900, 1
      %v10903 = vor.u32 %v10898, %v10902
      %v10905 = vshll.u32 %v10124, 16
      %v10907 = vrot.slane %v10905, 1
      %v10908 = vsel %vm2607, %v10903, %v10907
      %v10909 = vshrl.u32 %v10124, 16
      %v10911 = vor.u32 %v10909, %v10907
      %v10913 = vshll.u32 %v10352, 16
      %v10915 = vrot.slane %v10913, 1
      %v10916 = vsel %vm2607, %v10911, %v10915
      %v10918 = vshrl.u32 %v10125, 16
      %v10920 = vshll.u32 %v10125, 16
      %v10922 = vrot.slane %v10920, 1
      %v10923 = vor.u32 %v10918, %v10922
      %v10925 = vshll.u32 %v10126, 16
      %v10927 = vrot.slane %v10925, 1
      %v10928 = vsel %vm2607, %v10923, %v10927
      %v10929 = vshrl.u32 %v10126, 16
      %v10931 = vor.u32 %v10929, %v10927
      %v10933 = vshll.u32 %v10353, 16
      %v10935 = vrot.slane %v10933, 1
      %v10936 = vsel %vm2607, %v10931, %v10935
      %v10938 = vshrl.u32 %v10127, 16
      %v10940 = vshll.u32 %v10127, 16
      %v10942 = vrot.slane %v10940, 1
      %v10943 = vor.u32 %v10938, %v10942
      %v10945 = vshll.u32 %v10128, 16
      %v10947 = vrot.slane %v10945, 1
      %v10948 = vsel %vm2607, %v10943, %v10947
      %v10949 = vshrl.u32 %v10128, 16
      %v10951 = vor.u32 %v10949, %v10947
      %v10953 = vshll.u32 %v10354, 16
      %v10955 = vrot.slane %v10953, 1
      %v10956 = vsel %vm2607, %v10951, %v10955
      %v10958 = vshrl.u32 %v10129, 16
      %v10960 = vshll.u32 %v10129, 16
      %v10962 = vrot.slane %v10960, 1
      %v10963 = vor.u32 %v10958, %v10962
      %v10965 = vshll.u32 %v10130, 16
      %v10967 = vrot.slane %v10965, 1
      %v10968 = vsel %vm2607, %v10963, %v10967
      %v10969 = vshrl.u32 %v10130, 16
      %v10971 = vor.u32 %v10969, %v10967
      %v10973 = vshll.u32 %v10355, 16
      %v10975 = vrot.slane %v10973, 1
      %v10976 = vsel %vm2607, %v10971, %v10975
      %v10978 = vshrl.u32 %v10131, 16
      %v10980 = vshll.u32 %v10131, 16
      %v10982 = vrot.slane %v10980, 1
      %v10983 = vor.u32 %v10978, %v10982
      %v10985 = vshll.u32 %v10132, 16
      %v10987 = vrot.slane %v10985, 1
      %v10988 = vsel %vm2607, %v10983, %v10987
      %v10989 = vshrl.u32 %v10132, 16
      %v10991 = vor.u32 %v10989, %v10987
      %v10993 = vshll.u32 %v10356, 16
      %v10995 = vrot.slane %v10993, 1
      %v10996 = vsel %vm2607, %v10991, %v10995
      %v11029 = vunpack.c.l.b16 %v8020
      %v11030 = vunpack.c.l.b16 %v8021
      %v11031 = vunpack.c.l.b16 %v8022
      %v11032 = vunpack.c.l.b16 %v8023
      %v11033 = vunpack.c.l.b16 %v8024
      %v11034 = vunpack.c.l.b16 %v8025
      %v11035 = vunpack.c.l.b16 %v8026
      %v11036 = vunpack.c.l.b16 %v8027
      %v11037 = vunpack.c.l.b16 %v8028
      %v11038 = vunpack.c.l.b16 %v8029
      %v11039 = vunpack.c.l.b16 %v8030
      %v11040 = vunpack.c.l.b16 %v8031
      %v11041 = vunpack.c.l.b16 %v8032
      %v11042 = vunpack.c.l.b16 %v8033
      %v11043 = vunpack.c.l.b16 %v8034
      %v11044 = vunpack.c.l.b16 %v8035
      %v11045 = vunpack.c.l.b16 %v8036
      %v11046 = vunpack.c.l.b16 %v8037
      %v11047 = vunpack.c.l.b16 %v8038
      %v11048 = vunpack.c.l.b16 %v8039
      %v11049 = vunpack.c.l.b16 %v8040
      %v11050 = vunpack.c.l.b16 %v8041
      %v11051 = vunpack.c.l.b16 %v8042
      %v11052 = vunpack.c.l.b16 %v8043
      %v11053 = vunpack.c.l.b16 %v8044
      %v11054 = vunpack.c.l.b16 %v8045
      %v11055 = vunpack.c.l.b16 %v8046
      %v11056 = vunpack.c.l.b16 %v8047
      %v11057 = vunpack.c.l.b16 %v8048
      %v11058 = vunpack.c.l.b16 %v8049
      %v11059 = vunpack.c.l.b16 %v8050
      %v11060 = vunpack.c.l.b16 %v8051
      %v11061 = vpack.c.b16 %v9942, %v11029
      %v11062 = vpack.c.b16 %v9946, %v11030
      %v11063 = vpack.c.b16 %v9950, %v11031
      %v11064 = vpack.c.b16 %v9954, %v11032
      %v11065 = vpack.c.b16 %v9958, %v11033
      %v11066 = vpack.c.b16 %v9962, %v11034
      %v11067 = vpack.c.b16 %v9966, %v11035
      %v11068 = vpack.c.b16 %v9970, %v11036
      %v11069 = vpack.c.b16 %v9974, %v11037
      %v11070 = vpack.c.b16 %v9978, %v11038
      %v11071 = vpack.c.b16 %v9982, %v11039
      %v11072 = vpack.c.b16 %v9986, %v11040
      %v11073 = vpack.c.b16 %v9990, %v11041
      %v11074 = vpack.c.b16 %v9994, %v11042
      %v11075 = vpack.c.b16 %v9998, %v11043
      %v11076 = vpack.c.b16 %v10002, %v11044
      %v11077 = vpack.c.b16 %v10006, %v11045
      %v11078 = vpack.c.b16 %v10010, %v11046
      %v11079 = vpack.c.b16 %v10014, %v11047
      %v11080 = vpack.c.b16 %v10018, %v11048
      %v11081 = vpack.c.b16 %v10022, %v11049
      %v11082 = vpack.c.b16 %v10026, %v11050
      %v11083 = vpack.c.b16 %v10030, %v11051
      %v11084 = vpack.c.b16 %v10034, %v11052
      %v11085 = vpack.c.b16 %v10038, %v11053
      %v11086 = vpack.c.b16 %v10042, %v11054
      %v11087 = vpack.c.b16 %v10046, %v11055
      %v11088 = vpack.c.b16 %v10050, %v11056
      %v11089 = vpack.c.b16 %v10054, %v11057
      %v11090 = vpack.c.b16 %v10058, %v11058
      %v11091 = vpack.c.b16 %v10062, %v11059
      %v11092 = vpack.c.b16 %v10066, %v11060
      %v11093 = vrot.slane %v11061, 1
      %v11094 = vrot.slane %v10070, 1
      %v11095 = vsel %vm2562, %v11093, %v11094
      %v11096 = vrot.slane %v10325, 1
      %v11097 = vsel %vm2562, %v11094, %v11096
      %v11098 = vrot.slane %v11062, 1
      %v11099 = vrot.slane %v10072, 1
      %v11100 = vsel %vm2562, %v11098, %v11099
      %v11101 = vrot.slane %v10326, 1
      %v11102 = vsel %vm2562, %v11099, %v11101
      %v11103 = vrot.slane %v11063, 1
      %v11104 = vrot.slane %v10074, 1
      %v11105 = vsel %vm2562, %v11103, %v11104
      %v11106 = vrot.slane %v10327, 1
      %v11107 = vsel %vm2562, %v11104, %v11106
      %v11108 = vrot.slane %v11064, 1
      %v11109 = vrot.slane %v10076, 1
      %v11110 = vsel %vm2562, %v11108, %v11109
      %v11111 = vrot.slane %v10328, 1
      %v11112 = vsel %vm2562, %v11109, %v11111
      %v11113 = vrot.slane %v11065, 1
      %v11114 = vrot.slane %v10078, 1
      %v11115 = vsel %vm2562, %v11113, %v11114
      %v11116 = vrot.slane %v10329, 1
      %v11117 = vsel %vm2562, %v11114, %v11116
      %v11118 = vrot.slane %v11066, 1
      %v11119 = vrot.slane %v10080, 1
      %v11120 = vsel %vm2562, %v11118, %v11119
      %v11121 = vrot.slane %v10330, 1
      %v11122 = vsel %vm2562, %v11119, %v11121
      %v11123 = vrot.slane %v11067, 1
      %v11124 = vrot.slane %v10082, 1
      %v11125 = vsel %vm2562, %v11123, %v11124
      %v11126 = vrot.slane %v10331, 1
      %v11127 = vsel %vm2562, %v11124, %v11126
      %v11128 = vrot.slane %v11068, 1
      %v11129 = vrot.slane %v10084, 1
      %v11130 = vsel %vm2562, %v11128, %v11129
      %v11131 = vrot.slane %v10332, 1
      %v11132 = vsel %vm2562, %v11129, %v11131
      %v11133 = vrot.slane %v11069, 1
      %v11134 = vrot.slane %v10086, 1
      %v11135 = vsel %vm2562, %v11133, %v11134
      %v11136 = vrot.slane %v10333, 1
      %v11137 = vsel %vm2562, %v11134, %v11136
      %v11138 = vrot.slane %v11070, 1
      %v11139 = vrot.slane %v10088, 1
      %v11140 = vsel %vm2562, %v11138, %v11139
      %v11141 = vrot.slane %v10334, 1
      %v11142 = vsel %vm2562, %v11139, %v11141
      %v11143 = vrot.slane %v11071, 1
      %v11144 = vrot.slane %v10090, 1
      %v11145 = vsel %vm2562, %v11143, %v11144
      %v11146 = vrot.slane %v10335, 1
      %v11147 = vsel %vm2562, %v11144, %v11146
      %v11148 = vrot.slane %v11072, 1
      %v11149 = vrot.slane %v10092, 1
      %v11150 = vsel %vm2562, %v11148, %v11149
      %v11151 = vrot.slane %v10336, 1
      %v11152 = vsel %vm2562, %v11149, %v11151
      %v11153 = vrot.slane %v11073, 1
      %v11154 = vrot.slane %v10094, 1
      %v11155 = vsel %vm2562, %v11153, %v11154
      %v11156 = vrot.slane %v10337, 1
      %v11157 = vsel %vm2562, %v11154, %v11156
      %v11158 = vrot.slane %v11074, 1
      %v11159 = vrot.slane %v10096, 1
      %v11160 = vsel %vm2562, %v11158, %v11159
      %v11161 = vrot.slane %v10338, 1
      %v11162 = vsel %vm2562, %v11159, %v11161
      %v11163 = vrot.slane %v11075, 1
      %v11164 = vrot.slane %v10098, 1
      %v11165 = vsel %vm2562, %v11163, %v11164
      %v11166 = vrot.slane %v10339, 1
      %v11167 = vsel %vm2562, %v11164, %v11166
      %v11168 = vrot.slane %v11076, 1
      %v11169 = vrot.slane %v10100, 1
      %v11170 = vsel %vm2562, %v11168, %v11169
      %v11171 = vrot.slane %v10340, 1
      %v11172 = vsel %vm2562, %v11169, %v11171
      %v11173 = vrot.slane %v11077, 1
      %v11174 = vrot.slane %v10102, 1
      %v11175 = vsel %vm2562, %v11173, %v11174
      %v11176 = vrot.slane %v10341, 1
      %v11177 = vsel %vm2562, %v11174, %v11176
      %v11178 = vrot.slane %v11078, 1
      %v11179 = vrot.slane %v10104, 1
      %v11180 = vsel %vm2562, %v11178, %v11179
      %v11181 = vrot.slane %v10342, 1
      %v11182 = vsel %vm2562, %v11179, %v11181
      %v11183 = vrot.slane %v11079, 1
      %v11184 = vrot.slane %v10106, 1
      %v11185 = vsel %vm2562, %v11183, %v11184
      %v11186 = vrot.slane %v10343, 1
      %v11187 = vsel %vm2562, %v11184, %v11186
      %v11188 = vrot.slane %v11080, 1
      %v11189 = vrot.slane %v10108, 1
      %v11190 = vsel %vm2562, %v11188, %v11189
      %v11191 = vrot.slane %v10344, 1
      %v11192 = vsel %vm2562, %v11189, %v11191
      %v11193 = vrot.slane %v11081, 1
      %v11194 = vrot.slane %v10110, 1
      %v11195 = vsel %vm2562, %v11193, %v11194
      %v11196 = vrot.slane %v10345, 1
      %v11197 = vsel %vm2562, %v11194, %v11196
      %v11198 = vrot.slane %v11082, 1
      %v11199 = vrot.slane %v10112, 1
      %v11200 = vsel %vm2562, %v11198, %v11199
      %v11201 = vrot.slane %v10346, 1
      %v11202 = vsel %vm2562, %v11199, %v11201
      %v11203 = vrot.slane %v11083, 1
      %v11204 = vrot.slane %v10114, 1
      %v11205 = vsel %vm2562, %v11203, %v11204
      %v11206 = vrot.slane %v10347, 1
      %v11207 = vsel %vm2562, %v11204, %v11206
      %v11208 = vrot.slane %v11084, 1
      %v11209 = vrot.slane %v10116, 1
      %v11210 = vsel %vm2562, %v11208, %v11209
      %v11211 = vrot.slane %v10348, 1
      %v11212 = vsel %vm2562, %v11209, %v11211
      %v11213 = vrot.slane %v11085, 1
      %v11214 = vrot.slane %v10118, 1
      %v11215 = vsel %vm2562, %v11213, %v11214
      %v11216 = vrot.slane %v10349, 1
      %v11217 = vsel %vm2562, %v11214, %v11216
      %v11218 = vrot.slane %v11086, 1
      %v11219 = vrot.slane %v10120, 1
      %v11220 = vsel %vm2562, %v11218, %v11219
      %v11221 = vrot.slane %v10350, 1
      %v11222 = vsel %vm2562, %v11219, %v11221
      %v11223 = vrot.slane %v11087, 1
      %v11224 = vrot.slane %v10122, 1
      %v11225 = vsel %vm2562, %v11223, %v11224
      %v11226 = vrot.slane %v10351, 1
      %v11227 = vsel %vm2562, %v11224, %v11226
      %v11228 = vrot.slane %v11088, 1
      %v11229 = vrot.slane %v10124, 1
      %v11230 = vsel %vm2562, %v11228, %v11229
      %v11231 = vrot.slane %v10352, 1
      %v11232 = vsel %vm2562, %v11229, %v11231
      %v11233 = vrot.slane %v11089, 1
      %v11234 = vrot.slane %v10126, 1
      %v11235 = vsel %vm2562, %v11233, %v11234
      %v11236 = vrot.slane %v10353, 1
      %v11237 = vsel %vm2562, %v11234, %v11236
      %v11238 = vrot.slane %v11090, 1
      %v11239 = vrot.slane %v10128, 1
      %v11240 = vsel %vm2562, %v11238, %v11239
      %v11241 = vrot.slane %v10354, 1
      %v11242 = vsel %vm2562, %v11239, %v11241
      %v11243 = vrot.slane %v11091, 1
      %v11244 = vrot.slane %v10130, 1
      %v11245 = vsel %vm2562, %v11243, %v11244
      %v11246 = vrot.slane %v10355, 1
      %v11247 = vsel %vm2562, %v11244, %v11246
      %v11248 = vrot.slane %v11092, 1
      %v11249 = vrot.slane %v10132, 1
      %v11250 = vsel %vm2562, %v11248, %v11249
      %v11251 = vrot.slane %v10356, 1
      %v11252 = vsel %vm2562, %v11249, %v11251
      %11253 = vrot.lane.b32.xlu0 %v11095, 32
      %v11254 = vpop.permute.xlu0 %11253
      %11255 = vrot.lane.b32.xlu0 %v11097, 32
      %v11256 = vpop.permute.xlu0 %11255
      %11257 = vrot.lane.b32.xlu0 %v11100, 32
      %v11258 = vpop.permute.xlu0 %11257
      %11259 = vrot.lane.b32.xlu0 %v11102, 32
      %v11260 = vpop.permute.xlu0 %11259
      %11261 = vrot.lane.b32.xlu0 %v11105, 32
      %v11262 = vpop.permute.xlu0 %11261
      %11263 = vrot.lane.b32.xlu0 %v11107, 32
      %v11264 = vpop.permute.xlu0 %11263
      %11265 = vrot.lane.b32.xlu0 %v11110, 32
      %v11266 = vpop.permute.xlu0 %11265
      %11267 = vrot.lane.b32.xlu0 %v11112, 32
      %v11268 = vpop.permute.xlu0 %11267
      %11269 = vrot.lane.b32.xlu0 %v11115, 32
      %v11270 = vpop.permute.xlu0 %11269
      %11271 = vrot.lane.b32.xlu0 %v11117, 32
      %v11272 = vpop.permute.xlu0 %11271
      %11273 = vrot.lane.b32.xlu0 %v11120, 32
      %v11274 = vpop.permute.xlu0 %11273
      %11275 = vrot.lane.b32.xlu0 %v11122, 32
      %v11276 = vpop.permute.xlu0 %11275
      %11277 = vrot.lane.b32.xlu0 %v11125, 32
      %v11278 = vpop.permute.xlu0 %11277
      %11279 = vrot.lane.b32.xlu0 %v11127, 32
      %v11280 = vpop.permute.xlu0 %11279
      %11281 = vrot.lane.b32.xlu0 %v11130, 32
      %v11282 = vpop.permute.xlu0 %11281
      %11283 = vrot.lane.b32.xlu0 %v11132, 32
      %v11284 = vpop.permute.xlu0 %11283
      %11285 = vrot.lane.b32.xlu0 %v11135, 32
      %v11286 = vpop.permute.xlu0 %11285
      %11287 = vrot.lane.b32.xlu0 %v11137, 32
      %v11288 = vpop.permute.xlu0 %11287
      %11289 = vrot.lane.b32.xlu0 %v11140, 32
      %v11290 = vpop.permute.xlu0 %11289
      %11291 = vrot.lane.b32.xlu0 %v11142, 32
      %v11292 = vpop.permute.xlu0 %11291
      %11293 = vrot.lane.b32.xlu0 %v11145, 32
      %v11294 = vpop.permute.xlu0 %11293
      %11295 = vrot.lane.b32.xlu0 %v11147, 32
      %v11296 = vpop.permute.xlu0 %11295
      %11297 = vrot.lane.b32.xlu0 %v11150, 32
      %v11298 = vpop.permute.xlu0 %11297
      %11299 = vrot.lane.b32.xlu0 %v11152, 32
      %v11300 = vpop.permute.xlu0 %11299
      %11301 = vrot.lane.b32.xlu0 %v11155, 32
      %v11302 = vpop.permute.xlu0 %11301
      %11303 = vrot.lane.b32.xlu0 %v11157, 32
      %v11304 = vpop.permute.xlu0 %11303
      %11305 = vrot.lane.b32.xlu0 %v11160, 32
      %v11306 = vpop.permute.xlu0 %11305
      %11307 = vrot.lane.b32.xlu0 %v11162, 32
      %v11308 = vpop.permute.xlu0 %11307
      %11309 = vrot.lane.b32.xlu0 %v11165, 32
      %v11310 = vpop.permute.xlu0 %11309
      %11311 = vrot.lane.b32.xlu0 %v11167, 32
      %v11312 = vpop.permute.xlu0 %11311
      %11313 = vrot.lane.b32.xlu0 %v11170, 32
      %v11314 = vpop.permute.xlu0 %11313
      %11315 = vrot.lane.b32.xlu0 %v11172, 32
      %v11316 = vpop.permute.xlu0 %11315
      %11317 = vrot.lane.b32.xlu0 %v11175, 32
      %v11318 = vpop.permute.xlu0 %11317
      %11319 = vrot.lane.b32.xlu0 %v11177, 32
      %v11320 = vpop.permute.xlu0 %11319
      %11321 = vrot.lane.b32.xlu0 %v11180, 32
      %v11322 = vpop.permute.xlu0 %11321
      %11323 = vrot.lane.b32.xlu0 %v11182, 32
      %v11324 = vpop.permute.xlu0 %11323
      %11325 = vrot.lane.b32.xlu0 %v11185, 32
      %v11326 = vpop.permute.xlu0 %11325
      %11327 = vrot.lane.b32.xlu0 %v11187, 32
      %v11328 = vpop.permute.xlu0 %11327
      %11329 = vrot.lane.b32.xlu0 %v11190, 32
      %v11330 = vpop.permute.xlu0 %11329
      %11331 = vrot.lane.b32.xlu0 %v11192, 32
      %v11332 = vpop.permute.xlu0 %11331
      %11333 = vrot.lane.b32.xlu0 %v11195, 32
      %v11334 = vpop.permute.xlu0 %11333
      %11335 = vrot.lane.b32.xlu0 %v11197, 32
      %v11336 = vpop.permute.xlu0 %11335
      %11337 = vrot.lane.b32.xlu0 %v11200, 32
      %v11338 = vpop.permute.xlu0 %11337
      %11339 = vrot.lane.b32.xlu0 %v11202, 32
      %v11340 = vpop.permute.xlu0 %11339
      %11341 = vrot.lane.b32.xlu0 %v11205, 32
      %v11342 = vpop.permute.xlu0 %11341
      %11343 = vrot.lane.b32.xlu0 %v11207, 32
      %v11344 = vpop.permute.xlu0 %11343
      %11345 = vrot.lane.b32.xlu0 %v11210, 32
      %v11346 = vpop.permute.xlu0 %11345
      %11347 = vrot.lane.b32.xlu0 %v11212, 32
      %v11348 = vpop.permute.xlu0 %11347
      %11349 = vrot.lane.b32.xlu0 %v11215, 32
      %v11350 = vpop.permute.xlu0 %11349
      %11351 = vrot.lane.b32.xlu0 %v11217, 32
      %v11352 = vpop.permute.xlu0 %11351
      %11353 = vrot.lane.b32.xlu0 %v11220, 32
      %v11354 = vpop.permute.xlu0 %11353
      %11355 = vrot.lane.b32.xlu0 %v11222, 32
      %v11356 = vpop.permute.xlu0 %11355
      %11357 = vrot.lane.b32.xlu0 %v11225, 32
      %v11358 = vpop.permute.xlu0 %11357
      %11359 = vrot.lane.b32.xlu0 %v11227, 32
      %v11360 = vpop.permute.xlu0 %11359
      %11361 = vrot.lane.b32.xlu0 %v11230, 32
      %v11362 = vpop.permute.xlu0 %11361
      %11363 = vrot.lane.b32.xlu0 %v11232, 32
      %v11364 = vpop.permute.xlu0 %11363
      %11365 = vrot.lane.b32.xlu0 %v11235, 32
      %v11366 = vpop.permute.xlu0 %11365
      %11367 = vrot.lane.b32.xlu0 %v11237, 32
      %v11368 = vpop.permute.xlu0 %11367
      %11369 = vrot.lane.b32.xlu0 %v11240, 32
      %v11370 = vpop.permute.xlu0 %11369
      %11371 = vrot.lane.b32.xlu0 %v11242, 32
      %v11372 = vpop.permute.xlu0 %11371
      %11373 = vrot.lane.b32.xlu0 %v11245, 32
      %v11374 = vpop.permute.xlu0 %11373
      %11375 = vrot.lane.b32.xlu0 %v11247, 32
      %v11376 = vpop.permute.xlu0 %11375
      %11377 = vrot.lane.b32.xlu0 %v11250, 32
      %v11378 = vpop.permute.xlu0 %11377
      %11379 = vrot.lane.b32.xlu0 %v11252, 32
      %v11380 = vpop.permute.xlu0 %11379
      %v11509 = vunpack.c.l.b16 %v8053
      %v11510 = vunpack.c.l.b16 %v8054
      %v11511 = vunpack.c.l.b16 %v8055
      %v11512 = vunpack.c.l.b16 %v8056
      %v11513 = vunpack.c.l.b16 %v8057
      %v11514 = vunpack.c.l.b16 %v8058
      %v11515 = vunpack.c.l.b16 %v8059
      %v11516 = vunpack.c.l.b16 %v8060
      %v11517 = vunpack.c.l.b16 %v8061
      %v11518 = vunpack.c.l.b16 %v8062
      %v11519 = vunpack.c.l.b16 %v8063
      %v11520 = vunpack.c.l.b16 %v8064
      %v11521 = vunpack.c.l.b16 %v8065
      %v11522 = vunpack.c.l.b16 %v8066
      %v11523 = vunpack.c.l.b16 %v8067
      %v11524 = vunpack.c.l.b16 %v8068
      %v11525 = vunpack.c.l.b16 %v8069
      %v11526 = vunpack.c.l.b16 %v8070
      %v11527 = vunpack.c.l.b16 %v8071
      %v11528 = vunpack.c.l.b16 %v8072
      %v11529 = vunpack.c.l.b16 %v8073
      %v11530 = vunpack.c.l.b16 %v8074
      %v11531 = vunpack.c.l.b16 %v8075
      %v11532 = vunpack.c.l.b16 %v8076
      %v11533 = vunpack.c.l.b16 %v8077
      %v11534 = vunpack.c.l.b16 %v8078
      %v11535 = vunpack.c.l.b16 %v8079
      %v11536 = vunpack.c.l.b16 %v8080
      %v11537 = vunpack.c.l.b16 %v8081
      %v11538 = vunpack.c.l.b16 %v8082
      %v11539 = vunpack.c.l.b16 %v8083
      %v11540 = vunpack.c.l.b16 %v8084
      %v11541 = vunpack.c.l.b16 %v8085
      %v11542 = vunpack.c.l.b16 %v8086
      %v11543 = vunpack.c.l.b16 %v8087
      %v11544 = vunpack.c.l.b16 %v8088
      %v11545 = vunpack.c.l.b16 %v8089
      %v11546 = vunpack.c.l.b16 %v8090
      %v11547 = vunpack.c.l.b16 %v8091
      %v11548 = vunpack.c.l.b16 %v8092
      %v11549 = vunpack.c.l.b16 %v8093
      %v11550 = vunpack.c.l.b16 %v8094
      %v11551 = vunpack.c.l.b16 %v8095
      %v11552 = vunpack.c.l.b16 %v8096
      %v11553 = vunpack.c.l.b16 %v8097
      %v11554 = vunpack.c.l.b16 %v8098
      %v11555 = vunpack.c.l.b16 %v8099
      %v11556 = vunpack.c.l.b16 %v8100
      %v11557 = vunpack.c.l.b16 %v8101
      %v11558 = vunpack.c.l.b16 %v8102
      %v11559 = vunpack.c.l.b16 %v8103
      %v11560 = vunpack.c.l.b16 %v8104
      %v11561 = vunpack.c.l.b16 %v8105
      %v11562 = vunpack.c.l.b16 %v8106
      %v11563 = vunpack.c.l.b16 %v8107
      %v11564 = vunpack.c.l.b16 %v8108
      %v11565 = vunpack.c.l.b16 %v8109
      %v11566 = vunpack.c.l.b16 %v8110
      %v11567 = vunpack.c.l.b16 %v8111
      %v11568 = vunpack.c.l.b16 %v8112
      %v11569 = vunpack.c.l.b16 %v8113
      %v11570 = vunpack.c.l.b16 %v8114
      %v11571 = vunpack.c.l.b16 %v8115
      %v11572 = vunpack.c.l.b16 %v8116
      %v11573 = vunpack.c.l.b16 %v8117
      %v11574 = vunpack.c.l.b16 %v8118
      %v11575 = vunpack.c.l.b16 %v8119
      %v11576 = vunpack.c.l.b16 %v8120
      %v11577 = vunpack.c.l.b16 %v8121
      %v11578 = vunpack.c.l.b16 %v8122
      %v11579 = vunpack.c.l.b16 %v8123
      %v11580 = vunpack.c.l.b16 %v8124
      %v11581 = vunpack.c.l.b16 %v8125
      %v11582 = vunpack.c.l.b16 %v8126
      %v11583 = vunpack.c.l.b16 %v8127
      %v11584 = vunpack.c.l.b16 %v8128
      %v11585 = vunpack.c.l.b16 %v8129
      %v11586 = vunpack.c.l.b16 %v8130
      %v11587 = vunpack.c.l.b16 %v8131
      %v11588 = vunpack.c.l.b16 %v8132
      %v11589 = vunpack.c.l.b16 %v8133
      %v11590 = vunpack.c.l.b16 %v8134
      %v11591 = vunpack.c.l.b16 %v8135
      %v11592 = vunpack.c.l.b16 %v8136
      %v11593 = vunpack.c.l.b16 %v8137
      %v11594 = vunpack.c.l.b16 %v8138
      %v11595 = vunpack.c.l.b16 %v8139
      %v11596 = vunpack.c.l.b16 %v8140
      %v11597 = vunpack.c.l.b16 %v8141
      %v11598 = vunpack.c.l.b16 %v8142
      %v11599 = vunpack.c.l.b16 %v8143
      %v11600 = vunpack.c.l.b16 %v8144
      %v11601 = vunpack.c.l.b16 %v8145
      %v11602 = vunpack.c.l.b16 %v8146
      %v11603 = vunpack.c.l.b16 %v8147
      %v11604 = vunpack.c.l.b16 %v8148
      %v11605 = vunpack.c.l.b16 %v8149
      %v11606 = vunpack.c.l.b16 %v8150
      %v11607 = vunpack.c.l.b16 %v8151
      %v11608 = vunpack.c.l.b16 %v8152
      %v11609 = vunpack.c.l.b16 %v8153
      %v11610 = vunpack.c.l.b16 %v8154
      %v11611 = vunpack.c.l.b16 %v8155
      %v11612 = vunpack.c.l.b16 %v8156
      %v11613 = vunpack.c.l.b16 %v8157
      %v11614 = vunpack.c.l.b16 %v8158
      %v11615 = vunpack.c.l.b16 %v8159
      %v11616 = vunpack.c.l.b16 %v8160
      %v11617 = vunpack.c.l.b16 %v8161
      %v11618 = vunpack.c.l.b16 %v8162
      %v11619 = vunpack.c.l.b16 %v8163
      %v11620 = vunpack.c.l.b16 %v8164
      %v11621 = vunpack.c.l.b16 %v8165
      %v11622 = vunpack.c.l.b16 %v8166
      %v11623 = vunpack.c.l.b16 %v8167
      %v11624 = vunpack.c.l.b16 %v8168
      %v11625 = vunpack.c.l.b16 %v8169
      %v11626 = vunpack.c.l.b16 %v8170
      %v11627 = vunpack.c.l.b16 %v8171
      %v11628 = vunpack.c.l.b16 %v8172
      %v11629 = vunpack.c.l.b16 %v8173
      %v11630 = vunpack.c.l.b16 %v8174
      %v11631 = vunpack.c.l.b16 %v8175
      %v11632 = vunpack.c.l.b16 %v8176
      %v11633 = vunpack.c.l.b16 %v8177
      %v11634 = vunpack.c.l.b16 %v8178
      %v11635 = vunpack.c.l.b16 %v8179
      %v11636 = vunpack.c.l.b16 %v8180
      %v11637 = vpack.c.b16 %v11510, %v11509
      %v11638 = vpack.c.b16 %v11512, %v11511
      %v11639 = vpack.c.b16 %v11514, %v11513
      %v11640 = vpack.c.b16 %v11516, %v11515
      %v11641 = vpack.c.b16 %v11518, %v11517
      %v11642 = vpack.c.b16 %v11520, %v11519
      %v11643 = vpack.c.b16 %v11522, %v11521
      %v11644 = vpack.c.b16 %v11524, %v11523
      %v11645 = vpack.c.b16 %v11526, %v11525
      %v11646 = vpack.c.b16 %v11528, %v11527
      %v11647 = vpack.c.b16 %v11530, %v11529
      %v11648 = vpack.c.b16 %v11532, %v11531
      %v11649 = vpack.c.b16 %v11534, %v11533
      %v11650 = vpack.c.b16 %v11536, %v11535
      %v11651 = vpack.c.b16 %v11538, %v11537
      %v11652 = vpack.c.b16 %v11540, %v11539
      %v11653 = vpack.c.b16 %v11542, %v11541
      %v11654 = vpack.c.b16 %v11544, %v11543
      %v11655 = vpack.c.b16 %v11546, %v11545
      %v11656 = vpack.c.b16 %v11548, %v11547
      %v11657 = vpack.c.b16 %v11550, %v11549
      %v11658 = vpack.c.b16 %v11552, %v11551
      %v11659 = vpack.c.b16 %v11554, %v11553
      %v11660 = vpack.c.b16 %v11556, %v11555
      %v11661 = vpack.c.b16 %v11558, %v11557
      %v11662 = vpack.c.b16 %v11560, %v11559
      %v11663 = vpack.c.b16 %v11562, %v11561
      %v11664 = vpack.c.b16 %v11564, %v11563
      %v11665 = vpack.c.b16 %v11566, %v11565
      %v11666 = vpack.c.b16 %v11568, %v11567
      %v11667 = vpack.c.b16 %v11570, %v11569
      %v11668 = vpack.c.b16 %v11572, %v11571
      %v11669 = vpack.c.b16 %v11574, %v11573
      %v11670 = vpack.c.b16 %v11576, %v11575
      %v11671 = vpack.c.b16 %v11578, %v11577
      %v11672 = vpack.c.b16 %v11580, %v11579
      %v11673 = vpack.c.b16 %v11582, %v11581
      %v11674 = vpack.c.b16 %v11584, %v11583
      %v11675 = vpack.c.b16 %v11586, %v11585
      %v11676 = vpack.c.b16 %v11588, %v11587
      %v11677 = vpack.c.b16 %v11590, %v11589
      %v11678 = vpack.c.b16 %v11592, %v11591
      %v11679 = vpack.c.b16 %v11594, %v11593
      %v11680 = vpack.c.b16 %v11596, %v11595
      %v11681 = vpack.c.b16 %v11598, %v11597
      %v11682 = vpack.c.b16 %v11600, %v11599
      %v11683 = vpack.c.b16 %v11602, %v11601
      %v11684 = vpack.c.b16 %v11604, %v11603
      %v11685 = vpack.c.b16 %v11606, %v11605
      %v11686 = vpack.c.b16 %v11608, %v11607
      %v11687 = vpack.c.b16 %v11610, %v11609
      %v11688 = vpack.c.b16 %v11612, %v11611
      %v11689 = vpack.c.b16 %v11614, %v11613
      %v11690 = vpack.c.b16 %v11616, %v11615
      %v11691 = vpack.c.b16 %v11618, %v11617
      %v11692 = vpack.c.b16 %v11620, %v11619
      %v11693 = vpack.c.b16 %v11622, %v11621
      %v11694 = vpack.c.b16 %v11624, %v11623
      %v11695 = vpack.c.b16 %v11626, %v11625
      %v11696 = vpack.c.b16 %v11628, %v11627
      %v11697 = vpack.c.b16 %v11630, %v11629
      %v11698 = vpack.c.b16 %v11632, %v11631
      %v11699 = vpack.c.b16 %v11634, %v11633
      %v11700 = vpack.c.b16 %v11636, %v11635
      %11701 = vrot.lane.b32.xlu0 %v11637, 64
      %v11702 = vpop.permute.xlu0 %11701
      %11703 = vrot.lane.b32.xlu0 %v11638, 64
      %v11704 = vpop.permute.xlu0 %11703
      %11705 = vrot.lane.b32.xlu0 %v11639, 64
      %v11706 = vpop.permute.xlu0 %11705
      %11707 = vrot.lane.b32.xlu0 %v11640, 64
      %v11708 = vpop.permute.xlu0 %11707
      %11709 = vrot.lane.b32.xlu0 %v11641, 64
      %v11710 = vpop.permute.xlu0 %11709
      %11711 = vrot.lane.b32.xlu0 %v11642, 64
      %v11712 = vpop.permute.xlu0 %11711
      %11713 = vrot.lane.b32.xlu0 %v11643, 64
      %v11714 = vpop.permute.xlu0 %11713
      %11715 = vrot.lane.b32.xlu0 %v11644, 64
      %v11716 = vpop.permute.xlu0 %11715
      %11717 = vrot.lane.b32.xlu0 %v11645, 64
      %v11718 = vpop.permute.xlu0 %11717
      %11719 = vrot.lane.b32.xlu0 %v11646, 64
      %v11720 = vpop.permute.xlu0 %11719
      %11721 = vrot.lane.b32.xlu0 %v11647, 64
      %v11722 = vpop.permute.xlu0 %11721
      %11723 = vrot.lane.b32.xlu0 %v11648, 64
      %v11724 = vpop.permute.xlu0 %11723
      %11725 = vrot.lane.b32.xlu0 %v11649, 64
      %v11726 = vpop.permute.xlu0 %11725
      %11727 = vrot.lane.b32.xlu0 %v11650, 64
      %v11728 = vpop.permute.xlu0 %11727
      %11729 = vrot.lane.b32.xlu0 %v11651, 64
      %v11730 = vpop.permute.xlu0 %11729
      %11731 = vrot.lane.b32.xlu0 %v11652, 64
      %v11732 = vpop.permute.xlu0 %11731
      %11733 = vrot.lane.b32.xlu0 %v11653, 64
      %v11734 = vpop.permute.xlu0 %11733
      %11735 = vrot.lane.b32.xlu0 %v11654, 64
      %v11736 = vpop.permute.xlu0 %11735
      %11737 = vrot.lane.b32.xlu0 %v11655, 64
      %v11738 = vpop.permute.xlu0 %11737
      %11739 = vrot.lane.b32.xlu0 %v11656, 64
      %v11740 = vpop.permute.xlu0 %11739
      %11741 = vrot.lane.b32.xlu0 %v11657, 64
      %v11742 = vpop.permute.xlu0 %11741
      %11743 = vrot.lane.b32.xlu0 %v11658, 64
      %v11744 = vpop.permute.xlu0 %11743
      %11745 = vrot.lane.b32.xlu0 %v11659, 64
      %v11746 = vpop.permute.xlu0 %11745
      %11747 = vrot.lane.b32.xlu0 %v11660, 64
      %v11748 = vpop.permute.xlu0 %11747
      %11749 = vrot.lane.b32.xlu0 %v11661, 64
      %v11750 = vpop.permute.xlu0 %11749
      %11751 = vrot.lane.b32.xlu0 %v11662, 64
      %v11752 = vpop.permute.xlu0 %11751
      %11753 = vrot.lane.b32.xlu0 %v11663, 64
      %v11754 = vpop.permute.xlu0 %11753
      %11755 = vrot.lane.b32.xlu0 %v11664, 64
      %v11756 = vpop.permute.xlu0 %11755
      %11757 = vrot.lane.b32.xlu0 %v11665, 64
      %v11758 = vpop.permute.xlu0 %11757
      %11759 = vrot.lane.b32.xlu0 %v11666, 64
      %v11760 = vpop.permute.xlu0 %11759
      %11761 = vrot.lane.b32.xlu0 %v11667, 64
      %v11762 = vpop.permute.xlu0 %11761
      %11763 = vrot.lane.b32.xlu0 %v11668, 64
      %v11764 = vpop.permute.xlu0 %11763
      %11765 = vrot.lane.b32.xlu0 %v11669, 64
      %v11766 = vpop.permute.xlu0 %11765
      %11767 = vrot.lane.b32.xlu0 %v11670, 64
      %v11768 = vpop.permute.xlu0 %11767
      %11769 = vrot.lane.b32.xlu0 %v11671, 64
      %v11770 = vpop.permute.xlu0 %11769
      %11771 = vrot.lane.b32.xlu0 %v11672, 64
      %v11772 = vpop.permute.xlu0 %11771
      %11773 = vrot.lane.b32.xlu0 %v11673, 64
      %v11774 = vpop.permute.xlu0 %11773
      %11775 = vrot.lane.b32.xlu0 %v11674, 64
      %v11776 = vpop.permute.xlu0 %11775
      %11777 = vrot.lane.b32.xlu0 %v11675, 64
      %v11778 = vpop.permute.xlu0 %11777
      %11779 = vrot.lane.b32.xlu0 %v11676, 64
      %v11780 = vpop.permute.xlu0 %11779
      %11781 = vrot.lane.b32.xlu0 %v11677, 64
      %v11782 = vpop.permute.xlu0 %11781
      %11783 = vrot.lane.b32.xlu0 %v11678, 64
      %v11784 = vpop.permute.xlu0 %11783
      %11785 = vrot.lane.b32.xlu0 %v11679, 64
      %v11786 = vpop.permute.xlu0 %11785
      %11787 = vrot.lane.b32.xlu0 %v11680, 64
      %v11788 = vpop.permute.xlu0 %11787
      %11789 = vrot.lane.b32.xlu0 %v11681, 64
      %v11790 = vpop.permute.xlu0 %11789
      %11791 = vrot.lane.b32.xlu0 %v11682, 64
      %v11792 = vpop.permute.xlu0 %11791
      %11793 = vrot.lane.b32.xlu0 %v11683, 64
      %v11794 = vpop.permute.xlu0 %11793
      %11795 = vrot.lane.b32.xlu0 %v11684, 64
      %v11796 = vpop.permute.xlu0 %11795
      %11797 = vrot.lane.b32.xlu0 %v11685, 64
      %v11798 = vpop.permute.xlu0 %11797
      %11799 = vrot.lane.b32.xlu0 %v11686, 64
      %v11800 = vpop.permute.xlu0 %11799
      %11801 = vrot.lane.b32.xlu0 %v11687, 64
      %v11802 = vpop.permute.xlu0 %11801
      %11803 = vrot.lane.b32.xlu0 %v11688, 64
      %v11804 = vpop.permute.xlu0 %11803
      %11805 = vrot.lane.b32.xlu0 %v11689, 64
      %v11806 = vpop.permute.xlu0 %11805
      %11807 = vrot.lane.b32.xlu0 %v11690, 64
      %v11808 = vpop.permute.xlu0 %11807
      %11809 = vrot.lane.b32.xlu0 %v11691, 64
      %v11810 = vpop.permute.xlu0 %11809
      %11811 = vrot.lane.b32.xlu0 %v11692, 64
      %v11812 = vpop.permute.xlu0 %11811
      %11813 = vrot.lane.b32.xlu0 %v11693, 64
      %v11814 = vpop.permute.xlu0 %11813
      %11815 = vrot.lane.b32.xlu0 %v11694, 64
      %v11816 = vpop.permute.xlu0 %11815
      %11817 = vrot.lane.b32.xlu0 %v11695, 64
      %v11818 = vpop.permute.xlu0 %11817
      %11819 = vrot.lane.b32.xlu0 %v11696, 64
      %v11820 = vpop.permute.xlu0 %11819
      %11821 = vrot.lane.b32.xlu0 %v11697, 64
      %v11822 = vpop.permute.xlu0 %11821
      %11823 = vrot.lane.b32.xlu0 %v11698, 64
      %v11824 = vpop.permute.xlu0 %11823
      %11825 = vrot.lane.b32.xlu0 %v11699, 64
      %v11826 = vpop.permute.xlu0 %11825
      %11827 = vrot.lane.b32.xlu0 %v11700, 64
      %v11828 = vpop.permute.xlu0 %11827
      %v11861 = vunpack.c.l.b16 %v8181
      %v11862 = vunpack.c.l.b16 %v8182
      %v11863 = vunpack.c.l.b16 %v8183
      %v11864 = vunpack.c.l.b16 %v8184
      %v11865 = vunpack.c.l.b16 %v8185
      %v11866 = vunpack.c.l.b16 %v8186
      %v11867 = vunpack.c.l.b16 %v8187
      %v11868 = vunpack.c.l.b16 %v8188
      %v11869 = vunpack.c.l.b16 %v8189
      %v11870 = vunpack.c.l.b16 %v8190
      %v11871 = vunpack.c.l.b16 %v8191
      %v11872 = vunpack.c.l.b16 %v8192
      %v11873 = vunpack.c.l.b16 %v8193
      %v11874 = vunpack.c.l.b16 %v8194
      %v11875 = vunpack.c.l.b16 %v8195
      %v11876 = vunpack.c.l.b16 %v8196
      %v11877 = vunpack.c.l.b16 %v8197
      %v11878 = vunpack.c.l.b16 %v8198
      %v11879 = vunpack.c.l.b16 %v8199
      %v11880 = vunpack.c.l.b16 %v8200
      %v11881 = vunpack.c.l.b16 %v8201
      %v11882 = vunpack.c.l.b16 %v8202
      %v11883 = vunpack.c.l.b16 %v8203
      %v11884 = vunpack.c.l.b16 %v8204
      %v11885 = vunpack.c.l.b16 %v8205
      %v11886 = vunpack.c.l.b16 %v8206
      %v11887 = vunpack.c.l.b16 %v8207
      %v11888 = vunpack.c.l.b16 %v8208
      %v11889 = vunpack.c.l.b16 %v8209
      %v11890 = vunpack.c.l.b16 %v8210
      %v11891 = vunpack.c.l.b16 %v8211
      %v11892 = vunpack.c.l.b16 %v8212
      %v11893 = vpack.c.b16 %v11861, %v11861
      %v11894 = vpack.c.b16 %v11862, %v11862
      %v11895 = vpack.c.b16 %v11863, %v11863
      %v11896 = vpack.c.b16 %v11864, %v11864
      %v11897 = vpack.c.b16 %v11865, %v11865
      %v11898 = vpack.c.b16 %v11866, %v11866
      %v11899 = vpack.c.b16 %v11867, %v11867
      %v11900 = vpack.c.b16 %v11868, %v11868
      %v11901 = vpack.c.b16 %v11869, %v11869
      %v11902 = vpack.c.b16 %v11870, %v11870
      %v11903 = vpack.c.b16 %v11871, %v11871
      %v11904 = vpack.c.b16 %v11872, %v11872
      %v11905 = vpack.c.b16 %v11873, %v11873
      %v11906 = vpack.c.b16 %v11874, %v11874
      %v11907 = vpack.c.b16 %v11875, %v11875
      %v11908 = vpack.c.b16 %v11876, %v11876
      %v11909 = vpack.c.b16 %v11877, %v11877
      %v11910 = vpack.c.b16 %v11878, %v11878
      %v11911 = vpack.c.b16 %v11879, %v11879
      %v11912 = vpack.c.b16 %v11880, %v11880
      %v11913 = vpack.c.b16 %v11881, %v11881
      %v11914 = vpack.c.b16 %v11882, %v11882
      %v11915 = vpack.c.b16 %v11883, %v11883
      %v11916 = vpack.c.b16 %v11884, %v11884
      %v11917 = vpack.c.b16 %v11885, %v11885
      %v11918 = vpack.c.b16 %v11886, %v11886
      %v11919 = vpack.c.b16 %v11887, %v11887
      %v11920 = vpack.c.b16 %v11888, %v11888
      %v11921 = vpack.c.b16 %v11889, %v11889
      %v11922 = vpack.c.b16 %v11890, %v11890
      %v11923 = vpack.c.b16 %v11891, %v11891
      %v11924 = vpack.c.b16 %v11892, %v11892
      %v11926 = vshrl.u32 %v11637, 16
      %v11928 = vshll.u32 %v11637, 16
      %v11930 = vrot.slane %v11928, 1
      %v11931 = vor.u32 %v11926, %v11930
      %v11933 = vshll.u32 %v11638, 16
      %v11935 = vrot.slane %v11933, 1
      %v11936 = vsel %vm2607, %v11931, %v11935
      %v11937 = vshrl.u32 %v11638, 16
      %v11939 = vor.u32 %v11937, %v11935
      %v11941 = vshll.u32 %v11893, 16
      %v11943 = vrot.slane %v11941, 1
      %v11944 = vsel %vm2607, %v11939, %v11943
      %v11946 = vshrl.u32 %v11639, 16
      %v11948 = vshll.u32 %v11639, 16
      %v11950 = vrot.slane %v11948, 1
      %v11951 = vor.u32 %v11946, %v11950
      %v11953 = vshll.u32 %v11640, 16
      %v11955 = vrot.slane %v11953, 1
      %v11956 = vsel %vm2607, %v11951, %v11955
      %v11957 = vshrl.u32 %v11640, 16
      %v11959 = vor.u32 %v11957, %v11955
      %v11961 = vshll.u32 %v11894, 16
      %v11963 = vrot.slane %v11961, 1
      %v11964 = vsel %vm2607, %v11959, %v11963
      %v11966 = vshrl.u32 %v11641, 16
      %v11968 = vshll.u32 %v11641, 16
      %v11970 = vrot.slane %v11968, 1
      %v11971 = vor.u32 %v11966, %v11970
      %v11973 = vshll.u32 %v11642, 16
      %v11975 = vrot.slane %v11973, 1
      %v11976 = vsel %vm2607, %v11971, %v11975
      %v11977 = vshrl.u32 %v11642, 16
      %v11979 = vor.u32 %v11977, %v11975
      %v11981 = vshll.u32 %v11895, 16
      %v11983 = vrot.slane %v11981, 1
      %v11984 = vsel %vm2607, %v11979, %v11983
      %v11986 = vshrl.u32 %v11643, 16
      %v11988 = vshll.u32 %v11643, 16
      %v11990 = vrot.slane %v11988, 1
      %v11991 = vor.u32 %v11986, %v11990
      %v11993 = vshll.u32 %v11644, 16
      %v11995 = vrot.slane %v11993, 1
      %v11996 = vsel %vm2607, %v11991, %v11995
      %v11997 = vshrl.u32 %v11644, 16
      %v11999 = vor.u32 %v11997, %v11995
      %v12001 = vshll.u32 %v11896, 16
      %v12003 = vrot.slane %v12001, 1
      %v12004 = vsel %vm2607, %v11999, %v12003
      %v12006 = vshrl.u32 %v11645, 16
      %v12008 = vshll.u32 %v11645, 16
      %v12010 = vrot.slane %v12008, 1
      %v12011 = vor.u32 %v12006, %v12010
      %v12013 = vshll.u32 %v11646, 16
      %v12015 = vrot.slane %v12013, 1
      %v12016 = vsel %vm2607, %v12011, %v12015
      %v12017 = vshrl.u32 %v11646, 16
      %v12019 = vor.u32 %v12017, %v12015
      %v12021 = vshll.u32 %v11897, 16
      %v12023 = vrot.slane %v12021, 1
      %v12024 = vsel %vm2607, %v12019, %v12023
      %v12026 = vshrl.u32 %v11647, 16
      %v12028 = vshll.u32 %v11647, 16
      %v12030 = vrot.slane %v12028, 1
      %v12031 = vor.u32 %v12026, %v12030
      %v12033 = vshll.u32 %v11648, 16
      %v12035 = vrot.slane %v12033, 1
      %v12036 = vsel %vm2607, %v12031, %v12035
      %v12037 = vshrl.u32 %v11648, 16
      %v12039 = vor.u32 %v12037, %v12035
      %v12041 = vshll.u32 %v11898, 16
      %v12043 = vrot.slane %v12041, 1
      %v12044 = vsel %vm2607, %v12039, %v12043
      %v12046 = vshrl.u32 %v11649, 16
      %v12048 = vshll.u32 %v11649, 16
      %v12050 = vrot.slane %v12048, 1
      %v12051 = vor.u32 %v12046, %v12050
      %v12053 = vshll.u32 %v11650, 16
      %v12055 = vrot.slane %v12053, 1
      %v12056 = vsel %vm2607, %v12051, %v12055
      %v12057 = vshrl.u32 %v11650, 16
      %v12059 = vor.u32 %v12057, %v12055
      %v12061 = vshll.u32 %v11899, 16
      %v12063 = vrot.slane %v12061, 1
      %v12064 = vsel %vm2607, %v12059, %v12063
      %v12066 = vshrl.u32 %v11651, 16
      %v12068 = vshll.u32 %v11651, 16
      %v12070 = vrot.slane %v12068, 1
      %v12071 = vor.u32 %v12066, %v12070
      %v12073 = vshll.u32 %v11652, 16
      %v12075 = vrot.slane %v12073, 1
      %v12076 = vsel %vm2607, %v12071, %v12075
      %v12077 = vshrl.u32 %v11652, 16
      %v12079 = vor.u32 %v12077, %v12075
      %v12081 = vshll.u32 %v11900, 16
      %v12083 = vrot.slane %v12081, 1
      %v12084 = vsel %vm2607, %v12079, %v12083
      %v12086 = vshrl.u32 %v11653, 16
      %v12088 = vshll.u32 %v11653, 16
      %v12090 = vrot.slane %v12088, 1
      %v12091 = vor.u32 %v12086, %v12090
      %v12093 = vshll.u32 %v11654, 16
      %v12095 = vrot.slane %v12093, 1
      %v12096 = vsel %vm2607, %v12091, %v12095
      %v12097 = vshrl.u32 %v11654, 16
      %v12099 = vor.u32 %v12097, %v12095
      %v12101 = vshll.u32 %v11901, 16
      %v12103 = vrot.slane %v12101, 1
      %v12104 = vsel %vm2607, %v12099, %v12103
      %v12106 = vshrl.u32 %v11655, 16
      %v12108 = vshll.u32 %v11655, 16
      %v12110 = vrot.slane %v12108, 1
      %v12111 = vor.u32 %v12106, %v12110
      %v12113 = vshll.u32 %v11656, 16
      %v12115 = vrot.slane %v12113, 1
      %v12116 = vsel %vm2607, %v12111, %v12115
      %v12117 = vshrl.u32 %v11656, 16
      %v12119 = vor.u32 %v12117, %v12115
      %v12121 = vshll.u32 %v11902, 16
      %v12123 = vrot.slane %v12121, 1
      %v12124 = vsel %vm2607, %v12119, %v12123
      %v12126 = vshrl.u32 %v11657, 16
      %v12128 = vshll.u32 %v11657, 16
      %v12130 = vrot.slane %v12128, 1
      %v12131 = vor.u32 %v12126, %v12130
      %v12133 = vshll.u32 %v11658, 16
      %v12135 = vrot.slane %v12133, 1
      %v12136 = vsel %vm2607, %v12131, %v12135
      %v12137 = vshrl.u32 %v11658, 16
      %v12139 = vor.u32 %v12137, %v12135
      %v12141 = vshll.u32 %v11903, 16
      %v12143 = vrot.slane %v12141, 1
      %v12144 = vsel %vm2607, %v12139, %v12143
      %v12146 = vshrl.u32 %v11659, 16
      %v12148 = vshll.u32 %v11659, 16
      %v12150 = vrot.slane %v12148, 1
      %v12151 = vor.u32 %v12146, %v12150
      %v12153 = vshll.u32 %v11660, 16
      %v12155 = vrot.slane %v12153, 1
      %v12156 = vsel %vm2607, %v12151, %v12155
      %v12157 = vshrl.u32 %v11660, 16
      %v12159 = vor.u32 %v12157, %v12155
      %v12161 = vshll.u32 %v11904, 16
      %v12163 = vrot.slane %v12161, 1
      %v12164 = vsel %vm2607, %v12159, %v12163
      %v12166 = vshrl.u32 %v11661, 16
      %v12168 = vshll.u32 %v11661, 16
      %v12170 = vrot.slane %v12168, 1
      %v12171 = vor.u32 %v12166, %v12170
      %v12173 = vshll.u32 %v11662, 16
      %v12175 = vrot.slane %v12173, 1
      %v12176 = vsel %vm2607, %v12171, %v12175
      %v12177 = vshrl.u32 %v11662, 16
      %v12179 = vor.u32 %v12177, %v12175
      %v12181 = vshll.u32 %v11905, 16
      %v12183 = vrot.slane %v12181, 1
      %v12184 = vsel %vm2607, %v12179, %v12183
      %v12186 = vshrl.u32 %v11663, 16
      %v12188 = vshll.u32 %v11663, 16
      %v12190 = vrot.slane %v12188, 1
      %v12191 = vor.u32 %v12186, %v12190
      %v12193 = vshll.u32 %v11664, 16
      %v12195 = vrot.slane %v12193, 1
      %v12196 = vsel %vm2607, %v12191, %v12195
      %v12197 = vshrl.u32 %v11664, 16
      %v12199 = vor.u32 %v12197, %v12195
      %v12201 = vshll.u32 %v11906, 16
      %v12203 = vrot.slane %v12201, 1
      %v12204 = vsel %vm2607, %v12199, %v12203
      %v12206 = vshrl.u32 %v11665, 16
      %v12208 = vshll.u32 %v11665, 16
      %v12210 = vrot.slane %v12208, 1
      %v12211 = vor.u32 %v12206, %v12210
      %v12213 = vshll.u32 %v11666, 16
      %v12215 = vrot.slane %v12213, 1
      %v12216 = vsel %vm2607, %v12211, %v12215
      %v12217 = vshrl.u32 %v11666, 16
      %v12219 = vor.u32 %v12217, %v12215
      %v12221 = vshll.u32 %v11907, 16
      %v12223 = vrot.slane %v12221, 1
      %v12224 = vsel %vm2607, %v12219, %v12223
      %v12226 = vshrl.u32 %v11667, 16
      %v12228 = vshll.u32 %v11667, 16
      %v12230 = vrot.slane %v12228, 1
      %v12231 = vor.u32 %v12226, %v12230
      %v12233 = vshll.u32 %v11668, 16
      %v12235 = vrot.slane %v12233, 1
      %v12236 = vsel %vm2607, %v12231, %v12235
      %v12237 = vshrl.u32 %v11668, 16
      %v12239 = vor.u32 %v12237, %v12235
      %v12241 = vshll.u32 %v11908, 16
      %v12243 = vrot.slane %v12241, 1
      %v12244 = vsel %vm2607, %v12239, %v12243
      %v12246 = vshrl.u32 %v11669, 16
      %v12248 = vshll.u32 %v11669, 16
      %v12250 = vrot.slane %v12248, 1
      %v12251 = vor.u32 %v12246, %v12250
      %v12253 = vshll.u32 %v11670, 16
      %v12255 = vrot.slane %v12253, 1
      %v12256 = vsel %vm2607, %v12251, %v12255
      %v12257 = vshrl.u32 %v11670, 16
      %v12259 = vor.u32 %v12257, %v12255
      %v12261 = vshll.u32 %v11909, 16
      %v12263 = vrot.slane %v12261, 1
      %v12264 = vsel %vm2607, %v12259, %v12263
      %v12266 = vshrl.u32 %v11671, 16
      %v12268 = vshll.u32 %v11671, 16
      %v12270 = vrot.slane %v12268, 1
      %v12271 = vor.u32 %v12266, %v12270
      %v12273 = vshll.u32 %v11672, 16
      %v12275 = vrot.slane %v12273, 1
      %v12276 = vsel %vm2607, %v12271, %v12275
      %v12277 = vshrl.u32 %v11672, 16
      %v12279 = vor.u32 %v12277, %v12275
      %v12281 = vshll.u32 %v11910, 16
      %v12283 = vrot.slane %v12281, 1
      %v12284 = vsel %vm2607, %v12279, %v12283
      %v12286 = vshrl.u32 %v11673, 16
      %v12288 = vshll.u32 %v11673, 16
      %v12290 = vrot.slane %v12288, 1
      %v12291 = vor.u32 %v12286, %v12290
      %v12293 = vshll.u32 %v11674, 16
      %v12295 = vrot.slane %v12293, 1
      %v12296 = vsel %vm2607, %v12291, %v12295
      %v12297 = vshrl.u32 %v11674, 16
      %v12299 = vor.u32 %v12297, %v12295
      %v12301 = vshll.u32 %v11911, 16
      %v12303 = vrot.slane %v12301, 1
      %v12304 = vsel %vm2607, %v12299, %v12303
      %v12306 = vshrl.u32 %v11675, 16
      %v12308 = vshll.u32 %v11675, 16
      %v12310 = vrot.slane %v12308, 1
      %v12311 = vor.u32 %v12306, %v12310
      %v12313 = vshll.u32 %v11676, 16
      %v12315 = vrot.slane %v12313, 1
      %v12316 = vsel %vm2607, %v12311, %v12315
      %v12317 = vshrl.u32 %v11676, 16
      %v12319 = vor.u32 %v12317, %v12315
      %v12321 = vshll.u32 %v11912, 16
      %v12323 = vrot.slane %v12321, 1
      %v12324 = vsel %vm2607, %v12319, %v12323
      %v12326 = vshrl.u32 %v11677, 16
      %v12328 = vshll.u32 %v11677, 16
      %v12330 = vrot.slane %v12328, 1
      %v12331 = vor.u32 %v12326, %v12330
      %v12333 = vshll.u32 %v11678, 16
      %v12335 = vrot.slane %v12333, 1
      %v12336 = vsel %vm2607, %v12331, %v12335
      %v12337 = vshrl.u32 %v11678, 16
      %v12339 = vor.u32 %v12337, %v12335
      %v12341 = vshll.u32 %v11913, 16
      %v12343 = vrot.slane %v12341, 1
      %v12344 = vsel %vm2607, %v12339, %v12343
      %v12346 = vshrl.u32 %v11679, 16
      %v12348 = vshll.u32 %v11679, 16
      %v12350 = vrot.slane %v12348, 1
      %v12351 = vor.u32 %v12346, %v12350
      %v12353 = vshll.u32 %v11680, 16
      %v12355 = vrot.slane %v12353, 1
      %v12356 = vsel %vm2607, %v12351, %v12355
      %v12357 = vshrl.u32 %v11680, 16
      %v12359 = vor.u32 %v12357, %v12355
      %v12361 = vshll.u32 %v11914, 16
      %v12363 = vrot.slane %v12361, 1
      %v12364 = vsel %vm2607, %v12359, %v12363
      %v12366 = vshrl.u32 %v11681, 16
      %v12368 = vshll.u32 %v11681, 16
      %v12370 = vrot.slane %v12368, 1
      %v12371 = vor.u32 %v12366, %v12370
      %v12373 = vshll.u32 %v11682, 16
      %v12375 = vrot.slane %v12373, 1
      %v12376 = vsel %vm2607, %v12371, %v12375
      %v12377 = vshrl.u32 %v11682, 16
      %v12379 = vor.u32 %v12377, %v12375
      %v12381 = vshll.u32 %v11915, 16
      %v12383 = vrot.slane %v12381, 1
      %v12384 = vsel %vm2607, %v12379, %v12383
      %v12386 = vshrl.u32 %v11683, 16
      %v12388 = vshll.u32 %v11683, 16
      %v12390 = vrot.slane %v12388, 1
      %v12391 = vor.u32 %v12386, %v12390
      %v12393 = vshll.u32 %v11684, 16
      %v12395 = vrot.slane %v12393, 1
      %v12396 = vsel %vm2607, %v12391, %v12395
      %v12397 = vshrl.u32 %v11684, 16
      %v12399 = vor.u32 %v12397, %v12395
      %v12401 = vshll.u32 %v11916, 16
      %v12403 = vrot.slane %v12401, 1
      %v12404 = vsel %vm2607, %v12399, %v12403
      %v12406 = vshrl.u32 %v11685, 16
      %v12408 = vshll.u32 %v11685, 16
      %v12410 = vrot.slane %v12408, 1
      %v12411 = vor.u32 %v12406, %v12410
      %v12413 = vshll.u32 %v11686, 16
      %v12415 = vrot.slane %v12413, 1
      %v12416 = vsel %vm2607, %v12411, %v12415
      %v12417 = vshrl.u32 %v11686, 16
      %v12419 = vor.u32 %v12417, %v12415
      %v12421 = vshll.u32 %v11917, 16
      %v12423 = vrot.slane %v12421, 1
      %v12424 = vsel %vm2607, %v12419, %v12423
      %v12426 = vshrl.u32 %v11687, 16
      %v12428 = vshll.u32 %v11687, 16
      %v12430 = vrot.slane %v12428, 1
      %v12431 = vor.u32 %v12426, %v12430
      %v12433 = vshll.u32 %v11688, 16
      %v12435 = vrot.slane %v12433, 1
      %v12436 = vsel %vm2607, %v12431, %v12435
      %v12437 = vshrl.u32 %v11688, 16
      %v12439 = vor.u32 %v12437, %v12435
      %v12441 = vshll.u32 %v11918, 16
      %v12443 = vrot.slane %v12441, 1
      %v12444 = vsel %vm2607, %v12439, %v12443
      %v12446 = vshrl.u32 %v11689, 16
      %v12448 = vshll.u32 %v11689, 16
      %v12450 = vrot.slane %v12448, 1
      %v12451 = vor.u32 %v12446, %v12450
      %v12453 = vshll.u32 %v11690, 16
      %v12455 = vrot.slane %v12453, 1
      %v12456 = vsel %vm2607, %v12451, %v12455
      %v12457 = vshrl.u32 %v11690, 16
      %v12459 = vor.u32 %v12457, %v12455
      %v12461 = vshll.u32 %v11919, 16
      %v12463 = vrot.slane %v12461, 1
      %v12464 = vsel %vm2607, %v12459, %v12463
      %v12466 = vshrl.u32 %v11691, 16
      %v12468 = vshll.u32 %v11691, 16
      %v12470 = vrot.slane %v12468, 1
      %v12471 = vor.u32 %v12466, %v12470
      %v12473 = vshll.u32 %v11692, 16
      %v12475 = vrot.slane %v12473, 1
      %v12476 = vsel %vm2607, %v12471, %v12475
      %v12477 = vshrl.u32 %v11692, 16
      %v12479 = vor.u32 %v12477, %v12475
      %v12481 = vshll.u32 %v11920, 16
      %v12483 = vrot.slane %v12481, 1
      %v12484 = vsel %vm2607, %v12479, %v12483
      %v12486 = vshrl.u32 %v11693, 16
      %v12488 = vshll.u32 %v11693, 16
      %v12490 = vrot.slane %v12488, 1
      %v12491 = vor.u32 %v12486, %v12490
      %v12493 = vshll.u32 %v11694, 16
      %v12495 = vrot.slane %v12493, 1
      %v12496 = vsel %vm2607, %v12491, %v12495
      %v12497 = vshrl.u32 %v11694, 16
      %v12499 = vor.u32 %v12497, %v12495
      %v12501 = vshll.u32 %v11921, 16
      %v12503 = vrot.slane %v12501, 1
      %v12504 = vsel %vm2607, %v12499, %v12503
      %v12506 = vshrl.u32 %v11695, 16
      %v12508 = vshll.u32 %v11695, 16
      %v12510 = vrot.slane %v12508, 1
      %v12511 = vor.u32 %v12506, %v12510
      %v12513 = vshll.u32 %v11696, 16
      %v12515 = vrot.slane %v12513, 1
      %v12516 = vsel %vm2607, %v12511, %v12515
      %v12517 = vshrl.u32 %v11696, 16
      %v12519 = vor.u32 %v12517, %v12515
      %v12521 = vshll.u32 %v11922, 16
      %v12523 = vrot.slane %v12521, 1
      %v12524 = vsel %vm2607, %v12519, %v12523
      %v12526 = vshrl.u32 %v11697, 16
      %v12528 = vshll.u32 %v11697, 16
      %v12530 = vrot.slane %v12528, 1
      %v12531 = vor.u32 %v12526, %v12530
      %v12533 = vshll.u32 %v11698, 16
      %v12535 = vrot.slane %v12533, 1
      %v12536 = vsel %vm2607, %v12531, %v12535
      %v12537 = vshrl.u32 %v11698, 16
      %v12539 = vor.u32 %v12537, %v12535
      %v12541 = vshll.u32 %v11923, 16
      %v12543 = vrot.slane %v12541, 1
      %v12544 = vsel %vm2607, %v12539, %v12543
      %v12546 = vshrl.u32 %v11699, 16
      %v12548 = vshll.u32 %v11699, 16
      %v12550 = vrot.slane %v12548, 1
      %v12551 = vor.u32 %v12546, %v12550
      %v12553 = vshll.u32 %v11700, 16
      %v12555 = vrot.slane %v12553, 1
      %v12556 = vsel %vm2607, %v12551, %v12555
      %v12557 = vshrl.u32 %v11700, 16
      %v12559 = vor.u32 %v12557, %v12555
      %v12561 = vshll.u32 %v11924, 16
      %v12563 = vrot.slane %v12561, 1
      %v12564 = vsel %vm2607, %v12559, %v12563
      %12565 = vrot.lane.b32.xlu0 %v11936, 96
      %v12566 = vpop.permute.xlu0 %12565
      %12567 = vrot.lane.b32.xlu0 %v11944, 96
      %v12568 = vpop.permute.xlu0 %12567
      %12569 = vrot.lane.b32.xlu0 %v11956, 96
      %v12570 = vpop.permute.xlu0 %12569
      %12571 = vrot.lane.b32.xlu0 %v11964, 96
      %v12572 = vpop.permute.xlu0 %12571
      %12573 = vrot.lane.b32.xlu0 %v11976, 96
      %v12574 = vpop.permute.xlu0 %12573
      %12575 = vrot.lane.b32.xlu0 %v11984, 96
      %v12576 = vpop.permute.xlu0 %12575
      %12577 = vrot.lane.b32.xlu0 %v11996, 96
      %v12578 = vpop.permute.xlu0 %12577
      %12579 = vrot.lane.b32.xlu0 %v12004, 96
      %v12580 = vpop.permute.xlu0 %12579
      %12581 = vrot.lane.b32.xlu0 %v12016, 96
      %v12582 = vpop.permute.xlu0 %12581
      %12583 = vrot.lane.b32.xlu0 %v12024, 96
      %v12584 = vpop.permute.xlu0 %12583
      %12585 = vrot.lane.b32.xlu0 %v12036, 96
      %v12586 = vpop.permute.xlu0 %12585
      %12587 = vrot.lane.b32.xlu0 %v12044, 96
      %v12588 = vpop.permute.xlu0 %12587
      %12589 = vrot.lane.b32.xlu0 %v12056, 96
      %v12590 = vpop.permute.xlu0 %12589
      %12591 = vrot.lane.b32.xlu0 %v12064, 96
      %v12592 = vpop.permute.xlu0 %12591
      %12593 = vrot.lane.b32.xlu0 %v12076, 96
      %v12594 = vpop.permute.xlu0 %12593
      %12595 = vrot.lane.b32.xlu0 %v12084, 96
      %v12596 = vpop.permute.xlu0 %12595
      %12597 = vrot.lane.b32.xlu0 %v12096, 96
      %v12598 = vpop.permute.xlu0 %12597
      %12599 = vrot.lane.b32.xlu0 %v12104, 96
      %v12600 = vpop.permute.xlu0 %12599
      %12601 = vrot.lane.b32.xlu0 %v12116, 96
      %v12602 = vpop.permute.xlu0 %12601
      %12603 = vrot.lane.b32.xlu0 %v12124, 96
      %v12604 = vpop.permute.xlu0 %12603
      %12605 = vrot.lane.b32.xlu0 %v12136, 96
      %v12606 = vpop.permute.xlu0 %12605
      %12607 = vrot.lane.b32.xlu0 %v12144, 96
      %v12608 = vpop.permute.xlu0 %12607
      %12609 = vrot.lane.b32.xlu0 %v12156, 96
      %v12610 = vpop.permute.xlu0 %12609
      %12611 = vrot.lane.b32.xlu0 %v12164, 96
      %v12612 = vpop.permute.xlu0 %12611
      %12613 = vrot.lane.b32.xlu0 %v12176, 96
      %v12614 = vpop.permute.xlu0 %12613
      %12615 = vrot.lane.b32.xlu0 %v12184, 96
      %v12616 = vpop.permute.xlu0 %12615
      %12617 = vrot.lane.b32.xlu0 %v12196, 96
      %v12618 = vpop.permute.xlu0 %12617
      %12619 = vrot.lane.b32.xlu0 %v12204, 96
      %v12620 = vpop.permute.xlu0 %12619
      %12621 = vrot.lane.b32.xlu0 %v12216, 96
      %v12622 = vpop.permute.xlu0 %12621
      %12623 = vrot.lane.b32.xlu0 %v12224, 96
      %v12624 = vpop.permute.xlu0 %12623
      %12625 = vrot.lane.b32.xlu0 %v12236, 96
      %v12626 = vpop.permute.xlu0 %12625
      %12627 = vrot.lane.b32.xlu0 %v12244, 96
      %v12628 = vpop.permute.xlu0 %12627
      %12629 = vrot.lane.b32.xlu0 %v12256, 96
      %v12630 = vpop.permute.xlu0 %12629
      %12631 = vrot.lane.b32.xlu0 %v12264, 96
      %v12632 = vpop.permute.xlu0 %12631
      %12633 = vrot.lane.b32.xlu0 %v12276, 96
      %v12634 = vpop.permute.xlu0 %12633
      %12635 = vrot.lane.b32.xlu0 %v12284, 96
      %v12636 = vpop.permute.xlu0 %12635
      %12637 = vrot.lane.b32.xlu0 %v12296, 96
      %v12638 = vpop.permute.xlu0 %12637
      %12639 = vrot.lane.b32.xlu0 %v12304, 96
      %v12640 = vpop.permute.xlu0 %12639
      %12641 = vrot.lane.b32.xlu0 %v12316, 96
      %v12642 = vpop.permute.xlu0 %12641
      %12643 = vrot.lane.b32.xlu0 %v12324, 96
      %v12644 = vpop.permute.xlu0 %12643
      %12645 = vrot.lane.b32.xlu0 %v12336, 96
      %v12646 = vpop.permute.xlu0 %12645
      %12647 = vrot.lane.b32.xlu0 %v12344, 96
      %v12648 = vpop.permute.xlu0 %12647
      %12649 = vrot.lane.b32.xlu0 %v12356, 96
      %v12650 = vpop.permute.xlu0 %12649
      %12651 = vrot.lane.b32.xlu0 %v12364, 96
      %v12652 = vpop.permute.xlu0 %12651
      %12653 = vrot.lane.b32.xlu0 %v12376, 96
      %v12654 = vpop.permute.xlu0 %12653
      %12655 = vrot.lane.b32.xlu0 %v12384, 96
      %v12656 = vpop.permute.xlu0 %12655
      %12657 = vrot.lane.b32.xlu0 %v12396, 96
      %v12658 = vpop.permute.xlu0 %12657
      %12659 = vrot.lane.b32.xlu0 %v12404, 96
      %v12660 = vpop.permute.xlu0 %12659
      %12661 = vrot.lane.b32.xlu0 %v12416, 96
      %v12662 = vpop.permute.xlu0 %12661
      %12663 = vrot.lane.b32.xlu0 %v12424, 96
      %v12664 = vpop.permute.xlu0 %12663
      %12665 = vrot.lane.b32.xlu0 %v12436, 96
      %v12666 = vpop.permute.xlu0 %12665
      %12667 = vrot.lane.b32.xlu0 %v12444, 96
      %v12668 = vpop.permute.xlu0 %12667
      %12669 = vrot.lane.b32.xlu0 %v12456, 96
      %v12670 = vpop.permute.xlu0 %12669
      %12671 = vrot.lane.b32.xlu0 %v12464, 96
      %v12672 = vpop.permute.xlu0 %12671
      %12673 = vrot.lane.b32.xlu0 %v12476, 96
      %v12674 = vpop.permute.xlu0 %12673
      %12675 = vrot.lane.b32.xlu0 %v12484, 96
      %v12676 = vpop.permute.xlu0 %12675
      %12677 = vrot.lane.b32.xlu0 %v12496, 96
      %v12678 = vpop.permute.xlu0 %12677
      %12679 = vrot.lane.b32.xlu0 %v12504, 96
      %v12680 = vpop.permute.xlu0 %12679
      %12681 = vrot.lane.b32.xlu0 %v12516, 96
      %v12682 = vpop.permute.xlu0 %12681
      %12683 = vrot.lane.b32.xlu0 %v12524, 96
      %v12684 = vpop.permute.xlu0 %12683
      %12685 = vrot.lane.b32.xlu0 %v12536, 96
      %v12686 = vpop.permute.xlu0 %12685
      %12687 = vrot.lane.b32.xlu0 %v12544, 96
      %v12688 = vpop.permute.xlu0 %12687
      %12689 = vrot.lane.b32.xlu0 %v12556, 96
      %v12690 = vpop.permute.xlu0 %12689
      %12691 = vrot.lane.b32.xlu0 %v12564, 96
      %v12692 = vpop.permute.xlu0 %12691
      %v12725 = vunpack.c.l.b16 %v8213
      %v12726 = vunpack.c.l.b16 %v8214
      %v12727 = vunpack.c.l.b16 %v8215
      %v12728 = vunpack.c.l.b16 %v8216
      %v12729 = vunpack.c.l.b16 %v8217
      %v12730 = vunpack.c.l.b16 %v8218
      %v12731 = vunpack.c.l.b16 %v8219
      %v12732 = vunpack.c.l.b16 %v8220
      %v12733 = vunpack.c.l.b16 %v8221
      %v12734 = vunpack.c.l.b16 %v8222
      %v12735 = vunpack.c.l.b16 %v8223
      %v12736 = vunpack.c.l.b16 %v8224
      %v12737 = vunpack.c.l.b16 %v8225
      %v12738 = vunpack.c.l.b16 %v8226
      %v12739 = vunpack.c.l.b16 %v8227
      %v12740 = vunpack.c.l.b16 %v8228
      %v12741 = vunpack.c.l.b16 %v8229
      %v12742 = vunpack.c.l.b16 %v8230
      %v12743 = vunpack.c.l.b16 %v8231
      %v12744 = vunpack.c.l.b16 %v8232
      %v12745 = vunpack.c.l.b16 %v8233
      %v12746 = vunpack.c.l.b16 %v8234
      %v12747 = vunpack.c.l.b16 %v8235
      %v12748 = vunpack.c.l.b16 %v8236
      %v12749 = vunpack.c.l.b16 %v8237
      %v12750 = vunpack.c.l.b16 %v8238
      %v12751 = vunpack.c.l.b16 %v8239
      %v12752 = vunpack.c.l.b16 %v8240
      %v12753 = vunpack.c.l.b16 %v8241
      %v12754 = vunpack.c.l.b16 %v8242
      %v12755 = vunpack.c.l.b16 %v8243
      %v12756 = vunpack.c.l.b16 %v8244
      %v12757 = vpack.c.b16 %v11510, %v12725
      %v12758 = vpack.c.b16 %v11514, %v12726
      %v12759 = vpack.c.b16 %v11518, %v12727
      %v12760 = vpack.c.b16 %v11522, %v12728
      %v12761 = vpack.c.b16 %v11526, %v12729
      %v12762 = vpack.c.b16 %v11530, %v12730
      %v12763 = vpack.c.b16 %v11534, %v12731
      %v12764 = vpack.c.b16 %v11538, %v12732
      %v12765 = vpack.c.b16 %v11542, %v12733
      %v12766 = vpack.c.b16 %v11546, %v12734
      %v12767 = vpack.c.b16 %v11550, %v12735
      %v12768 = vpack.c.b16 %v11554, %v12736
      %v12769 = vpack.c.b16 %v11558, %v12737
      %v12770 = vpack.c.b16 %v11562, %v12738
      %v12771 = vpack.c.b16 %v11566, %v12739
      %v12772 = vpack.c.b16 %v11570, %v12740
      %v12773 = vpack.c.b16 %v11574, %v12741
      %v12774 = vpack.c.b16 %v11578, %v12742
      %v12775 = vpack.c.b16 %v11582, %v12743
      %v12776 = vpack.c.b16 %v11586, %v12744
      %v12777 = vpack.c.b16 %v11590, %v12745
      %v12778 = vpack.c.b16 %v11594, %v12746
      %v12779 = vpack.c.b16 %v11598, %v12747
      %v12780 = vpack.c.b16 %v11602, %v12748
      %v12781 = vpack.c.b16 %v11606, %v12749
      %v12782 = vpack.c.b16 %v11610, %v12750
      %v12783 = vpack.c.b16 %v11614, %v12751
      %v12784 = vpack.c.b16 %v11618, %v12752
      %v12785 = vpack.c.b16 %v11622, %v12753
      %v12786 = vpack.c.b16 %v11626, %v12754
      %v12787 = vpack.c.b16 %v11630, %v12755
      %v12788 = vpack.c.b16 %v11634, %v12756
      %v12789 = vrot.slane %v12757, 1
      %v12790 = vrot.slane %v11638, 1
      %v12791 = vsel %vm2562, %v12789, %v12790
      %v12792 = vrot.slane %v11893, 1
      %v12793 = vsel %vm2562, %v12790, %v12792
      %v12794 = vrot.slane %v12758, 1
      %v12795 = vrot.slane %v11640, 1
      %v12796 = vsel %vm2562, %v12794, %v12795
      %v12797 = vrot.slane %v11894, 1
      %v12798 = vsel %vm2562, %v12795, %v12797
      %v12799 = vrot.slane %v12759, 1
      %v12800 = vrot.slane %v11642, 1
      %v12801 = vsel %vm2562, %v12799, %v12800
      %v12802 = vrot.slane %v11895, 1
      %v12803 = vsel %vm2562, %v12800, %v12802
      %v12804 = vrot.slane %v12760, 1
      %v12805 = vrot.slane %v11644, 1
      %v12806 = vsel %vm2562, %v12804, %v12805
      %v12807 = vrot.slane %v11896, 1
      %v12808 = vsel %vm2562, %v12805, %v12807
      %v12809 = vrot.slane %v12761, 1
      %v12810 = vrot.slane %v11646, 1
      %v12811 = vsel %vm2562, %v12809, %v12810
      %v12812 = vrot.slane %v11897, 1
      %v12813 = vsel %vm2562, %v12810, %v12812
      %v12814 = vrot.slane %v12762, 1
      %v12815 = vrot.slane %v11648, 1
      %v12816 = vsel %vm2562, %v12814, %v12815
      %v12817 = vrot.slane %v11898, 1
      %v12818 = vsel %vm2562, %v12815, %v12817
      %v12819 = vrot.slane %v12763, 1
      %v12820 = vrot.slane %v11650, 1
      %v12821 = vsel %vm2562, %v12819, %v12820
      %v12822 = vrot.slane %v11899, 1
      %v12823 = vsel %vm2562, %v12820, %v12822
      %v12824 = vrot.slane %v12764, 1
      %v12825 = vrot.slane %v11652, 1
      %v12826 = vsel %vm2562, %v12824, %v12825
      %v12827 = vrot.slane %v11900, 1
      %v12828 = vsel %vm2562, %v12825, %v12827
      %v12829 = vrot.slane %v12765, 1
      %v12830 = vrot.slane %v11654, 1
      %v12831 = vsel %vm2562, %v12829, %v12830
      %v12832 = vrot.slane %v11901, 1
      %v12833 = vsel %vm2562, %v12830, %v12832
      %v12834 = vrot.slane %v12766, 1
      %v12835 = vrot.slane %v11656, 1
      %v12836 = vsel %vm2562, %v12834, %v12835
      %v12837 = vrot.slane %v11902, 1
      %v12838 = vsel %vm2562, %v12835, %v12837
      %v12839 = vrot.slane %v12767, 1
      %v12840 = vrot.slane %v11658, 1
      %v12841 = vsel %vm2562, %v12839, %v12840
      %v12842 = vrot.slane %v11903, 1
      %v12843 = vsel %vm2562, %v12840, %v12842
      %v12844 = vrot.slane %v12768, 1
      %v12845 = vrot.slane %v11660, 1
      %v12846 = vsel %vm2562, %v12844, %v12845
      %v12847 = vrot.slane %v11904, 1
      %v12848 = vsel %vm2562, %v12845, %v12847
      %v12849 = vrot.slane %v12769, 1
      %v12850 = vrot.slane %v11662, 1
      %v12851 = vsel %vm2562, %v12849, %v12850
      %v12852 = vrot.slane %v11905, 1
      %v12853 = vsel %vm2562, %v12850, %v12852
      %v12854 = vrot.slane %v12770, 1
      %v12855 = vrot.slane %v11664, 1
      %v12856 = vsel %vm2562, %v12854, %v12855
      %v12857 = vrot.slane %v11906, 1
      %v12858 = vsel %vm2562, %v12855, %v12857
      %v12859 = vrot.slane %v12771, 1
      %v12860 = vrot.slane %v11666, 1
      %v12861 = vsel %vm2562, %v12859, %v12860
      %v12862 = vrot.slane %v11907, 1
      %v12863 = vsel %vm2562, %v12860, %v12862
      %v12864 = vrot.slane %v12772, 1
      %v12865 = vrot.slane %v11668, 1
      %v12866 = vsel %vm2562, %v12864, %v12865
      %v12867 = vrot.slane %v11908, 1
      %v12868 = vsel %vm2562, %v12865, %v12867
      %v12869 = vrot.slane %v12773, 1
      %v12870 = vrot.slane %v11670, 1
      %v12871 = vsel %vm2562, %v12869, %v12870
      %v12872 = vrot.slane %v11909, 1
      %v12873 = vsel %vm2562, %v12870, %v12872
      %v12874 = vrot.slane %v12774, 1
      %v12875 = vrot.slane %v11672, 1
      %v12876 = vsel %vm2562, %v12874, %v12875
      %v12877 = vrot.slane %v11910, 1
      %v12878 = vsel %vm2562, %v12875, %v12877
      %v12879 = vrot.slane %v12775, 1
      %v12880 = vrot.slane %v11674, 1
      %v12881 = vsel %vm2562, %v12879, %v12880
      %v12882 = vrot.slane %v11911, 1
      %v12883 = vsel %vm2562, %v12880, %v12882
      %v12884 = vrot.slane %v12776, 1
      %v12885 = vrot.slane %v11676, 1
      %v12886 = vsel %vm2562, %v12884, %v12885
      %v12887 = vrot.slane %v11912, 1
      %v12888 = vsel %vm2562, %v12885, %v12887
      %v12889 = vrot.slane %v12777, 1
      %v12890 = vrot.slane %v11678, 1
      %v12891 = vsel %vm2562, %v12889, %v12890
      %v12892 = vrot.slane %v11913, 1
      %v12893 = vsel %vm2562, %v12890, %v12892
      %v12894 = vrot.slane %v12778, 1
      %v12895 = vrot.slane %v11680, 1
      %v12896 = vsel %vm2562, %v12894, %v12895
      %v12897 = vrot.slane %v11914, 1
      %v12898 = vsel %vm2562, %v12895, %v12897
      %v12899 = vrot.slane %v12779, 1
      %v12900 = vrot.slane %v11682, 1
      %v12901 = vsel %vm2562, %v12899, %v12900
      %v12902 = vrot.slane %v11915, 1
      %v12903 = vsel %vm2562, %v12900, %v12902
      %v12904 = vrot.slane %v12780, 1
      %v12905 = vrot.slane %v11684, 1
      %v12906 = vsel %vm2562, %v12904, %v12905
      %v12907 = vrot.slane %v11916, 1
      %v12908 = vsel %vm2562, %v12905, %v12907
      %v12909 = vrot.slane %v12781, 1
      %v12910 = vrot.slane %v11686, 1
      %v12911 = vsel %vm2562, %v12909, %v12910
      %v12912 = vrot.slane %v11917, 1
      %v12913 = vsel %vm2562, %v12910, %v12912
      %v12914 = vrot.slane %v12782, 1
      %v12915 = vrot.slane %v11688, 1
      %v12916 = vsel %vm2562, %v12914, %v12915
      %v12917 = vrot.slane %v11918, 1
      %v12918 = vsel %vm2562, %v12915, %v12917
      %v12919 = vrot.slane %v12783, 1
      %v12920 = vrot.slane %v11690, 1
      %v12921 = vsel %vm2562, %v12919, %v12920
      %v12922 = vrot.slane %v11919, 1
      %v12923 = vsel %vm2562, %v12920, %v12922
      %v12924 = vrot.slane %v12784, 1
      %v12925 = vrot.slane %v11692, 1
      %v12926 = vsel %vm2562, %v12924, %v12925
      %v12927 = vrot.slane %v11920, 1
      %v12928 = vsel %vm2562, %v12925, %v12927
      %v12929 = vrot.slane %v12785, 1
      %v12930 = vrot.slane %v11694, 1
      %v12931 = vsel %vm2562, %v12929, %v12930
      %v12932 = vrot.slane %v11921, 1
      %v12933 = vsel %vm2562, %v12930, %v12932
      %v12934 = vrot.slane %v12786, 1
      %v12935 = vrot.slane %v11696, 1
      %v12936 = vsel %vm2562, %v12934, %v12935
      %v12937 = vrot.slane %v11922, 1
      %v12938 = vsel %vm2562, %v12935, %v12937
      %v12939 = vrot.slane %v12787, 1
      %v12940 = vrot.slane %v11698, 1
      %v12941 = vsel %vm2562, %v12939, %v12940
      %v12942 = vrot.slane %v11923, 1
      %v12943 = vsel %vm2562, %v12940, %v12942
      %v12944 = vrot.slane %v12788, 1
      %v12945 = vrot.slane %v11700, 1
      %v12946 = vsel %vm2562, %v12944, %v12945
      %v12947 = vrot.slane %v11924, 1
      %v12948 = vsel %vm2562, %v12945, %v12947
      %vm12949 = vcmask 261120
      %v12951 = vsel %vm12949, %v8501, %v9302
      %v12953 = vsel %vm12949, %v8502, %v9304
      %v12955 = vsel %vm12949, %v8503, %v9306
      %v12957 = vsel %vm12949, %v8504, %v9308
      %v12959 = vsel %vm12949, %v8505, %v9310
      %v12961 = vsel %vm12949, %v8506, %v9312
      %v12963 = vsel %vm12949, %v8507, %v9314
      %v12965 = vsel %vm12949, %v8508, %v9316
      %v12967 = vsel %vm12949, %v8509, %v9318
      %v12969 = vsel %vm12949, %v8510, %v9320
      %v12971 = vsel %vm12949, %v8511, %v9322
      %v12973 = vsel %vm12949, %v8512, %v9324
      %v12975 = vsel %vm12949, %v8513, %v9326
      %v12977 = vsel %vm12949, %v8514, %v9328
      %v12979 = vsel %vm12949, %v8515, %v9330
      %v12981 = vsel %vm12949, %v8516, %v9332
      %v12983 = vsel %vm12949, %v8517, %v9334
      %v12985 = vsel %vm12949, %v8518, %v9336
      %v12987 = vsel %vm12949, %v8519, %v9338
      %v12989 = vsel %vm12949, %v8520, %v9340
      %v12991 = vsel %vm12949, %v8521, %v9342
      %v12993 = vsel %vm12949, %v8522, %v9344
      %v12995 = vsel %vm12949, %v8523, %v9346
      %v12997 = vsel %vm12949, %v8524, %v9348
      %v12999 = vsel %vm12949, %v8525, %v9350
      %v13001 = vsel %vm12949, %v8526, %v9352
      %v13003 = vsel %vm12949, %v8527, %v9354
      %v13005 = vsel %vm12949, %v8528, %v9356
      %v13007 = vsel %vm12949, %v8529, %v9358
      %v13009 = vsel %vm12949, %v8530, %v9360
      %v13011 = vsel %vm12949, %v8531, %v9362
      %v13013 = vsel %vm12949, %v8532, %v9364
      %v13015 = vsel %vm12949, %v8533, %v9366
      %v13017 = vsel %vm12949, %v8534, %v9368
      %v13019 = vsel %vm12949, %v8535, %v9370
      %v13021 = vsel %vm12949, %v8536, %v9372
      %v13023 = vsel %vm12949, %v8537, %v9374
      %v13025 = vsel %vm12949, %v8538, %v9376
      %v13027 = vsel %vm12949, %v8539, %v9378
      %v13029 = vsel %vm12949, %v8540, %v9380
      %v13031 = vsel %vm12949, %v8541, %v9382
      %v13033 = vsel %vm12949, %v8542, %v9384
      %v13035 = vsel %vm12949, %v8543, %v9386
      %v13037 = vsel %vm12949, %v8544, %v9388
      %v13039 = vsel %vm12949, %v8545, %v9390
      %v13041 = vsel %vm12949, %v8546, %v9392
      %v13043 = vsel %vm12949, %v8547, %v9394
      %v13045 = vsel %vm12949, %v8548, %v9396
      %v13047 = vsel %vm12949, %v8549, %v9398
      %v13049 = vsel %vm12949, %v8550, %v9400
      %v13051 = vsel %vm12949, %v8551, %v9402
      %v13053 = vsel %vm12949, %v8552, %v9404
      %v13055 = vsel %vm12949, %v8553, %v9406
      %v13057 = vsel %vm12949, %v8554, %v9408
      %v13059 = vsel %vm12949, %v8555, %v9410
      %v13061 = vsel %vm12949, %v8556, %v9412
      %v13063 = vsel %vm12949, %v8557, %v9414
      %v13065 = vsel %vm12949, %v8558, %v9416
      %v13067 = vsel %vm12949, %v8559, %v9418
      %v13069 = vsel %vm12949, %v8560, %v9420
      %v13071 = vsel %vm12949, %v8561, %v9422
      %v13073 = vsel %vm12949, %v8562, %v9424
      %v13075 = vsel %vm12949, %v8563, %v9426
      %v13077 = vsel %vm12949, %v8564, %v9428
      %v13079 = vsel %vm4355, %v12951, %v9686
      %v13081 = vsel %vm4355, %v12953, %v9688
      %v13083 = vsel %vm4355, %v12955, %v9690
      %v13085 = vsel %vm4355, %v12957, %v9692
      %v13087 = vsel %vm4355, %v12959, %v9694
      %v13089 = vsel %vm4355, %v12961, %v9696
      %v13091 = vsel %vm4355, %v12963, %v9698
      %v13093 = vsel %vm4355, %v12965, %v9700
      %v13095 = vsel %vm4355, %v12967, %v9702
      %v13097 = vsel %vm4355, %v12969, %v9704
      %v13099 = vsel %vm4355, %v12971, %v9706
      %v13101 = vsel %vm4355, %v12973, %v9708
      %v13103 = vsel %vm4355, %v12975, %v9710
      %v13105 = vsel %vm4355, %v12977, %v9712
      %v13107 = vsel %vm4355, %v12979, %v9714
      %v13109 = vsel %vm4355, %v12981, %v9716
      %v13111 = vsel %vm4355, %v12983, %v9718
      %v13113 = vsel %vm4355, %v12985, %v9720
      %v13115 = vsel %vm4355, %v12987, %v9722
      %v13117 = vsel %vm4355, %v12989, %v9724
      %v13119 = vsel %vm4355, %v12991, %v9726
      %v13121 = vsel %vm4355, %v12993, %v9728
      %v13123 = vsel %vm4355, %v12995, %v9730
      %v13125 = vsel %vm4355, %v12997, %v9732
      %v13127 = vsel %vm4355, %v12999, %v9734
      %v13129 = vsel %vm4355, %v13001, %v9736
      %v13131 = vsel %vm4355, %v13003, %v9738
      %v13133 = vsel %vm4355, %v13005, %v9740
      %v13135 = vsel %vm4355, %v13007, %v9742
      %v13137 = vsel %vm4355, %v13009, %v9744
      %v13139 = vsel %vm4355, %v13011, %v9746
      %v13141 = vsel %vm4355, %v13013, %v9748
      %v13143 = vsel %vm4355, %v13015, %v9750
      %v13145 = vsel %vm4355, %v13017, %v9752
      %v13147 = vsel %vm4355, %v13019, %v9754
      %v13149 = vsel %vm4355, %v13021, %v9756
      %v13151 = vsel %vm4355, %v13023, %v9758
      %v13153 = vsel %vm4355, %v13025, %v9760
      %v13155 = vsel %vm4355, %v13027, %v9762
      %v13157 = vsel %vm4355, %v13029, %v9764
      %v13159 = vsel %vm4355, %v13031, %v9766
      %v13161 = vsel %vm4355, %v13033, %v9768
      %v13163 = vsel %vm4355, %v13035, %v9770
      %v13165 = vsel %vm4355, %v13037, %v9772
      %v13167 = vsel %vm4355, %v13039, %v9774
      %v13169 = vsel %vm4355, %v13041, %v9776
      %v13171 = vsel %vm4355, %v13043, %v9778
      %v13173 = vsel %vm4355, %v13045, %v9780
      %v13175 = vsel %vm4355, %v13047, %v9782
      %v13177 = vsel %vm4355, %v13049, %v9784
      %v13179 = vsel %vm4355, %v13051, %v9786
      %v13181 = vsel %vm4355, %v13053, %v9788
      %v13183 = vsel %vm4355, %v13055, %v9790
      %v13185 = vsel %vm4355, %v13057, %v9792
      %v13187 = vsel %vm4355, %v13059, %v9794
      %v13189 = vsel %vm4355, %v13061, %v9796
      %v13191 = vsel %vm4355, %v13063, %v9798
      %v13193 = vsel %vm4355, %v13065, %v9800
      %v13195 = vsel %vm4355, %v13067, %v9802
      %v13197 = vsel %vm4355, %v13069, %v9804
      %v13199 = vsel %vm4355, %v13071, %v9806
      %v13201 = vsel %vm4355, %v13073, %v9808
      %v13203 = vsel %vm4355, %v13075, %v9810
      %v13205 = vsel %vm4355, %v13077, %v9812
      %vm13206 = vcmask 785408
      %v13208 = vsel %vm13206, %v13079, %v10134
      %v13211 = vsel %vm13206, %v13081, %v10136
      %v13214 = vsel %vm13206, %v13083, %v10138
      %v13217 = vsel %vm13206, %v13085, %v10140
      %v13220 = vsel %vm13206, %v13087, %v10142
      %v13223 = vsel %vm13206, %v13089, %v10144
      %v13226 = vsel %vm13206, %v13091, %v10146
      %v13229 = vsel %vm13206, %v13093, %v10148
      %v13232 = vsel %vm13206, %v13095, %v10150
      %v13235 = vsel %vm13206, %v13097, %v10152
      %v13238 = vsel %vm13206, %v13099, %v10154
      %v13241 = vsel %vm13206, %v13101, %v10156
      %v13244 = vsel %vm13206, %v13103, %v10158
      %v13247 = vsel %vm13206, %v13105, %v10160
      %v13250 = vsel %vm13206, %v13107, %v10162
      %v13253 = vsel %vm13206, %v13109, %v10164
      %v13256 = vsel %vm13206, %v13111, %v10166
      %v13259 = vsel %vm13206, %v13113, %v10168
      %v13262 = vsel %vm13206, %v13115, %v10170
      %v13265 = vsel %vm13206, %v13117, %v10172
      %v13268 = vsel %vm13206, %v13119, %v10174
      %v13271 = vsel %vm13206, %v13121, %v10176
      %v13274 = vsel %vm13206, %v13123, %v10178
      %v13277 = vsel %vm13206, %v13125, %v10180
      %v13280 = vsel %vm13206, %v13127, %v10182
      %v13283 = vsel %vm13206, %v13129, %v10184
      %v13286 = vsel %vm13206, %v13131, %v10186
      %v13289 = vsel %vm13206, %v13133, %v10188
      %v13292 = vsel %vm13206, %v13135, %v10190
      %v13295 = vsel %vm13206, %v13137, %v10192
      %v13298 = vsel %vm13206, %v13139, %v10194
      %v13301 = vsel %vm13206, %v13141, %v10196
      %v13304 = vsel %vm13206, %v13143, %v10198
      %v13307 = vsel %vm13206, %v13145, %v10200
      %v13310 = vsel %vm13206, %v13147, %v10202
      %v13313 = vsel %vm13206, %v13149, %v10204
      %v13316 = vsel %vm13206, %v13151, %v10206
      %v13319 = vsel %vm13206, %v13153, %v10208
      %v13322 = vsel %vm13206, %v13155, %v10210
      %v13325 = vsel %vm13206, %v13157, %v10212
      %v13328 = vsel %vm13206, %v13159, %v10214
      %v13331 = vsel %vm13206, %v13161, %v10216
      %v13334 = vsel %vm13206, %v13163, %v10218
      %v13337 = vsel %vm13206, %v13165, %v10220
      %v13340 = vsel %vm13206, %v13167, %v10222
      %v13343 = vsel %vm13206, %v13169, %v10224
      %v13346 = vsel %vm13206, %v13171, %v10226
      %v13349 = vsel %vm13206, %v13173, %v10228
      %v13352 = vsel %vm13206, %v13175, %v10230
      %v13355 = vsel %vm13206, %v13177, %v10232
      %v13358 = vsel %vm13206, %v13179, %v10234
      %v13361 = vsel %vm13206, %v13181, %v10236
      %v13364 = vsel %vm13206, %v13183, %v10238
      %v13367 = vsel %vm13206, %v13185, %v10240
      %v13370 = vsel %vm13206, %v13187, %v10242
      %v13373 = vsel %vm13206, %v13189, %v10244
      %v13376 = vsel %vm13206, %v13191, %v10246
      %v13379 = vsel %vm13206, %v13193, %v10248
      %v13382 = vsel %vm13206, %v13195, %v10250
      %v13385 = vsel %vm13206, %v13197, %v10252
      %v13388 = vsel %vm13206, %v13199, %v10254
      %v13391 = vsel %vm13206, %v13201, %v10256
      %v13394 = vsel %vm13206, %v13203, %v10258
      %v13397 = vsel %vm13206, %v13205, %v10260
      %v13401 = vsel %vm12949, %v10368, %v11254
      %v13404 = vsel %vm12949, %v10376, %v11256
      %v13407 = vsel %vm12949, %v10388, %v11258
      %v13410 = vsel %vm12949, %v10396, %v11260
      %v13413 = vsel %vm12949, %v10408, %v11262
      %v13416 = vsel %vm12949, %v10416, %v11264
      %v13419 = vsel %vm12949, %v10428, %v11266
      %v13422 = vsel %vm12949, %v10436, %v11268
      %v13425 = vsel %vm12949, %v10448, %v11270
      %v13428 = vsel %vm12949, %v10456, %v11272
      %v13431 = vsel %vm12949, %v10468, %v11274
      %v13434 = vsel %vm12949, %v10476, %v11276
      %v13437 = vsel %vm12949, %v10488, %v11278
      %v13440 = vsel %vm12949, %v10496, %v11280
      %v13443 = vsel %vm12949, %v10508, %v11282
      %v13446 = vsel %vm12949, %v10516, %v11284
      %v13449 = vsel %vm12949, %v10528, %v11286
      %v13452 = vsel %vm12949, %v10536, %v11288
      %v13455 = vsel %vm12949, %v10548, %v11290
      %v13458 = vsel %vm12949, %v10556, %v11292
      %v13461 = vsel %vm12949, %v10568, %v11294
      %v13464 = vsel %vm12949, %v10576, %v11296
      %v13467 = vsel %vm12949, %v10588, %v11298
      %v13470 = vsel %vm12949, %v10596, %v11300
      %v13473 = vsel %vm12949, %v10608, %v11302
      %v13476 = vsel %vm12949, %v10616, %v11304
      %v13479 = vsel %vm12949, %v10628, %v11306
      %v13482 = vsel %vm12949, %v10636, %v11308
      %v13485 = vsel %vm12949, %v10648, %v11310
      %v13488 = vsel %vm12949, %v10656, %v11312
      %v13491 = vsel %vm12949, %v10668, %v11314
      %v13494 = vsel %vm12949, %v10676, %v11316
      %v13497 = vsel %vm12949, %v10688, %v11318
      %v13500 = vsel %vm12949, %v10696, %v11320
      %v13503 = vsel %vm12949, %v10708, %v11322
      %v13506 = vsel %vm12949, %v10716, %v11324
      %v13509 = vsel %vm12949, %v10728, %v11326
      %v13512 = vsel %vm12949, %v10736, %v11328
      %v13515 = vsel %vm12949, %v10748, %v11330
      %v13518 = vsel %vm12949, %v10756, %v11332
      %v13521 = vsel %vm12949, %v10768, %v11334
      %v13524 = vsel %vm12949, %v10776, %v11336
      %v13527 = vsel %vm12949, %v10788, %v11338
      %v13530 = vsel %vm12949, %v10796, %v11340
      %v13533 = vsel %vm12949, %v10808, %v11342
      %v13536 = vsel %vm12949, %v10816, %v11344
      %v13539 = vsel %vm12949, %v10828, %v11346
      %v13542 = vsel %vm12949, %v10836, %v11348
      %v13545 = vsel %vm12949, %v10848, %v11350
      %v13548 = vsel %vm12949, %v10856, %v11352
      %v13551 = vsel %vm12949, %v10868, %v11354
      %v13554 = vsel %vm12949, %v10876, %v11356
      %v13557 = vsel %vm12949, %v10888, %v11358
      %v13560 = vsel %vm12949, %v10896, %v11360
      %v13563 = vsel %vm12949, %v10908, %v11362
      %v13566 = vsel %vm12949, %v10916, %v11364
      %v13569 = vsel %vm12949, %v10928, %v11366
      %v13572 = vsel %vm12949, %v10936, %v11368
      %v13575 = vsel %vm12949, %v10948, %v11370
      %v13578 = vsel %vm12949, %v10956, %v11372
      %v13581 = vsel %vm12949, %v10968, %v11374
      %v13584 = vsel %vm12949, %v10976, %v11376
      %v13587 = vsel %vm12949, %v10988, %v11378
      %v13590 = vsel %vm12949, %v10996, %v11380
      %v13592 = vsel %vm4355, %v13401, %v11702
      %v13594 = vsel %vm4355, %v13404, %v11704
      %v13596 = vsel %vm4355, %v13407, %v11706
      %v13598 = vsel %vm4355, %v13410, %v11708
      %v13600 = vsel %vm4355, %v13413, %v11710
      %v13602 = vsel %vm4355, %v13416, %v11712
      %v13604 = vsel %vm4355, %v13419, %v11714
      %v13606 = vsel %vm4355, %v13422, %v11716
      %v13608 = vsel %vm4355, %v13425, %v11718
      %v13610 = vsel %vm4355, %v13428, %v11720
      %v13612 = vsel %vm4355, %v13431, %v11722
      %v13614 = vsel %vm4355, %v13434, %v11724
      %v13616 = vsel %vm4355, %v13437, %v11726
      %v13618 = vsel %vm4355, %v13440, %v11728
      %v13620 = vsel %vm4355, %v13443, %v11730
      %v13622 = vsel %vm4355, %v13446, %v11732
      %v13624 = vsel %vm4355, %v13449, %v11734
      %v13626 = vsel %vm4355, %v13452, %v11736
      %v13628 = vsel %vm4355, %v13455, %v11738
      %v13630 = vsel %vm4355, %v13458, %v11740
      %v13632 = vsel %vm4355, %v13461, %v11742
      %v13634 = vsel %vm4355, %v13464, %v11744
      %v13636 = vsel %vm4355, %v13467, %v11746
      %v13638 = vsel %vm4355, %v13470, %v11748
      %v13640 = vsel %vm4355, %v13473, %v11750
      %v13642 = vsel %vm4355, %v13476, %v11752
      %v13644 = vsel %vm4355, %v13479, %v11754
      %v13646 = vsel %vm4355, %v13482, %v11756
      %v13648 = vsel %vm4355, %v13485, %v11758
      %v13650 = vsel %vm4355, %v13488, %v11760
      %v13652 = vsel %vm4355, %v13491, %v11762
      %v13654 = vsel %vm4355, %v13494, %v11764
      %v13656 = vsel %vm4355, %v13497, %v11766
      %v13658 = vsel %vm4355, %v13500, %v11768
      %v13660 = vsel %vm4355, %v13503, %v11770
      %v13662 = vsel %vm4355, %v13506, %v11772
      %v13664 = vsel %vm4355, %v13509, %v11774
      %v13666 = vsel %vm4355, %v13512, %v11776
      %v13668 = vsel %vm4355, %v13515, %v11778
      %v13670 = vsel %vm4355, %v13518, %v11780
      %v13672 = vsel %vm4355, %v13521, %v11782
      %v13674 = vsel %vm4355, %v13524, %v11784
      %v13676 = vsel %vm4355, %v13527, %v11786
      %v13678 = vsel %vm4355, %v13530, %v11788
      %v13680 = vsel %vm4355, %v13533, %v11790
      %v13682 = vsel %vm4355, %v13536, %v11792
      %v13684 = vsel %vm4355, %v13539, %v11794
      %v13686 = vsel %vm4355, %v13542, %v11796
      %v13688 = vsel %vm4355, %v13545, %v11798
      %v13690 = vsel %vm4355, %v13548, %v11800
      %v13692 = vsel %vm4355, %v13551, %v11802
      %v13694 = vsel %vm4355, %v13554, %v11804
      %v13696 = vsel %vm4355, %v13557, %v11806
      %v13698 = vsel %vm4355, %v13560, %v11808
      %v13700 = vsel %vm4355, %v13563, %v11810
      %v13702 = vsel %vm4355, %v13566, %v11812
      %v13704 = vsel %vm4355, %v13569, %v11814
      %v13706 = vsel %vm4355, %v13572, %v11816
      %v13708 = vsel %vm4355, %v13575, %v11818
      %v13710 = vsel %vm4355, %v13578, %v11820
      %v13712 = vsel %vm4355, %v13581, %v11822
      %v13714 = vsel %vm4355, %v13584, %v11824
      %v13716 = vsel %vm4355, %v13587, %v11826
      %v13718 = vsel %vm4355, %v13590, %v11828
      %v13720 = vsel %vm13206, %v13592, %v12566
      %v13723 = vsel %vm13206, %v13594, %v12568
      %v13726 = vsel %vm13206, %v13596, %v12570
      %v13729 = vsel %vm13206, %v13598, %v12572
      %v13732 = vsel %vm13206, %v13600, %v12574
      %v13735 = vsel %vm13206, %v13602, %v12576
      %v13738 = vsel %vm13206, %v13604, %v12578
      %v13741 = vsel %vm13206, %v13606, %v12580
      %v13744 = vsel %vm13206, %v13608, %v12582
      %v13747 = vsel %vm13206, %v13610, %v12584
      %v13750 = vsel %vm13206, %v13612, %v12586
      %v13753 = vsel %vm13206, %v13614, %v12588
      %v13756 = vsel %vm13206, %v13616, %v12590
      %v13759 = vsel %vm13206, %v13618, %v12592
      %v13762 = vsel %vm13206, %v13620, %v12594
      %v13765 = vsel %vm13206, %v13622, %v12596
      %v13768 = vsel %vm13206, %v13624, %v12598
      %v13771 = vsel %vm13206, %v13626, %v12600
      %v13774 = vsel %vm13206, %v13628, %v12602
      %v13777 = vsel %vm13206, %v13630, %v12604
      %v13780 = vsel %vm13206, %v13632, %v12606
      %v13783 = vsel %vm13206, %v13634, %v12608
      %v13786 = vsel %vm13206, %v13636, %v12610
      %v13789 = vsel %vm13206, %v13638, %v12612
      %v13792 = vsel %vm13206, %v13640, %v12614
      %v13795 = vsel %vm13206, %v13642, %v12616
      %v13798 = vsel %vm13206, %v13644, %v12618
      %v13801 = vsel %vm13206, %v13646, %v12620
      %v13804 = vsel %vm13206, %v13648, %v12622
      %v13807 = vsel %vm13206, %v13650, %v12624
      %v13810 = vsel %vm13206, %v13652, %v12626
      %v13813 = vsel %vm13206, %v13654, %v12628
      %v13816 = vsel %vm13206, %v13656, %v12630
      %v13819 = vsel %vm13206, %v13658, %v12632
      %v13822 = vsel %vm13206, %v13660, %v12634
      %v13825 = vsel %vm13206, %v13662, %v12636
      %v13828 = vsel %vm13206, %v13664, %v12638
      %v13831 = vsel %vm13206, %v13666, %v12640
      %v13834 = vsel %vm13206, %v13668, %v12642
      %v13837 = vsel %vm13206, %v13670, %v12644
      %v13840 = vsel %vm13206, %v13672, %v12646
      %v13843 = vsel %vm13206, %v13674, %v12648
      %v13846 = vsel %vm13206, %v13676, %v12650
      %v13849 = vsel %vm13206, %v13678, %v12652
      %v13852 = vsel %vm13206, %v13680, %v12654
      %v13855 = vsel %vm13206, %v13682, %v12656
      %v13858 = vsel %vm13206, %v13684, %v12658
      %v13861 = vsel %vm13206, %v13686, %v12660
      %v13864 = vsel %vm13206, %v13688, %v12662
      %v13867 = vsel %vm13206, %v13690, %v12664
      %v13870 = vsel %vm13206, %v13692, %v12666
      %v13873 = vsel %vm13206, %v13694, %v12668
      %v13876 = vsel %vm13206, %v13696, %v12670
      %v13879 = vsel %vm13206, %v13698, %v12672
      %v13882 = vsel %vm13206, %v13700, %v12674
      %v13885 = vsel %vm13206, %v13702, %v12676
      %v13888 = vsel %vm13206, %v13704, %v12678
      %v13891 = vsel %vm13206, %v13706, %v12680
      %v13894 = vsel %vm13206, %v13708, %v12682
      %v13897 = vsel %vm13206, %v13710, %v12684
      %v13900 = vsel %vm13206, %v13712, %v12686
      %v13903 = vsel %vm13206, %v13714, %v12688
      %v13906 = vsel %vm13206, %v13716, %v12690
      %v13909 = vsel %vm13206, %v13718, %v12692
      %13912 = vset.pattern.permute.xlu0 0
      %13913 = vperm.xlu0 %13912, %v5334
      %v13914 = vpop.permute.xlu0 %13913
      %v13917 = vcombine.high %v5333, %v5333
      %v13919 = vunpack.c.l.s4 1983009808
      %v13920 = vunpack.c.0.s8 %v13919
      %v13921 = vlaneseq
      %v13922 = vshrl.u32 %v13921, 7
      %v13923 = vsub.s32 %v13920, %v13922
      %v13924 = vrot.slane %v5333, %v13923
      %v13926 = vunpack.c.l.s4 1983009808
      %v13927 = vunpack.c.0.s8 %v13926
      %v13928 = vlaneseq
      %v13929 = vshrl.u32 %v13928, 7
      %v13930 = vsub.s32 %v13927, %v13929
      %v13931 = vrot.slane %v13917, %v13930
      %v13932 = vcombine.high %v13924, %v13924
      %v13936 = vsel %vm12949, %v13931, 0
      %v13939 = vsel %vm12949, %v12791, 0
      %v13942 = vsel %vm12949, %v12793, 0
      %v13945 = vsel %vm12949, %v12796, 0
      %v13948 = vsel %vm12949, %v12798, 0
      %v13951 = vsel %vm12949, %v12801, 0
      %v13954 = vsel %vm12949, %v12803, 0
      %v13957 = vsel %vm12949, %v12806, 0
      %v13960 = vsel %vm12949, %v12808, 0
      %v13963 = vsel %vm12949, %v12811, 0
      %v13966 = vsel %vm12949, %v12813, 0
      %v13969 = vsel %vm12949, %v12816, 0
      %v13972 = vsel %vm12949, %v12818, 0
      %v13975 = vsel %vm12949, %v12821, 0
      %v13978 = vsel %vm12949, %v12823, 0
      %v13981 = vsel %vm12949, %v12826, 0
      %v13984 = vsel %vm12949, %v12828, 0
      %v13987 = vsel %vm12949, %v12831, 0
      %v13990 = vsel %vm12949, %v12833, 0
      %v13993 = vsel %vm12949, %v12836, 0
      %v13996 = vsel %vm12949, %v12838, 0
      %v13999 = vsel %vm12949, %v12841, 0
      %v14002 = vsel %vm12949, %v12843, 0
      %v14005 = vsel %vm12949, %v12846, 0
      %v14008 = vsel %vm12949, %v12848, 0
      %v14011 = vsel %vm12949, %v12851, 0
      %v14014 = vsel %vm12949, %v12853, 0
      %v14017 = vsel %vm12949, %v12856, 0
      %v14020 = vsel %vm12949, %v12858, 0
      %v14023 = vsel %vm12949, %v12861, 0
      %v14026 = vsel %vm12949, %v12863, 0
      %v14029 = vsel %vm12949, %v12866, 0
      %v14032 = vsel %vm12949, %v12868, 0
      %v14035 = vsel %vm12949, %v12871, 0
      %v14038 = vsel %vm12949, %v12873, 0
      %v14041 = vsel %vm12949, %v12876, 0
      %v14044 = vsel %vm12949, %v12878, 0
      %v14047 = vsel %vm12949, %v12881, 0
      %v14050 = vsel %vm12949, %v12883, 0
      %v14053 = vsel %vm12949, %v12886, 0
      %v14056 = vsel %vm12949, %v12888, 0
      %v14059 = vsel %vm12949, %v12891, 0
      %v14062 = vsel %vm12949, %v12893, 0
      %v14065 = vsel %vm12949, %v12896, 0
      %v14068 = vsel %vm12949, %v12898, 0
      %v14071 = vsel %vm12949, %v12901, 0
      %v14074 = vsel %vm12949, %v12903, 0
      %v14077 = vsel %vm12949, %v12906, 0
      %v14080 = vsel %vm12949, %v12908, 0
      %v14083 = vsel %vm12949, %v12911, 0
      %v14086 = vsel %vm12949, %v12913, 0
      %v14089 = vsel %vm12949, %v12916, 0
      %v14092 = vsel %vm12949, %v12918, 0
      %v14095 = vsel %vm12949, %v12921, 0
      %v14098 = vsel %vm12949, %v12923, 0
      %v14101 = vsel %vm12949, %v12926, 0
      %v14104 = vsel %vm12949, %v12928, 0
      %v14107 = vsel %vm12949, %v12931, 0
      %v14110 = vsel %vm12949, %v12933, 0
      %v14113 = vsel %vm12949, %v12936, 0
      %v14116 = vsel %vm12949, %v12938, 0
      %v14119 = vsel %vm12949, %v12941, 0
      %v14122 = vsel %vm12949, %v12943, 0
      %v14125 = vsel %vm12949, %v12946, 0
      %v14128 = vsel %vm12949, %v12948, 0
      %14130 = vmatprep.subr.bf16.mxu0 %v13720
      %14131 = vmatpush1.bf16.xpose.msra.mxu0 %v13208
      %14132 = vmatprep.subr.bf16.mxu0 %v13723
      %14133 = vmatpush1.bf16.xpose.msra.mxu0 %v13211
      %14134 = vmatprep.subr.bf16.mxu0 %v13726
      %14135 = vmatpush1.bf16.xpose.msra.mxu0 %v13214
      %14136 = vmatprep.subr.bf16.mxu0 %v13729
      %14137 = vmatpush1.bf16.xpose.msra.mxu0 %v13217
      %14138 = vmatprep.subr.bf16.mxu0 %v13732
      %14139 = vmatpush1.bf16.xpose.msra.mxu0 %v13220
      %14140 = vmatprep.subr.bf16.mxu0 %v13735
      %14141 = vmatpush1.bf16.xpose.msra.mxu0 %v13223
      %14142 = vmatprep.subr.bf16.mxu0 %v13738
      %14143 = vmatpush1.bf16.xpose.msra.mxu0 %v13226
      %14144 = vmatprep.subr.bf16.mxu0 %v13741
      %14145 = vmatpush1.bf16.xpose.msra.mxu0 %v13229
      %14146 = vmatprep.subr.bf16.mxu0 %v13744
      %14147 = vmatpush1.bf16.xpose.msra.mxu0 %v13232
      %14148 = vmatprep.subr.bf16.mxu0 %v13747
      %14149 = vmatpush1.bf16.xpose.msra.mxu0 %v13235
      %14150 = vmatprep.subr.bf16.mxu0 %v13750
      %14151 = vmatpush1.bf16.xpose.msra.mxu0 %v13238
      %14152 = vmatprep.subr.bf16.mxu0 %v13753
      %14153 = vmatpush1.bf16.xpose.msra.mxu0 %v13241
      %14154 = vmatprep.subr.bf16.mxu0 %v13756
      %14155 = vmatpush1.bf16.xpose.msra.mxu0 %v13244
      %14156 = vmatprep.subr.bf16.mxu0 %v13759
      %14157 = vmatpush1.bf16.xpose.msra.mxu0 %v13247
      %14158 = vmatprep.subr.bf16.mxu0 %v13762
      %14159 = vmatpush1.bf16.xpose.msra.mxu0 %v13250
      %14160 = vmatprep.subr.bf16.mxu0 %v13765
      %14161 = vmatpush1.bf16.xpose.msra.mxu0 %v13253
      %14162 = vmatprep.mubr.bf16.mxu0 %v13932
      %14163 = vmatmul.mubr.bf16.gmra.mrb[0].mxu0 %v13924
      %v14164 = vpop.f32.mrb[0].mxu0
      %v14165 = vadd.f32 %v13914, %v14164
      %v14166 = vpop.f32.mrb[0].mxu0
      %v14167 = vadd.f32 %v13914, %v14166
      %v14168 = vpop.f32.mrb[0].mxu0
      %v14169 = vpop.f32.mrb[0].mxu0
      %14170 = vdwg.mxu0
      %14171 = vmatprep.subr.bf16.mxu0 0
      %14172 = vmatpush1.bf16.xpose.msra.mxu0 %v13939
      %14173 = vmatprep.subr.bf16.mxu0 0
      %14174 = vmatpush1.bf16.xpose.msra.mxu0 %v13942
      %14175 = vmatprep.subr.bf16.mxu0 0
      %14176 = vmatpush1.bf16.xpose.msra.mxu0 %v13945
      %14177 = vmatprep.subr.bf16.mxu0 0
      %14178 = vmatpush1.bf16.xpose.msra.mxu0 %v13948
      %14179 = vmatprep.subr.bf16.mxu0 0
      %14180 = vmatpush1.bf16.xpose.msra.mxu0 %v13951
      %14181 = vmatprep.subr.bf16.mxu0 0
      %14182 = vmatpush1.bf16.xpose.msra.mxu0 %v13954
      %14183 = vmatprep.subr.bf16.mxu0 0
      %14184 = vmatpush1.bf16.xpose.msra.mxu0 %v13957
      %14185 = vmatprep.subr.bf16.mxu0 0
      %14186 = vmatpush1.bf16.xpose.msra.mxu0 %v13960
      %14187 = vmatprep.subr.bf16.mxu0 0
      %14188 = vmatpush1.bf16.xpose.msra.mxu0 %v13963
      %14189 = vmatprep.subr.bf16.mxu0 0
      %14190 = vmatpush1.bf16.xpose.msra.mxu0 %v13966
      %14191 = vmatprep.subr.bf16.mxu0 0
      %14192 = vmatpush1.bf16.xpose.msra.mxu0 %v13969
      %14193 = vmatprep.subr.bf16.mxu0 0
      %14194 = vmatpush1.bf16.xpose.msra.mxu0 %v13972
      %14195 = vmatprep.subr.bf16.mxu0 0
      %14196 = vmatpush1.bf16.xpose.msra.mxu0 %v13975
      %14197 = vmatprep.subr.bf16.mxu0 0
      %14198 = vmatpush1.bf16.xpose.msra.mxu0 %v13978
      %14199 = vmatprep.subr.bf16.mxu0 0
      %14200 = vmatpush1.bf16.xpose.msra.mxu0 %v13981
      %14201 = vmatprep.subr.bf16.mxu0 0
      %14202 = vmatpush1.bf16.xpose.msra.mxu0 %v13984
      %14203 = vmatprep.mubr.bf16.mxu0 0
      %14204 = vmatmul.mubr.bf16.gmra.mrb[0].mxu0 %v13936
      %v14205 = vpop.f32.mrb[0].mxu0
      %v14206 = vadd.f32 %v14165, %v14205
      %v14207 = vpop.f32.mrb[0].mxu0
      %v14208 = vadd.f32 %v14167, %v14207
      %v14209 = vpop.f32.mrb[0].mxu0
      %v14210 = vpop.f32.mrb[0].mxu0
      %14211 = vdwg.mxu0
      %14212 = vmatprep.subr.bf16.mxu0 %v13768
      %14213 = vmatpush1.bf16.xpose.msra.mxu0 %v13256
      %14214 = vmatprep.subr.bf16.mxu0 %v13771
      %14215 = vmatpush1.bf16.xpose.msra.mxu0 %v13259
      %14216 = vmatprep.subr.bf16.mxu0 %v13774
      %14217 = vmatpush1.bf16.xpose.msra.mxu0 %v13262
      %14218 = vmatprep.subr.bf16.mxu0 %v13777
      %14219 = vmatpush1.bf16.xpose.msra.mxu0 %v13265
      %14220 = vmatprep.subr.bf16.mxu0 %v13780
      %14221 = vmatpush1.bf16.xpose.msra.mxu0 %v13268
      %14222 = vmatprep.subr.bf16.mxu0 %v13783
      %14223 = vmatpush1.bf16.xpose.msra.mxu0 %v13271
      %14224 = vmatprep.subr.bf16.mxu0 %v13786
      %14225 = vmatpush1.bf16.xpose.msra.mxu0 %v13274
      %14226 = vmatprep.subr.bf16.mxu0 %v13789
      %14227 = vmatpush1.bf16.xpose.msra.mxu0 %v13277
      %14228 = vmatprep.subr.bf16.mxu0 %v13792
      %14229 = vmatpush1.bf16.xpose.msra.mxu0 %v13280
      %14230 = vmatprep.subr.bf16.mxu0 %v13795
      %14231 = vmatpush1.bf16.xpose.msra.mxu0 %v13283
      %14232 = vmatprep.subr.bf16.mxu0 %v13798
      %14233 = vmatpush1.bf16.xpose.msra.mxu0 %v13286
      %14234 = vmatprep.subr.bf16.mxu0 %v13801
      %14235 = vmatpush1.bf16.xpose.msra.mxu0 %v13289
      %14236 = vmatprep.subr.bf16.mxu0 %v13804
      %14237 = vmatpush1.bf16.xpose.msra.mxu0 %v13292
      %14238 = vmatprep.subr.bf16.mxu0 %v13807
      %14239 = vmatpush1.bf16.xpose.msra.mxu0 %v13295
      %14240 = vmatprep.subr.bf16.mxu0 %v13810
      %14241 = vmatpush1.bf16.xpose.msra.mxu0 %v13298
      %14242 = vmatprep.subr.bf16.mxu0 %v13813
      %14243 = vmatpush1.bf16.xpose.msra.mxu0 %v13301
      %14244 = vmatprep.mubr.bf16.mxu0 %v13932
      %14245 = vmatmul.mubr.bf16.gmra.mrb[0].mxu0 %v13924
      %v14246 = vpop.f32.mrb[0].mxu0
      %v14247 = vadd.f32 %v13914, %v14246
      %v14248 = vpop.f32.mrb[0].mxu0
      %v14249 = vadd.f32 %v13914, %v14248
      %v14250 = vpop.f32.mrb[0].mxu0
      %v14251 = vpop.f32.mrb[0].mxu0
      %14252 = vdwg.mxu0
      %14253 = vmatprep.subr.bf16.mxu0 0
      %14254 = vmatpush1.bf16.xpose.msra.mxu0 %v13987
      %14255 = vmatprep.subr.bf16.mxu0 0
      %14256 = vmatpush1.bf16.xpose.msra.mxu0 %v13990
      %14257 = vmatprep.subr.bf16.mxu0 0
      %14258 = vmatpush1.bf16.xpose.msra.mxu0 %v13993
      %14259 = vmatprep.subr.bf16.mxu0 0
      %14260 = vmatpush1.bf16.xpose.msra.mxu0 %v13996
      %14261 = vmatprep.subr.bf16.mxu0 0
      %14262 = vmatpush1.bf16.xpose.msra.mxu0 %v13999
      %14263 = vmatprep.subr.bf16.mxu0 0
      %14264 = vmatpush1.bf16.xpose.msra.mxu0 %v14002
      %14265 = vmatprep.subr.bf16.mxu0 0
      %14266 = vmatpush1.bf16.xpose.msra.mxu0 %v14005
      %14267 = vmatprep.subr.bf16.mxu0 0
      %14268 = vmatpush1.bf16.xpose.msra.mxu0 %v14008
      %14269 = vmatprep.subr.bf16.mxu0 0
      %14270 = vmatpush1.bf16.xpose.msra.mxu0 %v14011
      %14271 = vmatprep.subr.bf16.mxu0 0
      %14272 = vmatpush1.bf16.xpose.msra.mxu0 %v14014
      %14273 = vmatprep.subr.bf16.mxu0 0
      %14274 = vmatpush1.bf16.xpose.msra.mxu0 %v14017
      %14275 = vmatprep.subr.bf16.mxu0 0
      %14276 = vmatpush1.bf16.xpose.msra.mxu0 %v14020
      %14277 = vmatprep.subr.bf16.mxu0 0
      %14278 = vmatpush1.bf16.xpose.msra.mxu0 %v14023
      %14279 = vmatprep.subr.bf16.mxu0 0
      %14280 = vmatpush1.bf16.xpose.msra.mxu0 %v14026
      %14281 = vmatprep.subr.bf16.mxu0 0
      %14282 = vmatpush1.bf16.xpose.msra.mxu0 %v14029
      %14283 = vmatprep.subr.bf16.mxu0 0
      %14284 = vmatpush1.bf16.xpose.msra.mxu0 %v14032
      %14285 = vmatprep.mubr.bf16.mxu0 0
      %14286 = vmatmul.mubr.bf16.gmra.mrb[0].mxu0 %v13936
      %v14287 = vpop.f32.mrb[0].mxu0
      %v14288 = vadd.f32 %v14247, %v14287
      %v14289 = vpop.f32.mrb[0].mxu0
      %v14290 = vadd.f32 %v14249, %v14289
      %v14291 = vpop.f32.mrb[0].mxu0
      %v14292 = vpop.f32.mrb[0].mxu0
      %14293 = vdwg.mxu0
      %14294 = vmatprep.subr.bf16.mxu0 %v13816
      %14295 = vmatpush1.bf16.xpose.msra.mxu0 %v13304
      %14296 = vmatprep.subr.bf16.mxu0 %v13819
      %14297 = vmatpush1.bf16.xpose.msra.mxu0 %v13307
      %14298 = vmatprep.subr.bf16.mxu0 %v13822
      %14299 = vmatpush1.bf16.xpose.msra.mxu0 %v13310
      %14300 = vmatprep.subr.bf16.mxu0 %v13825
      %14301 = vmatpush1.bf16.xpose.msra.mxu0 %v13313
      %14302 = vmatprep.subr.bf16.mxu0 %v13828
      %14303 = vmatpush1.bf16.xpose.msra.mxu0 %v13316
      %14304 = vmatprep.subr.bf16.mxu0 %v13831
      %14305 = vmatpush1.bf16.xpose.msra.mxu0 %v13319
      %14306 = vmatprep.subr.bf16.mxu0 %v13834
      %14307 = vmatpush1.bf16.xpose.msra.mxu0 %v13322
      %14308 = vmatprep.subr.bf16.mxu0 %v13837
      %14309 = vmatpush1.bf16.xpose.msra.mxu0 %v13325
      %14310 = vmatprep.subr.bf16.mxu0 %v13840
      %14311 = vmatpush1.bf16.xpose.msra.mxu0 %v13328
      %14312 = vmatprep.subr.bf16.mxu0 %v13843
      %14313 = vmatpush1.bf16.xpose.msra.mxu0 %v13331
      %14314 = vmatprep.subr.bf16.mxu0 %v13846
      %14315 = vmatpush1.bf16.xpose.msra.mxu0 %v13334
      %14316 = vmatprep.subr.bf16.mxu0 %v13849
      %14317 = vmatpush1.bf16.xpose.msra.mxu0 %v13337
      %14318 = vmatprep.subr.bf16.mxu0 %v13852
      %14319 = vmatpush1.bf16.xpose.msra.mxu0 %v13340
      %14320 = vmatprep.subr.bf16.mxu0 %v13855
      %14321 = vmatpush1.bf16.xpose.msra.mxu0 %v13343
      %14322 = vmatprep.subr.bf16.mxu0 %v13858
      %14323 = vmatpush1.bf16.xpose.msra.mxu0 %v13346
      %14324 = vmatprep.subr.bf16.mxu0 %v13861
      %14325 = vmatpush1.bf16.xpose.msra.mxu0 %v13349
      %14326 = vmatprep.mubr.bf16.mxu0 %v13932
      %14327 = vmatmul.mubr.bf16.gmra.mrb[0].mxu0 %v13924
      %v14328 = vpop.f32.mrb[0].mxu0
      %v14329 = vadd.f32 %v13914, %v14328
      %v14330 = vpop.f32.mrb[0].mxu0
      %v14331 = vadd.f32 %v13914, %v14330
      %v14332 = vpop.f32.mrb[0].mxu0
      %v14333 = vpop.f32.mrb[0].mxu0
      %14334 = vdwg.mxu0
      %14335 = vmatprep.subr.bf16.mxu0 0
      %14336 = vmatpush1.bf16.xpose.msra.mxu0 %v14035
      %14337 = vmatprep.subr.bf16.mxu0 0
      %14338 = vmatpush1.bf16.xpose.msra.mxu0 %v14038
      %14339 = vmatprep.subr.bf16.mxu0 0
      %14340 = vmatpush1.bf16.xpose.msra.mxu0 %v14041
      %14341 = vmatprep.subr.bf16.mxu0 0
      %14342 = vmatpush1.bf16.xpose.msra.mxu0 %v14044
      %14343 = vmatprep.subr.bf16.mxu0 0
      %14344 = vmatpush1.bf16.xpose.msra.mxu0 %v14047
      %14345 = vmatprep.subr.bf16.mxu0 0
      %14346 = vmatpush1.bf16.xpose.msra.mxu0 %v14050
      %14347 = vmatprep.subr.bf16.mxu0 0
      %14348 = vmatpush1.bf16.xpose.msra.mxu0 %v14053
      %14349 = vmatprep.subr.bf16.mxu0 0
      %14350 = vmatpush1.bf16.xpose.msra.mxu0 %v14056
      %14351 = vmatprep.subr.bf16.mxu0 0
      %14352 = vmatpush1.bf16.xpose.msra.mxu0 %v14059
      %14353 = vmatprep.subr.bf16.mxu0 0
      %14354 = vmatpush1.bf16.xpose.msra.mxu0 %v14062
      %14355 = vmatprep.subr.bf16.mxu0 0
      %14356 = vmatpush1.bf16.xpose.msra.mxu0 %v14065
      %14357 = vmatprep.subr.bf16.mxu0 0
      %14358 = vmatpush1.bf16.xpose.msra.mxu0 %v14068
      %14359 = vmatprep.subr.bf16.mxu0 0
      %14360 = vmatpush1.bf16.xpose.msra.mxu0 %v14071
      %14361 = vmatprep.subr.bf16.mxu0 0
      %14362 = vmatpush1.bf16.xpose.msra.mxu0 %v14074
      %14363 = vmatprep.subr.bf16.mxu0 0
      %14364 = vmatpush1.bf16.xpose.msra.mxu0 %v14077
      %14365 = vmatprep.subr.bf16.mxu0 0
      %14366 = vmatpush1.bf16.xpose.msra.mxu0 %v14080
      %14367 = vmatprep.mubr.bf16.mxu0 0
      %14368 = vmatmul.mubr.bf16.gmra.mrb[0].mxu0 %v13936
      %v14369 = vpop.f32.mrb[0].mxu0
      %v14370 = vadd.f32 %v14329, %v14369
      %v14371 = vpop.f32.mrb[0].mxu0
      %v14372 = vadd.f32 %v14331, %v14371
      %v14373 = vpop.f32.mrb[0].mxu0
      %v14374 = vpop.f32.mrb[0].mxu0
      %14375 = vdwg.mxu0
      %14376 = vmatprep.subr.bf16.mxu0 %v13864
      %14377 = vmatpush1.bf16.xpose.msra.mxu0 %v13352
      %14378 = vmatprep.subr.bf16.mxu0 %v13867
      %14379 = vmatpush1.bf16.xpose.msra.mxu0 %v13355
      %14380 = vmatprep.subr.bf16.mxu0 %v13870
      %14381 = vmatpush1.bf16.xpose.msra.mxu0 %v13358
      %14382 = vmatprep.subr.bf16.mxu0 %v13873
      %14383 = vmatpush1.bf16.xpose.msra.mxu0 %v13361
      %14384 = vmatprep.subr.bf16.mxu0 %v13876
      %14385 = vmatpush1.bf16.xpose.msra.mxu0 %v13364
      %14386 = vmatprep.subr.bf16.mxu0 %v13879
      %14387 = vmatpush1.bf16.xpose.msra.mxu0 %v13367
      %14388 = vmatprep.subr.bf16.mxu0 %v13882
      %14389 = vmatpush1.bf16.xpose.msra.mxu0 %v13370
      %14390 = vmatprep.subr.bf16.mxu0 %v13885
      %14391 = vmatpush1.bf16.xpose.msra.mxu0 %v13373
      %14392 = vmatprep.subr.bf16.mxu0 %v13888
      %14393 = vmatpush1.bf16.xpose.msra.mxu0 %v13376
      %14394 = vmatprep.subr.bf16.mxu0 %v13891
      %14395 = vmatpush1.bf16.xpose.msra.mxu0 %v13379
      %14396 = vmatprep.subr.bf16.mxu0 %v13894
      %14397 = vmatpush1.bf16.xpose.msra.mxu0 %v13382
      %14398 = vmatprep.subr.bf16.mxu0 %v13897
      %14399 = vmatpush1.bf16.xpose.msra.mxu0 %v13385
      %14400 = vmatprep.subr.bf16.mxu0 %v13900
      %14401 = vmatpush1.bf16.xpose.msra.mxu0 %v13388
      %14402 = vmatprep.subr.bf16.mxu0 %v13903
      %14403 = vmatpush1.bf16.xpose.msra.mxu0 %v13391
      %14404 = vmatprep.subr.bf16.mxu0 %v13906
      %14405 = vmatpush1.bf16.xpose.msra.mxu0 %v13394
      %14406 = vmatprep.subr.bf16.mxu0 %v13909
      %14407 = vmatpush1.bf16.xpose.msra.mxu0 %v13397
      %14408 = vmatprep.mubr.bf16.mxu0 %v13932
      %14409 = vmatmul.mubr.bf16.gmra.mrb[0].mxu0 %v13924
      %v14410 = vpop.f32.mrb[0].mxu0
      %v14411 = vadd.f32 %v13914, %v14410
      %v14412 = vpop.f32.mrb[0].mxu0
      %v14413 = vadd.f32 %v13914, %v14412
      %v14414 = vpop.f32.mrb[0].mxu0
      %v14415 = vpop.f32.mrb[0].mxu0
      %14416 = vdwg.mxu0
      %14417 = vmatprep.subr.bf16.mxu0 0
      %14418 = vmatpush1.bf16.xpose.msra.mxu0 %v14083
      %14419 = vmatprep.subr.bf16.mxu0 0
      %14420 = vmatpush1.bf16.xpose.msra.mxu0 %v14086
      %14421 = vmatprep.subr.bf16.mxu0 0
      %14422 = vmatpush1.bf16.xpose.msra.mxu0 %v14089
      %14423 = vmatprep.subr.bf16.mxu0 0
      %14424 = vmatpush1.bf16.xpose.msra.mxu0 %v14092
      %14425 = vmatprep.subr.bf16.mxu0 0
      %14426 = vmatpush1.bf16.xpose.msra.mxu0 %v14095
      %14427 = vmatprep.subr.bf16.mxu0 0
      %14428 = vmatpush1.bf16.xpose.msra.mxu0 %v14098
      %14429 = vmatprep.subr.bf16.mxu0 0
      %14430 = vmatpush1.bf16.xpose.msra.mxu0 %v14101
      %14431 = vmatprep.subr.bf16.mxu0 0
      %14432 = vmatpush1.bf16.xpose.msra.mxu0 %v14104
      %14433 = vmatprep.subr.bf16.mxu0 0
      %14434 = vmatpush1.bf16.xpose.msra.mxu0 %v14107
      %14435 = vmatprep.subr.bf16.mxu0 0
      %14436 = vmatpush1.bf16.xpose.msra.mxu0 %v14110
      %14437 = vmatprep.subr.bf16.mxu0 0
      %14438 = vmatpush1.bf16.xpose.msra.mxu0 %v14113
      %14439 = vmatprep.subr.bf16.mxu0 0
      %14440 = vmatpush1.bf16.xpose.msra.mxu0 %v14116
      %14441 = vmatprep.subr.bf16.mxu0 0
      %14442 = vmatpush1.bf16.xpose.msra.mxu0 %v14119
      %14443 = vmatprep.subr.bf16.mxu0 0
      %14444 = vmatpush1.bf16.xpose.msra.mxu0 %v14122
      %14445 = vmatprep.subr.bf16.mxu0 0
      %14446 = vmatpush1.bf16.xpose.msra.mxu0 %v14125
      %14447 = vmatprep.subr.bf16.mxu0 0
      %14448 = vmatpush1.bf16.xpose.msra.mxu0 %v14128
      %14449 = vmatprep.mubr.bf16.mxu0 0
      %14450 = vmatmul.mubr.bf16.gmra.mrb[0].mxu0 %v13936
      %v14451 = vpop.f32.mrb[0].mxu0
      %v14452 = vadd.f32 %v14411, %v14451
      %v14453 = vpop.f32.mrb[0].mxu0
      %v14454 = vadd.f32 %v14413, %v14453
      %v14455 = vpop.f32.mrb[0].mxu0
      %v14456 = vpop.f32.mrb[0].mxu0
      %14457 = vdwg.mxu0
      %v14466 = vcombine.low %v14206, %v14208
      %v14467 = vcombine.low %v14288, %v14290
      %v14468 = vcombine.low %v14370, %v14372
      %v14469 = vcombine.low %v14452, %v14454
      %14474 = vst [vmem:[%s278] sm:$0x77] %v14466
      %14475 = vst [vmem:[%s278 + $0x8] sm:$0x77] %v14467
      %14476 = vst [vmem:[%s278 + $0x10] sm:$0x77] %v14468
      %14477 = vst [vmem:[%s278 + $0x18] sm:$0x77] %v14469
      %p14478 = scmp.lt.s32.totalorder %s18, 3
      %s14479 = scalar_select %p14478, %s18, 3
      %s14480 = smul.addr %s14479, 8
      %s14481 = smul.addr %s14480, 4
      %s14482 = scalar_lea.vmem %s7, %s14481
      // Predicated region
      $region49: #{decoder_forward.1} parent=47 // pred_check
        %p14483 = pneg %p188
      $region50: #{decoder_forward.1} parent=47 // pred_check_branch
        %14485 = sbr.rel (%p14483) target = $region52
      $region51: #{decoder_forward.1} parent=47 // pred_region
        _
      $region52: #{decoder_forward.1} parent=47 // pred_fallthru
        _
    $region48: #{decoder_forward.1} parent=5 // pred_fallthru
      _
    %p14486 = scmp.le.s32.totalorder 2, %s13
    // Predicated region
    $region53: #{decoder_forward.1} parent=5 // pred_check
      %p14487 = pneg %p14486
    $region54: #{decoder_forward.1} parent=5 // pred_check_branch
      %14489 = sbr.rel (%p14487) target = $region56
    $region55: #{decoder_forward.1} parent=5 // pred_region
      %s14490 = ssub.s32 %s13, 2
      // Predicated region
      $region57: #{decoder_forward.1} parent=55 // pred_check
        %p14491 = pneg %p194
      $region58: #{decoder_forward.1} parent=55 // pred_check_branch
        %14493 = sbr.rel (%p14491) target = $region60
      $region59: #{decoder_forward.1} parent=55 // pred_region
        %p14494 = scmp.lt.s32.totalorder %s19, 3
        %s14495 = scalar_select %p14494, %s19, 3
        %s14496 = smul.addr %s14495, 8
        %s14497 = smul.addr %s14496, 4
        %s14498 = scalar_lea.vmem %s7, %s14497
      $region60: #{decoder_forward.1} parent=55 // pred_fallthru
        _
    $region56: #{decoder_forward.1} parent=5 // pred_fallthru
      _
  $region6: #{decoder_forward.1} parent=0 // loop_footer
    %s17 = sadd.s32 1, %s13
  $region7: #{decoder_forward.1} parent=0 // loop_footer_branch
    %12 = sbr.rel target = $region3
  $region8: #{decoder_forward.1} parent=0 // loop_exit
    _

</llo_original>
